<compile_context>
chip_gen: v6e
topology: v6e:2x2x1
jax: 0.10.0
libtpu: 0.0.40
codegen_flags: <defaults>
</compile_context>

<pallas_src>
import math
import functools

import jax
import jax.numpy as jnp
from jax.experimental import pallas as pl
from jax.experimental.pallas import tpu as pltpu

VMEM = pltpu.MemorySpace.VMEM


def _vmem_specs(n):
    return [pl.BlockSpec(memory_space=VMEM) for _ in range(n)]


def _sigmoid(x):
    # Exact identity sigmoid(x) = 0.5*(1+tanh(x/2)); tanh has a native EUP
    # lowering, avoiding a VALU divide chain.
    return 0.5 * (jnp.tanh(0.5 * x) + 1.0)


def _layernorm(x, g, b, eps):
    mu = jnp.mean(x, axis=-1, keepdims=True)
    var = jnp.mean((x - mu) ** 2, axis=-1, keepdims=True)
    return (x - mu) * jax.lax.rsqrt(var + eps) * g + b


def _softmax_lastdim(s):
    s = s - jnp.max(s, axis=-1, keepdims=True)
    p = jnp.exp(s)
    return p * pl.reciprocal(jnp.sum(p, axis=-1, keepdims=True), approx=True)


# ---------------------- fused TransformerEncoderLayer kernel -----------------

def _encoder_layer_kernel(x_ref, wqkv_ref, bqkv_ref, wo_ref, bo_ref,
                          w1_ref, b1_ref, w2_ref, b2_ref,
                          n1w_ref, n1b_ref, n2w_ref, n2b_ref,
                          wattn_ref, battn_ref,
                          y_ref, score_ref, *, nhead, eps):
    B, S, D = x_ref.shape
    dh = D // nhead
    scale = 1.0 / math.sqrt(dh)

    wqkv = wqkv_ref[...]; bqkv = bqkv_ref[...]
    wo = wo_ref[...]; bo = bo_ref[...]
    w1 = w1_ref[...]; b1 = b1_ref[...]
    w2 = w2_ref[...]; b2 = b2_ref[...]
    n1w = n1w_ref[...]; n1b = n1b_ref[...]
    n2w = n2w_ref[...]; n2b = n2b_ref[...]
    wattn = wattn_ref[...]; battn = battn_ref[...]

    for b in range(B):                                              # B=2, unrolled
        xb = x_ref[b]                                               # [S, D]
        qkv = jnp.dot(xb, wqkv, preferred_element_type=jnp.float32) + bqkv
        q = qkv[:, 0 * D:1 * D]
        k = qkv[:, 1 * D:2 * D]
        v = qkv[:, 2 * D:3 * D]
        heads = []
        for h in range(nhead):                                      # unrolled
            qh = q[:, h * dh:(h + 1) * dh]
            kh = k[:, h * dh:(h + 1) * dh]
            vh = v[:, h * dh:(h + 1) * dh]
            # q @ k^T via dot_general (rhs contracting dim 1), scale the scores.
            s = jax.lax.dot_general(qh, kh, (((1,), (1,)), ((), ())),
                                    preferred_element_type=jnp.float32) * scale
            p = _softmax_lastdim(s)
            heads.append(jnp.dot(p, vh, preferred_element_type=jnp.float32))
        attn = jnp.concatenate(heads, axis=-1)                      # [S, D]
        attn = jnp.dot(attn, wo, preferred_element_type=jnp.float32) + bo
        xb = _layernorm(xb + attn, n1w, n1b, eps)                   # post-norm
        ff = jnp.maximum(jnp.dot(xb, w1, preferred_element_type=jnp.float32) + b1, 0.0)
        ff = jnp.dot(ff, w2, preferred_element_type=jnp.float32) + b2
        yb = _layernorm(xb + ff, n2w, n2b, eps)
        y_ref[b] = yb
        # attn-Linear score for the decoder (step independent -> hoisted here).
        score_ref[b] = jnp.dot(yb, wattn, preferred_element_type=jnp.float32) + battn


def encoder_layer(x_bm, p, attn_w, attn_b, nhead):
    B, S, D = x_bm.shape
    kern = functools.partial(_encoder_layer_kernel, nhead=nhead, eps=1e-5)
    return pl.pallas_call(
        kern,
        out_shape=(jax.ShapeDtypeStruct((B, S, D), jnp.float32),
                   jax.ShapeDtypeStruct((B, S, D), jnp.float32)),
        in_specs=_vmem_specs(15),
        out_specs=(pl.BlockSpec(memory_space=VMEM),
                   pl.BlockSpec(memory_space=VMEM)),
    )(x_bm, p['in_proj_w'], p['in_proj_b'], p['out_proj_w'], p['out_proj_b'],
      p['lin1_w'], p['lin1_b'], p['lin2_w'], p['lin2_b'],
      p['norm1_w'], p['norm1_b'], p['norm2_w'], p['norm2_b'],
      attn_w, attn_b)


# --------------------------- fused decoder kernel ----------------------------

def _decoder_kernel(dec_ref, h0_ref, c0_ref,
                    wih1_ref, whh1_ref, b1_ref,
                    wih2_ref, whh2_ref, b2_ref,
                    enc1_ref, score1_ref, enc2_ref, score2_ref,
                    u_ref, v_ref, mask_ref,
                    wout_ref, bout_ref,
                    out_ref):
    T, B, D = dec_ref.shape
    S = score1_ref.shape[1]

    h0 = h0_ref[...]
    c0 = c0_ref[...]
    wih1 = wih1_ref[...]; whh1 = whh1_ref[...]; b1 = b1_ref[...]
    wih2 = wih2_ref[...]; whh2 = whh2_ref[...]; b2 = b2_ref[...]
    enc1 = enc1_ref[...]; enc2 = enc2_ref[...]                      # [B*S, D]
    sc1 = [score1_ref[b] for b in range(B)]                         # each [S, D]
    sc2 = [score2_ref[b] for b in range(B)]
    u = u_ref[...]                                                  # [S, S*B]
    vsel = v_ref[...]                                               # [B, S*B]
    mask = mask_ref[...]                                            # [B, S*B]
    wout = wout_ref[...]; bout = bout_ref[...]

    def lstm_step(x, h, c, wih, whh, bias):
        gates = (jnp.dot(x, wih, preferred_element_type=jnp.float32)
                 + jnp.dot(h, whh, preferred_element_type=jnp.float32) + bias)
        i = _sigmoid(gates[:, 0 * D:1 * D])
        f = _sigmoid(gates[:, 1 * D:2 * D])
        g = jnp.tanh(gates[:, 2 * D:3 * D])
        o = _sigmoid(gates[:, 3 * D:4 * D])
        c_new = f * c + i * g
        return o * jnp.tanh(c_new), c_new

    def attn_context(h, score_rows, enc_flat):
        # raw[s, b] = <h[b], attn(enc[s, b])>; softmax over s per batch column b.
        cols = [jnp.sum(score_rows[b] * h[b:b + 1, :], axis=-1, keepdims=True)
                for b in range(B)]                                  # [S, 1] each
        raw = jnp.concatenate(cols, axis=1)                         # [S, B]
        raw = raw - jnp.max(raw, axis=0, keepdims=True)
        e = jnp.exp(raw)
        a = e * pl.reciprocal(jnp.sum(e, axis=0, keepdims=True), approx=True)
        # Row-major flatten a_flat[k] = a[k//B, k%B] — reproduces torch's
        # softmax([S,B]).view(B,1,S) reinterpretation — built with a matmul
        # against constant selection matrices + a masked column sum so only
        # tile-friendly ops are used.
        a_flat = jnp.sum(u * jnp.dot(a, vsel, preferred_element_type=jnp.float32),
                         axis=0, keepdims=True)                     # [1, S*B]
        w = mask * a_flat                                           # [B, S*B]
        # context[b] = sum over this batch's S flat rows of the batch-major
        # flattened encoder output -> one MXU matmul.
        return jnp.dot(w, enc_flat, preferred_element_type=jnp.float32)   # [B, D]

    # ---- decoder layer 1: LSTM(d_model) + attention over enc1 ----
    h, c = h0, c0
    layer1 = []
    for t in range(T):                                              # T=6, unrolled
        h, c = lstm_step(dec_ref[t], h, c, wih1, whh1, b1)
        layer1.append(jnp.concatenate([h, attn_context(h, sc1, enc1)], axis=1))

    # ---- decoder layer 2: LSTM(2*d_model) + attention over enc2 ----
    h, c = h0, c0
    feats = []
    for t in range(T):
        h, c = lstm_step(layer1[t], h, c, wih2, whh2, b2)
        feats.append(jnp.concatenate([h, attn_context(h, sc2, enc2)], axis=1))

    # ---- batched output projection + log-softmax (single matmul, [T*B, 2D]) ----
    feat = jnp.concatenate(feats, axis=0)                           # [T*B, 2D]
    logits = jnp.dot(feat, wout, preferred_element_type=jnp.float32) + bout
    z = logits - jnp.max(logits, axis=-1, keepdims=True)
    out_ref[...] = z - jnp.log(jnp.sum(jnp.exp(z), axis=-1, keepdims=True))


def decoder_forward(dec_in, h0, c0, p, enc1_flat, score1_bm, enc2_flat, score2_bm,
                    u, vsel, mask):
    T, B, _ = dec_in.shape
    V = p['out_w'].shape[1]
    lstm1_b = p['lstm1_b_ih'] + p['lstm1_b_hh']
    lstm2_b = p['lstm2_b_ih'] + p['lstm2_b_hh']
    return pl.pallas_call(
        _decoder_kernel,
        out_shape=jax.ShapeDtypeStruct((T * B, V), jnp.float32),
        in_specs=_vmem_specs(18),
        out_specs=pl.BlockSpec(memory_space=VMEM),
    )(dec_in, h0, c0,
      p['lstm1_w_ih'], p['lstm1_w_hh'], lstm1_b,
      p['lstm2_w_ih'], p['lstm2_w_hh'], lstm2_b,
      enc1_flat, score1_bm, enc2_flat, score2_bm,
      u, vsel, mask,
      p['out_w'], p['out_b'])


# ------------------------------- model glue ----------------------------------

def positional_encoding_table(max_len, d_model):
    position = jnp.arange(max_len, dtype=jnp.float32)[:, None]
    div_term = jnp.exp(jnp.arange(0, d_model, 2, dtype=jnp.float32)
                       * (-math.log(10000.0) / d_model))
    pe = jnp.zeros((max_len, d_model), dtype=jnp.float32)
    pe = pe.at[:, 0::2].set(jnp.sin(position * div_term))
    pe = pe.at[:, 1::2].set(jnp.cos(position * div_term))
    return pe


def attention_forward(src_ids, tgt_ids, hidden, cell, params, nhead):
    S, B = src_ids.shape
    T = tgt_ids.shape[0]
    D = params['tgt_emb'].shape[1]
    V = params['out_w'].shape[1]

    # Embedding + positional encoding (tiny host-side gathers; PE table stays out
    # of the kernels).  TODO(synk): dropout layers (p given, behave as eval/p=0)
    # and .to('cuda') moves are no-ops here.
    src_x = params['src_emb'][src_ids] + params['pe'][:S][:, None, :]     # [S, B, D]
    dec_in = params['tgt_emb'][tgt_ids] + params['pe'][:T][:, None, :]    # [T, B, D]

    # Encoder runs batch-major so kernels only index the leading axis.
    x_bm = jnp.transpose(src_x, (1, 0, 2))                                # [B, S, D]
    enc1_bm, score1_bm = encoder_layer(x_bm, params['enc1'],
                                       params['attn_w'], params['attn_b'], nhead)
    enc2_bm, score2_bm = encoder_layer(enc1_bm, params['enc2'],
                                       params['attn_w'], params['attn_b'], nhead)

    # Batch-major row flatten: enc_flat[b*S + s] = enc[s, b, :] (free bitcast).
    enc1_flat = enc1_bm.reshape(B * S, D)
    enc2_flat = enc2_bm.reshape(B * S, D)

    # Constant selection matrices for the in-kernel flatten / scramble.
    k_idx = jnp.arange(S * B)
    u = (jnp.arange(S)[:, None] == (k_idx[None, :] // B)).astype(jnp.float32)     # [S, S*B]
    vsel = (jnp.arange(B)[:, None] == (k_idx[None, :] % B)).astype(jnp.float32)   # [B, S*B]
    mask = ((k_idx[None, :] // S) == jnp.arange(B)[:, None]).astype(jnp.float32)  # [B, S*B]

    logp = decoder_forward(dec_in, hidden[0], cell[0], params,
                           enc1_flat, score1_bm, enc2_flat, score2_bm,
                           u, vsel, mask)
    return logp.reshape(T, B, V)


def init_params(key, src_vocab, tgt_vocab, d_model, nhead, dim_ffd, max_len=5000):
    # NOTE: all Linear / LSTM weights are stored PRE-TRANSPOSED ([in, out]) so no
    # per-call transposes are needed; biases are stored as [1, N] rows.
    keys = iter(jax.random.split(key, 64))

    def rnd(shape, scale=0.1):
        return jax.random.normal(next(keys), shape, dtype=jnp.float32) * scale

    def enc_layer():
        return dict(
            in_proj_w=rnd((d_model, 3 * d_model)), in_proj_b=rnd((1, 3 * d_model)),
            out_proj_w=rnd((d_model, d_model)), out_proj_b=rnd((1, d_model)),
            lin1_w=rnd((d_model, dim_ffd)), lin1_b=rnd((1, dim_ffd)),
            lin2_w=rnd((dim_ffd, d_model)), lin2_b=rnd((1, d_model)),
            norm1_w=jnp.ones((1, d_model), jnp.float32),
            norm1_b=jnp.zeros((1, d_model), jnp.float32),
            norm2_w=jnp.ones((1, d_model), jnp.float32),
            norm2_b=jnp.zeros((1, d_model), jnp.float32),
        )

    return dict(
        pe=positional_encoding_table(max_len, d_model),
        src_emb=rnd((src_vocab, d_model), 1.0),
        tgt_emb=rnd((tgt_vocab, d_model), 1.0),
        enc1=enc_layer(),
        enc2=enc_layer(),
        lstm1_w_ih=rnd((d_model, 4 * d_model)), lstm1_w_hh=rnd((d_model, 4 * d_model)),
        lstm1_b_ih=rnd((1, 4 * d_model)), lstm1_b_hh=rnd((1, 4 * d_model)),
        lstm2_w_ih=rnd((2 * d_model, 4 * d_model)), lstm2_w_hh=rnd((d_model, 4 * d_model)),
        lstm2_b_ih=rnd((1, 4 * d_model)), lstm2_b_hh=rnd((1, 4 * d_model)),
        attn_w=rnd((d_model, d_model)), attn_b=rnd((1, d_model)),
        out_w=rnd((2 * d_model, tgt_vocab)), out_b=rnd((1, tgt_vocab)),
    )


if __name__ == "__main__":
    src_vocab, tgt_vocab = 11, 13
    d_model, nhead, dim_ffd = 32, 4, 64
    batch = 2
    src_len, tgt_len = 5, 6

    key = jax.random.PRNGKey(0)
    kp, ks, kt, kh, kc = jax.random.split(key, 5)
    params = init_params(kp, src_vocab, tgt_vocab, d_model, nhead, dim_ffd)

    src = jax.random.randint(ks, (src_len, batch), 0, src_vocab)        # [S, B] ids
    tgt = jax.random.randint(kt, (tgt_len, batch), 0, tgt_vocab)        # [T, B] ids
    hidden = jax.random.normal(kh, (1, batch, d_model), dtype=jnp.float32)
    cell = jax.random.normal(kc, (1, batch, d_model), dtype=jnp.float32)

    fwd = jax.jit(attention_forward, static_argnames=("nhead",))
    out = fwd(src, tgt, hidden, cell, params, nhead=nhead)
    out = jax.block_until_ready(out)

    assert out.shape == (tgt_len, batch, tgt_vocab)
    assert bool(jnp.all(jnp.isfinite(out)))
    print("KERNEL_OK")
</pallas_src>

<mosaic_0001>
module attributes {stable_mosaic.version = 11 : i64} {
  func.func @_encoder_layer_kernel(%arg0: memref<2x5x32xf32, #tpu.memory_space<vmem>>, %arg1: memref<32x96xf32, #tpu.memory_space<vmem>>, %arg2: memref<1x96xf32, #tpu.memory_space<vmem>>, %arg3: memref<32x32xf32, #tpu.memory_space<vmem>>, %arg4: memref<1x32xf32, #tpu.memory_space<vmem>>, %arg5: memref<32x64xf32, #tpu.memory_space<vmem>>, %arg6: memref<1x64xf32, #tpu.memory_space<vmem>>, %arg7: memref<64x32xf32, #tpu.memory_space<vmem>>, %arg8: memref<1x32xf32, #tpu.memory_space<vmem>>, %arg9: memref<1x32xf32, #tpu.memory_space<vmem>>, %arg10: memref<1x32xf32, #tpu.memory_space<vmem>>, %arg11: memref<1x32xf32, #tpu.memory_space<vmem>>, %arg12: memref<1x32xf32, #tpu.memory_space<vmem>>, %arg13: memref<32x32xf32, #tpu.memory_space<vmem>>, %arg14: memref<1x32xf32, #tpu.memory_space<vmem>>, %arg15: memref<2x5x32xf32, #tpu.memory_space<vmem>>, %arg16: memref<2x5x32xf32, #tpu.memory_space<vmem>>) attributes {dimension_semantics = [], scalar_prefetch = 0 : i64, scratch_operands = 0 : i64, tpu.core_type = #tpu.core_type<tc>} {
    %c0 = arith.constant 0 : index
    %c0_0 = arith.constant 0 : index
    %0 = vector.load %arg1[%c0, %c0_0] : memref<32x96xf32, #tpu.memory_space<vmem>>, vector<32x96xf32>
    %c0_1 = arith.constant 0 : index
    %c0_2 = arith.constant 0 : index
    %1 = vector.load %arg2[%c0_1, %c0_2] : memref<1x96xf32, #tpu.memory_space<vmem>>, vector<1x96xf32>
    %c0_3 = arith.constant 0 : index
    %c0_4 = arith.constant 0 : index
    %2 = vector.load %arg3[%c0_3, %c0_4] : memref<32x32xf32, #tpu.memory_space<vmem>>, vector<32x32xf32>
    %c0_5 = arith.constant 0 : index
    %c0_6 = arith.constant 0 : index
    %3 = vector.load %arg4[%c0_5, %c0_6] : memref<1x32xf32, #tpu.memory_space<vmem>>, vector<1x32xf32>
    %c0_7 = arith.constant 0 : index
    %c0_8 = arith.constant 0 : index
    %4 = vector.load %arg5[%c0_7, %c0_8] : memref<32x64xf32, #tpu.memory_space<vmem>>, vector<32x64xf32>
    %c0_9 = arith.constant 0 : index
    %c0_10 = arith.constant 0 : index
    %5 = vector.load %arg6[%c0_9, %c0_10] : memref<1x64xf32, #tpu.memory_space<vmem>>, vector<1x64xf32>
    %c0_11 = arith.constant 0 : index
    %c0_12 = arith.constant 0 : index
    %6 = vector.load %arg7[%c0_11, %c0_12] : memref<64x32xf32, #tpu.memory_space<vmem>>, vector<64x32xf32>
    %c0_13 = arith.constant 0 : index
    %c0_14 = arith.constant 0 : index
    %7 = vector.load %arg8[%c0_13, %c0_14] : memref<1x32xf32, #tpu.memory_space<vmem>>, vector<1x32xf32>
    %c0_15 = arith.constant 0 : index
    %c0_16 = arith.constant 0 : index
    %8 = vector.load %arg9[%c0_15, %c0_16] : memref<1x32xf32, #tpu.memory_space<vmem>>, vector<1x32xf32>
    %c0_17 = arith.constant 0 : index
    %c0_18 = arith.constant 0 : index
    %9 = vector.load %arg10[%c0_17, %c0_18] : memref<1x32xf32, #tpu.memory_space<vmem>>, vector<1x32xf32>
    %c0_19 = arith.constant 0 : index
    %c0_20 = arith.constant 0 : index
    %10 = vector.load %arg11[%c0_19, %c0_20] : memref<1x32xf32, #tpu.memory_space<vmem>>, vector<1x32xf32>
    %c0_21 = arith.constant 0 : index
    %c0_22 = arith.constant 0 : index
    %11 = vector.load %arg12[%c0_21, %c0_22] : memref<1x32xf32, #tpu.memory_space<vmem>>, vector<1x32xf32>
    %c0_23 = arith.constant 0 : index
    %c0_24 = arith.constant 0 : index
    %12 = vector.load %arg13[%c0_23, %c0_24] : memref<32x32xf32, #tpu.memory_space<vmem>>, vector<32x32xf32>
    %c0_25 = arith.constant 0 : index
    %c0_26 = arith.constant 0 : index
    %13 = vector.load %arg14[%c0_25, %c0_26] : memref<1x32xf32, #tpu.memory_space<vmem>>, vector<1x32xf32>
    %c0_27 = arith.constant 0 : index
    %c0_28 = arith.constant 0 : index
    %c0_29 = arith.constant 0 : index
    %14 = vector.load %arg0[%c0_27, %c0_28, %c0_29] : memref<2x5x32xf32, #tpu.memory_space<vmem>>, vector<1x5x32xf32>
    %15 = vector.shape_cast %14 : vector<1x5x32xf32> to vector<5x32xf32>
    %cst = arith.constant dense<0.000000e+00> : vector<5x96xf32>
    %16 = tpu.matmul %15, %0, %cst {dimension_numbers = #tpu.dot_dimension_numbers<[1], [0], [0], [1], [0, 0, 1, 1], [], []>} : vector<5x32xf32>, vector<32x96xf32>, vector<5x96xf32> -> vector<5x96xf32>
    %17 = vector.broadcast %1 : vector<1x96xf32> to vector<5x96xf32>
    %18 = arith.addf %16, %17 : vector<5x96xf32>
    %19 = vector.extract_strided_slice %18 {offsets = [0, 0], sizes = [5, 32], strides = [1, 1]} : vector<5x96xf32> to vector<5x32xf32>
    %20 = vector.extract_strided_slice %18 {offsets = [0, 32], sizes = [5, 32], strides = [1, 1]} : vector<5x96xf32> to vector<5x32xf32>
    %21 = vector.extract_strided_slice %18 {offsets = [0, 64], sizes = [5, 32], strides = [1, 1]} : vector<5x96xf32> to vector<5x32xf32>
    %22 = vector.extract_strided_slice %19 {offsets = [0, 0], sizes = [5, 8], strides = [1, 1]} : vector<5x32xf32> to vector<5x8xf32>
    %23 = vector.extract_strided_slice %20 {offsets = [0, 0], sizes = [5, 8], strides = [1, 1]} : vector<5x32xf32> to vector<5x8xf32>
    %24 = vector.extract_strided_slice %21 {offsets = [0, 0], sizes = [5, 8], strides = [1, 1]} : vector<5x32xf32> to vector<5x8xf32>
    %cst_30 = arith.constant dense<0.000000e+00> : vector<5x5xf32>
    %25 = tpu.matmul %22, %23, %cst_30 {dimension_numbers = #tpu.dot_dimension_numbers<[1], [1], [0], [0], [0, 0, 1, 0], [], []>} : vector<5x8xf32>, vector<5x8xf32>, vector<5x5xf32> -> vector<5x5xf32>
    %cst_31 = arith.constant 0.353553385 : f32
    %26 = vector.broadcast %cst_31 : f32 to vector<5x5xf32>
    %27 = arith.mulf %25, %26 : vector<5x5xf32>
    %cst_32 = arith.constant dense<0xFF800000> : vector<5xf32>
    %28 = vector.multi_reduction <maximumf>, %27, %cst_32 [1] : vector<5x5xf32> to vector<5xf32>
    %29 = vector.shape_cast %28 : vector<5xf32> to vector<5x1xf32>
    %30 = vector.broadcast %29 : vector<5x1xf32> to vector<5x5xf32>
    %31 = arith.subf %27, %30 : vector<5x5xf32>
    %32 = math.exp %31 : vector<5x5xf32>
    %cst_33 = arith.constant dense<0.000000e+00> : vector<5xf32>
    %33 = vector.multi_reduction <add>, %32, %cst_33 [1] : vector<5x5xf32> to vector<5xf32>
    %34 = vector.shape_cast %33 : vector<5xf32> to vector<5x1xf32>
    %35 = tpu.reciprocal %34 {approx = true} : vector<5x1xf32> -> vector<5x1xf32>
    %36 = vector.broadcast %35 : vector<5x1xf32> to vector<5x5xf32>
    %37 = arith.mulf %32, %36 : vector<5x5xf32>
    %cst_34 = arith.constant dense<0.000000e+00> : vector<5x8xf32>
    %38 = tpu.matmul %37, %24, %cst_34 {dimension_numbers = #tpu.dot_dimension_numbers<[1], [0], [0], [1], [0, 0, 1, 1], [], []>} : vector<5x5xf32>, vector<5x8xf32>, vector<5x8xf32> -> vector<5x8xf32>
    %39 = vector.extract_strided_slice %19 {offsets = [0, 8], sizes = [5, 8], strides = [1, 1]} : vector<5x32xf32> to vector<5x8xf32>
    %40 = vector.extract_strided_slice %20 {offsets = [0, 8], sizes = [5, 8], strides = [1, 1]} : vector<5x32xf32> to vector<5x8xf32>
    %41 = vector.extract_strided_slice %21 {offsets = [0, 8], sizes = [5, 8], strides = [1, 1]} : vector<5x32xf32> to vector<5x8xf32>
    %cst_35 = arith.constant dense<0.000000e+00> : vector<5x5xf32>
    %42 = tpu.matmul %39, %40, %cst_35 {dimension_numbers = #tpu.dot_dimension_numbers<[1], [1], [0], [0], [0, 0, 1, 0], [], []>} : vector<5x8xf32>, vector<5x8xf32>, vector<5x5xf32> -> vector<5x5xf32>
    %cst_36 = arith.constant 0.353553385 : f32
    %43 = vector.broadcast %cst_36 : f32 to vector<5x5xf32>
    %44 = arith.mulf %42, %43 : vector<5x5xf32>
    %cst_37 = arith.constant dense<0xFF800000> : vector<5xf32>
    %45 = vector.multi_reduction <maximumf>, %44, %cst_37 [1] : vector<5x5xf32> to vector<5xf32>
    %46 = vector.shape_cast %45 : vector<5xf32> to vector<5x1xf32>
    %47 = vector.broadcast %46 : vector<5x1xf32> to vector<5x5xf32>
    %48 = arith.subf %44, %47 : vector<5x5xf32>
    %49 = math.exp %48 : vector<5x5xf32>
    %cst_38 = arith.constant dense<0.000000e+00> : vector<5xf32>
    %50 = vector.multi_reduction <add>, %49, %cst_38 [1] : vector<5x5xf32> to vector<5xf32>
    %51 = vector.shape_cast %50 : vector<5xf32> to vector<5x1xf32>
    %52 = tpu.reciprocal %51 {approx = true} : vector<5x1xf32> -> vector<5x1xf32>
    %53 = vector.broadcast %52 : vector<5x1xf32> to vector<5x5xf32>
    %54 = arith.mulf %49, %53 : vector<5x5xf32>
    %cst_39 = arith.constant dense<0.000000e+00> : vector<5x8xf32>
    %55 = tpu.matmul %54, %41, %cst_39 {dimension_numbers = #tpu.dot_dimension_numbers<[1], [0], [0], [1], [0, 0, 1, 1], [], []>} : vector<5x5xf32>, vector<5x8xf32>, vector<5x8xf32> -> vector<5x8xf32>
    %56 = vector.extract_strided_slice %19 {offsets = [0, 16], sizes = [5, 8], strides = [1, 1]} : vector<5x32xf32> to vector<5x8xf32>
    %57 = vector.extract_strided_slice %20 {offsets = [0, 16], sizes = [5, 8], strides = [1, 1]} : vector<5x32xf32> to vector<5x8xf32>
    %58 = vector.extract_strided_slice %21 {offsets = [0, 16], sizes = [5, 8], strides = [1, 1]} : vector<5x32xf32> to vector<5x8xf32>
    %cst_40 = arith.constant dense<0.000000e+00> : vector<5x5xf32>
    %59 = tpu.matmul %56, %57, %cst_40 {dimension_numbers = #tpu.dot_dimension_numbers<[1], [1], [0], [0], [0, 0, 1, 0], [], []>} : vector<5x8xf32>, vector<5x8xf32>, vector<5x5xf32> -> vector<5x5xf32>
    %cst_41 = arith.constant 0.353553385 : f32
    %60 = vector.broadcast %cst_41 : f32 to vector<5x5xf32>
    %61 = arith.mulf %59, %60 : vector<5x5xf32>
    %cst_42 = arith.constant dense<0xFF800000> : vector<5xf32>
    %62 = vector.multi_reduction <maximumf>, %61, %cst_42 [1] : vector<5x5xf32> to vector<5xf32>
    %63 = vector.shape_cast %62 : vector<5xf32> to vector<5x1xf32>
    %64 = vector.broadcast %63 : vector<5x1xf32> to vector<5x5xf32>
    %65 = arith.subf %61, %64 : vector<5x5xf32>
    %66 = math.exp %65 : vector<5x5xf32>
    %cst_43 = arith.constant dense<0.000000e+00> : vector<5xf32>
    %67 = vector.multi_reduction <add>, %66, %cst_43 [1] : vector<5x5xf32> to vector<5xf32>
    %68 = vector.shape_cast %67 : vector<5xf32> to vector<5x1xf32>
    %69 = tpu.reciprocal %68 {approx = true} : vector<5x1xf32> -> vector<5x1xf32>
    %70 = vector.broadcast %69 : vector<5x1xf32> to vector<5x5xf32>
    %71 = arith.mulf %66, %70 : vector<5x5xf32>
    %cst_44 = arith.constant dense<0.000000e+00> : vector<5x8xf32>
    %72 = tpu.matmul %71, %58, %cst_44 {dimension_numbers = #tpu.dot_dimension_numbers<[1], [0], [0], [1], [0, 0, 1, 1], [], []>} : vector<5x5xf32>, vector<5x8xf32>, vector<5x8xf32> -> vector<5x8xf32>
    %73 = vector.extract_strided_slice %19 {offsets = [0, 24], sizes = [5, 8], strides = [1, 1]} : vector<5x32xf32> to vector<5x8xf32>
    %74 = vector.extract_strided_slice %20 {offsets = [0, 24], sizes = [5, 8], strides = [1, 1]} : vector<5x32xf32> to vector<5x8xf32>
    %75 = vector.extract_strided_slice %21 {offsets = [0, 24], sizes = [5, 8], strides = [1, 1]} : vector<5x32xf32> to vector<5x8xf32>
    %cst_45 = arith.constant dense<0.000000e+00> : vector<5x5xf32>
    %76 = tpu.matmul %73, %74, %cst_45 {dimension_numbers = #tpu.dot_dimension_numbers<[1], [1], [0], [0], [0, 0, 1, 0], [], []>} : vector<5x8xf32>, vector<5x8xf32>, vector<5x5xf32> -> vector<5x5xf32>
    %cst_46 = arith.constant 0.353553385 : f32
    %77 = vector.broadcast %cst_46 : f32 to vector<5x5xf32>
    %78 = arith.mulf %76, %77 : vector<5x5xf32>
    %cst_47 = arith.constant dense<0xFF800000> : vector<5xf32>
    %79 = vector.multi_reduction <maximumf>, %78, %cst_47 [1] : vector<5x5xf32> to vector<5xf32>
    %80 = vector.shape_cast %79 : vector<5xf32> to vector<5x1xf32>
    %81 = vector.broadcast %80 : vector<5x1xf32> to vector<5x5xf32>
    %82 = arith.subf %78, %81 : vector<5x5xf32>
    %83 = math.exp %82 : vector<5x5xf32>
    %cst_48 = arith.constant dense<0.000000e+00> : vector<5xf32>
    %84 = vector.multi_reduction <add>, %83, %cst_48 [1] : vector<5x5xf32> to vector<5xf32>
    %85 = vector.shape_cast %84 : vector<5xf32> to vector<5x1xf32>
    %86 = tpu.reciprocal %85 {approx = true} : vector<5x1xf32> -> vector<5x1xf32>
    %87 = vector.broadcast %86 : vector<5x1xf32> to vector<5x5xf32>
    %88 = arith.mulf %83, %87 : vector<5x5xf32>
    %cst_49 = arith.constant dense<0.000000e+00> : vector<5x8xf32>
    %89 = tpu.matmul %88, %75, %cst_49 {dimension_numbers = #tpu.dot_dimension_numbers<[1], [0], [0], [1], [0, 0, 1, 1], [], []>} : vector<5x5xf32>, vector<5x8xf32>, vector<5x8xf32> -> vector<5x8xf32>
    %90 = tpu.concatenate %38, %55, %72, %89 in 1 : vector<5x8xf32>, vector<5x8xf32>, vector<5x8xf32>, vector<5x8xf32> -> vector<5x32xf32>
    %cst_50 = arith.constant dense<0.000000e+00> : vector<5x32xf32>
    %91 = tpu.matmul %90, %2, %cst_50 {dimension_numbers = #tpu.dot_dimension_numbers<[1], [0], [0], [1], [0, 0, 1, 1], [], []>} : vector<5x32xf32>, vector<32x32xf32>, vector<5x32xf32> -> vector<5x32xf32>
    %92 = vector.broadcast %3 : vector<1x32xf32> to vector<5x32xf32>
    %93 = arith.addf %91, %92 : vector<5x32xf32>
    %94 = arith.addf %15, %93 : vector<5x32xf32>
    %cst_51 = arith.constant dense<0.000000e+00> : vector<5xf32>
    %95 = vector.multi_reduction <add>, %94, %cst_51 [1] : vector<5x32xf32> to vector<5xf32>
    %96 = vector.shape_cast %95 : vector<5xf32> to vector<5x1xf32>
    %cst_52 = arith.constant 3.200000e+01 : f32
    %97 = vector.broadcast %cst_52 : f32 to vector<5x1xf32>
    %98 = arith.divf %96, %97 : vector<5x1xf32>
    %99 = vector.broadcast %98 : vector<5x1xf32> to vector<5x32xf32>
    %100 = arith.subf %94, %99 : vector<5x32xf32>
    %101 = arith.mulf %100, %100 : vector<5x32xf32>
    %cst_53 = arith.constant dense<0.000000e+00> : vector<5xf32>
    %102 = vector.multi_reduction <add>, %101, %cst_53 [1] : vector<5x32xf32> to vector<5xf32>
    %103 = vector.shape_cast %102 : vector<5xf32> to vector<5x1xf32>
    %cst_54 = arith.constant 3.200000e+01 : f32
    %104 = vector.broadcast %cst_54 : f32 to vector<5x1xf32>
    %105 = arith.divf %103, %104 : vector<5x1xf32>
    %106 = vector.broadcast %98 : vector<5x1xf32> to vector<5x32xf32>
    %107 = arith.subf %94, %106 : vector<5x32xf32>
    %cst_55 = arith.constant 9.99999974E-6 : f32
    %108 = vector.broadcast %cst_55 : f32 to vector<5x1xf32>
    %109 = arith.addf %105, %108 : vector<5x1xf32>
    %110 = math.rsqrt %109 : vector<5x1xf32>
    %111 = vector.broadcast %110 : vector<5x1xf32> to vector<5x32xf32>
    %112 = arith.mulf %107, %111 : vector<5x32xf32>
    %113 = vector.broadcast %8 : vector<1x32xf32> to vector<5x32xf32>
    %114 = arith.mulf %112, %113 : vector<5x32xf32>
    %115 = vector.broadcast %9 : vector<1x32xf32> to vector<5x32xf32>
    %116 = arith.addf %114, %115 : vector<5x32xf32>
    %cst_56 = arith.constant dense<0.000000e+00> : vector<5x64xf32>
    %117 = tpu.matmul %116, %4, %cst_56 {dimension_numbers = #tpu.dot_dimension_numbers<[1], [0], [0], [1], [0, 0, 1, 1], [], []>} : vector<5x32xf32>, vector<32x64xf32>, vector<5x64xf32> -> vector<5x64xf32>
    %118 = vector.broadcast %5 : vector<1x64xf32> to vector<5x64xf32>
    %119 = arith.addf %117, %118 : vector<5x64xf32>
    %cst_57 = arith.constant 0.000000e+00 : f32
    %120 = vector.broadcast %cst_57 : f32 to vector<5x64xf32>
    %121 = arith.maximumf %119, %120 : vector<5x64xf32>
    %cst_58 = arith.constant dense<0.000000e+00> : vector<5x32xf32>
    %122 = tpu.matmul %121, %6, %cst_58 {dimension_numbers = #tpu.dot_dimension_numbers<[1], [0], [0], [1], [0, 0, 1, 1], [], []>} : vector<5x64xf32>, vector<64x32xf32>, vector<5x32xf32> -> vector<5x32xf32>
    %123 = vector.broadcast %7 : vector<1x32xf32> to vector<5x32xf32>
    %124 = arith.addf %122, %123 : vector<5x32xf32>
    %125 = arith.addf %116, %124 : vector<5x32xf32>
    %cst_59 = arith.constant dense<0.000000e+00> : vector<5xf32>
    %126 = vector.multi_reduction <add>, %125, %cst_59 [1] : vector<5x32xf32> to vector<5xf32>
    %127 = vector.shape_cast %126 : vector<5xf32> to vector<5x1xf32>
    %cst_60 = arith.constant 3.200000e+01 : f32
    %128 = vector.broadcast %cst_60 : f32 to vector<5x1xf32>
    %129 = arith.divf %127, %128 : vector<5x1xf32>
    %130 = vector.broadcast %129 : vector<5x1xf32> to vector<5x32xf32>
    %131 = arith.subf %125, %130 : vector<5x32xf32>
    %132 = arith.mulf %131, %131 : vector<5x32xf32>
    %cst_61 = arith.constant dense<0.000000e+00> : vector<5xf32>
    %133 = vector.multi_reduction <add>, %132, %cst_61 [1] : vector<5x32xf32> to vector<5xf32>
    %134 = vector.shape_cast %133 : vector<5xf32> to vector<5x1xf32>
    %cst_62 = arith.constant 3.200000e+01 : f32
    %135 = vector.broadcast %cst_62 : f32 to vector<5x1xf32>
    %136 = arith.divf %134, %135 : vector<5x1xf32>
    %137 = vector.broadcast %129 : vector<5x1xf32> to vector<5x32xf32>
    %138 = arith.subf %125, %137 : vector<5x32xf32>
    %cst_63 = arith.constant 9.99999974E-6 : f32
    %139 = vector.broadcast %cst_63 : f32 to vector<5x1xf32>
    %140 = arith.addf %136, %139 : vector<5x1xf32>
    %141 = math.rsqrt %140 : vector<5x1xf32>
    %142 = vector.broadcast %141 : vector<5x1xf32> to vector<5x32xf32>
    %143 = arith.mulf %138, %142 : vector<5x32xf32>
    %144 = vector.broadcast %10 : vector<1x32xf32> to vector<5x32xf32>
    %145 = arith.mulf %143, %144 : vector<5x32xf32>
    %146 = vector.broadcast %11 : vector<1x32xf32> to vector<5x32xf32>
    %147 = arith.addf %145, %146 : vector<5x32xf32>
    %c0_64 = arith.constant 0 : index
    %c0_65 = arith.constant 0 : index
    %c0_66 = arith.constant 0 : index
    %148 = vector.load %arg15[%c0_64, %c0_65, %c0_66] : memref<2x5x32xf32, #tpu.memory_space<vmem>>, vector<1x5x32xf32>
    %149 = vector.shape_cast %148 : vector<1x5x32xf32> to vector<5x32xf32>
    %150 = vector.shape_cast %147 : vector<5x32xf32> to vector<1x5x32xf32>
    tpu.vector_store %arg15[%c0_64, %c0_65, %c0_66], %150 {strides = array<i32>} : memref<2x5x32xf32, #tpu.memory_space<vmem>>, vector<1x5x32xf32>,
    %cst_67 = arith.constant dense<0.000000e+00> : vector<5x32xf32>
    %151 = tpu.matmul %147, %12, %cst_67 {dimension_numbers = #tpu.dot_dimension_numbers<[1], [0], [0], [1], [0, 0, 1, 1], [], []>} : vector<5x32xf32>, vector<32x32xf32>, vector<5x32xf32> -> vector<5x32xf32>
    %152 = vector.broadcast %13 : vector<1x32xf32> to vector<5x32xf32>
    %153 = arith.addf %151, %152 : vector<5x32xf32>
    %c0_68 = arith.constant 0 : index
    %c0_69 = arith.constant 0 : index
    %c0_70 = arith.constant 0 : index
    %154 = vector.load %arg16[%c0_68, %c0_69, %c0_70] : memref<2x5x32xf32, #tpu.memory_space<vmem>>, vector<1x5x32xf32>
    %155 = vector.shape_cast %154 : vector<1x5x32xf32> to vector<5x32xf32>
    %156 = vector.shape_cast %153 : vector<5x32xf32> to vector<1x5x32xf32>
    tpu.vector_store %arg16[%c0_68, %c0_69, %c0_70], %156 {strides = array<i32>} : memref<2x5x32xf32, #tpu.memory_space<vmem>>, vector<1x5x32xf32>,
    %c1 = arith.constant 1 : index
    %c0_71 = arith.constant 0 : index
    %c0_72 = arith.constant 0 : index
    %157 = vector.load %arg0[%c1, %c0_71, %c0_72] : memref<2x5x32xf32, #tpu.memory_space<vmem>>, vector<1x5x32xf32>
    %158 = vector.shape_cast %157 : vector<1x5x32xf32> to vector<5x32xf32>
    %cst_73 = arith.constant dense<0.000000e+00> : vector<5x96xf32>
    %159 = tpu.matmul %158, %0, %cst_73 {dimension_numbers = #tpu.dot_dimension_numbers<[1], [0], [0], [1], [0, 0, 1, 1], [], []>} : vector<5x32xf32>, vector<32x96xf32>, vector<5x96xf32> -> vector<5x96xf32>
    %160 = vector.broadcast %1 : vector<1x96xf32> to vector<5x96xf32>
    %161 = arith.addf %159, %160 : vector<5x96xf32>
    %162 = vector.extract_strided_slice %161 {offsets = [0, 0], sizes = [5, 32], strides = [1, 1]} : vector<5x96xf32> to vector<5x32xf32>
    %163 = vector.extract_strided_slice %161 {offsets = [0, 32], sizes = [5, 32], strides = [1, 1]} : vector<5x96xf32> to vector<5x32xf32>
    %164 = vector.extract_strided_slice %161 {offsets = [0, 64], sizes = [5, 32], strides = [1, 1]} : vector<5x96xf32> to vector<5x32xf32>
    %165 = vector.extract_strided_slice %162 {offsets = [0, 0], sizes = [5, 8], strides = [1, 1]} : vector<5x32xf32> to vector<5x8xf32>
    %166 = vector.extract_strided_slice %163 {offsets = [0, 0], sizes = [5, 8], strides = [1, 1]} : vector<5x32xf32> to vector<5x8xf32>
    %167 = vector.extract_strided_slice %164 {offsets = [0, 0], sizes = [5, 8], strides = [1, 1]} : vector<5x32xf32> to vector<5x8xf32>
    %cst_74 = arith.constant dense<0.000000e+00> : vector<5x5xf32>
    %168 = tpu.matmul %165, %166, %cst_74 {dimension_numbers = #tpu.dot_dimension_numbers<[1], [1], [0], [0], [0, 0, 1, 0], [], []>} : vector<5x8xf32>, vector<5x8xf32>, vector<5x5xf32> -> vector<5x5xf32>
    %cst_75 = arith.constant 0.353553385 : f32
    %169 = vector.broadcast %cst_75 : f32 to vector<5x5xf32>
    %170 = arith.mulf %168, %169 : vector<5x5xf32>
    %cst_76 = arith.constant dense<0xFF800000> : vector<5xf32>
    %171 = vector.multi_reduction <maximumf>, %170, %cst_76 [1] : vector<5x5xf32> to vector<5xf32>
    %172 = vector.shape_cast %171 : vector<5xf32> to vector<5x1xf32>
    %173 = vector.broadcast %172 : vector<5x1xf32> to vector<5x5xf32>
    %174 = arith.subf %170, %173 : vector<5x5xf32>
    %175 = math.exp %174 : vector<5x5xf32>
    %cst_77 = arith.constant dense<0.000000e+00> : vector<5xf32>
    %176 = vector.multi_reduction <add>, %175, %cst_77 [1] : vector<5x5xf32> to vector<5xf32>
    %177 = vector.shape_cast %176 : vector<5xf32> to vector<5x1xf32>
    %178 = tpu.reciprocal %177 {approx = true} : vector<5x1xf32> -> vector<5x1xf32>
    %179 = vector.broadcast %178 : vector<5x1xf32> to vector<5x5xf32>
    %180 = arith.mulf %175, %179 : vector<5x5xf32>
    %cst_78 = arith.constant dense<0.000000e+00> : vector<5x8xf32>
    %181 = tpu.matmul %180, %167, %cst_78 {dimension_numbers = #tpu.dot_dimension_numbers<[1], [0], [0], [1], [0, 0, 1, 1], [], []>} : vector<5x5xf32>, vector<5x8xf32>, vector<5x8xf32> -> vector<5x8xf32>
    %182 = vector.extract_strided_slice %162 {offsets = [0, 8], sizes = [5, 8], strides = [1, 1]} : vector<5x32xf32> to vector<5x8xf32>
    %183 = vector.extract_strided_slice %163 {offsets = [0, 8], sizes = [5, 8], strides = [1, 1]} : vector<5x32xf32> to vector<5x8xf32>
    %184 = vector.extract_strided_slice %164 {offsets = [0, 8], sizes = [5, 8], strides = [1, 1]} : vector<5x32xf32> to vector<5x8xf32>
    %cst_79 = arith.constant dense<0.000000e+00> : vector<5x5xf32>
    %185 = tpu.matmul %182, %183, %cst_79 {dimension_numbers = #tpu.dot_dimension_numbers<[1], [1], [0], [0], [0, 0, 1, 0], [], []>} : vector<5x8xf32>, vector<5x8xf32>, vector<5x5xf32> -> vector<5x5xf32>
    %cst_80 = arith.constant 0.353553385 : f32
    %186 = vector.broadcast %cst_80 : f32 to vector<5x5xf32>
    %187 = arith.mulf %185, %186 : vector<5x5xf32>
    %cst_81 = arith.constant dense<0xFF800000> : vector<5xf32>
    %188 = vector.multi_reduction <maximumf>, %187, %cst_81 [1] : vector<5x5xf32> to vector<5xf32>
    %189 = vector.shape_cast %188 : vector<5xf32> to vector<5x1xf32>
    %190 = vector.broadcast %189 : vector<5x1xf32> to vector<5x5xf32>
    %191 = arith.subf %187, %190 : vector<5x5xf32>
    %192 = math.exp %191 : vector<5x5xf32>
    %cst_82 = arith.constant dense<0.000000e+00> : vector<5xf32>
    %193 = vector.multi_reduction <add>, %192, %cst_82 [1] : vector<5x5xf32> to vector<5xf32>
    %194 = vector.shape_cast %193 : vector<5xf32> to vector<5x1xf32>
    %195 = tpu.reciprocal %194 {approx = true} : vector<5x1xf32> -> vector<5x1xf32>
    %196 = vector.broadcast %195 : vector<5x1xf32> to vector<5x5xf32>
    %197 = arith.mulf %192, %196 : vector<5x5xf32>
    %cst_83 = arith.constant dense<0.000000e+00> : vector<5x8xf32>
    %198 = tpu.matmul %197, %184, %cst_83 {dimension_numbers = #tpu.dot_dimension_numbers<[1], [0], [0], [1], [0, 0, 1, 1], [], []>} : vector<5x5xf32>, vector<5x8xf32>, vector<5x8xf32> -> vector<5x8xf32>
    %199 = vector.extract_strided_slice %162 {offsets = [0, 16], sizes = [5, 8], strides = [1, 1]} : vector<5x32xf32> to vector<5x8xf32>
    %200 = vector.extract_strided_slice %163 {offsets = [0, 16], sizes = [5, 8], strides = [1, 1]} : vector<5x32xf32> to vector<5x8xf32>
    %201 = vector.extract_strided_slice %164 {offsets = [0, 16], sizes = [5, 8], strides = [1, 1]} : vector<5x32xf32> to vector<5x8xf32>
    %cst_84 = arith.constant dense<0.000000e+00> : vector<5x5xf32>
    %202 = tpu.matmul %199, %200, %cst_84 {dimension_numbers = #tpu.dot_dimension_numbers<[1], [1], [0], [0], [0, 0, 1, 0], [], []>} : vector<5x8xf32>, vector<5x8xf32>, vector<5x5xf32> -> vector<5x5xf32>
    %cst_85 = arith.constant 0.353553385 : f32
    %203 = vector.broadcast %cst_85 : f32 to vector<5x5xf32>
    %204 = arith.mulf %202, %203 : vector<5x5xf32>
    %cst_86 = arith.constant dense<0xFF800000> : vector<5xf32>
    %205 = vector.multi_reduction <maximumf>, %204, %cst_86 [1] : vector<5x5xf32> to vector<5xf32>
    %206 = vector.shape_cast %205 : vector<5xf32> to vector<5x1xf32>
    %207 = vector.broadcast %206 : vector<5x1xf32> to vector<5x5xf32>
    %208 = arith.subf %204, %207 : vector<5x5xf32>
    %209 = math.exp %208 : vector<5x5xf32>
    %cst_87 = arith.constant dense<0.000000e+00> : vector<5xf32>
    %210 = vector.multi_reduction <add>, %209, %cst_87 [1] : vector<5x5xf32> to vector<5xf32>
    %211 = vector.shape_cast %210 : vector<5xf32> to vector<5x1xf32>
    %212 = tpu.reciprocal %211 {approx = true} : vector<5x1xf32> -> vector<5x1xf32>
    %213 = vector.broadcast %212 : vector<5x1xf32> to vector<5x5xf32>
    %214 = arith.mulf %209, %213 : vector<5x5xf32>
    %cst_88 = arith.constant dense<0.000000e+00> : vector<5x8xf32>
    %215 = tpu.matmul %214, %201, %cst_88 {dimension_numbers = #tpu.dot_dimension_numbers<[1], [0], [0], [1], [0, 0, 1, 1], [], []>} : vector<5x5xf32>, vector<5x8xf32>, vector<5x8xf32> -> vector<5x8xf32>
    %216 = vector.extract_strided_slice %162 {offsets = [0, 24], sizes = [5, 8], strides = [1, 1]} : vector<5x32xf32> to vector<5x8xf32>
    %217 = vector.extract_strided_slice %163 {offsets = [0, 24], sizes = [5, 8], strides = [1, 1]} : vector<5x32xf32> to vector<5x8xf32>
    %218 = vector.extract_strided_slice %164 {offsets = [0, 24], sizes = [5, 8], strides = [1, 1]} : vector<5x32xf32> to vector<5x8xf32>
    %cst_89 = arith.constant dense<0.000000e+00> : vector<5x5xf32>
    %219 = tpu.matmul %216, %217, %cst_89 {dimension_numbers = #tpu.dot_dimension_numbers<[1], [1], [0], [0], [0, 0, 1, 0], [], []>} : vector<5x8xf32>, vector<5x8xf32>, vector<5x5xf32> -> vector<5x5xf32>
    %cst_90 = arith.constant 0.353553385 : f32
    %220 = vector.broadcast %cst_90 : f32 to vector<5x5xf32>
    %221 = arith.mulf %219, %220 : vector<5x5xf32>
    %cst_91 = arith.constant dense<0xFF800000> : vector<5xf32>
    %222 = vector.multi_reduction <maximumf>, %221, %cst_91 [1] : vector<5x5xf32> to vector<5xf32>
    %223 = vector.shape_cast %222 : vector<5xf32> to vector<5x1xf32>
    %224 = vector.broadcast %223 : vector<5x1xf32> to vector<5x5xf32>
    %225 = arith.subf %221, %224 : vector<5x5xf32>
    %226 = math.exp %225 : vector<5x5xf32>
    %cst_92 = arith.constant dense<0.000000e+00> : vector<5xf32>
    %227 = vector.multi_reduction <add>, %226, %cst_92 [1] : vector<5x5xf32> to vector<5xf32>
    %228 = vector.shape_cast %227 : vector<5xf32> to vector<5x1xf32>
    %229 = tpu.reciprocal %228 {approx = true} : vector<5x1xf32> -> vector<5x1xf32>
    %230 = vector.broadcast %229 : vector<5x1xf32> to vector<5x5xf32>
    %231 = arith.mulf %226, %230 : vector<5x5xf32>
    %cst_93 = arith.constant dense<0.000000e+00> : vector<5x8xf32>
    %232 = tpu.matmul %231, %218, %cst_93 {dimension_numbers = #tpu.dot_dimension_numbers<[1], [0], [0], [1], [0, 0, 1, 1], [], []>} : vector<5x5xf32>, vector<5x8xf32>, vector<5x8xf32> -> vector<5x8xf32>
    %233 = tpu.concatenate %181, %198, %215, %232 in 1 : vector<5x8xf32>, vector<5x8xf32>, vector<5x8xf32>, vector<5x8xf32> -> vector<5x32xf32>
    %cst_94 = arith.constant dense<0.000000e+00> : vector<5x32xf32>
    %234 = tpu.matmul %233, %2, %cst_94 {dimension_numbers = #tpu.dot_dimension_numbers<[1], [0], [0], [1], [0, 0, 1, 1], [], []>} : vector<5x32xf32>, vector<32x32xf32>, vector<5x32xf32> -> vector<5x32xf32>
    %235 = vector.broadcast %3 : vector<1x32xf32> to vector<5x32xf32>
    %236 = arith.addf %234, %235 : vector<5x32xf32>
    %237 = arith.addf %158, %236 : vector<5x32xf32>
    %cst_95 = arith.constant dense<0.000000e+00> : vector<5xf32>
    %238 = vector.multi_reduction <add>, %237, %cst_95 [1] : vector<5x32xf32> to vector<5xf32>
    %239 = vector.shape_cast %238 : vector<5xf32> to vector<5x1xf32>
    %cst_96 = arith.constant 3.200000e+01 : f32
    %240 = vector.broadcast %cst_96 : f32 to vector<5x1xf32>
    %241 = arith.divf %239, %240 : vector<5x1xf32>
    %242 = vector.broadcast %241 : vector<5x1xf32> to vector<5x32xf32>
    %243 = arith.subf %237, %242 : vector<5x32xf32>
    %244 = arith.mulf %243, %243 : vector<5x32xf32>
    %cst_97 = arith.constant dense<0.000000e+00> : vector<5xf32>
    %245 = vector.multi_reduction <add>, %244, %cst_97 [1] : vector<5x32xf32> to vector<5xf32>
    %246 = vector.shape_cast %245 : vector<5xf32> to vector<5x1xf32>
    %cst_98 = arith.constant 3.200000e+01 : f32
    %247 = vector.broadcast %cst_98 : f32 to vector<5x1xf32>
    %248 = arith.divf %246, %247 : vector<5x1xf32>
    %249 = vector.broadcast %241 : vector<5x1xf32> to vector<5x32xf32>
    %250 = arith.subf %237, %249 : vector<5x32xf32>
    %cst_99 = arith.constant 9.99999974E-6 : f32
    %251 = vector.broadcast %cst_99 : f32 to vector<5x1xf32>
    %252 = arith.addf %248, %251 : vector<5x1xf32>
    %253 = math.rsqrt %252 : vector<5x1xf32>
    %254 = vector.broadcast %253 : vector<5x1xf32> to vector<5x32xf32>
    %255 = arith.mulf %250, %254 : vector<5x32xf32>
    %256 = vector.broadcast %8 : vector<1x32xf32> to vector<5x32xf32>
    %257 = arith.mulf %255, %256 : vector<5x32xf32>
    %258 = vector.broadcast %9 : vector<1x32xf32> to vector<5x32xf32>
    %259 = arith.addf %257, %258 : vector<5x32xf32>
    %cst_100 = arith.constant dense<0.000000e+00> : vector<5x64xf32>
    %260 = tpu.matmul %259, %4, %cst_100 {dimension_numbers = #tpu.dot_dimension_numbers<[1], [0], [0], [1], [0, 0, 1, 1], [], []>} : vector<5x32xf32>, vector<32x64xf32>, vector<5x64xf32> -> vector<5x64xf32>
    %261 = vector.broadcast %5 : vector<1x64xf32> to vector<5x64xf32>
    %262 = arith.addf %260, %261 : vector<5x64xf32>
    %cst_101 = arith.constant 0.000000e+00 : f32
    %263 = vector.broadcast %cst_101 : f32 to vector<5x64xf32>
    %264 = arith.maximumf %262, %263 : vector<5x64xf32>
    %cst_102 = arith.constant dense<0.000000e+00> : vector<5x32xf32>
    %265 = tpu.matmul %264, %6, %cst_102 {dimension_numbers = #tpu.dot_dimension_numbers<[1], [0], [0], [1], [0, 0, 1, 1], [], []>} : vector<5x64xf32>, vector<64x32xf32>, vector<5x32xf32> -> vector<5x32xf32>
    %266 = vector.broadcast %7 : vector<1x32xf32> to vector<5x32xf32>
    %267 = arith.addf %265, %266 : vector<5x32xf32>
    %268 = arith.addf %259, %267 : vector<5x32xf32>
    %cst_103 = arith.constant dense<0.000000e+00> : vector<5xf32>
    %269 = vector.multi_reduction <add>, %268, %cst_103 [1] : vector<5x32xf32> to vector<5xf32>
    %270 = vector.shape_cast %269 : vector<5xf32> to vector<5x1xf32>
    %cst_104 = arith.constant 3.200000e+01 : f32
    %271 = vector.broadcast %cst_104 : f32 to vector<5x1xf32>
    %272 = arith.divf %270, %271 : vector<5x1xf32>
    %273 = vector.broadcast %272 : vector<5x1xf32> to vector<5x32xf32>
    %274 = arith.subf %268, %273 : vector<5x32xf32>
    %275 = arith.mulf %274, %274 : vector<5x32xf32>
    %cst_105 = arith.constant dense<0.000000e+00> : vector<5xf32>
    %276 = vector.multi_reduction <add>, %275, %cst_105 [1] : vector<5x32xf32> to vector<5xf32>
    %277 = vector.shape_cast %276 : vector<5xf32> to vector<5x1xf32>
    %cst_106 = arith.constant 3.200000e+01 : f32
    %278 = vector.broadcast %cst_106 : f32 to vector<5x1xf32>
    %279 = arith.divf %277, %278 : vector<5x1xf32>
    %280 = vector.broadcast %272 : vector<5x1xf32> to vector<5x32xf32>
    %281 = arith.subf %268, %280 : vector<5x32xf32>
    %cst_107 = arith.constant 9.99999974E-6 : f32
    %282 = vector.broadcast %cst_107 : f32 to vector<5x1xf32>
    %283 = arith.addf %279, %282 : vector<5x1xf32>
    %284 = math.rsqrt %283 : vector<5x1xf32>
    %285 = vector.broadcast %284 : vector<5x1xf32> to vector<5x32xf32>
    %286 = arith.mulf %281, %285 : vector<5x32xf32>
    %287 = vector.broadcast %10 : vector<1x32xf32> to vector<5x32xf32>
    %288 = arith.mulf %286, %287 : vector<5x32xf32>
    %289 = vector.broadcast %11 : vector<1x32xf32> to vector<5x32xf32>
    %290 = arith.addf %288, %289 : vector<5x32xf32>
    %c1_108 = arith.constant 1 : index
    %c0_109 = arith.constant 0 : index
    %c0_110 = arith.constant 0 : index
    %291 = vector.load %arg15[%c1_108, %c0_109, %c0_110] : memref<2x5x32xf32, #tpu.memory_space<vmem>>, vector<1x5x32xf32>
    %292 = vector.shape_cast %291 : vector<1x5x32xf32> to vector<5x32xf32>
    %293 = vector.shape_cast %290 : vector<5x32xf32> to vector<1x5x32xf32>
    tpu.vector_store %arg15[%c1_108, %c0_109, %c0_110], %293 {strides = array<i32>} : memref<2x5x32xf32, #tpu.memory_space<vmem>>, vector<1x5x32xf32>,
    %cst_111 = arith.constant dense<0.000000e+00> : vector<5x32xf32>
    %294 = tpu.matmul %290, %12, %cst_111 {dimension_numbers = #tpu.dot_dimension_numbers<[1], [0], [0], [1], [0, 0, 1, 1], [], []>} : vector<5x32xf32>, vector<32x32xf32>, vector<5x32xf32> -> vector<5x32xf32>
    %295 = vector.broadcast %13 : vector<1x32xf32> to vector<5x32xf32>
    %296 = arith.addf %294, %295 : vector<5x32xf32>
    %c1_112 = arith.constant 1 : index
    %c0_113 = arith.constant 0 : index
    %c0_114 = arith.constant 0 : index
    %297 = vector.load %arg16[%c1_112, %c0_113, %c0_114] : memref<2x5x32xf32, #tpu.memory_space<vmem>>, vector<1x5x32xf32>
    %298 = vector.shape_cast %297 : vector<1x5x32xf32> to vector<5x32xf32>
    %299 = vector.shape_cast %296 : vector<5x32xf32> to vector<1x5x32xf32>
    tpu.vector_store %arg16[%c1_112, %c0_113, %c0_114], %299 {strides = array<i32>} : memref<2x5x32xf32, #tpu.memory_space<vmem>>, vector<1x5x32xf32>,
    return
  }
}

module attributes {stable_mosaic.version = 11 : i64} {
  func.func @_decoder_kernel(%arg0: memref<6x2x32xf32, #tpu.memory_space<vmem>>, %arg1: memref<2x32xf32, #tpu.memory_space<vmem>>, %arg2: memref<2x32xf32, #tpu.memory_space<vmem>>, %arg3: memref<32x128xf32, #tpu.memory_space<vmem>>, %arg4: memref<32x128xf32, #tpu.memory_space<vmem>>, %arg5: memref<1x128xf32, #tpu.memory_space<vmem>>, %arg6: memref<64x128xf32, #tpu.memory_space<vmem>>, %arg7: memref<32x128xf32, #tpu.memory_space<vmem>>, %arg8: memref<1x128xf32, #tpu.memory_space<vmem>>, %arg9: memref<10x32xf32, #tpu.memory_space<vmem>>, %arg10: memref<2x5x32xf32, #tpu.memory_space<vmem>>, %arg11: memref<10x32xf32, #tpu.memory_space<vmem>>, %arg12: memref<2x5x32xf32, #tpu.memory_space<vmem>>, %arg13: memref<5x10xf32, #tpu.memory_space<vmem>>, %arg14: memref<2x10xf32, #tpu.memory_space<vmem>>, %arg15: memref<2x10xf32, #tpu.memory_space<vmem>>, %arg16: memref<64x13xf32, #tpu.memory_space<vmem>>, %arg17: memref<1x13xf32, #tpu.memory_space<vmem>>, %arg18: memref<12x13xf32, #tpu.memory_space<vmem>>) attributes {dimension_semantics = [], scalar_prefetch = 0 : i64, scratch_operands = 0 : i64, tpu.core_type = #tpu.core_type<tc>} {
    %c0 = arith.constant 0 : index
    %c0_0 = arith.constant 0 : index
    %0 = vector.load %arg1[%c0, %c0_0] : memref<2x32xf32, #tpu.memory_space<vmem>>, vector<2x32xf32>
    %c0_1 = arith.constant 0 : index
    %c0_2 = arith.constant 0 : index
    %1 = vector.load %arg2[%c0_1, %c0_2] : memref<2x32xf32, #tpu.memory_space<vmem>>, vector<2x32xf32>
    %c0_3 = arith.constant 0 : index
    %c0_4 = arith.constant 0 : index
    %2 = vector.load %arg3[%c0_3, %c0_4] : memref<32x128xf32, #tpu.memory_space<vmem>>, vector<32x128xf32>
    %c0_5 = arith.constant 0 : index
    %c0_6 = arith.constant 0 : index
    %3 = vector.load %arg4[%c0_5, %c0_6] : memref<32x128xf32, #tpu.memory_space<vmem>>, vector<32x128xf32>
    %c0_7 = arith.constant 0 : index
    %c0_8 = arith.constant 0 : index
    %4 = vector.load %arg5[%c0_7, %c0_8] : memref<1x128xf32, #tpu.memory_space<vmem>>, vector<1x128xf32>
    %c0_9 = arith.constant 0 : index
    %c0_10 = arith.constant 0 : index
    %5 = vector.load %arg6[%c0_9, %c0_10] : memref<64x128xf32, #tpu.memory_space<vmem>>, vector<64x128xf32>
    %c0_11 = arith.constant 0 : index
    %c0_12 = arith.constant 0 : index
    %6 = vector.load %arg7[%c0_11, %c0_12] : memref<32x128xf32, #tpu.memory_space<vmem>>, vector<32x128xf32>
    %c0_13 = arith.constant 0 : index
    %c0_14 = arith.constant 0 : index
    %7 = vector.load %arg8[%c0_13, %c0_14] : memref<1x128xf32, #tpu.memory_space<vmem>>, vector<1x128xf32>
    %c0_15 = arith.constant 0 : index
    %c0_16 = arith.constant 0 : index
    %8 = vector.load %arg9[%c0_15, %c0_16] : memref<10x32xf32, #tpu.memory_space<vmem>>, vector<10x32xf32>
    %c0_17 = arith.constant 0 : index
    %c0_18 = arith.constant 0 : index
    %9 = vector.load %arg11[%c0_17, %c0_18] : memref<10x32xf32, #tpu.memory_space<vmem>>, vector<10x32xf32>
    %c0_19 = arith.constant 0 : index
    %c0_20 = arith.constant 0 : index
    %c0_21 = arith.constant 0 : index
    %10 = vector.load %arg10[%c0_19, %c0_20, %c0_21] : memref<2x5x32xf32, #tpu.memory_space<vmem>>, vector<1x5x32xf32>
    %11 = vector.shape_cast %10 : vector<1x5x32xf32> to vector<5x32xf32>
    %c1 = arith.constant 1 : index
    %c0_22 = arith.constant 0 : index
    %c0_23 = arith.constant 0 : index
    %12 = vector.load %arg10[%c1, %c0_22, %c0_23] : memref<2x5x32xf32, #tpu.memory_space<vmem>>, vector<1x5x32xf32>
    %13 = vector.shape_cast %12 : vector<1x5x32xf32> to vector<5x32xf32>
    %c0_24 = arith.constant 0 : index
    %c0_25 = arith.constant 0 : index
    %c0_26 = arith.constant 0 : index
    %14 = vector.load %arg12[%c0_24, %c0_25, %c0_26] : memref<2x5x32xf32, #tpu.memory_space<vmem>>, vector<1x5x32xf32>
    %15 = vector.shape_cast %14 : vector<1x5x32xf32> to vector<5x32xf32>
    %c1_27 = arith.constant 1 : index
    %c0_28 = arith.constant 0 : index
    %c0_29 = arith.constant 0 : index
    %16 = vector.load %arg12[%c1_27, %c0_28, %c0_29] : memref<2x5x32xf32, #tpu.memory_space<vmem>>, vector<1x5x32xf32>
    %17 = vector.shape_cast %16 : vector<1x5x32xf32> to vector<5x32xf32>
    %c0_30 = arith.constant 0 : index
    %c0_31 = arith.constant 0 : index
    %18 = vector.load %arg13[%c0_30, %c0_31] : memref<5x10xf32, #tpu.memory_space<vmem>>, vector<5x10xf32>
    %c0_32 = arith.constant 0 : index
    %c0_33 = arith.constant 0 : index
    %19 = vector.load %arg14[%c0_32, %c0_33] : memref<2x10xf32, #tpu.memory_space<vmem>>, vector<2x10xf32>
    %c0_34 = arith.constant 0 : index
    %c0_35 = arith.constant 0 : index
    %20 = vector.load %arg15[%c0_34, %c0_35] : memref<2x10xf32, #tpu.memory_space<vmem>>, vector<2x10xf32>
    %c0_36 = arith.constant 0 : index
    %c0_37 = arith.constant 0 : index
    %21 = vector.load %arg16[%c0_36, %c0_37] : memref<64x13xf32, #tpu.memory_space<vmem>>, vector<64x13xf32>
    %c0_38 = arith.constant 0 : index
    %c0_39 = arith.constant 0 : index
    %22 = vector.load %arg17[%c0_38, %c0_39] : memref<1x13xf32, #tpu.memory_space<vmem>>, vector<1x13xf32>
    %c0_40 = arith.constant 0 : index
    %c0_41 = arith.constant 0 : index
    %c0_42 = arith.constant 0 : index
    %23 = vector.load %arg0[%c0_40, %c0_41, %c0_42] : memref<6x2x32xf32, #tpu.memory_space<vmem>>, vector<1x2x32xf32>
    %24 = vector.shape_cast %23 : vector<1x2x32xf32> to vector<2x32xf32>
    %cst = arith.constant dense<0.000000e+00> : vector<2x128xf32>
    %25 = tpu.matmul %24, %2, %cst {dimension_numbers = #tpu.dot_dimension_numbers<[1], [0], [0], [1], [0, 0, 1, 1], [], []>} : vector<2x32xf32>, vector<32x128xf32>, vector<2x128xf32> -> vector<2x128xf32>
    %cst_43 = arith.constant dense<0.000000e+00> : vector<2x128xf32>
    %26 = tpu.matmul %0, %3, %cst_43 {dimension_numbers = #tpu.dot_dimension_numbers<[1], [0], [0], [1], [0, 0, 1, 1], [], []>} : vector<2x32xf32>, vector<32x128xf32>, vector<2x128xf32> -> vector<2x128xf32>
    %27 = arith.addf %25, %26 : vector<2x128xf32>
    %28 = vector.broadcast %4 : vector<1x128xf32> to vector<2x128xf32>
    %29 = arith.addf %27, %28 : vector<2x128xf32>
    %30 = vector.extract_strided_slice %29 {offsets = [0, 0], sizes = [2, 32], strides = [1, 1]} : vector<2x128xf32> to vector<2x32xf32>
    %cst_44 = arith.constant 5.000000e-01 : f32
    %31 = vector.broadcast %cst_44 : f32 to vector<2x32xf32>
    %32 = arith.mulf %31, %30 : vector<2x32xf32>
    %33 = math.tanh %32 : vector<2x32xf32>
    %cst_45 = arith.constant 1.000000e+00 : f32
    %34 = vector.broadcast %cst_45 : f32 to vector<2x32xf32>
    %35 = arith.addf %33, %34 : vector<2x32xf32>
    %cst_46 = arith.constant 5.000000e-01 : f32
    %36 = vector.broadcast %cst_46 : f32 to vector<2x32xf32>
    %37 = arith.mulf %36, %35 : vector<2x32xf32>
    %38 = vector.extract_strided_slice %29 {offsets = [0, 32], sizes = [2, 32], strides = [1, 1]} : vector<2x128xf32> to vector<2x32xf32>
    %cst_47 = arith.constant 5.000000e-01 : f32
    %39 = vector.broadcast %cst_47 : f32 to vector<2x32xf32>
    %40 = arith.mulf %39, %38 : vector<2x32xf32>
    %41 = math.tanh %40 : vector<2x32xf32>
    %cst_48 = arith.constant 1.000000e+00 : f32
    %42 = vector.broadcast %cst_48 : f32 to vector<2x32xf32>
    %43 = arith.addf %41, %42 : vector<2x32xf32>
    %cst_49 = arith.constant 5.000000e-01 : f32
    %44 = vector.broadcast %cst_49 : f32 to vector<2x32xf32>
    %45 = arith.mulf %44, %43 : vector<2x32xf32>
    %46 = vector.extract_strided_slice %29 {offsets = [0, 64], sizes = [2, 32], strides = [1, 1]} : vector<2x128xf32> to vector<2x32xf32>
    %47 = math.tanh %46 : vector<2x32xf32>
    %48 = vector.extract_strided_slice %29 {offsets = [0, 96], sizes = [2, 32], strides = [1, 1]} : vector<2x128xf32> to vector<2x32xf32>
    %cst_50 = arith.constant 5.000000e-01 : f32
    %49 = vector.broadcast %cst_50 : f32 to vector<2x32xf32>
    %50 = arith.mulf %49, %48 : vector<2x32xf32>
    %51 = math.tanh %50 : vector<2x32xf32>
    %cst_51 = arith.constant 1.000000e+00 : f32
    %52 = vector.broadcast %cst_51 : f32 to vector<2x32xf32>
    %53 = arith.addf %51, %52 : vector<2x32xf32>
    %cst_52 = arith.constant 5.000000e-01 : f32
    %54 = vector.broadcast %cst_52 : f32 to vector<2x32xf32>
    %55 = arith.mulf %54, %53 : vector<2x32xf32>
    %56 = arith.mulf %45, %1 : vector<2x32xf32>
    %57 = arith.mulf %37, %47 : vector<2x32xf32>
    %58 = arith.addf %56, %57 : vector<2x32xf32>
    %59 = math.tanh %58 : vector<2x32xf32>
    %60 = arith.mulf %55, %59 : vector<2x32xf32>
    %61 = vector.extract_strided_slice %60 {offsets = [0, 0], sizes = [1, 32], strides = [1, 1]} : vector<2x32xf32> to vector<1x32xf32>
    %62 = vector.broadcast %61 : vector<1x32xf32> to vector<5x32xf32>
    %63 = arith.mulf %11, %62 : vector<5x32xf32>
    %cst_53 = arith.constant dense<0.000000e+00> : vector<5xf32>
    %64 = vector.multi_reduction <add>, %63, %cst_53 [1] : vector<5x32xf32> to vector<5xf32>
    %65 = vector.shape_cast %64 : vector<5xf32> to vector<5x1xf32>
    %66 = vector.extract_strided_slice %60 {offsets = [1, 0], sizes = [1, 32], strides = [1, 1]} : vector<2x32xf32> to vector<1x32xf32>
    %67 = vector.broadcast %66 : vector<1x32xf32> to vector<5x32xf32>
    %68 = arith.mulf %13, %67 : vector<5x32xf32>
    %cst_54 = arith.constant dense<0.000000e+00> : vector<5xf32>
    %69 = vector.multi_reduction <add>, %68, %cst_54 [1] : vector<5x32xf32> to vector<5xf32>
    %70 = vector.shape_cast %69 : vector<5xf32> to vector<5x1xf32>
    %71 = tpu.concatenate %65, %70 in 1 : vector<5x1xf32>, vector<5x1xf32> -> vector<5x2xf32>
    %cst_55 = arith.constant dense<0xFF800000> : vector<2xf32>
    %72 = vector.multi_reduction <maximumf>, %71, %cst_55 [0] : vector<5x2xf32> to vector<2xf32>
    %73 = vector.shape_cast %72 : vector<2xf32> to vector<1x2xf32>
    %74 = vector.broadcast %73 : vector<1x2xf32> to vector<5x2xf32>
    %75 = arith.subf %71, %74 : vector<5x2xf32>
    %76 = math.exp %75 : vector<5x2xf32>
    %cst_56 = arith.constant dense<0.000000e+00> : vector<2xf32>
    %77 = vector.multi_reduction <add>, %76, %cst_56 [0] : vector<5x2xf32> to vector<2xf32>
    %78 = vector.shape_cast %77 : vector<2xf32> to vector<1x2xf32>
    %79 = tpu.reciprocal %78 {approx = true} : vector<1x2xf32> -> vector<1x2xf32>
    %80 = vector.broadcast %79 : vector<1x2xf32> to vector<5x2xf32>
    %81 = arith.mulf %76, %80 : vector<5x2xf32>
    %cst_57 = arith.constant dense<0.000000e+00> : vector<5x10xf32>
    %82 = tpu.matmul %81, %19, %cst_57 {dimension_numbers = #tpu.dot_dimension_numbers<[1], [0], [0], [1], [0, 0, 1, 1], [], []>} : vector<5x2xf32>, vector<2x10xf32>, vector<5x10xf32> -> vector<5x10xf32>
    %83 = arith.mulf %18, %82 : vector<5x10xf32>
    %cst_58 = arith.constant dense<0.000000e+00> : vector<10xf32>
    %84 = vector.multi_reduction <add>, %83, %cst_58 [0] : vector<5x10xf32> to vector<10xf32>
    %85 = vector.shape_cast %84 : vector<10xf32> to vector<1x10xf32>
    %86 = vector.broadcast %85 : vector<1x10xf32> to vector<2x10xf32>
    %87 = arith.mulf %20, %86 : vector<2x10xf32>
    %cst_59 = arith.constant dense<0.000000e+00> : vector<2x32xf32>
    %88 = tpu.matmul %87, %8, %cst_59 {dimension_numbers = #tpu.dot_dimension_numbers<[1], [0], [0], [1], [0, 0, 1, 1], [], []>} : vector<2x10xf32>, vector<10x32xf32>, vector<2x32xf32> -> vector<2x32xf32>
    %89 = tpu.concatenate %60, %88 in 1 : vector<2x32xf32>, vector<2x32xf32> -> vector<2x64xf32>
    %c1_60 = arith.constant 1 : index
    %c0_61 = arith.constant 0 : index
    %c0_62 = arith.constant 0 : index
    %90 = vector.load %arg0[%c1_60, %c0_61, %c0_62] : memref<6x2x32xf32, #tpu.memory_space<vmem>>, vector<1x2x32xf32>
    %91 = vector.shape_cast %90 : vector<1x2x32xf32> to vector<2x32xf32>
    %cst_63 = arith.constant dense<0.000000e+00> : vector<2x128xf32>
    %92 = tpu.matmul %91, %2, %cst_63 {dimension_numbers = #tpu.dot_dimension_numbers<[1], [0], [0], [1], [0, 0, 1, 1], [], []>} : vector<2x32xf32>, vector<32x128xf32>, vector<2x128xf32> -> vector<2x128xf32>
    %cst_64 = arith.constant dense<0.000000e+00> : vector<2x128xf32>
    %93 = tpu.matmul %60, %3, %cst_64 {dimension_numbers = #tpu.dot_dimension_numbers<[1], [0], [0], [1], [0, 0, 1, 1], [], []>} : vector<2x32xf32>, vector<32x128xf32>, vector<2x128xf32> -> vector<2x128xf32>
    %94 = arith.addf %92, %93 : vector<2x128xf32>
    %95 = vector.broadcast %4 : vector<1x128xf32> to vector<2x128xf32>
    %96 = arith.addf %94, %95 : vector<2x128xf32>
    %97 = vector.extract_strided_slice %96 {offsets = [0, 0], sizes = [2, 32], strides = [1, 1]} : vector<2x128xf32> to vector<2x32xf32>
    %cst_65 = arith.constant 5.000000e-01 : f32
    %98 = vector.broadcast %cst_65 : f32 to vector<2x32xf32>
    %99 = arith.mulf %98, %97 : vector<2x32xf32>
    %100 = math.tanh %99 : vector<2x32xf32>
    %cst_66 = arith.constant 1.000000e+00 : f32
    %101 = vector.broadcast %cst_66 : f32 to vector<2x32xf32>
    %102 = arith.addf %100, %101 : vector<2x32xf32>
    %cst_67 = arith.constant 5.000000e-01 : f32
    %103 = vector.broadcast %cst_67 : f32 to vector<2x32xf32>
    %104 = arith.mulf %103, %102 : vector<2x32xf32>
    %105 = vector.extract_strided_slice %96 {offsets = [0, 32], sizes = [2, 32], strides = [1, 1]} : vector<2x128xf32> to vector<2x32xf32>
    %cst_68 = arith.constant 5.000000e-01 : f32
    %106 = vector.broadcast %cst_68 : f32 to vector<2x32xf32>
    %107 = arith.mulf %106, %105 : vector<2x32xf32>
    %108 = math.tanh %107 : vector<2x32xf32>
    %cst_69 = arith.constant 1.000000e+00 : f32
    %109 = vector.broadcast %cst_69 : f32 to vector<2x32xf32>
    %110 = arith.addf %108, %109 : vector<2x32xf32>
    %cst_70 = arith.constant 5.000000e-01 : f32
    %111 = vector.broadcast %cst_70 : f32 to vector<2x32xf32>
    %112 = arith.mulf %111, %110 : vector<2x32xf32>
    %113 = vector.extract_strided_slice %96 {offsets = [0, 64], sizes = [2, 32], strides = [1, 1]} : vector<2x128xf32> to vector<2x32xf32>
    %114 = math.tanh %113 : vector<2x32xf32>
    %115 = vector.extract_strided_slice %96 {offsets = [0, 96], sizes = [2, 32], strides = [1, 1]} : vector<2x128xf32> to vector<2x32xf32>
    %cst_71 = arith.constant 5.000000e-01 : f32
    %116 = vector.broadcast %cst_71 : f32 to vector<2x32xf32>
    %117 = arith.mulf %116, %115 : vector<2x32xf32>
    %118 = math.tanh %117 : vector<2x32xf32>
    %cst_72 = arith.constant 1.000000e+00 : f32
    %119 = vector.broadcast %cst_72 : f32 to vector<2x32xf32>
    %120 = arith.addf %118, %119 : vector<2x32xf32>
    %cst_73 = arith.constant 5.000000e-01 : f32
    %121 = vector.broadcast %cst_73 : f32 to vector<2x32xf32>
    %122 = arith.mulf %121, %120 : vector<2x32xf32>
    %123 = arith.mulf %112, %58 : vector<2x32xf32>
    %124 = arith.mulf %104, %114 : vector<2x32xf32>
    %125 = arith.addf %123, %124 : vector<2x32xf32>
    %126 = math.tanh %125 : vector<2x32xf32>
    %127 = arith.mulf %122, %126 : vector<2x32xf32>
    %128 = vector.extract_strided_slice %127 {offsets = [0, 0], sizes = [1, 32], strides = [1, 1]} : vector<2x32xf32> to vector<1x32xf32>
    %129 = vector.broadcast %128 : vector<1x32xf32> to vector<5x32xf32>
    %130 = arith.mulf %11, %129 : vector<5x32xf32>
    %cst_74 = arith.constant dense<0.000000e+00> : vector<5xf32>
    %131 = vector.multi_reduction <add>, %130, %cst_74 [1] : vector<5x32xf32> to vector<5xf32>
    %132 = vector.shape_cast %131 : vector<5xf32> to vector<5x1xf32>
    %133 = vector.extract_strided_slice %127 {offsets = [1, 0], sizes = [1, 32], strides = [1, 1]} : vector<2x32xf32> to vector<1x32xf32>
    %134 = vector.broadcast %133 : vector<1x32xf32> to vector<5x32xf32>
    %135 = arith.mulf %13, %134 : vector<5x32xf32>
    %cst_75 = arith.constant dense<0.000000e+00> : vector<5xf32>
    %136 = vector.multi_reduction <add>, %135, %cst_75 [1] : vector<5x32xf32> to vector<5xf32>
    %137 = vector.shape_cast %136 : vector<5xf32> to vector<5x1xf32>
    %138 = tpu.concatenate %132, %137 in 1 : vector<5x1xf32>, vector<5x1xf32> -> vector<5x2xf32>
    %cst_76 = arith.constant dense<0xFF800000> : vector<2xf32>
    %139 = vector.multi_reduction <maximumf>, %138, %cst_76 [0] : vector<5x2xf32> to vector<2xf32>
    %140 = vector.shape_cast %139 : vector<2xf32> to vector<1x2xf32>
    %141 = vector.broadcast %140 : vector<1x2xf32> to vector<5x2xf32>
    %142 = arith.subf %138, %141 : vector<5x2xf32>
    %143 = math.exp %142 : vector<5x2xf32>
    %cst_77 = arith.constant dense<0.000000e+00> : vector<2xf32>
    %144 = vector.multi_reduction <add>, %143, %cst_77 [0] : vector<5x2xf32> to vector<2xf32>
    %145 = vector.shape_cast %144 : vector<2xf32> to vector<1x2xf32>
    %146 = tpu.reciprocal %145 {approx = true} : vector<1x2xf32> -> vector<1x2xf32>
    %147 = vector.broadcast %146 : vector<1x2xf32> to vector<5x2xf32>
    %148 = arith.mulf %143, %147 : vector<5x2xf32>
    %cst_78 = arith.constant dense<0.000000e+00> : vector<5x10xf32>
    %149 = tpu.matmul %148, %19, %cst_78 {dimension_numbers = #tpu.dot_dimension_numbers<[1], [0], [0], [1], [0, 0, 1, 1], [], []>} : vector<5x2xf32>, vector<2x10xf32>, vector<5x10xf32> -> vector<5x10xf32>
    %150 = arith.mulf %18, %149 : vector<5x10xf32>
    %cst_79 = arith.constant dense<0.000000e+00> : vector<10xf32>
    %151 = vector.multi_reduction <add>, %150, %cst_79 [0] : vector<5x10xf32> to vector<10xf32>
    %152 = vector.shape_cast %151 : vector<10xf32> to vector<1x10xf32>
    %153 = vector.broadcast %152 : vector<1x10xf32> to vector<2x10xf32>
    %154 = arith.mulf %20, %153 : vector<2x10xf32>
    %cst_80 = arith.constant dense<0.000000e+00> : vector<2x32xf32>
    %155 = tpu.matmul %154, %8, %cst_80 {dimension_numbers = #tpu.dot_dimension_numbers<[1], [0], [0], [1], [0, 0, 1, 1], [], []>} : vector<2x10xf32>, vector<10x32xf32>, vector<2x32xf32> -> vector<2x32xf32>
    %156 = tpu.concatenate %127, %155 in 1 : vector<2x32xf32>, vector<2x32xf32> -> vector<2x64xf32>
    %c2 = arith.constant 2 : index
    %c0_81 = arith.constant 0 : index
    %c0_82 = arith.constant 0 : index
    %157 = vector.load %arg0[%c2, %c0_81, %c0_82] : memref<6x2x32xf32, #tpu.memory_space<vmem>>, vector<1x2x32xf32>
    %158 = vector.shape_cast %157 : vector<1x2x32xf32> to vector<2x32xf32>
    %cst_83 = arith.constant dense<0.000000e+00> : vector<2x128xf32>
    %159 = tpu.matmul %158, %2, %cst_83 {dimension_numbers = #tpu.dot_dimension_numbers<[1], [0], [0], [1], [0, 0, 1, 1], [], []>} : vector<2x32xf32>, vector<32x128xf32>, vector<2x128xf32> -> vector<2x128xf32>
    %cst_84 = arith.constant dense<0.000000e+00> : vector<2x128xf32>
    %160 = tpu.matmul %127, %3, %cst_84 {dimension_numbers = #tpu.dot_dimension_numbers<[1], [0], [0], [1], [0, 0, 1, 1], [], []>} : vector<2x32xf32>, vector<32x128xf32>, vector<2x128xf32> -> vector<2x128xf32>
    %161 = arith.addf %159, %160 : vector<2x128xf32>
    %162 = vector.broadcast %4 : vector<1x128xf32> to vector<2x128xf32>
    %163 = arith.addf %161, %162 : vector<2x128xf32>
    %164 = vector.extract_strided_slice %163 {offsets = [0, 0], sizes = [2, 32], strides = [1, 1]} : vector<2x128xf32> to vector<2x32xf32>
    %cst_85 = arith.constant 5.000000e-01 : f32
    %165 = vector.broadcast %cst_85 : f32 to vector<2x32xf32>
    %166 = arith.mulf %165, %164 : vector<2x32xf32>
    %167 = math.tanh %166 : vector<2x32xf32>
    %cst_86 = arith.constant 1.000000e+00 : f32
    %168 = vector.broadcast %cst_86 : f32 to vector<2x32xf32>
    %169 = arith.addf %167, %168 : vector<2x32xf32>
    %cst_87 = arith.constant 5.000000e-01 : f32
    %170 = vector.broadcast %cst_87 : f32 to vector<2x32xf32>
    %171 = arith.mulf %170, %169 : vector<2x32xf32>
    %172 = vector.extract_strided_slice %163 {offsets = [0, 32], sizes = [2, 32], strides = [1, 1]} : vector<2x128xf32> to vector<2x32xf32>
    %cst_88 = arith.constant 5.000000e-01 : f32
    %173 = vector.broadcast %cst_88 : f32 to vector<2x32xf32>
    %174 = arith.mulf %173, %172 : vector<2x32xf32>
    %175 = math.tanh %174 : vector<2x32xf32>
    %cst_89 = arith.constant 1.000000e+00 : f32
    %176 = vector.broadcast %cst_89 : f32 to vector<2x32xf32>
    %177 = arith.addf %175, %176 : vector<2x32xf32>
    %cst_90 = arith.constant 5.000000e-01 : f32
    %178 = vector.broadcast %cst_90 : f32 to vector<2x32xf32>
    %179 = arith.mulf %178, %177 : vector<2x32xf32>
    %180 = vector.extract_strided_slice %163 {offsets = [0, 64], sizes = [2, 32], strides = [1, 1]} : vector<2x128xf32> to vector<2x32xf32>
    %181 = math.tanh %180 : vector<2x32xf32>
    %182 = vector.extract_strided_slice %163 {offsets = [0, 96], sizes = [2, 32], strides = [1, 1]} : vector<2x128xf32> to vector<2x32xf32>
    %cst_91 = arith.constant 5.000000e-01 : f32
    %183 = vector.broadcast %cst_91 : f32 to vector<2x32xf32>
    %184 = arith.mulf %183, %182 : vector<2x32xf32>
    %185 = math.tanh %184 : vector<2x32xf32>
    %cst_92 = arith.constant 1.000000e+00 : f32
    %186 = vector.broadcast %cst_92 : f32 to vector<2x32xf32>
    %187 = arith.addf %185, %186 : vector<2x32xf32>
    %cst_93 = arith.constant 5.000000e-01 : f32
    %188 = vector.broadcast %cst_93 : f32 to vector<2x32xf32>
    %189 = arith.mulf %188, %187 : vector<2x32xf32>
    %190 = arith.mulf %179, %125 : vector<2x32xf32>
    %191 = arith.mulf %171, %181 : vector<2x32xf32>
    %192 = arith.addf %190, %191 : vector<2x32xf32>
    %193 = math.tanh %192 : vector<2x32xf32>
    %194 = arith.mulf %189, %193 : vector<2x32xf32>
    %195 = vector.extract_strided_slice %194 {offsets = [0, 0], sizes = [1, 32], strides = [1, 1]} : vector<2x32xf32> to vector<1x32xf32>
    %196 = vector.broadcast %195 : vector<1x32xf32> to vector<5x32xf32>
    %197 = arith.mulf %11, %196 : vector<5x32xf32>
    %cst_94 = arith.constant dense<0.000000e+00> : vector<5xf32>
    %198 = vector.multi_reduction <add>, %197, %cst_94 [1] : vector<5x32xf32> to vector<5xf32>
    %199 = vector.shape_cast %198 : vector<5xf32> to vector<5x1xf32>
    %200 = vector.extract_strided_slice %194 {offsets = [1, 0], sizes = [1, 32], strides = [1, 1]} : vector<2x32xf32> to vector<1x32xf32>
    %201 = vector.broadcast %200 : vector<1x32xf32> to vector<5x32xf32>
    %202 = arith.mulf %13, %201 : vector<5x32xf32>
    %cst_95 = arith.constant dense<0.000000e+00> : vector<5xf32>
    %203 = vector.multi_reduction <add>, %202, %cst_95 [1] : vector<5x32xf32> to vector<5xf32>
    %204 = vector.shape_cast %203 : vector<5xf32> to vector<5x1xf32>
    %205 = tpu.concatenate %199, %204 in 1 : vector<5x1xf32>, vector<5x1xf32> -> vector<5x2xf32>
    %cst_96 = arith.constant dense<0xFF800000> : vector<2xf32>
    %206 = vector.multi_reduction <maximumf>, %205, %cst_96 [0] : vector<5x2xf32> to vector<2xf32>
    %207 = vector.shape_cast %206 : vector<2xf32> to vector<1x2xf32>
    %208 = vector.broadcast %207 : vector<1x2xf32> to vector<5x2xf32>
    %209 = arith.subf %205, %208 : vector<5x2xf32>
    %210 = math.exp %209 : vector<5x2xf32>
    %cst_97 = arith.constant dense<0.000000e+00> : vector<2xf32>
    %211 = vector.multi_reduction <add>, %210, %cst_97 [0] : vector<5x2xf32> to vector<2xf32>
    %212 = vector.shape_cast %211 : vector<2xf32> to vector<1x2xf32>
    %213 = tpu.reciprocal %212 {approx = true} : vector<1x2xf32> -> vector<1x2xf32>
    %214 = vector.broadcast %213 : vector<1x2xf32> to vector<5x2xf32>
    %215 = arith.mulf %210, %214 : vector<5x2xf32>
    %cst_98 = arith.constant dense<0.000000e+00> : vector<5x10xf32>
    %216 = tpu.matmul %215, %19, %cst_98 {dimension_numbers = #tpu.dot_dimension_numbers<[1], [0], [0], [1], [0, 0, 1, 1], [], []>} : vector<5x2xf32>, vector<2x10xf32>, vector<5x10xf32> -> vector<5x10xf32>
    %217 = arith.mulf %18, %216 : vector<5x10xf32>
    %cst_99 = arith.constant dense<0.000000e+00> : vector<10xf32>
    %218 = vector.multi_reduction <add>, %217, %cst_99 [0] : vector<5x10xf32> to vector<10xf32>
    %219 = vector.shape_cast %218 : vector<10xf32> to vector<1x10xf32>
    %220 = vector.broadcast %219 : vector<1x10xf32> to vector<2x10xf32>
    %221 = arith.mulf %20, %220 : vector<2x10xf32>
    %cst_100 = arith.constant dense<0.000000e+00> : vector<2x32xf32>
    %222 = tpu.matmul %221, %8, %cst_100 {dimension_numbers = #tpu.dot_dimension_numbers<[1], [0], [0], [1], [0, 0, 1, 1], [], []>} : vector<2x10xf32>, vector<10x32xf32>, vector<2x32xf32> -> vector<2x32xf32>
    %223 = tpu.concatenate %194, %222 in 1 : vector<2x32xf32>, vector<2x32xf32> -> vector<2x64xf32>
    %c3 = arith.constant 3 : index
    %c0_101 = arith.constant 0 : index
    %c0_102 = arith.constant 0 : index
    %224 = vector.load %arg0[%c3, %c0_101, %c0_102] : memref<6x2x32xf32, #tpu.memory_space<vmem>>, vector<1x2x32xf32>
    %225 = vector.shape_cast %224 : vector<1x2x32xf32> to vector<2x32xf32>
    %cst_103 = arith.constant dense<0.000000e+00> : vector<2x128xf32>
    %226 = tpu.matmul %225, %2, %cst_103 {dimension_numbers = #tpu.dot_dimension_numbers<[1], [0], [0], [1], [0, 0, 1, 1], [], []>} : vector<2x32xf32>, vector<32x128xf32>, vector<2x128xf32> -> vector<2x128xf32>
    %cst_104 = arith.constant dense<0.000000e+00> : vector<2x128xf32>
    %227 = tpu.matmul %194, %3, %cst_104 {dimension_numbers = #tpu.dot_dimension_numbers<[1], [0], [0], [1], [0, 0, 1, 1], [], []>} : vector<2x32xf32>, vector<32x128xf32>, vector<2x128xf32> -> vector<2x128xf32>
    %228 = arith.addf %226, %227 : vector<2x128xf32>
    %229 = vector.broadcast %4 : vector<1x128xf32> to vector<2x128xf32>
    %230 = arith.addf %228, %229 : vector<2x128xf32>
    %231 = vector.extract_strided_slice %230 {offsets = [0, 0], sizes = [2, 32], strides = [1, 1]} : vector<2x128xf32> to vector<2x32xf32>
    %cst_105 = arith.constant 5.000000e-01 : f32
    %232 = vector.broadcast %cst_105 : f32 to vector<2x32xf32>
    %233 = arith.mulf %232, %231 : vector<2x32xf32>
    %234 = math.tanh %233 : vector<2x32xf32>
    %cst_106 = arith.constant 1.000000e+00 : f32
    %235 = vector.broadcast %cst_106 : f32 to vector<2x32xf32>
    %236 = arith.addf %234, %235 : vector<2x32xf32>
    %cst_107 = arith.constant 5.000000e-01 : f32
    %237 = vector.broadcast %cst_107 : f32 to vector<2x32xf32>
    %238 = arith.mulf %237, %236 : vector<2x32xf32>
    %239 = vector.extract_strided_slice %230 {offsets = [0, 32], sizes = [2, 32], strides = [1, 1]} : vector<2x128xf32> to vector<2x32xf32>
    %cst_108 = arith.constant 5.000000e-01 : f32
    %240 = vector.broadcast %cst_108 : f32 to vector<2x32xf32>
    %241 = arith.mulf %240, %239 : vector<2x32xf32>
    %242 = math.tanh %241 : vector<2x32xf32>
    %cst_109 = arith.constant 1.000000e+00 : f32
    %243 = vector.broadcast %cst_109 : f32 to vector<2x32xf32>
    %244 = arith.addf %242, %243 : vector<2x32xf32>
    %cst_110 = arith.constant 5.000000e-01 : f32
    %245 = vector.broadcast %cst_110 : f32 to vector<2x32xf32>
    %246 = arith.mulf %245, %244 : vector<2x32xf32>
    %247 = vector.extract_strided_slice %230 {offsets = [0, 64], sizes = [2, 32], strides = [1, 1]} : vector<2x128xf32> to vector<2x32xf32>
    %248 = math.tanh %247 : vector<2x32xf32>
    %249 = vector.extract_strided_slice %230 {offsets = [0, 96], sizes = [2, 32], strides = [1, 1]} : vector<2x128xf32> to vector<2x32xf32>
    %cst_111 = arith.constant 5.000000e-01 : f32
    %250 = vector.broadcast %cst_111 : f32 to vector<2x32xf32>
    %251 = arith.mulf %250, %249 : vector<2x32xf32>
    %252 = math.tanh %251 : vector<2x32xf32>
    %cst_112 = arith.constant 1.000000e+00 : f32
    %253 = vector.broadcast %cst_112 : f32 to vector<2x32xf32>
    %254 = arith.addf %252, %253 : vector<2x32xf32>
    %cst_113 = arith.constant 5.000000e-01 : f32
    %255 = vector.broadcast %cst_113 : f32 to vector<2x32xf32>
    %256 = arith.mulf %255, %254 : vector<2x32xf32>
    %257 = arith.mulf %246, %192 : vector<2x32xf32>
    %258 = arith.mulf %238, %248 : vector<2x32xf32>
    %259 = arith.addf %257, %258 : vector<2x32xf32>
    %260 = math.tanh %259 : vector<2x32xf32>
    %261 = arith.mulf %256, %260 : vector<2x32xf32>
    %262 = vector.extract_strided_slice %261 {offsets = [0, 0], sizes = [1, 32], strides = [1, 1]} : vector<2x32xf32> to vector<1x32xf32>
    %263 = vector.broadcast %262 : vector<1x32xf32> to vector<5x32xf32>
    %264 = arith.mulf %11, %263 : vector<5x32xf32>
    %cst_114 = arith.constant dense<0.000000e+00> : vector<5xf32>
    %265 = vector.multi_reduction <add>, %264, %cst_114 [1] : vector<5x32xf32> to vector<5xf32>
    %266 = vector.shape_cast %265 : vector<5xf32> to vector<5x1xf32>
    %267 = vector.extract_strided_slice %261 {offsets = [1, 0], sizes = [1, 32], strides = [1, 1]} : vector<2x32xf32> to vector<1x32xf32>
    %268 = vector.broadcast %267 : vector<1x32xf32> to vector<5x32xf32>
    %269 = arith.mulf %13, %268 : vector<5x32xf32>
    %cst_115 = arith.constant dense<0.000000e+00> : vector<5xf32>
    %270 = vector.multi_reduction <add>, %269, %cst_115 [1] : vector<5x32xf32> to vector<5xf32>
    %271 = vector.shape_cast %270 : vector<5xf32> to vector<5x1xf32>
    %272 = tpu.concatenate %266, %271 in 1 : vector<5x1xf32>, vector<5x1xf32> -> vector<5x2xf32>
    %cst_116 = arith.constant dense<0xFF800000> : vector<2xf32>
    %273 = vector.multi_reduction <maximumf>, %272, %cst_116 [0] : vector<5x2xf32> to vector<2xf32>
    %274 = vector.shape_cast %273 : vector<2xf32> to vector<1x2xf32>
    %275 = vector.broadcast %274 : vector<1x2xf32> to vector<5x2xf32>
    %276 = arith.subf %272, %275 : vector<5x2xf32>
    %277 = math.exp %276 : vector<5x2xf32>
    %cst_117 = arith.constant dense<0.000000e+00> : vector<2xf32>
    %278 = vector.multi_reduction <add>, %277, %cst_117 [0] : vector<5x2xf32> to vector<2xf32>
    %279 = vector.shape_cast %278 : vector<2xf32> to vector<1x2xf32>
    %280 = tpu.reciprocal %279 {approx = true} : vector<1x2xf32> -> vector<1x2xf32>
    %281 = vector.broadcast %280 : vector<1x2xf32> to vector<5x2xf32>
    %282 = arith.mulf %277, %281 : vector<5x2xf32>
    %cst_118 = arith.constant dense<0.000000e+00> : vector<5x10xf32>
    %283 = tpu.matmul %282, %19, %cst_118 {dimension_numbers = #tpu.dot_dimension_numbers<[1], [0], [0], [1], [0, 0, 1, 1], [], []>} : vector<5x2xf32>, vector<2x10xf32>, vector<5x10xf32> -> vector<5x10xf32>
    %284 = arith.mulf %18, %283 : vector<5x10xf32>
    %cst_119 = arith.constant dense<0.000000e+00> : vector<10xf32>
    %285 = vector.multi_reduction <add>, %284, %cst_119 [0] : vector<5x10xf32> to vector<10xf32>
    %286 = vector.shape_cast %285 : vector<10xf32> to vector<1x10xf32>
    %287 = vector.broadcast %286 : vector<1x10xf32> to vector<2x10xf32>
    %288 = arith.mulf %20, %287 : vector<2x10xf32>
    %cst_120 = arith.constant dense<0.000000e+00> : vector<2x32xf32>
    %289 = tpu.matmul %288, %8, %cst_120 {dimension_numbers = #tpu.dot_dimension_numbers<[1], [0], [0], [1], [0, 0, 1, 1], [], []>} : vector<2x10xf32>, vector<10x32xf32>, vector<2x32xf32> -> vector<2x32xf32>
    %290 = tpu.concatenate %261, %289 in 1 : vector<2x32xf32>, vector<2x32xf32> -> vector<2x64xf32>
    %c4 = arith.constant 4 : index
    %c0_121 = arith.constant 0 : index
    %c0_122 = arith.constant 0 : index
    %291 = vector.load %arg0[%c4, %c0_121, %c0_122] : memref<6x2x32xf32, #tpu.memory_space<vmem>>, vector<1x2x32xf32>
    %292 = vector.shape_cast %291 : vector<1x2x32xf32> to vector<2x32xf32>
    %cst_123 = arith.constant dense<0.000000e+00> : vector<2x128xf32>
    %293 = tpu.matmul %292, %2, %cst_123 {dimension_numbers = #tpu.dot_dimension_numbers<[1], [0], [0], [1], [0, 0, 1, 1], [], []>} : vector<2x32xf32>, vector<32x128xf32>, vector<2x128xf32> -> vector<2x128xf32>
    %cst_124 = arith.constant dense<0.000000e+00> : vector<2x128xf32>
    %294 = tpu.matmul %261, %3, %cst_124 {dimension_numbers = #tpu.dot_dimension_numbers<[1], [0], [0], [1], [0, 0, 1, 1], [], []>} : vector<2x32xf32>, vector<32x128xf32>, vector<2x128xf32> -> vector<2x128xf32>
    %295 = arith.addf %293, %294 : vector<2x128xf32>
    %296 = vector.broadcast %4 : vector<1x128xf32> to vector<2x128xf32>
    %297 = arith.addf %295, %296 : vector<2x128xf32>
    %298 = vector.extract_strided_slice %297 {offsets = [0, 0], sizes = [2, 32], strides = [1, 1]} : vector<2x128xf32> to vector<2x32xf32>
    %cst_125 = arith.constant 5.000000e-01 : f32
    %299 = vector.broadcast %cst_125 : f32 to vector<2x32xf32>
    %300 = arith.mulf %299, %298 : vector<2x32xf32>
    %301 = math.tanh %300 : vector<2x32xf32>
    %cst_126 = arith.constant 1.000000e+00 : f32
    %302 = vector.broadcast %cst_126 : f32 to vector<2x32xf32>
    %303 = arith.addf %301, %302 : vector<2x32xf32>
    %cst_127 = arith.constant 5.000000e-01 : f32
    %304 = vector.broadcast %cst_127 : f32 to vector<2x32xf32>
    %305 = arith.mulf %304, %303 : vector<2x32xf32>
    %306 = vector.extract_strided_slice %297 {offsets = [0, 32], sizes = [2, 32], strides = [1, 1]} : vector<2x128xf32> to vector<2x32xf32>
    %cst_128 = arith.constant 5.000000e-01 : f32
    %307 = vector.broadcast %cst_128 : f32 to vector<2x32xf32>
    %308 = arith.mulf %307, %306 : vector<2x32xf32>
    %309 = math.tanh %308 : vector<2x32xf32>
    %cst_129 = arith.constant 1.000000e+00 : f32
    %310 = vector.broadcast %cst_129 : f32 to vector<2x32xf32>
    %311 = arith.addf %309, %310 : vector<2x32xf32>
    %cst_130 = arith.constant 5.000000e-01 : f32
    %312 = vector.broadcast %cst_130 : f32 to vector<2x32xf32>
    %313 = arith.mulf %312, %311 : vector<2x32xf32>
    %314 = vector.extract_strided_slice %297 {offsets = [0, 64], sizes = [2, 32], strides = [1, 1]} : vector<2x128xf32> to vector<2x32xf32>
    %315 = math.tanh %314 : vector<2x32xf32>
    %316 = vector.extract_strided_slice %297 {offsets = [0, 96], sizes = [2, 32], strides = [1, 1]} : vector<2x128xf32> to vector<2x32xf32>
    %cst_131 = arith.constant 5.000000e-01 : f32
    %317 = vector.broadcast %cst_131 : f32 to vector<2x32xf32>
    %318 = arith.mulf %317, %316 : vector<2x32xf32>
    %319 = math.tanh %318 : vector<2x32xf32>
    %cst_132 = arith.constant 1.000000e+00 : f32
    %320 = vector.broadcast %cst_132 : f32 to vector<2x32xf32>
    %321 = arith.addf %319, %320 : vector<2x32xf32>
    %cst_133 = arith.constant 5.000000e-01 : f32
    %322 = vector.broadcast %cst_133 : f32 to vector<2x32xf32>
    %323 = arith.mulf %322, %321 : vector<2x32xf32>
    %324 = arith.mulf %313, %259 : vector<2x32xf32>
    %325 = arith.mulf %305, %315 : vector<2x32xf32>
    %326 = arith.addf %324, %325 : vector<2x32xf32>
    %327 = math.tanh %326 : vector<2x32xf32>
    %328 = arith.mulf %323, %327 : vector<2x32xf32>
    %329 = vector.extract_strided_slice %328 {offsets = [0, 0], sizes = [1, 32], strides = [1, 1]} : vector<2x32xf32> to vector<1x32xf32>
    %330 = vector.broadcast %329 : vector<1x32xf32> to vector<5x32xf32>
    %331 = arith.mulf %11, %330 : vector<5x32xf32>
    %cst_134 = arith.constant dense<0.000000e+00> : vector<5xf32>
    %332 = vector.multi_reduction <add>, %331, %cst_134 [1] : vector<5x32xf32> to vector<5xf32>
    %333 = vector.shape_cast %332 : vector<5xf32> to vector<5x1xf32>
    %334 = vector.extract_strided_slice %328 {offsets = [1, 0], sizes = [1, 32], strides = [1, 1]} : vector<2x32xf32> to vector<1x32xf32>
    %335 = vector.broadcast %334 : vector<1x32xf32> to vector<5x32xf32>
    %336 = arith.mulf %13, %335 : vector<5x32xf32>
    %cst_135 = arith.constant dense<0.000000e+00> : vector<5xf32>
    %337 = vector.multi_reduction <add>, %336, %cst_135 [1] : vector<5x32xf32> to vector<5xf32>
    %338 = vector.shape_cast %337 : vector<5xf32> to vector<5x1xf32>
    %339 = tpu.concatenate %333, %338 in 1 : vector<5x1xf32>, vector<5x1xf32> -> vector<5x2xf32>
    %cst_136 = arith.constant dense<0xFF800000> : vector<2xf32>
    %340 = vector.multi_reduction <maximumf>, %339, %cst_136 [0] : vector<5x2xf32> to vector<2xf32>
    %341 = vector.shape_cast %340 : vector<2xf32> to vector<1x2xf32>
    %342 = vector.broadcast %341 : vector<1x2xf32> to vector<5x2xf32>
    %343 = arith.subf %339, %342 : vector<5x2xf32>
    %344 = math.exp %343 : vector<5x2xf32>
    %cst_137 = arith.constant dense<0.000000e+00> : vector<2xf32>
    %345 = vector.multi_reduction <add>, %344, %cst_137 [0] : vector<5x2xf32> to vector<2xf32>
    %346 = vector.shape_cast %345 : vector<2xf32> to vector<1x2xf32>
    %347 = tpu.reciprocal %346 {approx = true} : vector<1x2xf32> -> vector<1x2xf32>
    %348 = vector.broadcast %347 : vector<1x2xf32> to vector<5x2xf32>
    %349 = arith.mulf %344, %348 : vector<5x2xf32>
    %cst_138 = arith.constant dense<0.000000e+00> : vector<5x10xf32>
    %350 = tpu.matmul %349, %19, %cst_138 {dimension_numbers = #tpu.dot_dimension_numbers<[1], [0], [0], [1], [0, 0, 1, 1], [], []>} : vector<5x2xf32>, vector<2x10xf32>, vector<5x10xf32> -> vector<5x10xf32>
    %351 = arith.mulf %18, %350 : vector<5x10xf32>
    %cst_139 = arith.constant dense<0.000000e+00> : vector<10xf32>
    %352 = vector.multi_reduction <add>, %351, %cst_139 [0] : vector<5x10xf32> to vector<10xf32>
    %353 = vector.shape_cast %352 : vector<10xf32> to vector<1x10xf32>
    %354 = vector.broadcast %353 : vector<1x10xf32> to vector<2x10xf32>
    %355 = arith.mulf %20, %354 : vector<2x10xf32>
    %cst_140 = arith.constant dense<0.000000e+00> : vector<2x32xf32>
    %356 = tpu.matmul %355, %8, %cst_140 {dimension_numbers = #tpu.dot_dimension_numbers<[1], [0], [0], [1], [0, 0, 1, 1], [], []>} : vector<2x10xf32>, vector<10x32xf32>, vector<2x32xf32> -> vector<2x32xf32>
    %357 = tpu.concatenate %328, %356 in 1 : vector<2x32xf32>, vector<2x32xf32> -> vector<2x64xf32>
    %c5 = arith.constant 5 : index
    %c0_141 = arith.constant 0 : index
    %c0_142 = arith.constant 0 : index
    %358 = vector.load %arg0[%c5, %c0_141, %c0_142] : memref<6x2x32xf32, #tpu.memory_space<vmem>>, vector<1x2x32xf32>
    %359 = vector.shape_cast %358 : vector<1x2x32xf32> to vector<2x32xf32>
    %cst_143 = arith.constant dense<0.000000e+00> : vector<2x128xf32>
    %360 = tpu.matmul %359, %2, %cst_143 {dimension_numbers = #tpu.dot_dimension_numbers<[1], [0], [0], [1], [0, 0, 1, 1], [], []>} : vector<2x32xf32>, vector<32x128xf32>, vector<2x128xf32> -> vector<2x128xf32>
    %cst_144 = arith.constant dense<0.000000e+00> : vector<2x128xf32>
    %361 = tpu.matmul %328, %3, %cst_144 {dimension_numbers = #tpu.dot_dimension_numbers<[1], [0], [0], [1], [0, 0, 1, 1], [], []>} : vector<2x32xf32>, vector<32x128xf32>, vector<2x128xf32> -> vector<2x128xf32>
    %362 = arith.addf %360, %361 : vector<2x128xf32>
    %363 = vector.broadcast %4 : vector<1x128xf32> to vector<2x128xf32>
    %364 = arith.addf %362, %363 : vector<2x128xf32>
    %365 = vector.extract_strided_slice %364 {offsets = [0, 0], sizes = [2, 32], strides = [1, 1]} : vector<2x128xf32> to vector<2x32xf32>
    %cst_145 = arith.constant 5.000000e-01 : f32
    %366 = vector.broadcast %cst_145 : f32 to vector<2x32xf32>
    %367 = arith.mulf %366, %365 : vector<2x32xf32>
    %368 = math.tanh %367 : vector<2x32xf32>
    %cst_146 = arith.constant 1.000000e+00 : f32
    %369 = vector.broadcast %cst_146 : f32 to vector<2x32xf32>
    %370 = arith.addf %368, %369 : vector<2x32xf32>
    %cst_147 = arith.constant 5.000000e-01 : f32
    %371 = vector.broadcast %cst_147 : f32 to vector<2x32xf32>
    %372 = arith.mulf %371, %370 : vector<2x32xf32>
    %373 = vector.extract_strided_slice %364 {offsets = [0, 32], sizes = [2, 32], strides = [1, 1]} : vector<2x128xf32> to vector<2x32xf32>
    %cst_148 = arith.constant 5.000000e-01 : f32
    %374 = vector.broadcast %cst_148 : f32 to vector<2x32xf32>
    %375 = arith.mulf %374, %373 : vector<2x32xf32>
    %376 = math.tanh %375 : vector<2x32xf32>
    %cst_149 = arith.constant 1.000000e+00 : f32
    %377 = vector.broadcast %cst_149 : f32 to vector<2x32xf32>
    %378 = arith.addf %376, %377 : vector<2x32xf32>
    %cst_150 = arith.constant 5.000000e-01 : f32
    %379 = vector.broadcast %cst_150 : f32 to vector<2x32xf32>
    %380 = arith.mulf %379, %378 : vector<2x32xf32>
    %381 = vector.extract_strided_slice %364 {offsets = [0, 64], sizes = [2, 32], strides = [1, 1]} : vector<2x128xf32> to vector<2x32xf32>
    %382 = math.tanh %381 : vector<2x32xf32>
    %383 = vector.extract_strided_slice %364 {offsets = [0, 96], sizes = [2, 32], strides = [1, 1]} : vector<2x128xf32> to vector<2x32xf32>
    %cst_151 = arith.constant 5.000000e-01 : f32
    %384 = vector.broadcast %cst_151 : f32 to vector<2x32xf32>
    %385 = arith.mulf %384, %383 : vector<2x32xf32>
    %386 = math.tanh %385 : vector<2x32xf32>
    %cst_152 = arith.constant 1.000000e+00 : f32
    %387 = vector.broadcast %cst_152 : f32 to vector<2x32xf32>
    %388 = arith.addf %386, %387 : vector<2x32xf32>
    %cst_153 = arith.constant 5.000000e-01 : f32
    %389 = vector.broadcast %cst_153 : f32 to vector<2x32xf32>
    %390 = arith.mulf %389, %388 : vector<2x32xf32>
    %391 = arith.mulf %380, %326 : vector<2x32xf32>
    %392 = arith.mulf %372, %382 : vector<2x32xf32>
    %393 = arith.addf %391, %392 : vector<2x32xf32>
    %394 = math.tanh %393 : vector<2x32xf32>
    %395 = arith.mulf %390, %394 : vector<2x32xf32>
    %396 = vector.extract_strided_slice %395 {offsets = [0, 0], sizes = [1, 32], strides = [1, 1]} : vector<2x32xf32> to vector<1x32xf32>
    %397 = vector.broadcast %396 : vector<1x32xf32> to vector<5x32xf32>
    %398 = arith.mulf %11, %397 : vector<5x32xf32>
    %cst_154 = arith.constant dense<0.000000e+00> : vector<5xf32>
    %399 = vector.multi_reduction <add>, %398, %cst_154 [1] : vector<5x32xf32> to vector<5xf32>
    %400 = vector.shape_cast %399 : vector<5xf32> to vector<5x1xf32>
    %401 = vector.extract_strided_slice %395 {offsets = [1, 0], sizes = [1, 32], strides = [1, 1]} : vector<2x32xf32> to vector<1x32xf32>
    %402 = vector.broadcast %401 : vector<1x32xf32> to vector<5x32xf32>
    %403 = arith.mulf %13, %402 : vector<5x32xf32>
    %cst_155 = arith.constant dense<0.000000e+00> : vector<5xf32>
    %404 = vector.multi_reduction <add>, %403, %cst_155 [1] : vector<5x32xf32> to vector<5xf32>
    %405 = vector.shape_cast %404 : vector<5xf32> to vector<5x1xf32>
    %406 = tpu.concatenate %400, %405 in 1 : vector<5x1xf32>, vector<5x1xf32> -> vector<5x2xf32>
    %cst_156 = arith.constant dense<0xFF800000> : vector<2xf32>
    %407 = vector.multi_reduction <maximumf>, %406, %cst_156 [0] : vector<5x2xf32> to vector<2xf32>
    %408 = vector.shape_cast %407 : vector<2xf32> to vector<1x2xf32>
    %409 = vector.broadcast %408 : vector<1x2xf32> to vector<5x2xf32>
    %410 = arith.subf %406, %409 : vector<5x2xf32>
    %411 = math.exp %410 : vector<5x2xf32>
    %cst_157 = arith.constant dense<0.000000e+00> : vector<2xf32>
    %412 = vector.multi_reduction <add>, %411, %cst_157 [0] : vector<5x2xf32> to vector<2xf32>
    %413 = vector.shape_cast %412 : vector<2xf32> to vector<1x2xf32>
    %414 = tpu.reciprocal %413 {approx = true} : vector<1x2xf32> -> vector<1x2xf32>
    %415 = vector.broadcast %414 : vector<1x2xf32> to vector<5x2xf32>
    %416 = arith.mulf %411, %415 : vector<5x2xf32>
    %cst_158 = arith.constant dense<0.000000e+00> : vector<5x10xf32>
    %417 = tpu.matmul %416, %19, %cst_158 {dimension_numbers = #tpu.dot_dimension_numbers<[1], [0], [0], [1], [0, 0, 1, 1], [], []>} : vector<5x2xf32>, vector<2x10xf32>, vector<5x10xf32> -> vector<5x10xf32>
    %418 = arith.mulf %18, %417 : vector<5x10xf32>
    %cst_159 = arith.constant dense<0.000000e+00> : vector<10xf32>
    %419 = vector.multi_reduction <add>, %418, %cst_159 [0] : vector<5x10xf32> to vector<10xf32>
    %420 = vector.shape_cast %419 : vector<10xf32> to vector<1x10xf32>
    %421 = vector.broadcast %420 : vector<1x10xf32> to vector<2x10xf32>
    %422 = arith.mulf %20, %421 : vector<2x10xf32>
    %cst_160 = arith.constant dense<0.000000e+00> : vector<2x32xf32>
    %423 = tpu.matmul %422, %8, %cst_160 {dimension_numbers = #tpu.dot_dimension_numbers<[1], [0], [0], [1], [0, 0, 1, 1], [], []>} : vector<2x10xf32>, vector<10x32xf32>, vector<2x32xf32> -> vector<2x32xf32>
    %424 = tpu.concatenate %395, %423 in 1 : vector<2x32xf32>, vector<2x32xf32> -> vector<2x64xf32>
    %cst_161 = arith.constant dense<0.000000e+00> : vector<2x128xf32>
    %425 = tpu.matmul %89, %5, %cst_161 {dimension_numbers = #tpu.dot_dimension_numbers<[1], [0], [0], [1], [0, 0, 1, 1], [], []>} : vector<2x64xf32>, vector<64x128xf32>, vector<2x128xf32> -> vector<2x128xf32>
    %cst_162 = arith.constant dense<0.000000e+00> : vector<2x128xf32>
    %426 = tpu.matmul %0, %6, %cst_162 {dimension_numbers = #tpu.dot_dimension_numbers<[1], [0], [0], [1], [0, 0, 1, 1], [], []>} : vector<2x32xf32>, vector<32x128xf32>, vector<2x128xf32> -> vector<2x128xf32>
    %427 = arith.addf %425, %426 : vector<2x128xf32>
    %428 = vector.broadcast %7 : vector<1x128xf32> to vector<2x128xf32>
    %429 = arith.addf %427, %428 : vector<2x128xf32>
    %430 = vector.extract_strided_slice %429 {offsets = [0, 0], sizes = [2, 32], strides = [1, 1]} : vector<2x128xf32> to vector<2x32xf32>
    %cst_163 = arith.constant 5.000000e-01 : f32
    %431 = vector.broadcast %cst_163 : f32 to vector<2x32xf32>
    %432 = arith.mulf %431, %430 : vector<2x32xf32>
    %433 = math.tanh %432 : vector<2x32xf32>
    %cst_164 = arith.constant 1.000000e+00 : f32
    %434 = vector.broadcast %cst_164 : f32 to vector<2x32xf32>
    %435 = arith.addf %433, %434 : vector<2x32xf32>
    %cst_165 = arith.constant 5.000000e-01 : f32
    %436 = vector.broadcast %cst_165 : f32 to vector<2x32xf32>
    %437 = arith.mulf %436, %435 : vector<2x32xf32>
    %438 = vector.extract_strided_slice %429 {offsets = [0, 32], sizes = [2, 32], strides = [1, 1]} : vector<2x128xf32> to vector<2x32xf32>
    %cst_166 = arith.constant 5.000000e-01 : f32
    %439 = vector.broadcast %cst_166 : f32 to vector<2x32xf32>
    %440 = arith.mulf %439, %438 : vector<2x32xf32>
    %441 = math.tanh %440 : vector<2x32xf32>
    %cst_167 = arith.constant 1.000000e+00 : f32
    %442 = vector.broadcast %cst_167 : f32 to vector<2x32xf32>
    %443 = arith.addf %441, %442 : vector<2x32xf32>
    %cst_168 = arith.constant 5.000000e-01 : f32
    %444 = vector.broadcast %cst_168 : f32 to vector<2x32xf32>
    %445 = arith.mulf %444, %443 : vector<2x32xf32>
    %446 = vector.extract_strided_slice %429 {offsets = [0, 64], sizes = [2, 32], strides = [1, 1]} : vector<2x128xf32> to vector<2x32xf32>
    %447 = math.tanh %446 : vector<2x32xf32>
    %448 = vector.extract_strided_slice %429 {offsets = [0, 96], sizes = [2, 32], strides = [1, 1]} : vector<2x128xf32> to vector<2x32xf32>
    %cst_169 = arith.constant 5.000000e-01 : f32
    %449 = vector.broadcast %cst_169 : f32 to vector<2x32xf32>
    %450 = arith.mulf %449, %448 : vector<2x32xf32>
    %451 = math.tanh %450 : vector<2x32xf32>
    %cst_170 = arith.constant 1.000000e+00 : f32
    %452 = vector.broadcast %cst_170 : f32 to vector<2x32xf32>
    %453 = arith.addf %451, %452 : vector<2x32xf32>
    %cst_171 = arith.constant 5.000000e-01 : f32
    %454 = vector.broadcast %cst_171 : f32 to vector<2x32xf32>
    %455 = arith.mulf %454, %453 : vector<2x32xf32>
    %456 = arith.mulf %445, %1 : vector<2x32xf32>
    %457 = arith.mulf %437, %447 : vector<2x32xf32>
    %458 = arith.addf %456, %457 : vector<2x32xf32>
    %459 = math.tanh %458 : vector<2x32xf32>
    %460 = arith.mulf %455, %459 : vector<2x32xf32>
    %461 = vector.extract_strided_slice %460 {offsets = [0, 0], sizes = [1, 32], strides = [1, 1]} : vector<2x32xf32> to vector<1x32xf32>
    %462 = vector.broadcast %461 : vector<1x32xf32> to vector<5x32xf32>
    %463 = arith.mulf %15, %462 : vector<5x32xf32>
    %cst_172 = arith.constant dense<0.000000e+00> : vector<5xf32>
    %464 = vector.multi_reduction <add>, %463, %cst_172 [1] : vector<5x32xf32> to vector<5xf32>
    %465 = vector.shape_cast %464 : vector<5xf32> to vector<5x1xf32>
    %466 = vector.extract_strided_slice %460 {offsets = [1, 0], sizes = [1, 32], strides = [1, 1]} : vector<2x32xf32> to vector<1x32xf32>
    %467 = vector.broadcast %466 : vector<1x32xf32> to vector<5x32xf32>
    %468 = arith.mulf %17, %467 : vector<5x32xf32>
    %cst_173 = arith.constant dense<0.000000e+00> : vector<5xf32>
    %469 = vector.multi_reduction <add>, %468, %cst_173 [1] : vector<5x32xf32> to vector<5xf32>
    %470 = vector.shape_cast %469 : vector<5xf32> to vector<5x1xf32>
    %471 = tpu.concatenate %465, %470 in 1 : vector<5x1xf32>, vector<5x1xf32> -> vector<5x2xf32>
    %cst_174 = arith.constant dense<0xFF800000> : vector<2xf32>
    %472 = vector.multi_reduction <maximumf>, %471, %cst_174 [0] : vector<5x2xf32> to vector<2xf32>
    %473 = vector.shape_cast %472 : vector<2xf32> to vector<1x2xf32>
    %474 = vector.broadcast %473 : vector<1x2xf32> to vector<5x2xf32>
    %475 = arith.subf %471, %474 : vector<5x2xf32>
    %476 = math.exp %475 : vector<5x2xf32>
    %cst_175 = arith.constant dense<0.000000e+00> : vector<2xf32>
    %477 = vector.multi_reduction <add>, %476, %cst_175 [0] : vector<5x2xf32> to vector<2xf32>
    %478 = vector.shape_cast %477 : vector<2xf32> to vector<1x2xf32>
    %479 = tpu.reciprocal %478 {approx = true} : vector<1x2xf32> -> vector<1x2xf32>
    %480 = vector.broadcast %479 : vector<1x2xf32> to vector<5x2xf32>
    %481 = arith.mulf %476, %480 : vector<5x2xf32>
    %cst_176 = arith.constant dense<0.000000e+00> : vector<5x10xf32>
    %482 = tpu.matmul %481, %19, %cst_176 {dimension_numbers = #tpu.dot_dimension_numbers<[1], [0], [0], [1], [0, 0, 1, 1], [], []>} : vector<5x2xf32>, vector<2x10xf32>, vector<5x10xf32> -> vector<5x10xf32>
    %483 = arith.mulf %18, %482 : vector<5x10xf32>
    %cst_177 = arith.constant dense<0.000000e+00> : vector<10xf32>
    %484 = vector.multi_reduction <add>, %483, %cst_177 [0] : vector<5x10xf32> to vector<10xf32>
    %485 = vector.shape_cast %484 : vector<10xf32> to vector<1x10xf32>
    %486 = vector.broadcast %485 : vector<1x10xf32> to vector<2x10xf32>
    %487 = arith.mulf %20, %486 : vector<2x10xf32>
    %cst_178 = arith.constant dense<0.000000e+00> : vector<2x32xf32>
    %488 = tpu.matmul %487, %9, %cst_178 {dimension_numbers = #tpu.dot_dimension_numbers<[1], [0], [0], [1], [0, 0, 1, 1], [], []>} : vector<2x10xf32>, vector<10x32xf32>, vector<2x32xf32> -> vector<2x32xf32>
    %489 = tpu.concatenate %460, %488 in 1 : vector<2x32xf32>, vector<2x32xf32> -> vector<2x64xf32>
    %cst_179 = arith.constant dense<0.000000e+00> : vector<2x128xf32>
    %490 = tpu.matmul %156, %5, %cst_179 {dimension_numbers = #tpu.dot_dimension_numbers<[1], [0], [0], [1], [0, 0, 1, 1], [], []>} : vector<2x64xf32>, vector<64x128xf32>, vector<2x128xf32> -> vector<2x128xf32>
    %cst_180 = arith.constant dense<0.000000e+00> : vector<2x128xf32>
    %491 = tpu.matmul %460, %6, %cst_180 {dimension_numbers = #tpu.dot_dimension_numbers<[1], [0], [0], [1], [0, 0, 1, 1], [], []>} : vector<2x32xf32>, vector<32x128xf32>, vector<2x128xf32> -> vector<2x128xf32>
    %492 = arith.addf %490, %491 : vector<2x128xf32>
    %493 = vector.broadcast %7 : vector<1x128xf32> to vector<2x128xf32>
    %494 = arith.addf %492, %493 : vector<2x128xf32>
    %495 = vector.extract_strided_slice %494 {offsets = [0, 0], sizes = [2, 32], strides = [1, 1]} : vector<2x128xf32> to vector<2x32xf32>
    %cst_181 = arith.constant 5.000000e-01 : f32
    %496 = vector.broadcast %cst_181 : f32 to vector<2x32xf32>
    %497 = arith.mulf %496, %495 : vector<2x32xf32>
    %498 = math.tanh %497 : vector<2x32xf32>
    %cst_182 = arith.constant 1.000000e+00 : f32
    %499 = vector.broadcast %cst_182 : f32 to vector<2x32xf32>
    %500 = arith.addf %498, %499 : vector<2x32xf32>
    %cst_183 = arith.constant 5.000000e-01 : f32
    %501 = vector.broadcast %cst_183 : f32 to vector<2x32xf32>
    %502 = arith.mulf %501, %500 : vector<2x32xf32>
    %503 = vector.extract_strided_slice %494 {offsets = [0, 32], sizes = [2, 32], strides = [1, 1]} : vector<2x128xf32> to vector<2x32xf32>
    %cst_184 = arith.constant 5.000000e-01 : f32
    %504 = vector.broadcast %cst_184 : f32 to vector<2x32xf32>
    %505 = arith.mulf %504, %503 : vector<2x32xf32>
    %506 = math.tanh %505 : vector<2x32xf32>
    %cst_185 = arith.constant 1.000000e+00 : f32
    %507 = vector.broadcast %cst_185 : f32 to vector<2x32xf32>
    %508 = arith.addf %506, %507 : vector<2x32xf32>
    %cst_186 = arith.constant 5.000000e-01 : f32
    %509 = vector.broadcast %cst_186 : f32 to vector<2x32xf32>
    %510 = arith.mulf %509, %508 : vector<2x32xf32>
    %511 = vector.extract_strided_slice %494 {offsets = [0, 64], sizes = [2, 32], strides = [1, 1]} : vector<2x128xf32> to vector<2x32xf32>
    %512 = math.tanh %511 : vector<2x32xf32>
    %513 = vector.extract_strided_slice %494 {offsets = [0, 96], sizes = [2, 32], strides = [1, 1]} : vector<2x128xf32> to vector<2x32xf32>
    %cst_187 = arith.constant 5.000000e-01 : f32
    %514 = vector.broadcast %cst_187 : f32 to vector<2x32xf32>
    %515 = arith.mulf %514, %513 : vector<2x32xf32>
    %516 = math.tanh %515 : vector<2x32xf32>
    %cst_188 = arith.constant 1.000000e+00 : f32
    %517 = vector.broadcast %cst_188 : f32 to vector<2x32xf32>
    %518 = arith.addf %516, %517 : vector<2x32xf32>
    %cst_189 = arith.constant 5.000000e-01 : f32
    %519 = vector.broadcast %cst_189 : f32 to vector<2x32xf32>
    %520 = arith.mulf %519, %518 : vector<2x32xf32>
    %521 = arith.mulf %510, %458 : vector<2x32xf32>
    %522 = arith.mulf %502, %512 : vector<2x32xf32>
    %523 = arith.addf %521, %522 : vector<2x32xf32>
    %524 = math.tanh %523 : vector<2x32xf32>
    %525 = arith.mulf %520, %524 : vector<2x32xf32>
    %526 = vector.extract_strided_slice %525 {offsets = [0, 0], sizes = [1, 32], strides = [1, 1]} : vector<2x32xf32> to vector<1x32xf32>
    %527 = vector.broadcast %526 : vector<1x32xf32> to vector<5x32xf32>
    %528 = arith.mulf %15, %527 : vector<5x32xf32>
    %cst_190 = arith.constant dense<0.000000e+00> : vector<5xf32>
    %529 = vector.multi_reduction <add>, %528, %cst_190 [1] : vector<5x32xf32> to vector<5xf32>
    %530 = vector.shape_cast %529 : vector<5xf32> to vector<5x1xf32>
    %531 = vector.extract_strided_slice %525 {offsets = [1, 0], sizes = [1, 32], strides = [1, 1]} : vector<2x32xf32> to vector<1x32xf32>
    %532 = vector.broadcast %531 : vector<1x32xf32> to vector<5x32xf32>
    %533 = arith.mulf %17, %532 : vector<5x32xf32>
    %cst_191 = arith.constant dense<0.000000e+00> : vector<5xf32>
    %534 = vector.multi_reduction <add>, %533, %cst_191 [1] : vector<5x32xf32> to vector<5xf32>
    %535 = vector.shape_cast %534 : vector<5xf32> to vector<5x1xf32>
    %536 = tpu.concatenate %530, %535 in 1 : vector<5x1xf32>, vector<5x1xf32> -> vector<5x2xf32>
    %cst_192 = arith.constant dense<0xFF800000> : vector<2xf32>
    %537 = vector.multi_reduction <maximumf>, %536, %cst_192 [0] : vector<5x2xf32> to vector<2xf32>
    %538 = vector.shape_cast %537 : vector<2xf32> to vector<1x2xf32>
    %539 = vector.broadcast %538 : vector<1x2xf32> to vector<5x2xf32>
    %540 = arith.subf %536, %539 : vector<5x2xf32>
    %541 = math.exp %540 : vector<5x2xf32>
    %cst_193 = arith.constant dense<0.000000e+00> : vector<2xf32>
    %542 = vector.multi_reduction <add>, %541, %cst_193 [0] : vector<5x2xf32> to vector<2xf32>
    %543 = vector.shape_cast %542 : vector<2xf32> to vector<1x2xf32>
    %544 = tpu.reciprocal %543 {approx = true} : vector<1x2xf32> -> vector<1x2xf32>
    %545 = vector.broadcast %544 : vector<1x2xf32> to vector<5x2xf32>
    %546 = arith.mulf %541, %545 : vector<5x2xf32>
    %cst_194 = arith.constant dense<0.000000e+00> : vector<5x10xf32>
    %547 = tpu.matmul %546, %19, %cst_194 {dimension_numbers = #tpu.dot_dimension_numbers<[1], [0], [0], [1], [0, 0, 1, 1], [], []>} : vector<5x2xf32>, vector<2x10xf32>, vector<5x10xf32> -> vector<5x10xf32>
    %548 = arith.mulf %18, %547 : vector<5x10xf32>
    %cst_195 = arith.constant dense<0.000000e+00> : vector<10xf32>
    %549 = vector.multi_reduction <add>, %548, %cst_195 [0] : vector<5x10xf32> to vector<10xf32>
    %550 = vector.shape_cast %549 : vector<10xf32> to vector<1x10xf32>
    %551 = vector.broadcast %550 : vector<1x10xf32> to vector<2x10xf32>
    %552 = arith.mulf %20, %551 : vector<2x10xf32>
    %cst_196 = arith.constant dense<0.000000e+00> : vector<2x32xf32>
    %553 = tpu.matmul %552, %9, %cst_196 {dimension_numbers = #tpu.dot_dimension_numbers<[1], [0], [0], [1], [0, 0, 1, 1], [], []>} : vector<2x10xf32>, vector<10x32xf32>, vector<2x32xf32> -> vector<2x32xf32>
    %554 = tpu.concatenate %525, %553 in 1 : vector<2x32xf32>, vector<2x32xf32> -> vector<2x64xf32>
    %cst_197 = arith.constant dense<0.000000e+00> : vector<2x128xf32>
    %555 = tpu.matmul %223, %5, %cst_197 {dimension_numbers = #tpu.dot_dimension_numbers<[1], [0], [0], [1], [0, 0, 1, 1], [], []>} : vector<2x64xf32>, vector<64x128xf32>, vector<2x128xf32> -> vector<2x128xf32>
    %cst_198 = arith.constant dense<0.000000e+00> : vector<2x128xf32>
    %556 = tpu.matmul %525, %6, %cst_198 {dimension_numbers = #tpu.dot_dimension_numbers<[1], [0], [0], [1], [0, 0, 1, 1], [], []>} : vector<2x32xf32>, vector<32x128xf32>, vector<2x128xf32> -> vector<2x128xf32>
    %557 = arith.addf %555, %556 : vector<2x128xf32>
    %558 = vector.broadcast %7 : vector<1x128xf32> to vector<2x128xf32>
    %559 = arith.addf %557, %558 : vector<2x128xf32>
    %560 = vector.extract_strided_slice %559 {offsets = [0, 0], sizes = [2, 32], strides = [1, 1]} : vector<2x128xf32> to vector<2x32xf32>
    %cst_199 = arith.constant 5.000000e-01 : f32
    %561 = vector.broadcast %cst_199 : f32 to vector<2x32xf32>
    %562 = arith.mulf %561, %560 : vector<2x32xf32>
    %563 = math.tanh %562 : vector<2x32xf32>
    %cst_200 = arith.constant 1.000000e+00 : f32
    %564 = vector.broadcast %cst_200 : f32 to vector<2x32xf32>
    %565 = arith.addf %563, %564 : vector<2x32xf32>
    %cst_201 = arith.constant 5.000000e-01 : f32
    %566 = vector.broadcast %cst_201 : f32 to vector<2x32xf32>
    %567 = arith.mulf %566, %565 : vector<2x32xf32>
    %568 = vector.extract_strided_slice %559 {offsets = [0, 32], sizes = [2, 32], strides = [1, 1]} : vector<2x128xf32> to vector<2x32xf32>
    %cst_202 = arith.constant 5.000000e-01 : f32
    %569 = vector.broadcast %cst_202 : f32 to vector<2x32xf32>
    %570 = arith.mulf %569, %568 : vector<2x32xf32>
    %571 = math.tanh %570 : vector<2x32xf32>
    %cst_203 = arith.constant 1.000000e+00 : f32
    %572 = vector.broadcast %cst_203 : f32 to vector<2x32xf32>
    %573 = arith.addf %571, %572 : vector<2x32xf32>
    %cst_204 = arith.constant 5.000000e-01 : f32
    %574 = vector.broadcast %cst_204 : f32 to vector<2x32xf32>
    %575 = arith.mulf %574, %573 : vector<2x32xf32>
    %576 = vector.extract_strided_slice %559 {offsets = [0, 64], sizes = [2, 32], strides = [1, 1]} : vector<2x128xf32> to vector<2x32xf32>
    %577 = math.tanh %576 : vector<2x32xf32>
    %578 = vector.extract_strided_slice %559 {offsets = [0, 96], sizes = [2, 32], strides = [1, 1]} : vector<2x128xf32> to vector<2x32xf32>
    %cst_205 = arith.constant 5.000000e-01 : f32
    %579 = vector.broadcast %cst_205 : f32 to vector<2x32xf32>
    %580 = arith.mulf %579, %578 : vector<2x32xf32>
    %581 = math.tanh %580 : vector<2x32xf32>
    %cst_206 = arith.constant 1.000000e+00 : f32
    %582 = vector.broadcast %cst_206 : f32 to vector<2x32xf32>
    %583 = arith.addf %581, %582 : vector<2x32xf32>
    %cst_207 = arith.constant 5.000000e-01 : f32
    %584 = vector.broadcast %cst_207 : f32 to vector<2x32xf32>
    %585 = arith.mulf %584, %583 : vector<2x32xf32>
    %586 = arith.mulf %575, %523 : vector<2x32xf32>
    %587 = arith.mulf %567, %577 : vector<2x32xf32>
    %588 = arith.addf %586, %587 : vector<2x32xf32>
    %589 = math.tanh %588 : vector<2x32xf32>
    %590 = arith.mulf %585, %589 : vector<2x32xf32>
    %591 = vector.extract_strided_slice %590 {offsets = [0, 0], sizes = [1, 32], strides = [1, 1]} : vector<2x32xf32> to vector<1x32xf32>
    %592 = vector.broadcast %591 : vector<1x32xf32> to vector<5x32xf32>
    %593 = arith.mulf %15, %592 : vector<5x32xf32>
    %cst_208 = arith.constant dense<0.000000e+00> : vector<5xf32>
    %594 = vector.multi_reduction <add>, %593, %cst_208 [1] : vector<5x32xf32> to vector<5xf32>
    %595 = vector.shape_cast %594 : vector<5xf32> to vector<5x1xf32>
    %596 = vector.extract_strided_slice %590 {offsets = [1, 0], sizes = [1, 32], strides = [1, 1]} : vector<2x32xf32> to vector<1x32xf32>
    %597 = vector.broadcast %596 : vector<1x32xf32> to vector<5x32xf32>
    %598 = arith.mulf %17, %597 : vector<5x32xf32>
    %cst_209 = arith.constant dense<0.000000e+00> : vector<5xf32>
    %599 = vector.multi_reduction <add>, %598, %cst_209 [1] : vector<5x32xf32> to vector<5xf32>
    %600 = vector.shape_cast %599 : vector<5xf32> to vector<5x1xf32>
    %601 = tpu.concatenate %595, %600 in 1 : vector<5x1xf32>, vector<5x1xf32> -> vector<5x2xf32>
    %cst_210 = arith.constant dense<0xFF800000> : vector<2xf32>
    %602 = vector.multi_reduction <maximumf>, %601, %cst_210 [0] : vector<5x2xf32> to vector<2xf32>
    %603 = vector.shape_cast %602 : vector<2xf32> to vector<1x2xf32>
    %604 = vector.broadcast %603 : vector<1x2xf32> to vector<5x2xf32>
    %605 = arith.subf %601, %604 : vector<5x2xf32>
    %606 = math.exp %605 : vector<5x2xf32>
    %cst_211 = arith.constant dense<0.000000e+00> : vector<2xf32>
    %607 = vector.multi_reduction <add>, %606, %cst_211 [0] : vector<5x2xf32> to vector<2xf32>
    %608 = vector.shape_cast %607 : vector<2xf32> to vector<1x2xf32>
    %609 = tpu.reciprocal %608 {approx = true} : vector<1x2xf32> -> vector<1x2xf32>
    %610 = vector.broadcast %609 : vector<1x2xf32> to vector<5x2xf32>
    %611 = arith.mulf %606, %610 : vector<5x2xf32>
    %cst_212 = arith.constant dense<0.000000e+00> : vector<5x10xf32>
    %612 = tpu.matmul %611, %19, %cst_212 {dimension_numbers = #tpu.dot_dimension_numbers<[1], [0], [0], [1], [0, 0, 1, 1], [], []>} : vector<5x2xf32>, vector<2x10xf32>, vector<5x10xf32> -> vector<5x10xf32>
    %613 = arith.mulf %18, %612 : vector<5x10xf32>
    %cst_213 = arith.constant dense<0.000000e+00> : vector<10xf32>
    %614 = vector.multi_reduction <add>, %613, %cst_213 [0] : vector<5x10xf32> to vector<10xf32>
    %615 = vector.shape_cast %614 : vector<10xf32> to vector<1x10xf32>
    %616 = vector.broadcast %615 : vector<1x10xf32> to vector<2x10xf32>
    %617 = arith.mulf %20, %616 : vector<2x10xf32>
    %cst_214 = arith.constant dense<0.000000e+00> : vector<2x32xf32>
    %618 = tpu.matmul %617, %9, %cst_214 {dimension_numbers = #tpu.dot_dimension_numbers<[1], [0], [0], [1], [0, 0, 1, 1], [], []>} : vector<2x10xf32>, vector<10x32xf32>, vector<2x32xf32> -> vector<2x32xf32>
    %619 = tpu.concatenate %590, %618 in 1 : vector<2x32xf32>, vector<2x32xf32> -> vector<2x64xf32>
    %cst_215 = arith.constant dense<0.000000e+00> : vector<2x128xf32>
    %620 = tpu.matmul %290, %5, %cst_215 {dimension_numbers = #tpu.dot_dimension_numbers<[1], [0], [0], [1], [0, 0, 1, 1], [], []>} : vector<2x64xf32>, vector<64x128xf32>, vector<2x128xf32> -> vector<2x128xf32>
    %cst_216 = arith.constant dense<0.000000e+00> : vector<2x128xf32>
    %621 = tpu.matmul %590, %6, %cst_216 {dimension_numbers = #tpu.dot_dimension_numbers<[1], [0], [0], [1], [0, 0, 1, 1], [], []>} : vector<2x32xf32>, vector<32x128xf32>, vector<2x128xf32> -> vector<2x128xf32>
    %622 = arith.addf %620, %621 : vector<2x128xf32>
    %623 = vector.broadcast %7 : vector<1x128xf32> to vector<2x128xf32>
    %624 = arith.addf %622, %623 : vector<2x128xf32>
    %625 = vector.extract_strided_slice %624 {offsets = [0, 0], sizes = [2, 32], strides = [1, 1]} : vector<2x128xf32> to vector<2x32xf32>
    %cst_217 = arith.constant 5.000000e-01 : f32
    %626 = vector.broadcast %cst_217 : f32 to vector<2x32xf32>
    %627 = arith.mulf %626, %625 : vector<2x32xf32>
    %628 = math.tanh %627 : vector<2x32xf32>
    %cst_218 = arith.constant 1.000000e+00 : f32
    %629 = vector.broadcast %cst_218 : f32 to vector<2x32xf32>
    %630 = arith.addf %628, %629 : vector<2x32xf32>
    %cst_219 = arith.constant 5.000000e-01 : f32
    %631 = vector.broadcast %cst_219 : f32 to vector<2x32xf32>
    %632 = arith.mulf %631, %630 : vector<2x32xf32>
    %633 = vector.extract_strided_slice %624 {offsets = [0, 32], sizes = [2, 32], strides = [1, 1]} : vector<2x128xf32> to vector<2x32xf32>
    %cst_220 = arith.constant 5.000000e-01 : f32
    %634 = vector.broadcast %cst_220 : f32 to vector<2x32xf32>
    %635 = arith.mulf %634, %633 : vector<2x32xf32>
    %636 = math.tanh %635 : vector<2x32xf32>
    %cst_221 = arith.constant 1.000000e+00 : f32
    %637 = vector.broadcast %cst_221 : f32 to vector<2x32xf32>
    %638 = arith.addf %636, %637 : vector<2x32xf32>
    %cst_222 = arith.constant 5.000000e-01 : f32
    %639 = vector.broadcast %cst_222 : f32 to vector<2x32xf32>
    %640 = arith.mulf %639, %638 : vector<2x32xf32>
    %641 = vector.extract_strided_slice %624 {offsets = [0, 64], sizes = [2, 32], strides = [1, 1]} : vector<2x128xf32> to vector<2x32xf32>
    %642 = math.tanh %641 : vector<2x32xf32>
    %643 = vector.extract_strided_slice %624 {offsets = [0, 96], sizes = [2, 32], strides = [1, 1]} : vector<2x128xf32> to vector<2x32xf32>
    %cst_223 = arith.constant 5.000000e-01 : f32
    %644 = vector.broadcast %cst_223 : f32 to vector<2x32xf32>
    %645 = arith.mulf %644, %643 : vector<2x32xf32>
    %646 = math.tanh %645 : vector<2x32xf32>
    %cst_224 = arith.constant 1.000000e+00 : f32
    %647 = vector.broadcast %cst_224 : f32 to vector<2x32xf32>
    %648 = arith.addf %646, %647 : vector<2x32xf32>
    %cst_225 = arith.constant 5.000000e-01 : f32
    %649 = vector.broadcast %cst_225 : f32 to vector<2x32xf32>
    %650 = arith.mulf %649, %648 : vector<2x32xf32>
    %651 = arith.mulf %640, %588 : vector<2x32xf32>
    %652 = arith.mulf %632, %642 : vector<2x32xf32>
    %653 = arith.addf %651, %652 : vector<2x32xf32>
    %654 = math.tanh %653 : vector<2x32xf32>
    %655 = arith.mulf %650, %654 : vector<2x32xf32>
    %656 = vector.extract_strided_slice %655 {offsets = [0, 0], sizes = [1, 32], strides = [1, 1]} : vector<2x32xf32> to vector<1x32xf32>
    %657 = vector.broadcast %656 : vector<1x32xf32> to vector<5x32xf32>
    %658 = arith.mulf %15, %657 : vector<5x32xf32>
    %cst_226 = arith.constant dense<0.000000e+00> : vector<5xf32>
    %659 = vector.multi_reduction <add>, %658, %cst_226 [1] : vector<5x32xf32> to vector<5xf32>
    %660 = vector.shape_cast %659 : vector<5xf32> to vector<5x1xf32>
    %661 = vector.extract_strided_slice %655 {offsets = [1, 0], sizes = [1, 32], strides = [1, 1]} : vector<2x32xf32> to vector<1x32xf32>
    %662 = vector.broadcast %661 : vector<1x32xf32> to vector<5x32xf32>
    %663 = arith.mulf %17, %662 : vector<5x32xf32>
    %cst_227 = arith.constant dense<0.000000e+00> : vector<5xf32>
    %664 = vector.multi_reduction <add>, %663, %cst_227 [1] : vector<5x32xf32> to vector<5xf32>
    %665 = vector.shape_cast %664 : vector<5xf32> to vector<5x1xf32>
    %666 = tpu.concatenate %660, %665 in 1 : vector<5x1xf32>, vector<5x1xf32> -> vector<5x2xf32>
    %cst_228 = arith.constant dense<0xFF800000> : vector<2xf32>
    %667 = vector.multi_reduction <maximumf>, %666, %cst_228 [0] : vector<5x2xf32> to vector<2xf32>
    %668 = vector.shape_cast %667 : vector<2xf32> to vector<1x2xf32>
    %669 = vector.broadcast %668 : vector<1x2xf32> to vector<5x2xf32>
    %670 = arith.subf %666, %669 : vector<5x2xf32>
    %671 = math.exp %670 : vector<5x2xf32>
    %cst_229 = arith.constant dense<0.000000e+00> : vector<2xf32>
    %672 = vector.multi_reduction <add>, %671, %cst_229 [0] : vector<5x2xf32> to vector<2xf32>
    %673 = vector.shape_cast %672 : vector<2xf32> to vector<1x2xf32>
    %674 = tpu.reciprocal %673 {approx = true} : vector<1x2xf32> -> vector<1x2xf32>
    %675 = vector.broadcast %674 : vector<1x2xf32> to vector<5x2xf32>
    %676 = arith.mulf %671, %675 : vector<5x2xf32>
    %cst_230 = arith.constant dense<0.000000e+00> : vector<5x10xf32>
    %677 = tpu.matmul %676, %19, %cst_230 {dimension_numbers = #tpu.dot_dimension_numbers<[1], [0], [0], [1], [0, 0, 1, 1], [], []>} : vector<5x2xf32>, vector<2x10xf32>, vector<5x10xf32> -> vector<5x10xf32>
    %678 = arith.mulf %18, %677 : vector<5x10xf32>
    %cst_231 = arith.constant dense<0.000000e+00> : vector<10xf32>
    %679 = vector.multi_reduction <add>, %678, %cst_231 [0] : vector<5x10xf32> to vector<10xf32>
    %680 = vector.shape_cast %679 : vector<10xf32> to vector<1x10xf32>
    %681 = vector.broadcast %680 : vector<1x10xf32> to vector<2x10xf32>
    %682 = arith.mulf %20, %681 : vector<2x10xf32>
    %cst_232 = arith.constant dense<0.000000e+00> : vector<2x32xf32>
    %683 = tpu.matmul %682, %9, %cst_232 {dimension_numbers = #tpu.dot_dimension_numbers<[1], [0], [0], [1], [0, 0, 1, 1], [], []>} : vector<2x10xf32>, vector<10x32xf32>, vector<2x32xf32> -> vector<2x32xf32>
    %684 = tpu.concatenate %655, %683 in 1 : vector<2x32xf32>, vector<2x32xf32> -> vector<2x64xf32>
    %cst_233 = arith.constant dense<0.000000e+00> : vector<2x128xf32>
    %685 = tpu.matmul %357, %5, %cst_233 {dimension_numbers = #tpu.dot_dimension_numbers<[1], [0], [0], [1], [0, 0, 1, 1], [], []>} : vector<2x64xf32>, vector<64x128xf32>, vector<2x128xf32> -> vector<2x128xf32>
    %cst_234 = arith.constant dense<0.000000e+00> : vector<2x128xf32>
    %686 = tpu.matmul %655, %6, %cst_234 {dimension_numbers = #tpu.dot_dimension_numbers<[1], [0], [0], [1], [0, 0, 1, 1], [], []>} : vector<2x32xf32>, vector<32x128xf32>, vector<2x128xf32> -> vector<2x128xf32>
    %687 = arith.addf %685, %686 : vector<2x128xf32>
    %688 = vector.broadcast %7 : vector<1x128xf32> to vector<2x128xf32>
    %689 = arith.addf %687, %688 : vector<2x128xf32>
    %690 = vector.extract_strided_slice %689 {offsets = [0, 0], sizes = [2, 32], strides = [1, 1]} : vector<2x128xf32> to vector<2x32xf32>
    %cst_235 = arith.constant 5.000000e-01 : f32
    %691 = vector.broadcast %cst_235 : f32 to vector<2x32xf32>
    %692 = arith.mulf %691, %690 : vector<2x32xf32>
    %693 = math.tanh %692 : vector<2x32xf32>
    %cst_236 = arith.constant 1.000000e+00 : f32
    %694 = vector.broadcast %cst_236 : f32 to vector<2x32xf32>
    %695 = arith.addf %693, %694 : vector<2x32xf32>
    %cst_237 = arith.constant 5.000000e-01 : f32
    %696 = vector.broadcast %cst_237 : f32 to vector<2x32xf32>
    %697 = arith.mulf %696, %695 : vector<2x32xf32>
    %698 = vector.extract_strided_slice %689 {offsets = [0, 32], sizes = [2, 32], strides = [1, 1]} : vector<2x128xf32> to vector<2x32xf32>
    %cst_238 = arith.constant 5.000000e-01 : f32
    %699 = vector.broadcast %cst_238 : f32 to vector<2x32xf32>
    %700 = arith.mulf %699, %698 : vector<2x32xf32>
    %701 = math.tanh %700 : vector<2x32xf32>
    %cst_239 = arith.constant 1.000000e+00 : f32
    %702 = vector.broadcast %cst_239 : f32 to vector<2x32xf32>
    %703 = arith.addf %701, %702 : vector<2x32xf32>
    %cst_240 = arith.constant 5.000000e-01 : f32
    %704 = vector.broadcast %cst_240 : f32 to vector<2x32xf32>
    %705 = arith.mulf %704, %703 : vector<2x32xf32>
    %706 = vector.extract_strided_slice %689 {offsets = [0, 64], sizes = [2, 32], strides = [1, 1]} : vector<2x128xf32> to vector<2x32xf32>
    %707 = math.tanh %706 : vector<2x32xf32>
    %708 = vector.extract_strided_slice %689 {offsets = [0, 96], sizes = [2, 32], strides = [1, 1]} : vector<2x128xf32> to vector<2x32xf32>
    %cst_241 = arith.constant 5.000000e-01 : f32
    %709 = vector.broadcast %cst_241 : f32 to vector<2x32xf32>
    %710 = arith.mulf %709, %708 : vector<2x32xf32>
    %711 = math.tanh %710 : vector<2x32xf32>
    %cst_242 = arith.constant 1.000000e+00 : f32
    %712 = vector.broadcast %cst_242 : f32 to vector<2x32xf32>
    %713 = arith.addf %711, %712 : vector<2x32xf32>
    %cst_243 = arith.constant 5.000000e-01 : f32
    %714 = vector.broadcast %cst_243 : f32 to vector<2x32xf32>
    %715 = arith.mulf %714, %713 : vector<2x32xf32>
    %716 = arith.mulf %705, %653 : vector<2x32xf32>
    %717 = arith.mulf %697, %707 : vector<2x32xf32>
    %718 = arith.addf %716, %717 : vector<2x32xf32>
    %719 = math.tanh %718 : vector<2x32xf32>
    %720 = arith.mulf %715, %719 : vector<2x32xf32>
    %721 = vector.extract_strided_slice %720 {offsets = [0, 0], sizes = [1, 32], strides = [1, 1]} : vector<2x32xf32> to vector<1x32xf32>
    %722 = vector.broadcast %721 : vector<1x32xf32> to vector<5x32xf32>
    %723 = arith.mulf %15, %722 : vector<5x32xf32>
    %cst_244 = arith.constant dense<0.000000e+00> : vector<5xf32>
    %724 = vector.multi_reduction <add>, %723, %cst_244 [1] : vector<5x32xf32> to vector<5xf32>
    %725 = vector.shape_cast %724 : vector<5xf32> to vector<5x1xf32>
    %726 = vector.extract_strided_slice %720 {offsets = [1, 0], sizes = [1, 32], strides = [1, 1]} : vector<2x32xf32> to vector<1x32xf32>
    %727 = vector.broadcast %726 : vector<1x32xf32> to vector<5x32xf32>
    %728 = arith.mulf %17, %727 : vector<5x32xf32>
    %cst_245 = arith.constant dense<0.000000e+00> : vector<5xf32>
    %729 = vector.multi_reduction <add>, %728, %cst_245 [1] : vector<5x32xf32> to vector<5xf32>
    %730 = vector.shape_cast %729 : vector<5xf32> to vector<5x1xf32>
    %731 = tpu.concatenate %725, %730 in 1 : vector<5x1xf32>, vector<5x1xf32> -> vector<5x2xf32>
    %cst_246 = arith.constant dense<0xFF800000> : vector<2xf32>
    %732 = vector.multi_reduction <maximumf>, %731, %cst_246 [0] : vector<5x2xf32> to vector<2xf32>
    %733 = vector.shape_cast %732 : vector<2xf32> to vector<1x2xf32>
    %734 = vector.broadcast %733 : vector<1x2xf32> to vector<5x2xf32>
    %735 = arith.subf %731, %734 : vector<5x2xf32>
    %736 = math.exp %735 : vector<5x2xf32>
    %cst_247 = arith.constant dense<0.000000e+00> : vector<2xf32>
    %737 = vector.multi_reduction <add>, %736, %cst_247 [0] : vector<5x2xf32> to vector<2xf32>
    %738 = vector.shape_cast %737 : vector<2xf32> to vector<1x2xf32>
    %739 = tpu.reciprocal %738 {approx = true} : vector<1x2xf32> -> vector<1x2xf32>
    %740 = vector.broadcast %739 : vector<1x2xf32> to vector<5x2xf32>
    %741 = arith.mulf %736, %740 : vector<5x2xf32>
    %cst_248 = arith.constant dense<0.000000e+00> : vector<5x10xf32>
    %742 = tpu.matmul %741, %19, %cst_248 {dimension_numbers = #tpu.dot_dimension_numbers<[1], [0], [0], [1], [0, 0, 1, 1], [], []>} : vector<5x2xf32>, vector<2x10xf32>, vector<5x10xf32> -> vector<5x10xf32>
    %743 = arith.mulf %18, %742 : vector<5x10xf32>
    %cst_249 = arith.constant dense<0.000000e+00> : vector<10xf32>
    %744 = vector.multi_reduction <add>, %743, %cst_249 [0] : vector<5x10xf32> to vector<10xf32>
    %745 = vector.shape_cast %744 : vector<10xf32> to vector<1x10xf32>
    %746 = vector.broadcast %745 : vector<1x10xf32> to vector<2x10xf32>
    %747 = arith.mulf %20, %746 : vector<2x10xf32>
    %cst_250 = arith.constant dense<0.000000e+00> : vector<2x32xf32>
    %748 = tpu.matmul %747, %9, %cst_250 {dimension_numbers = #tpu.dot_dimension_numbers<[1], [0], [0], [1], [0, 0, 1, 1], [], []>} : vector<2x10xf32>, vector<10x32xf32>, vector<2x32xf32> -> vector<2x32xf32>
    %749 = tpu.concatenate %720, %748 in 1 : vector<2x32xf32>, vector<2x32xf32> -> vector<2x64xf32>
    %cst_251 = arith.constant dense<0.000000e+00> : vector<2x128xf32>
    %750 = tpu.matmul %424, %5, %cst_251 {dimension_numbers = #tpu.dot_dimension_numbers<[1], [0], [0], [1], [0, 0, 1, 1], [], []>} : vector<2x64xf32>, vector<64x128xf32>, vector<2x128xf32> -> vector<2x128xf32>
    %cst_252 = arith.constant dense<0.000000e+00> : vector<2x128xf32>
    %751 = tpu.matmul %720, %6, %cst_252 {dimension_numbers = #tpu.dot_dimension_numbers<[1], [0], [0], [1], [0, 0, 1, 1], [], []>} : vector<2x32xf32>, vector<32x128xf32>, vector<2x128xf32> -> vector<2x128xf32>
    %752 = arith.addf %750, %751 : vector<2x128xf32>
    %753 = vector.broadcast %7 : vector<1x128xf32> to vector<2x128xf32>
    %754 = arith.addf %752, %753 : vector<2x128xf32>
    %755 = vector.extract_strided_slice %754 {offsets = [0, 0], sizes = [2, 32], strides = [1, 1]} : vector<2x128xf32> to vector<2x32xf32>
    %cst_253 = arith.constant 5.000000e-01 : f32
    %756 = vector.broadcast %cst_253 : f32 to vector<2x32xf32>
    %757 = arith.mulf %756, %755 : vector<2x32xf32>
    %758 = math.tanh %757 : vector<2x32xf32>
    %cst_254 = arith.constant 1.000000e+00 : f32
    %759 = vector.broadcast %cst_254 : f32 to vector<2x32xf32>
    %760 = arith.addf %758, %759 : vector<2x32xf32>
    %cst_255 = arith.constant 5.000000e-01 : f32
    %761 = vector.broadcast %cst_255 : f32 to vector<2x32xf32>
    %762 = arith.mulf %761, %760 : vector<2x32xf32>
    %763 = vector.extract_strided_slice %754 {offsets = [0, 32], sizes = [2, 32], strides = [1, 1]} : vector<2x128xf32> to vector<2x32xf32>
    %cst_256 = arith.constant 5.000000e-01 : f32
    %764 = vector.broadcast %cst_256 : f32 to vector<2x32xf32>
    %765 = arith.mulf %764, %763 : vector<2x32xf32>
    %766 = math.tanh %765 : vector<2x32xf32>
    %cst_257 = arith.constant 1.000000e+00 : f32
    %767 = vector.broadcast %cst_257 : f32 to vector<2x32xf32>
    %768 = arith.addf %766, %767 : vector<2x32xf32>
    %cst_258 = arith.constant 5.000000e-01 : f32
    %769 = vector.broadcast %cst_258 : f32 to vector<2x32xf32>
    %770 = arith.mulf %769, %768 : vector<2x32xf32>
    %771 = vector.extract_strided_slice %754 {offsets = [0, 64], sizes = [2, 32], strides = [1, 1]} : vector<2x128xf32> to vector<2x32xf32>
    %772 = math.tanh %771 : vector<2x32xf32>
    %773 = vector.extract_strided_slice %754 {offsets = [0, 96], sizes = [2, 32], strides = [1, 1]} : vector<2x128xf32> to vector<2x32xf32>
    %cst_259 = arith.constant 5.000000e-01 : f32
    %774 = vector.broadcast %cst_259 : f32 to vector<2x32xf32>
    %775 = arith.mulf %774, %773 : vector<2x32xf32>
    %776 = math.tanh %775 : vector<2x32xf32>
    %cst_260 = arith.constant 1.000000e+00 : f32
    %777 = vector.broadcast %cst_260 : f32 to vector<2x32xf32>
    %778 = arith.addf %776, %777 : vector<2x32xf32>
    %cst_261 = arith.constant 5.000000e-01 : f32
    %779 = vector.broadcast %cst_261 : f32 to vector<2x32xf32>
    %780 = arith.mulf %779, %778 : vector<2x32xf32>
    %781 = arith.mulf %770, %718 : vector<2x32xf32>
    %782 = arith.mulf %762, %772 : vector<2x32xf32>
    %783 = arith.addf %781, %782 : vector<2x32xf32>
    %784 = math.tanh %783 : vector<2x32xf32>
    %785 = arith.mulf %780, %784 : vector<2x32xf32>
    %786 = vector.extract_strided_slice %785 {offsets = [0, 0], sizes = [1, 32], strides = [1, 1]} : vector<2x32xf32> to vector<1x32xf32>
    %787 = vector.broadcast %786 : vector<1x32xf32> to vector<5x32xf32>
    %788 = arith.mulf %15, %787 : vector<5x32xf32>
    %cst_262 = arith.constant dense<0.000000e+00> : vector<5xf32>
    %789 = vector.multi_reduction <add>, %788, %cst_262 [1] : vector<5x32xf32> to vector<5xf32>
    %790 = vector.shape_cast %789 : vector<5xf32> to vector<5x1xf32>
    %791 = vector.extract_strided_slice %785 {offsets = [1, 0], sizes = [1, 32], strides = [1, 1]} : vector<2x32xf32> to vector<1x32xf32>
    %792 = vector.broadcast %791 : vector<1x32xf32> to vector<5x32xf32>
    %793 = arith.mulf %17, %792 : vector<5x32xf32>
    %cst_263 = arith.constant dense<0.000000e+00> : vector<5xf32>
    %794 = vector.multi_reduction <add>, %793, %cst_263 [1] : vector<5x32xf32> to vector<5xf32>
    %795 = vector.shape_cast %794 : vector<5xf32> to vector<5x1xf32>
    %796 = tpu.concatenate %790, %795 in 1 : vector<5x1xf32>, vector<5x1xf32> -> vector<5x2xf32>
    %cst_264 = arith.constant dense<0xFF800000> : vector<2xf32>
    %797 = vector.multi_reduction <maximumf>, %796, %cst_264 [0] : vector<5x2xf32> to vector<2xf32>
    %798 = vector.shape_cast %797 : vector<2xf32> to vector<1x2xf32>
    %799 = vector.broadcast %798 : vector<1x2xf32> to vector<5x2xf32>
    %800 = arith.subf %796, %799 : vector<5x2xf32>
    %801 = math.exp %800 : vector<5x2xf32>
    %cst_265 = arith.constant dense<0.000000e+00> : vector<2xf32>
    %802 = vector.multi_reduction <add>, %801, %cst_265 [0] : vector<5x2xf32> to vector<2xf32>
    %803 = vector.shape_cast %802 : vector<2xf32> to vector<1x2xf32>
    %804 = tpu.reciprocal %803 {approx = true} : vector<1x2xf32> -> vector<1x2xf32>
    %805 = vector.broadcast %804 : vector<1x2xf32> to vector<5x2xf32>
    %806 = arith.mulf %801, %805 : vector<5x2xf32>
    %cst_266 = arith.constant dense<0.000000e+00> : vector<5x10xf32>
    %807 = tpu.matmul %806, %19, %cst_266 {dimension_numbers = #tpu.dot_dimension_numbers<[1], [0], [0], [1], [0, 0, 1, 1], [], []>} : vector<5x2xf32>, vector<2x10xf32>, vector<5x10xf32> -> vector<5x10xf32>
    %808 = arith.mulf %18, %807 : vector<5x10xf32>
    %cst_267 = arith.constant dense<0.000000e+00> : vector<10xf32>
    %809 = vector.multi_reduction <add>, %808, %cst_267 [0] : vector<5x10xf32> to vector<10xf32>
    %810 = vector.shape_cast %809 : vector<10xf32> to vector<1x10xf32>
    %811 = vector.broadcast %810 : vector<1x10xf32> to vector<2x10xf32>
    %812 = arith.mulf %20, %811 : vector<2x10xf32>
    %cst_268 = arith.constant dense<0.000000e+00> : vector<2x32xf32>
    %813 = tpu.matmul %812, %9, %cst_268 {dimension_numbers = #tpu.dot_dimension_numbers<[1], [0], [0], [1], [0, 0, 1, 1], [], []>} : vector<2x10xf32>, vector<10x32xf32>, vector<2x32xf32> -> vector<2x32xf32>
    %814 = tpu.concatenate %785, %813 in 1 : vector<2x32xf32>, vector<2x32xf32> -> vector<2x64xf32>
    %815 = tpu.concatenate %489, %554, %619, %684, %749, %814 in 0 : vector<2x64xf32>, vector<2x64xf32>, vector<2x64xf32>, vector<2x64xf32>, vector<2x64xf32>, vector<2x64xf32> -> vector<12x64xf32>
    %cst_269 = arith.constant dense<0.000000e+00> : vector<12x13xf32>
    %816 = tpu.matmul %815, %21, %cst_269 {dimension_numbers = #tpu.dot_dimension_numbers<[1], [0], [0], [1], [0, 0, 1, 1], [], []>} : vector<12x64xf32>, vector<64x13xf32>, vector<12x13xf32> -> vector<12x13xf32>
    %817 = vector.broadcast %22 : vector<1x13xf32> to vector<12x13xf32>
    %818 = arith.addf %816, %817 : vector<12x13xf32>
    %cst_270 = arith.constant dense<0xFF800000> : vector<12xf32>
    %819 = vector.multi_reduction <maximumf>, %818, %cst_270 [1] : vector<12x13xf32> to vector<12xf32>
    %820 = vector.shape_cast %819 : vector<12xf32> to vector<12x1xf32>
    %821 = vector.broadcast %820 : vector<12x1xf32> to vector<12x13xf32>
    %822 = arith.subf %818, %821 : vector<12x13xf32>
    %823 = math.exp %822 : vector<12x13xf32>
    %cst_271 = arith.constant dense<0.000000e+00> : vector<12xf32>
    %824 = vector.multi_reduction <add>, %823, %cst_271 [1] : vector<12x13xf32> to vector<12xf32>
    %825 = vector.shape_cast %824 : vector<12xf32> to vector<12x1xf32>
    %826 = math.log %825 : vector<12x1xf32>
    %827 = vector.broadcast %826 : vector<12x1xf32> to vector<12x13xf32>
    %828 = arith.subf %822, %827 : vector<12x13xf32>
    %c0_272 = arith.constant 0 : index
    %c0_273 = arith.constant 0 : index
    %829 = vector.load %arg18[%c0_272, %c0_273] : memref<12x13xf32, #tpu.memory_space<vmem>>, vector<12x13xf32>
    tpu.vector_store %arg18[%c0_272, %c0_273], %828 {strides = array<i32>} : memref<12x13xf32, #tpu.memory_space<vmem>>, vector<12x13xf32>,
    return
  }
}

</mosaic_0001>

<llo_original>
// kernel: attention_forward.3
$region0: #{attention_forward.3}
  #allocation0 [shape = 'u32[]', space=smem, size = 0x4, offset = 0x4, fixed_abs, tag = 'smem constant byte address 0x4 - core index']
  #allocation1 [shape = 'u32[144,128]{1,0:T(1,128)}', space=vmem, size = 0x12000, scoped, tag = 'internal scratch']
  %s0 = inlined_call_operand.vmem [shape: f32[2,5,32], index: 0, kind: input, shape index: {}]
  %s1 = inlined_call_operand.vmem [shape: f32[32,96], index: 1, kind: input, shape index: {}]
  %s2 = inlined_call_operand.vmem [shape: f32[1,96], index: 2, kind: input, shape index: {}]
  %s3 = inlined_call_operand.vmem [shape: f32[32,32], index: 3, kind: input, shape index: {}]
  %s4 = inlined_call_operand.vmem [shape: f32[1,32], index: 4, kind: input, shape index: {}]
  %s5 = inlined_call_operand.vmem [shape: f32[32,64], index: 5, kind: input, shape index: {}]
  %s6 = inlined_call_operand.vmem [shape: f32[1,64], index: 6, kind: input, shape index: {}]
  %s7 = inlined_call_operand.vmem [shape: f32[64,32], index: 7, kind: input, shape index: {}]
  %s8 = inlined_call_operand.vmem [shape: f32[1,32], index: 8, kind: input, shape index: {}]
  %s9 = inlined_call_operand.vmem [shape: f32[1,32], index: 9, kind: input, shape index: {}]
  %s10 = inlined_call_operand.vmem [shape: f32[1,32], index: 10, kind: input, shape index: {}]
  %s11 = inlined_call_operand.vmem [shape: f32[1,32], index: 11, kind: input, shape index: {}]
  %s12 = inlined_call_operand.vmem [shape: f32[1,32], index: 12, kind: input, shape index: {}]
  %s13 = inlined_call_operand.vmem [shape: f32[32,32], index: 13, kind: input, shape index: {}]
  %s14 = inlined_call_operand.vmem [shape: f32[1,32], index: 14, kind: input, shape index: {}]
  %s15 = inlined_call_operand.vmem [shape: f32[2,5,32], index: 15, kind: output, shape index: {0}]
  %s16 = inlined_call_operand.vmem [shape: f32[2,5,32], index: 16, kind: output, shape index: {1}]
  %17 = xla_tuple %s15, %s16
  %s18 = sld [smem:[#allocation0]]
  $region78: #{attention_forward.3} parent=0
    _
  %s20 = ssub.s32 1, %s18
  %s21 = scalar_select 0, %s20, %s18
  // Predicated region
  $region2: #{attention_forward.3} parent=0 // pred_check
    _
  $region3: #{attention_forward.3} parent=0 // pred_check_branch
    %23 = sbr.rel (0) target = $region5
  $region4: #{attention_forward.3} parent=0 // pred_region
    _
  $region5: #{attention_forward.3} parent=0 // pred_fallthru
    _
  // Predicated region
  $region6: #{attention_forward.3} parent=0 // pred_check
    _
  $region7: #{attention_forward.3} parent=0 // pred_check_branch
    %25 = sbr.rel (0) target = $region9
  $region8: #{attention_forward.3} parent=0 // pred_region
    _
  $region9: #{attention_forward.3} parent=0 // pred_fallthru
    _
  // Predicated region
  $region10: #{attention_forward.3} parent=0 // pred_check
    _
  $region11: #{attention_forward.3} parent=0 // pred_check_branch
    %27 = sbr.rel (0) target = $region13
  $region12: #{attention_forward.3} parent=0 // pred_region
    _
  $region13: #{attention_forward.3} parent=0 // pred_fallthru
    _
  // Predicated region
  $region14: #{attention_forward.3} parent=0 // pred_check
    _
  $region15: #{attention_forward.3} parent=0 // pred_check_branch
    %29 = sbr.rel (0) target = $region17
  $region16: #{attention_forward.3} parent=0 // pred_region
    _
  $region17: #{attention_forward.3} parent=0 // pred_fallthru
    _
  // Predicated region
  $region18: #{attention_forward.3} parent=0 // pred_check
    _
  $region19: #{attention_forward.3} parent=0 // pred_check_branch
    %31 = sbr.rel (0) target = $region21
  $region20: #{attention_forward.3} parent=0 // pred_region
    _
  $region21: #{attention_forward.3} parent=0 // pred_fallthru
    _
  // Predicated region
  $region22: #{attention_forward.3} parent=0 // pred_check
    _
  $region23: #{attention_forward.3} parent=0 // pred_check_branch
    %33 = sbr.rel (0) target = $region25
  $region24: #{attention_forward.3} parent=0 // pred_region
    _
  $region25: #{attention_forward.3} parent=0 // pred_fallthru
    _
  // Predicated region
  $region26: #{attention_forward.3} parent=0 // pred_check
    _
  $region27: #{attention_forward.3} parent=0 // pred_check_branch
    %35 = sbr.rel (0) target = $region29
  $region28: #{attention_forward.3} parent=0 // pred_region
    _
  $region29: #{attention_forward.3} parent=0 // pred_fallthru
    _
  // Predicated region
  $region30: #{attention_forward.3} parent=0 // pred_check
    _
  $region31: #{attention_forward.3} parent=0 // pred_check_branch
    %37 = sbr.rel (0) target = $region33
  $region32: #{attention_forward.3} parent=0 // pred_region
    _
  $region33: #{attention_forward.3} parent=0 // pred_fallthru
    _
  // Predicated region
  $region34: #{attention_forward.3} parent=0 // pred_check
    _
  $region35: #{attention_forward.3} parent=0 // pred_check_branch
    %39 = sbr.rel (0) target = $region37
  $region36: #{attention_forward.3} parent=0 // pred_region
    _
  $region37: #{attention_forward.3} parent=0 // pred_fallthru
    _
  // Predicated region
  $region38: #{attention_forward.3} parent=0 // pred_check
    _
  $region39: #{attention_forward.3} parent=0 // pred_check_branch
    %41 = sbr.rel (0) target = $region41
  $region40: #{attention_forward.3} parent=0 // pred_region
    _
  $region41: #{attention_forward.3} parent=0 // pred_fallthru
    _
  // Predicated region
  $region42: #{attention_forward.3} parent=0 // pred_check
    _
  $region43: #{attention_forward.3} parent=0 // pred_check_branch
    %43 = sbr.rel (0) target = $region45
  $region44: #{attention_forward.3} parent=0 // pred_region
    _
  $region45: #{attention_forward.3} parent=0 // pred_fallthru
    _
  // Predicated region
  $region46: #{attention_forward.3} parent=0 // pred_check
    _
  $region47: #{attention_forward.3} parent=0 // pred_check_branch
    %45 = sbr.rel (0) target = $region49
  $region48: #{attention_forward.3} parent=0 // pred_region
    _
  $region49: #{attention_forward.3} parent=0 // pred_fallthru
    _
  // Predicated region
  $region50: #{attention_forward.3} parent=0 // pred_check
    _
  $region51: #{attention_forward.3} parent=0 // pred_check_branch
    %47 = sbr.rel (0) target = $region53
  $region52: #{attention_forward.3} parent=0 // pred_region
    _
  $region53: #{attention_forward.3} parent=0 // pred_fallthru
    _
  // Predicated region
  $region54: #{attention_forward.3} parent=0 // pred_check
    _
  $region55: #{attention_forward.3} parent=0 // pred_check_branch
    %49 = sbr.rel (0) target = $region57
  $region56: #{attention_forward.3} parent=0 // pred_region
    _
  $region57: #{attention_forward.3} parent=0 // pred_fallthru
    _
  // Predicated region
  $region58: #{attention_forward.3} parent=0 // pred_check
    _
  $region59: #{attention_forward.3} parent=0 // pred_check_branch
    %51 = sbr.rel (0) target = $region61
  $region60: #{attention_forward.3} parent=0 // pred_region
    _
  $region61: #{attention_forward.3} parent=0 // pred_fallthru
    _
  %v52 = vld [vmem:[%s1] sm:$0xff]
  %v53 = vld [vmem:[%s1 + $0x8] sm:$0xff]
  %v54 = vld [vmem:[%s1 + $0x10] sm:$0xff]
  %v55 = vld [vmem:[%s1 + $0x18] sm:$0xff]
  %v56 = vld [vmem:[%s2] sm:$0x1]
  %v57 = vld [vmem:[%s3] sm:$0xff]
  %v58 = vld [vmem:[%s3 + $0x8] sm:$0xff]
  %v59 = vld [vmem:[%s3 + $0x10] sm:$0xff]
  %v60 = vld [vmem:[%s3 + $0x18] sm:$0xff]
  %v61 = vld [vmem:[%s4] sm:$0x1]
  %v62 = vld [vmem:[%s5] sm:$0xff]
  %v63 = vld [vmem:[%s5 + $0x8] sm:$0xff]
  %v64 = vld [vmem:[%s5 + $0x10] sm:$0xff]
  %v65 = vld [vmem:[%s5 + $0x18] sm:$0xff]
  %v66 = vld [vmem:[%s6] sm:$0x1]
  %v67 = vld [vmem:[%s7] sm:$0xff]
  %v68 = vld [vmem:[%s7 + $0x8] sm:$0xff]
  %v69 = vld [vmem:[%s7 + $0x10] sm:$0xff]
  %v70 = vld [vmem:[%s7 + $0x18] sm:$0xff]
  %v71 = vld [vmem:[%s7 + $0x20] sm:$0xff]
  %v72 = vld [vmem:[%s7 + $0x28] sm:$0xff]
  %v73 = vld [vmem:[%s7 + $0x30] sm:$0xff]
  %v74 = vld [vmem:[%s7 + $0x38] sm:$0xff]
  %v75 = vld [vmem:[%s8] sm:$0x1]
  %v76 = vld [vmem:[%s9] sm:$0x1]
  %v77 = vld [vmem:[%s10] sm:$0x1]
  %v78 = vld [vmem:[%s11] sm:$0x1]
  %v79 = vld [vmem:[%s12] sm:$0x1]
  %v80 = vld [vmem:[%s13] sm:$0xff]
  %v81 = vld [vmem:[%s13 + $0x8] sm:$0xff]
  %v82 = vld [vmem:[%s13 + $0x10] sm:$0xff]
  %v83 = vld [vmem:[%s13 + $0x18] sm:$0xff]
  %v84 = vld [vmem:[%s14] sm:$0x1]
  %v85 = vld [vmem:[%s0] sm:$0x1f]
  %v87 = vlaneseq
  %v88 = vshrl.u32 %v87, 7
  %v89 = vsub.s32 0, %v88
  %v90 = vrot.slane %v56, %v89
  %vm92 = vcmask 261120
  %v94 = vsel %vm92, %v85, 0
  %96 = vmatprep.subr.mxu0 0.0
  %97 = vmatpush1.msra.mxu0 0.0
  %98 = vmatprep.subr.mxu0 0.0
  %99 = vmatpush1.msra.mxu0 0.0
  %100 = vmatprep.subr.mxu0 0.0
  %101 = vmatpush1.msra.mxu0 0.0
  %102 = vmatprep.subr.mxu0 0.0
  %103 = vmatpush1.msra.mxu0 0.0
  %104 = vmatprep.subr.mxu0 0.0
  %105 = vmatpush1.msra.mxu0 0.0
  %106 = vmatprep.subr.mxu0 0.0
  %107 = vmatpush1.msra.mxu0 0.0
  %108 = vmatprep.subr.mxu0 0.0
  %109 = vmatpush1.msra.mxu0 0.0
  %110 = vmatprep.subr.mxu0 0.0
  %111 = vmatpush1.msra.mxu0 0.0
  %112 = vmatprep.subr.mxu0 0.0
  %113 = vmatpush1.msra.mxu0 0.0
  %114 = vmatprep.subr.mxu0 0.0
  %115 = vmatpush1.msra.mxu0 0.0
  %116 = vmatprep.subr.mxu0 0.0
  %117 = vmatpush1.msra.mxu0 0.0
  %118 = vmatprep.subr.mxu0 0.0
  %119 = vmatpush1.msra.mxu0 0.0
  %120 = vmatprep.subr.mxu0 0.0
  %121 = vmatpush1.msra.mxu0 %v55
  %122 = vmatprep.subr.mxu0 0.0
  %123 = vmatpush1.msra.mxu0 %v54
  %124 = vmatprep.subr.mxu0 0.0
  %125 = vmatpush1.msra.mxu0 %v53
  %126 = vmatprep.subr.mxu0 0.0
  %127 = vmatpush1.msra.mxu0 %v52
  %128 = vmatprep.subr.mxu0 0.0
  %129 = vmatpush2.msra.mxu0 0.0
  %130 = vmatprep.subr.mxu0 0.0
  %131 = vmatpush2.msra.mxu0 0.0
  %132 = vmatprep.subr.mxu0 0.0
  %133 = vmatpush2.msra.mxu0 0.0
  %134 = vmatprep.subr.mxu0 0.0
  %135 = vmatpush2.msra.mxu0 0.0
  %136 = vmatprep.subr.mxu0 0.0
  %137 = vmatpush2.msra.mxu0 0.0
  %138 = vmatprep.subr.mxu0 0.0
  %139 = vmatpush2.msra.mxu0 0.0
  %140 = vmatprep.subr.mxu0 0.0
  %141 = vmatpush2.msra.mxu0 0.0
  %142 = vmatprep.subr.mxu0 0.0
  %143 = vmatpush2.msra.mxu0 0.0
  %144 = vmatprep.subr.mxu0 0.0
  %145 = vmatpush2.msra.mxu0 0.0
  %146 = vmatprep.subr.mxu0 0.0
  %147 = vmatpush2.msra.mxu0 0.0
  %148 = vmatprep.subr.mxu0 0.0
  %149 = vmatpush2.msra.mxu0 0.0
  %150 = vmatprep.subr.mxu0 0.0
  %151 = vmatpush2.msra.mxu0 0.0
  %152 = vmatprep.subr.mxu0 0.0
  %153 = vmatpush2.msra.mxu0 0.0
  %154 = vmatprep.subr.mxu0 0.0
  %155 = vmatpush2.msra.mxu0 0.0
  %156 = vmatprep.subr.mxu0 0.0
  %157 = vmatpush2.msra.mxu0 0.0
  %158 = vmatprep.subr.mxu0 0.0
  %159 = vmatpush2.msra.mxu0 0.0
  %160 = vmatprep.mubr.f32.mxu0 0.0
  %161 = vmatmul.mubr.f32.gmra.mxu0 %v94
  %v162 = vpop.f32.mrf.mxu0
  %v163 = vadd.f32 %v90, %v162
  %v164 = vpop.f32.mrf.mxu0
  %165 = vdwg.mxu0
  %167 = vrot.lane.b32.xlu0 %v163, 96
  %v168 = vpop.permute.xlu0 %167
  %vm169 = vcmask 64512
  %v170 = vsel %vm169, %v163, 0
  %v172 = vsel %vm169, %v168, 0
  %174 = vmatprep.subr.mxu0 0.0
  %175 = vmatpush1.xpose.msra.mxu0 0.0
  %176 = vmatprep.subr.mxu0 0.0
  %177 = vmatpush1.xpose.msra.mxu0 0.0
  %178 = vmatprep.subr.mxu0 0.0
  %179 = vmatpush1.xpose.msra.mxu0 0.0
  %180 = vmatprep.subr.mxu0 0.0
  %181 = vmatpush1.xpose.msra.mxu0 0.0
  %182 = vmatprep.subr.mxu0 0.0
  %183 = vmatpush1.xpose.msra.mxu0 0.0
  %184 = vmatprep.subr.mxu0 0.0
  %185 = vmatpush1.xpose.msra.mxu0 0.0
  %186 = vmatprep.subr.mxu0 0.0
  %187 = vmatpush1.xpose.msra.mxu0 0.0
  %188 = vmatprep.subr.mxu0 0.0
  %189 = vmatpush1.xpose.msra.mxu0 0.0
  %190 = vmatprep.subr.mxu0 0.0
  %191 = vmatpush1.xpose.msra.mxu0 0.0
  %192 = vmatprep.subr.mxu0 0.0
  %193 = vmatpush1.xpose.msra.mxu0 0.0
  %194 = vmatprep.subr.mxu0 0.0
  %195 = vmatpush1.xpose.msra.mxu0 0.0
  %196 = vmatprep.subr.mxu0 0.0
  %197 = vmatpush1.xpose.msra.mxu0 0.0
  %198 = vmatprep.subr.mxu0 0.0
  %199 = vmatpush1.xpose.msra.mxu0 0.0
  %200 = vmatprep.subr.mxu0 0.0
  %201 = vmatpush1.xpose.msra.mxu0 0.0
  %202 = vmatprep.subr.mxu0 0.0
  %203 = vmatpush1.xpose.msra.mxu0 0.0
  %204 = vmatprep.subr.mxu0 0.0
  %205 = vmatpush1.xpose.msra.mxu0 %v172
  %206 = vmatprep.subr.mxu0 0.0
  %207 = vmatpush2.xpose.msra.mxu0 0.0
  %208 = vmatprep.subr.mxu0 0.0
  %209 = vmatpush2.xpose.msra.mxu0 0.0
  %210 = vmatprep.subr.mxu0 0.0
  %211 = vmatpush2.xpose.msra.mxu0 0.0
  %212 = vmatprep.subr.mxu0 0.0
  %213 = vmatpush2.xpose.msra.mxu0 0.0
  %214 = vmatprep.subr.mxu0 0.0
  %215 = vmatpush2.xpose.msra.mxu0 0.0
  %216 = vmatprep.subr.mxu0 0.0
  %217 = vmatpush2.xpose.msra.mxu0 0.0
  %218 = vmatprep.subr.mxu0 0.0
  %219 = vmatpush2.xpose.msra.mxu0 0.0
  %220 = vmatprep.subr.mxu0 0.0
  %221 = vmatpush2.xpose.msra.mxu0 0.0
  %222 = vmatprep.subr.mxu0 0.0
  %223 = vmatpush2.xpose.msra.mxu0 0.0
  %224 = vmatprep.subr.mxu0 0.0
  %225 = vmatpush2.xpose.msra.mxu0 0.0
  %226 = vmatprep.subr.mxu0 0.0
  %227 = vmatpush2.xpose.msra.mxu0 0.0
  %228 = vmatprep.subr.mxu0 0.0
  %229 = vmatpush2.xpose.msra.mxu0 0.0
  %230 = vmatprep.subr.mxu0 0.0
  %231 = vmatpush2.xpose.msra.mxu0 0.0
  %232 = vmatprep.subr.mxu0 0.0
  %233 = vmatpush2.xpose.msra.mxu0 0.0
  %234 = vmatprep.subr.mxu0 0.0
  %235 = vmatpush2.xpose.msra.mxu0 0.0
  %236 = vmatprep.subr.mxu0 0.0
  %237 = vmatpush2.xpose.msra.mxu0 0.0
  %238 = vmatprep.mubr.f32.mxu0 0.0
  %239 = vmatmul.mubr.f32.gmra.mxu0 %v170
  %v240 = vpop.f32.mrf.mxu0
  %v241 = vadd.f32 0.0, %v240
  %v242 = vpop.f32.mrf.mxu0
  %243 = vdwg.mxu0
  %v244 = vmul.f32 %v241, 0.35355338
  %vm245 = vcmask 36864
  %v246 = vsel %vm245, %v244, -inf
  %247 = vmax.xlane.f32.xlu0 %v246
  %v248 = vpop.xlane.xlu0 %247
  %v249 = vsub.f32 %v244, %v248
  %v250 = vmul.f32 %v249, 1.442695
  %v251 = vpow.pop %v250
  %v252 = vsel %vm245, %v251, 0.0
  %253 = vadd.xlane.f32.xlu0 %v252
  %v254 = vpop.xlane.xlu0 %253
  %v255 = vrcp.pop %v254
  %v256 = vmul.f32 %v251, %v255
  %257 = vrot.lane.b32.xlu0 %v163, 64
  %v258 = vpop.permute.xlu0 %257
  %vm259 = vcmask 39936
  %v261 = vsel %vm259, %v256, 0
  %vm263 = vcmask 1044480
  %v264 = vsel %vm263, %v258, 0
  %266 = vmatprep.subr.mxu0 0.0
  %267 = vmatpush1.msra.mxu0 0.0
  %268 = vmatprep.subr.mxu0 0.0
  %269 = vmatpush1.msra.mxu0 0.0
  %270 = vmatprep.subr.mxu0 0.0
  %271 = vmatpush1.msra.mxu0 0.0
  %272 = vmatprep.subr.mxu0 0.0
  %273 = vmatpush1.msra.mxu0 0.0
  %274 = vmatprep.subr.mxu0 0.0
  %275 = vmatpush1.msra.mxu0 0.0
  %276 = vmatprep.subr.mxu0 0.0
  %277 = vmatpush1.msra.mxu0 0.0
  %278 = vmatprep.subr.mxu0 0.0
  %279 = vmatpush1.msra.mxu0 0.0
  %280 = vmatprep.subr.mxu0 0.0
  %281 = vmatpush1.msra.mxu0 0.0
  %282 = vmatprep.subr.mxu0 0.0
  %283 = vmatpush1.msra.mxu0 0.0
  %284 = vmatprep.subr.mxu0 0.0
  %285 = vmatpush1.msra.mxu0 0.0
  %286 = vmatprep.subr.mxu0 0.0
  %287 = vmatpush1.msra.mxu0 0.0
  %288 = vmatprep.subr.mxu0 0.0
  %289 = vmatpush1.msra.mxu0 0.0
  %290 = vmatprep.subr.mxu0 0.0
  %291 = vmatpush1.msra.mxu0 0.0
  %292 = vmatprep.subr.mxu0 0.0
  %293 = vmatpush1.msra.mxu0 0.0
  %294 = vmatprep.subr.mxu0 0.0
  %295 = vmatpush1.msra.mxu0 0.0
  %296 = vmatprep.subr.mxu0 0.0
  %297 = vmatpush1.msra.mxu0 %v264
  %298 = vmatprep.subr.mxu0 0.0
  %299 = vmatpush2.msra.mxu0 0.0
  %300 = vmatprep.subr.mxu0 0.0
  %301 = vmatpush2.msra.mxu0 0.0
  %302 = vmatprep.subr.mxu0 0.0
  %303 = vmatpush2.msra.mxu0 0.0
  %304 = vmatprep.subr.mxu0 0.0
  %305 = vmatpush2.msra.mxu0 0.0
  %306 = vmatprep.subr.mxu0 0.0
  %307 = vmatpush2.msra.mxu0 0.0
  %308 = vmatprep.subr.mxu0 0.0
  %309 = vmatpush2.msra.mxu0 0.0
  %310 = vmatprep.subr.mxu0 0.0
  %311 = vmatpush2.msra.mxu0 0.0
  %312 = vmatprep.subr.mxu0 0.0
  %313 = vmatpush2.msra.mxu0 0.0
  %314 = vmatprep.subr.mxu0 0.0
  %315 = vmatpush2.msra.mxu0 0.0
  %316 = vmatprep.subr.mxu0 0.0
  %317 = vmatpush2.msra.mxu0 0.0
  %318 = vmatprep.subr.mxu0 0.0
  %319 = vmatpush2.msra.mxu0 0.0
  %320 = vmatprep.subr.mxu0 0.0
  %321 = vmatpush2.msra.mxu0 0.0
  %322 = vmatprep.subr.mxu0 0.0
  %323 = vmatpush2.msra.mxu0 0.0
  %324 = vmatprep.subr.mxu0 0.0
  %325 = vmatpush2.msra.mxu0 0.0
  %326 = vmatprep.subr.mxu0 0.0
  %327 = vmatpush2.msra.mxu0 0.0
  %328 = vmatprep.subr.mxu0 0.0
  %329 = vmatpush2.msra.mxu0 0.0
  %330 = vmatprep.mubr.f32.mxu0 0.0
  %331 = vmatmul.mubr.f32.gmra.mxu0 %v261
  %v332 = vpop.f32.mrf.mxu0
  %v333 = vadd.f32 0.0, %v332
  %v334 = vpop.f32.mrf.mxu0
  %335 = vdwg.mxu0
  %336 = vrot.lane.b32.xlu0 %v163, 120
  %v337 = vpop.permute.xlu0 %336
  %338 = vrot.lane.b32.xlu0 %v163, 88
  %v339 = vpop.permute.xlu0 %338
  %v340 = vsel %vm169, %v337, 0
  %v342 = vsel %vm169, %v339, 0
  %344 = vmatprep.subr.mxu0 0.0
  %345 = vmatpush1.xpose.msra.mxu0 0.0
  %346 = vmatprep.subr.mxu0 0.0
  %347 = vmatpush1.xpose.msra.mxu0 0.0
  %348 = vmatprep.subr.mxu0 0.0
  %349 = vmatpush1.xpose.msra.mxu0 0.0
  %350 = vmatprep.subr.mxu0 0.0
  %351 = vmatpush1.xpose.msra.mxu0 0.0
  %352 = vmatprep.subr.mxu0 0.0
  %353 = vmatpush1.xpose.msra.mxu0 0.0
  %354 = vmatprep.subr.mxu0 0.0
  %355 = vmatpush1.xpose.msra.mxu0 0.0
  %356 = vmatprep.subr.mxu0 0.0
  %357 = vmatpush1.xpose.msra.mxu0 0.0
  %358 = vmatprep.subr.mxu0 0.0
  %359 = vmatpush1.xpose.msra.mxu0 0.0
  %360 = vmatprep.subr.mxu0 0.0
  %361 = vmatpush1.xpose.msra.mxu0 0.0
  %362 = vmatprep.subr.mxu0 0.0
  %363 = vmatpush1.xpose.msra.mxu0 0.0
  %364 = vmatprep.subr.mxu0 0.0
  %365 = vmatpush1.xpose.msra.mxu0 0.0
  %366 = vmatprep.subr.mxu0 0.0
  %367 = vmatpush1.xpose.msra.mxu0 0.0
  %368 = vmatprep.subr.mxu0 0.0
  %369 = vmatpush1.xpose.msra.mxu0 0.0
  %370 = vmatprep.subr.mxu0 0.0
  %371 = vmatpush1.xpose.msra.mxu0 0.0
  %372 = vmatprep.subr.mxu0 0.0
  %373 = vmatpush1.xpose.msra.mxu0 0.0
  %374 = vmatprep.subr.mxu0 0.0
  %375 = vmatpush1.xpose.msra.mxu0 %v342
  %376 = vmatprep.subr.mxu0 0.0
  %377 = vmatpush2.xpose.msra.mxu0 0.0
  %378 = vmatprep.subr.mxu0 0.0
  %379 = vmatpush2.xpose.msra.mxu0 0.0
  %380 = vmatprep.subr.mxu0 0.0
  %381 = vmatpush2.xpose.msra.mxu0 0.0
  %382 = vmatprep.subr.mxu0 0.0
  %383 = vmatpush2.xpose.msra.mxu0 0.0
  %384 = vmatprep.subr.mxu0 0.0
  %385 = vmatpush2.xpose.msra.mxu0 0.0
  %386 = vmatprep.subr.mxu0 0.0
  %387 = vmatpush2.xpose.msra.mxu0 0.0
  %388 = vmatprep.subr.mxu0 0.0
  %389 = vmatpush2.xpose.msra.mxu0 0.0
  %390 = vmatprep.subr.mxu0 0.0
  %391 = vmatpush2.xpose.msra.mxu0 0.0
  %392 = vmatprep.subr.mxu0 0.0
  %393 = vmatpush2.xpose.msra.mxu0 0.0
  %394 = vmatprep.subr.mxu0 0.0
  %395 = vmatpush2.xpose.msra.mxu0 0.0
  %396 = vmatprep.subr.mxu0 0.0
  %397 = vmatpush2.xpose.msra.mxu0 0.0
  %398 = vmatprep.subr.mxu0 0.0
  %399 = vmatpush2.xpose.msra.mxu0 0.0
  %400 = vmatprep.subr.mxu0 0.0
  %401 = vmatpush2.xpose.msra.mxu0 0.0
  %402 = vmatprep.subr.mxu0 0.0
  %403 = vmatpush2.xpose.msra.mxu0 0.0
  %404 = vmatprep.subr.mxu0 0.0
  %405 = vmatpush2.xpose.msra.mxu0 0.0
  %406 = vmatprep.subr.mxu0 0.0
  %407 = vmatpush2.xpose.msra.mxu0 0.0
  %408 = vmatprep.mubr.f32.mxu0 0.0
  %409 = vmatmul.mubr.f32.gmra.mxu0 %v340
  %v410 = vpop.f32.mrf.mxu0
  %v411 = vadd.f32 0.0, %v410
  %v412 = vpop.f32.mrf.mxu0
  %413 = vdwg.mxu0
  %v414 = vmul.f32 %v411, 0.35355338
  %v415 = vsel %vm245, %v414, -inf
  %416 = vmax.xlane.f32.xlu0 %v415
  %v417 = vpop.xlane.xlu0 %416
  %v418 = vsub.f32 %v414, %v417
  %v419 = vmul.f32 %v418, 1.442695
  %v420 = vpow.pop %v419
  %v421 = vsel %vm245, %v420, 0.0
  %422 = vadd.xlane.f32.xlu0 %v421
  %v423 = vpop.xlane.xlu0 %422
  %v424 = vrcp.pop %v423
  %v425 = vmul.f32 %v420, %v424
  %426 = vrot.lane.b32.xlu0 %v163, 56
  %v427 = vpop.permute.xlu0 %426
  %v429 = vsel %vm259, %v425, 0
  %v431 = vsel %vm263, %v427, 0
  %433 = vmatprep.subr.mxu0 0.0
  %434 = vmatpush1.msra.mxu0 0.0
  %435 = vmatprep.subr.mxu0 0.0
  %436 = vmatpush1.msra.mxu0 0.0
  %437 = vmatprep.subr.mxu0 0.0
  %438 = vmatpush1.msra.mxu0 0.0
  %439 = vmatprep.subr.mxu0 0.0
  %440 = vmatpush1.msra.mxu0 0.0
  %441 = vmatprep.subr.mxu0 0.0
  %442 = vmatpush1.msra.mxu0 0.0
  %443 = vmatprep.subr.mxu0 0.0
  %444 = vmatpush1.msra.mxu0 0.0
  %445 = vmatprep.subr.mxu0 0.0
  %446 = vmatpush1.msra.mxu0 0.0
  %447 = vmatprep.subr.mxu0 0.0
  %448 = vmatpush1.msra.mxu0 0.0
  %449 = vmatprep.subr.mxu0 0.0
  %450 = vmatpush1.msra.mxu0 0.0
  %451 = vmatprep.subr.mxu0 0.0
  %452 = vmatpush1.msra.mxu0 0.0
  %453 = vmatprep.subr.mxu0 0.0
  %454 = vmatpush1.msra.mxu0 0.0
  %455 = vmatprep.subr.mxu0 0.0
  %456 = vmatpush1.msra.mxu0 0.0
  %457 = vmatprep.subr.mxu0 0.0
  %458 = vmatpush1.msra.mxu0 0.0
  %459 = vmatprep.subr.mxu0 0.0
  %460 = vmatpush1.msra.mxu0 0.0
  %461 = vmatprep.subr.mxu0 0.0
  %462 = vmatpush1.msra.mxu0 0.0
  %463 = vmatprep.subr.mxu0 0.0
  %464 = vmatpush1.msra.mxu0 %v431
  %465 = vmatprep.subr.mxu0 0.0
  %466 = vmatpush2.msra.mxu0 0.0
  %467 = vmatprep.subr.mxu0 0.0
  %468 = vmatpush2.msra.mxu0 0.0
  %469 = vmatprep.subr.mxu0 0.0
  %470 = vmatpush2.msra.mxu0 0.0
  %471 = vmatprep.subr.mxu0 0.0
  %472 = vmatpush2.msra.mxu0 0.0
  %473 = vmatprep.subr.mxu0 0.0
  %474 = vmatpush2.msra.mxu0 0.0
  %475 = vmatprep.subr.mxu0 0.0
  %476 = vmatpush2.msra.mxu0 0.0
  %477 = vmatprep.subr.mxu0 0.0
  %478 = vmatpush2.msra.mxu0 0.0
  %479 = vmatprep.subr.mxu0 0.0
  %480 = vmatpush2.msra.mxu0 0.0
  %481 = vmatprep.subr.mxu0 0.0
  %482 = vmatpush2.msra.mxu0 0.0
  %483 = vmatprep.subr.mxu0 0.0
  %484 = vmatpush2.msra.mxu0 0.0
  %485 = vmatprep.subr.mxu0 0.0
  %486 = vmatpush2.msra.mxu0 0.0
  %487 = vmatprep.subr.mxu0 0.0
  %488 = vmatpush2.msra.mxu0 0.0
  %489 = vmatprep.subr.mxu0 0.0
  %490 = vmatpush2.msra.mxu0 0.0
  %491 = vmatprep.subr.mxu0 0.0
  %492 = vmatpush2.msra.mxu0 0.0
  %493 = vmatprep.subr.mxu0 0.0
  %494 = vmatpush2.msra.mxu0 0.0
  %495 = vmatprep.subr.mxu0 0.0
  %496 = vmatpush2.msra.mxu0 0.0
  %497 = vmatprep.mubr.f32.mxu0 0.0
  %498 = vmatmul.mubr.f32.gmra.mxu0 %v429
  %v499 = vpop.f32.mrf.mxu0
  %v500 = vadd.f32 0.0, %v499
  %v501 = vpop.f32.mrf.mxu0
  %502 = vdwg.mxu0
  %503 = vrot.lane.b32.xlu0 %v163, 112
  %v504 = vpop.permute.xlu0 %503
  %505 = vrot.lane.b32.xlu0 %v163, 80
  %v506 = vpop.permute.xlu0 %505
  %v507 = vsel %vm169, %v504, 0
  %v509 = vsel %vm169, %v506, 0
  %511 = vmatprep.subr.mxu0 0.0
  %512 = vmatpush1.xpose.msra.mxu0 0.0
  %513 = vmatprep.subr.mxu0 0.0
  %514 = vmatpush1.xpose.msra.mxu0 0.0
  %515 = vmatprep.subr.mxu0 0.0
  %516 = vmatpush1.xpose.msra.mxu0 0.0
  %517 = vmatprep.subr.mxu0 0.0
  %518 = vmatpush1.xpose.msra.mxu0 0.0
  %519 = vmatprep.subr.mxu0 0.0
  %520 = vmatpush1.xpose.msra.mxu0 0.0
  %521 = vmatprep.subr.mxu0 0.0
  %522 = vmatpush1.xpose.msra.mxu0 0.0
  %523 = vmatprep.subr.mxu0 0.0
  %524 = vmatpush1.xpose.msra.mxu0 0.0
  %525 = vmatprep.subr.mxu0 0.0
  %526 = vmatpush1.xpose.msra.mxu0 0.0
  %527 = vmatprep.subr.mxu0 0.0
  %528 = vmatpush1.xpose.msra.mxu0 0.0
  %529 = vmatprep.subr.mxu0 0.0
  %530 = vmatpush1.xpose.msra.mxu0 0.0
  %531 = vmatprep.subr.mxu0 0.0
  %532 = vmatpush1.xpose.msra.mxu0 0.0
  %533 = vmatprep.subr.mxu0 0.0
  %534 = vmatpush1.xpose.msra.mxu0 0.0
  %535 = vmatprep.subr.mxu0 0.0
  %536 = vmatpush1.xpose.msra.mxu0 0.0
  %537 = vmatprep.subr.mxu0 0.0
  %538 = vmatpush1.xpose.msra.mxu0 0.0
  %539 = vmatprep.subr.mxu0 0.0
  %540 = vmatpush1.xpose.msra.mxu0 0.0
  %541 = vmatprep.subr.mxu0 0.0
  %542 = vmatpush1.xpose.msra.mxu0 %v509
  %543 = vmatprep.subr.mxu0 0.0
  %544 = vmatpush2.xpose.msra.mxu0 0.0
  %545 = vmatprep.subr.mxu0 0.0
  %546 = vmatpush2.xpose.msra.mxu0 0.0
  %547 = vmatprep.subr.mxu0 0.0
  %548 = vmatpush2.xpose.msra.mxu0 0.0
  %549 = vmatprep.subr.mxu0 0.0
  %550 = vmatpush2.xpose.msra.mxu0 0.0
  %551 = vmatprep.subr.mxu0 0.0
  %552 = vmatpush2.xpose.msra.mxu0 0.0
  %553 = vmatprep.subr.mxu0 0.0
  %554 = vmatpush2.xpose.msra.mxu0 0.0
  %555 = vmatprep.subr.mxu0 0.0
  %556 = vmatpush2.xpose.msra.mxu0 0.0
  %557 = vmatprep.subr.mxu0 0.0
  %558 = vmatpush2.xpose.msra.mxu0 0.0
  %559 = vmatprep.subr.mxu0 0.0
  %560 = vmatpush2.xpose.msra.mxu0 0.0
  %561 = vmatprep.subr.mxu0 0.0
  %562 = vmatpush2.xpose.msra.mxu0 0.0
  %563 = vmatprep.subr.mxu0 0.0
  %564 = vmatpush2.xpose.msra.mxu0 0.0
  %565 = vmatprep.subr.mxu0 0.0
  %566 = vmatpush2.xpose.msra.mxu0 0.0
  %567 = vmatprep.subr.mxu0 0.0
  %568 = vmatpush2.xpose.msra.mxu0 0.0
  %569 = vmatprep.subr.mxu0 0.0
  %570 = vmatpush2.xpose.msra.mxu0 0.0
  %571 = vmatprep.subr.mxu0 0.0
  %572 = vmatpush2.xpose.msra.mxu0 0.0
  %573 = vmatprep.subr.mxu0 0.0
  %574 = vmatpush2.xpose.msra.mxu0 0.0
  %575 = vmatprep.mubr.f32.mxu0 0.0
  %576 = vmatmul.mubr.f32.gmra.mxu0 %v507
  %v577 = vpop.f32.mrf.mxu0
  %v578 = vadd.f32 0.0, %v577
  %v579 = vpop.f32.mrf.mxu0
  %580 = vdwg.mxu0
  %v581 = vmul.f32 %v578, 0.35355338
  %v582 = vsel %vm245, %v581, -inf
  %583 = vmax.xlane.f32.xlu0 %v582
  %v584 = vpop.xlane.xlu0 %583
  %v585 = vsub.f32 %v581, %v584
  %v586 = vmul.f32 %v585, 1.442695
  %v587 = vpow.pop %v586
  %v588 = vsel %vm245, %v587, 0.0
  %589 = vadd.xlane.f32.xlu0 %v588
  %v590 = vpop.xlane.xlu0 %589
  %v591 = vrcp.pop %v590
  %v592 = vmul.f32 %v587, %v591
  %593 = vrot.lane.b32.xlu0 %v163, 48
  %v594 = vpop.permute.xlu0 %593
  %v596 = vsel %vm259, %v592, 0
  %v598 = vsel %vm263, %v594, 0
  %600 = vmatprep.subr.mxu0 0.0
  %601 = vmatpush1.msra.mxu0 0.0
  %602 = vmatprep.subr.mxu0 0.0
  %603 = vmatpush1.msra.mxu0 0.0
  %604 = vmatprep.subr.mxu0 0.0
  %605 = vmatpush1.msra.mxu0 0.0
  %606 = vmatprep.subr.mxu0 0.0
  %607 = vmatpush1.msra.mxu0 0.0
  %608 = vmatprep.subr.mxu0 0.0
  %609 = vmatpush1.msra.mxu0 0.0
  %610 = vmatprep.subr.mxu0 0.0
  %611 = vmatpush1.msra.mxu0 0.0
  %612 = vmatprep.subr.mxu0 0.0
  %613 = vmatpush1.msra.mxu0 0.0
  %614 = vmatprep.subr.mxu0 0.0
  %615 = vmatpush1.msra.mxu0 0.0
  %616 = vmatprep.subr.mxu0 0.0
  %617 = vmatpush1.msra.mxu0 0.0
  %618 = vmatprep.subr.mxu0 0.0
  %619 = vmatpush1.msra.mxu0 0.0
  %620 = vmatprep.subr.mxu0 0.0
  %621 = vmatpush1.msra.mxu0 0.0
  %622 = vmatprep.subr.mxu0 0.0
  %623 = vmatpush1.msra.mxu0 0.0
  %624 = vmatprep.subr.mxu0 0.0
  %625 = vmatpush1.msra.mxu0 0.0
  %626 = vmatprep.subr.mxu0 0.0
  %627 = vmatpush1.msra.mxu0 0.0
  %628 = vmatprep.subr.mxu0 0.0
  %629 = vmatpush1.msra.mxu0 0.0
  %630 = vmatprep.subr.mxu0 0.0
  %631 = vmatpush1.msra.mxu0 %v598
  %632 = vmatprep.subr.mxu0 0.0
  %633 = vmatpush2.msra.mxu0 0.0
  %634 = vmatprep.subr.mxu0 0.0
  %635 = vmatpush2.msra.mxu0 0.0
  %636 = vmatprep.subr.mxu0 0.0
  %637 = vmatpush2.msra.mxu0 0.0
  %638 = vmatprep.subr.mxu0 0.0
  %639 = vmatpush2.msra.mxu0 0.0
  %640 = vmatprep.subr.mxu0 0.0
  %641 = vmatpush2.msra.mxu0 0.0
  %642 = vmatprep.subr.mxu0 0.0
  %643 = vmatpush2.msra.mxu0 0.0
  %644 = vmatprep.subr.mxu0 0.0
  %645 = vmatpush2.msra.mxu0 0.0
  %646 = vmatprep.subr.mxu0 0.0
  %647 = vmatpush2.msra.mxu0 0.0
  %648 = vmatprep.subr.mxu0 0.0
  %649 = vmatpush2.msra.mxu0 0.0
  %650 = vmatprep.subr.mxu0 0.0
  %651 = vmatpush2.msra.mxu0 0.0
  %652 = vmatprep.subr.mxu0 0.0
  %653 = vmatpush2.msra.mxu0 0.0
  %654 = vmatprep.subr.mxu0 0.0
  %655 = vmatpush2.msra.mxu0 0.0
  %656 = vmatprep.subr.mxu0 0.0
  %657 = vmatpush2.msra.mxu0 0.0
  %658 = vmatprep.subr.mxu0 0.0
  %659 = vmatpush2.msra.mxu0 0.0
  %660 = vmatprep.subr.mxu0 0.0
  %661 = vmatpush2.msra.mxu0 0.0
  %662 = vmatprep.subr.mxu0 0.0
  %663 = vmatpush2.msra.mxu0 0.0
  %664 = vmatprep.mubr.f32.mxu0 0.0
  %665 = vmatmul.mubr.f32.gmra.mxu0 %v596
  %v666 = vpop.f32.mrf.mxu0
  %v667 = vadd.f32 0.0, %v666
  %v668 = vpop.f32.mrf.mxu0
  %669 = vdwg.mxu0
  %670 = vrot.lane.b32.xlu0 %v163, 104
  %v671 = vpop.permute.xlu0 %670
  %672 = vrot.lane.b32.xlu0 %v163, 72
  %v673 = vpop.permute.xlu0 %672
  %v674 = vsel %vm169, %v671, 0
  %v676 = vsel %vm169, %v673, 0
  %678 = vmatprep.subr.mxu0 0.0
  %679 = vmatpush1.xpose.msra.mxu0 0.0
  %680 = vmatprep.subr.mxu0 0.0
  %681 = vmatpush1.xpose.msra.mxu0 0.0
  %682 = vmatprep.subr.mxu0 0.0
  %683 = vmatpush1.xpose.msra.mxu0 0.0
  %684 = vmatprep.subr.mxu0 0.0
  %685 = vmatpush1.xpose.msra.mxu0 0.0
  %686 = vmatprep.subr.mxu0 0.0
  %687 = vmatpush1.xpose.msra.mxu0 0.0
  %688 = vmatprep.subr.mxu0 0.0
  %689 = vmatpush1.xpose.msra.mxu0 0.0
  %690 = vmatprep.subr.mxu0 0.0
  %691 = vmatpush1.xpose.msra.mxu0 0.0
  %692 = vmatprep.subr.mxu0 0.0
  %693 = vmatpush1.xpose.msra.mxu0 0.0
  %694 = vmatprep.subr.mxu0 0.0
  %695 = vmatpush1.xpose.msra.mxu0 0.0
  %696 = vmatprep.subr.mxu0 0.0
  %697 = vmatpush1.xpose.msra.mxu0 0.0
  %698 = vmatprep.subr.mxu0 0.0
  %699 = vmatpush1.xpose.msra.mxu0 0.0
  %700 = vmatprep.subr.mxu0 0.0
  %701 = vmatpush1.xpose.msra.mxu0 0.0
  %702 = vmatprep.subr.mxu0 0.0
  %703 = vmatpush1.xpose.msra.mxu0 0.0
  %704 = vmatprep.subr.mxu0 0.0
  %705 = vmatpush1.xpose.msra.mxu0 0.0
  %706 = vmatprep.subr.mxu0 0.0
  %707 = vmatpush1.xpose.msra.mxu0 0.0
  %708 = vmatprep.subr.mxu0 0.0
  %709 = vmatpush1.xpose.msra.mxu0 %v676
  %710 = vmatprep.subr.mxu0 0.0
  %711 = vmatpush2.xpose.msra.mxu0 0.0
  %712 = vmatprep.subr.mxu0 0.0
  %713 = vmatpush2.xpose.msra.mxu0 0.0
  %714 = vmatprep.subr.mxu0 0.0
  %715 = vmatpush2.xpose.msra.mxu0 0.0
  %716 = vmatprep.subr.mxu0 0.0
  %717 = vmatpush2.xpose.msra.mxu0 0.0
  %718 = vmatprep.subr.mxu0 0.0
  %719 = vmatpush2.xpose.msra.mxu0 0.0
  %720 = vmatprep.subr.mxu0 0.0
  %721 = vmatpush2.xpose.msra.mxu0 0.0
  %722 = vmatprep.subr.mxu0 0.0
  %723 = vmatpush2.xpose.msra.mxu0 0.0
  %724 = vmatprep.subr.mxu0 0.0
  %725 = vmatpush2.xpose.msra.mxu0 0.0
  %726 = vmatprep.subr.mxu0 0.0
  %727 = vmatpush2.xpose.msra.mxu0 0.0
  %728 = vmatprep.subr.mxu0 0.0
  %729 = vmatpush2.xpose.msra.mxu0 0.0
  %730 = vmatprep.subr.mxu0 0.0
  %731 = vmatpush2.xpose.msra.mxu0 0.0
  %732 = vmatprep.subr.mxu0 0.0
  %733 = vmatpush2.xpose.msra.mxu0 0.0
  %734 = vmatprep.subr.mxu0 0.0
  %735 = vmatpush2.xpose.msra.mxu0 0.0
  %736 = vmatprep.subr.mxu0 0.0
  %737 = vmatpush2.xpose.msra.mxu0 0.0
  %738 = vmatprep.subr.mxu0 0.0
  %739 = vmatpush2.xpose.msra.mxu0 0.0
  %740 = vmatprep.subr.mxu0 0.0
  %741 = vmatpush2.xpose.msra.mxu0 0.0
  %742 = vmatprep.mubr.f32.mxu0 0.0
  %743 = vmatmul.mubr.f32.gmra.mxu0 %v674
  %v744 = vpop.f32.mrf.mxu0
  %v745 = vadd.f32 0.0, %v744
  %v746 = vpop.f32.mrf.mxu0
  %747 = vdwg.mxu0
  %v748 = vmul.f32 %v745, 0.35355338
  %v749 = vsel %vm245, %v748, -inf
  %750 = vmax.xlane.f32.xlu0 %v749
  %v751 = vpop.xlane.xlu0 %750
  %v752 = vsub.f32 %v748, %v751
  %v753 = vmul.f32 %v752, 1.442695
  %v754 = vpow.pop %v753
  %v755 = vsel %vm245, %v754, 0.0
  %756 = vadd.xlane.f32.xlu0 %v755
  %v757 = vpop.xlane.xlu0 %756
  %v758 = vrcp.pop %v757
  %v759 = vmul.f32 %v754, %v758
  %760 = vrot.lane.b32.xlu0 %v163, 40
  %v761 = vpop.permute.xlu0 %760
  %v763 = vsel %vm259, %v759, 0
  %v765 = vsel %vm263, %v761, 0
  %767 = vmatprep.subr.mxu0 0.0
  %768 = vmatpush1.msra.mxu0 0.0
  %769 = vmatprep.subr.mxu0 0.0
  %770 = vmatpush1.msra.mxu0 0.0
  %771 = vmatprep.subr.mxu0 0.0
  %772 = vmatpush1.msra.mxu0 0.0
  %773 = vmatprep.subr.mxu0 0.0
  %774 = vmatpush1.msra.mxu0 0.0
  %775 = vmatprep.subr.mxu0 0.0
  %776 = vmatpush1.msra.mxu0 0.0
  %777 = vmatprep.subr.mxu0 0.0
  %778 = vmatpush1.msra.mxu0 0.0
  %779 = vmatprep.subr.mxu0 0.0
  %780 = vmatpush1.msra.mxu0 0.0
  %781 = vmatprep.subr.mxu0 0.0
  %782 = vmatpush1.msra.mxu0 0.0
  %783 = vmatprep.subr.mxu0 0.0
  %784 = vmatpush1.msra.mxu0 0.0
  %785 = vmatprep.subr.mxu0 0.0
  %786 = vmatpush1.msra.mxu0 0.0
  %787 = vmatprep.subr.mxu0 0.0
  %788 = vmatpush1.msra.mxu0 0.0
  %789 = vmatprep.subr.mxu0 0.0
  %790 = vmatpush1.msra.mxu0 0.0
  %791 = vmatprep.subr.mxu0 0.0
  %792 = vmatpush1.msra.mxu0 0.0
  %793 = vmatprep.subr.mxu0 0.0
  %794 = vmatpush1.msra.mxu0 0.0
  %795 = vmatprep.subr.mxu0 0.0
  %796 = vmatpush1.msra.mxu0 0.0
  %797 = vmatprep.subr.mxu0 0.0
  %798 = vmatpush1.msra.mxu0 %v765
  %799 = vmatprep.subr.mxu0 0.0
  %800 = vmatpush2.msra.mxu0 0.0
  %801 = vmatprep.subr.mxu0 0.0
  %802 = vmatpush2.msra.mxu0 0.0
  %803 = vmatprep.subr.mxu0 0.0
  %804 = vmatpush2.msra.mxu0 0.0
  %805 = vmatprep.subr.mxu0 0.0
  %806 = vmatpush2.msra.mxu0 0.0
  %807 = vmatprep.subr.mxu0 0.0
  %808 = vmatpush2.msra.mxu0 0.0
  %809 = vmatprep.subr.mxu0 0.0
  %810 = vmatpush2.msra.mxu0 0.0
  %811 = vmatprep.subr.mxu0 0.0
  %812 = vmatpush2.msra.mxu0 0.0
  %813 = vmatprep.subr.mxu0 0.0
  %814 = vmatpush2.msra.mxu0 0.0
  %815 = vmatprep.subr.mxu0 0.0
  %816 = vmatpush2.msra.mxu0 0.0
  %817 = vmatprep.subr.mxu0 0.0
  %818 = vmatpush2.msra.mxu0 0.0
  %819 = vmatprep.subr.mxu0 0.0
  %820 = vmatpush2.msra.mxu0 0.0
  %821 = vmatprep.subr.mxu0 0.0
  %822 = vmatpush2.msra.mxu0 0.0
  %823 = vmatprep.subr.mxu0 0.0
  %824 = vmatpush2.msra.mxu0 0.0
  %825 = vmatprep.subr.mxu0 0.0
  %826 = vmatpush2.msra.mxu0 0.0
  %827 = vmatprep.subr.mxu0 0.0
  %828 = vmatpush2.msra.mxu0 0.0
  %829 = vmatprep.subr.mxu0 0.0
  %830 = vmatpush2.msra.mxu0 0.0
  %831 = vmatprep.mubr.f32.mxu0 0.0
  %832 = vmatmul.mubr.f32.gmra.mxu0 %v763
  %v833 = vpop.f32.mrf.mxu0
  %v834 = vadd.f32 0.0, %v833
  %v835 = vpop.f32.mrf.mxu0
  %836 = vdwg.mxu0
  %838 = vrot.lane.b32.xlu0 %v500, 8
  %v839 = vpop.permute.xlu0 %838
  %842 = vrot.lane.b32.xlu0 %v667, 16
  %v843 = vpop.permute.xlu0 %842
  %846 = vrot.lane.b32.xlu0 %v834, 24
  %v847 = vpop.permute.xlu0 %846
  %v849 = vsel %vm169, %v333, %v839
  %vm850 = vcmask 130048
  %v851 = vsel %vm850, %v849, %v843
  %vm852 = vcmask 195584
  %v853 = vsel %vm852, %v851, %v847
  %v855 = vlaneseq
  %v856 = vshrl.u32 %v855, 7
  %v857 = vsub.s32 0, %v856
  %v858 = vrot.slane %v61, %v857
  %v861 = vsel %vm92, %v853, 0
  %863 = vmatprep.subr.mxu0 0.0
  %864 = vmatpush1.msra.mxu0 0.0
  %865 = vmatprep.subr.mxu0 0.0
  %866 = vmatpush1.msra.mxu0 0.0
  %867 = vmatprep.subr.mxu0 0.0
  %868 = vmatpush1.msra.mxu0 0.0
  %869 = vmatprep.subr.mxu0 0.0
  %870 = vmatpush1.msra.mxu0 0.0
  %871 = vmatprep.subr.mxu0 0.0
  %872 = vmatpush1.msra.mxu0 0.0
  %873 = vmatprep.subr.mxu0 0.0
  %874 = vmatpush1.msra.mxu0 0.0
  %875 = vmatprep.subr.mxu0 0.0
  %876 = vmatpush1.msra.mxu0 0.0
  %877 = vmatprep.subr.mxu0 0.0
  %878 = vmatpush1.msra.mxu0 0.0
  %879 = vmatprep.subr.mxu0 0.0
  %880 = vmatpush1.msra.mxu0 0.0
  %881 = vmatprep.subr.mxu0 0.0
  %882 = vmatpush1.msra.mxu0 0.0
  %883 = vmatprep.subr.mxu0 0.0
  %884 = vmatpush1.msra.mxu0 0.0
  %885 = vmatprep.subr.mxu0 0.0
  %886 = vmatpush1.msra.mxu0 0.0
  %887 = vmatprep.subr.mxu0 0.0
  %888 = vmatpush1.msra.mxu0 %v60
  %889 = vmatprep.subr.mxu0 0.0
  %890 = vmatpush1.msra.mxu0 %v59
  %891 = vmatprep.subr.mxu0 0.0
  %892 = vmatpush1.msra.mxu0 %v58
  %893 = vmatprep.subr.mxu0 0.0
  %894 = vmatpush1.msra.mxu0 %v57
  %895 = vmatprep.subr.mxu0 0.0
  %896 = vmatpush2.msra.mxu0 0.0
  %897 = vmatprep.subr.mxu0 0.0
  %898 = vmatpush2.msra.mxu0 0.0
  %899 = vmatprep.subr.mxu0 0.0
  %900 = vmatpush2.msra.mxu0 0.0
  %901 = vmatprep.subr.mxu0 0.0
  %902 = vmatpush2.msra.mxu0 0.0
  %903 = vmatprep.subr.mxu0 0.0
  %904 = vmatpush2.msra.mxu0 0.0
  %905 = vmatprep.subr.mxu0 0.0
  %906 = vmatpush2.msra.mxu0 0.0
  %907 = vmatprep.subr.mxu0 0.0
  %908 = vmatpush2.msra.mxu0 0.0
  %909 = vmatprep.subr.mxu0 0.0
  %910 = vmatpush2.msra.mxu0 0.0
  %911 = vmatprep.subr.mxu0 0.0
  %912 = vmatpush2.msra.mxu0 0.0
  %913 = vmatprep.subr.mxu0 0.0
  %914 = vmatpush2.msra.mxu0 0.0
  %915 = vmatprep.subr.mxu0 0.0
  %916 = vmatpush2.msra.mxu0 0.0
  %917 = vmatprep.subr.mxu0 0.0
  %918 = vmatpush2.msra.mxu0 0.0
  %919 = vmatprep.subr.mxu0 0.0
  %920 = vmatpush2.msra.mxu0 0.0
  %921 = vmatprep.subr.mxu0 0.0
  %922 = vmatpush2.msra.mxu0 0.0
  %923 = vmatprep.subr.mxu0 0.0
  %924 = vmatpush2.msra.mxu0 0.0
  %925 = vmatprep.subr.mxu0 0.0
  %926 = vmatpush2.msra.mxu0 0.0
  %927 = vmatprep.mubr.f32.mxu0 0.0
  %928 = vmatmul.mubr.f32.gmra.mxu0 %v861
  %v929 = vpop.f32.mrf.mxu0
  %v930 = vadd.f32 %v858, %v929
  %v931 = vpop.f32.mrf.mxu0
  %932 = vdwg.mxu0
  %v933 = vadd.f32 %v85, %v930
  %vm934 = vcmask 258048
  %v935 = vsel %vm934, %v933, 0.0
  %936 = vadd.xlane.f32.xlu0 %v935
  %v937 = vpop.xlane.xlu0 %936
  %v938 = vrcp.pop 32.0
  %v939 = vmul.f32 %v937, %v938
  %v940 = vsub.f32 %v933, %v939
  %v941 = vmul.f32 %v940, %v940
  %v942 = vsel %vm934, %v941, 0.0
  %943 = vadd.xlane.f32.xlu0 %v942
  %v944 = vpop.xlane.xlu0 %943
  %v945 = vmul.f32 %v944, %v938
  %v946 = vadd.f32 %v945, 1e-05
  %v947 = vrsqrt.pop %v946
  %v948 = vmul.f32 %v940, %v947
  %v950 = vlaneseq
  %v951 = vshrl.u32 %v950, 7
  %v952 = vsub.s32 0, %v951
  %v953 = vrot.slane %v76, %v952
  %v955 = vmul.f32 %v948, %v953
  %v957 = vlaneseq
  %v958 = vshrl.u32 %v957, 7
  %v959 = vsub.s32 0, %v958
  %v960 = vrot.slane %v77, %v959
  %v962 = vadd.f32 %v955, %v960
  %v964 = vlaneseq
  %v965 = vshrl.u32 %v964, 7
  %v966 = vsub.s32 0, %v965
  %v967 = vrot.slane %v66, %v966
  %v970 = vsel %vm92, %v962, 0
  %972 = vmatprep.subr.mxu0 0.0
  %973 = vmatpush1.msra.mxu0 0.0
  %974 = vmatprep.subr.mxu0 0.0
  %975 = vmatpush1.msra.mxu0 0.0
  %976 = vmatprep.subr.mxu0 0.0
  %977 = vmatpush1.msra.mxu0 0.0
  %978 = vmatprep.subr.mxu0 0.0
  %979 = vmatpush1.msra.mxu0 0.0
  %980 = vmatprep.subr.mxu0 0.0
  %981 = vmatpush1.msra.mxu0 0.0
  %982 = vmatprep.subr.mxu0 0.0
  %983 = vmatpush1.msra.mxu0 0.0
  %984 = vmatprep.subr.mxu0 0.0
  %985 = vmatpush1.msra.mxu0 0.0
  %986 = vmatprep.subr.mxu0 0.0
  %987 = vmatpush1.msra.mxu0 0.0
  %988 = vmatprep.subr.mxu0 0.0
  %989 = vmatpush1.msra.mxu0 0.0
  %990 = vmatprep.subr.mxu0 0.0
  %991 = vmatpush1.msra.mxu0 0.0
  %992 = vmatprep.subr.mxu0 0.0
  %993 = vmatpush1.msra.mxu0 0.0
  %994 = vmatprep.subr.mxu0 0.0
  %995 = vmatpush1.msra.mxu0 0.0
  %996 = vmatprep.subr.mxu0 0.0
  %997 = vmatpush1.msra.mxu0 %v65
  %998 = vmatprep.subr.mxu0 0.0
  %999 = vmatpush1.msra.mxu0 %v64
  %1000 = vmatprep.subr.mxu0 0.0
  %1001 = vmatpush1.msra.mxu0 %v63
  %1002 = vmatprep.subr.mxu0 0.0
  %1003 = vmatpush1.msra.mxu0 %v62
  %1004 = vmatprep.subr.mxu0 0.0
  %1005 = vmatpush2.msra.mxu0 0.0
  %1006 = vmatprep.subr.mxu0 0.0
  %1007 = vmatpush2.msra.mxu0 0.0
  %1008 = vmatprep.subr.mxu0 0.0
  %1009 = vmatpush2.msra.mxu0 0.0
  %1010 = vmatprep.subr.mxu0 0.0
  %1011 = vmatpush2.msra.mxu0 0.0
  %1012 = vmatprep.subr.mxu0 0.0
  %1013 = vmatpush2.msra.mxu0 0.0
  %1014 = vmatprep.subr.mxu0 0.0
  %1015 = vmatpush2.msra.mxu0 0.0
  %1016 = vmatprep.subr.mxu0 0.0
  %1017 = vmatpush2.msra.mxu0 0.0
  %1018 = vmatprep.subr.mxu0 0.0
  %1019 = vmatpush2.msra.mxu0 0.0
  %1020 = vmatprep.subr.mxu0 0.0
  %1021 = vmatpush2.msra.mxu0 0.0
  %1022 = vmatprep.subr.mxu0 0.0
  %1023 = vmatpush2.msra.mxu0 0.0
  %1024 = vmatprep.subr.mxu0 0.0
  %1025 = vmatpush2.msra.mxu0 0.0
  %1026 = vmatprep.subr.mxu0 0.0
  %1027 = vmatpush2.msra.mxu0 0.0
  %1028 = vmatprep.subr.mxu0 0.0
  %1029 = vmatpush2.msra.mxu0 0.0
  %1030 = vmatprep.subr.mxu0 0.0
  %1031 = vmatpush2.msra.mxu0 0.0
  %1032 = vmatprep.subr.mxu0 0.0
  %1033 = vmatpush2.msra.mxu0 0.0
  %1034 = vmatprep.subr.mxu0 0.0
  %1035 = vmatpush2.msra.mxu0 0.0
  %1036 = vmatprep.mubr.f32.mxu0 0.0
  %1037 = vmatmul.mubr.f32.gmra.mxu0 %v970
  %v1038 = vpop.f32.mrf.mxu0
  %v1039 = vadd.f32 %v967, %v1038
  %v1040 = vpop.f32.mrf.mxu0
  %1041 = vdwg.mxu0
  %v1042 = vmax.f32 %v1039, 0.0
  %v1044 = vlaneseq
  %v1045 = vshrl.u32 %v1044, 7
  %v1046 = vsub.s32 0, %v1045
  %v1047 = vrot.slane %v75, %v1046
  %vm1049 = vcmask 523264
  %v1051 = vsel %vm1049, %v1042, 0
  %1053 = vmatprep.subr.mxu0 0.0
  %1054 = vmatpush1.msra.mxu0 0.0
  %1055 = vmatprep.subr.mxu0 0.0
  %1056 = vmatpush1.msra.mxu0 0.0
  %1057 = vmatprep.subr.mxu0 0.0
  %1058 = vmatpush1.msra.mxu0 0.0
  %1059 = vmatprep.subr.mxu0 0.0
  %1060 = vmatpush1.msra.mxu0 0.0
  %1061 = vmatprep.subr.mxu0 0.0
  %1062 = vmatpush1.msra.mxu0 0.0
  %1063 = vmatprep.subr.mxu0 0.0
  %1064 = vmatpush1.msra.mxu0 0.0
  %1065 = vmatprep.subr.mxu0 0.0
  %1066 = vmatpush1.msra.mxu0 0.0
  %1067 = vmatprep.subr.mxu0 0.0
  %1068 = vmatpush1.msra.mxu0 0.0
  %1069 = vmatprep.subr.mxu0 0.0
  %1070 = vmatpush1.msra.mxu0 %v74
  %1071 = vmatprep.subr.mxu0 0.0
  %1072 = vmatpush1.msra.mxu0 %v73
  %1073 = vmatprep.subr.mxu0 0.0
  %1074 = vmatpush1.msra.mxu0 %v72
  %1075 = vmatprep.subr.mxu0 0.0
  %1076 = vmatpush1.msra.mxu0 %v71
  %1077 = vmatprep.subr.mxu0 0.0
  %1078 = vmatpush1.msra.mxu0 %v70
  %1079 = vmatprep.subr.mxu0 0.0
  %1080 = vmatpush1.msra.mxu0 %v69
  %1081 = vmatprep.subr.mxu0 0.0
  %1082 = vmatpush1.msra.mxu0 %v68
  %1083 = vmatprep.subr.mxu0 0.0
  %1084 = vmatpush1.msra.mxu0 %v67
  %1085 = vmatprep.subr.mxu0 0.0
  %1086 = vmatpush2.msra.mxu0 0.0
  %1087 = vmatprep.subr.mxu0 0.0
  %1088 = vmatpush2.msra.mxu0 0.0
  %1089 = vmatprep.subr.mxu0 0.0
  %1090 = vmatpush2.msra.mxu0 0.0
  %1091 = vmatprep.subr.mxu0 0.0
  %1092 = vmatpush2.msra.mxu0 0.0
  %1093 = vmatprep.subr.mxu0 0.0
  %1094 = vmatpush2.msra.mxu0 0.0
  %1095 = vmatprep.subr.mxu0 0.0
  %1096 = vmatpush2.msra.mxu0 0.0
  %1097 = vmatprep.subr.mxu0 0.0
  %1098 = vmatpush2.msra.mxu0 0.0
  %1099 = vmatprep.subr.mxu0 0.0
  %1100 = vmatpush2.msra.mxu0 0.0
  %1101 = vmatprep.subr.mxu0 0.0
  %1102 = vmatpush2.msra.mxu0 0.0
  %1103 = vmatprep.subr.mxu0 0.0
  %1104 = vmatpush2.msra.mxu0 0.0
  %1105 = vmatprep.subr.mxu0 0.0
  %1106 = vmatpush2.msra.mxu0 0.0
  %1107 = vmatprep.subr.mxu0 0.0
  %1108 = vmatpush2.msra.mxu0 0.0
  %1109 = vmatprep.subr.mxu0 0.0
  %1110 = vmatpush2.msra.mxu0 0.0
  %1111 = vmatprep.subr.mxu0 0.0
  %1112 = vmatpush2.msra.mxu0 0.0
  %1113 = vmatprep.subr.mxu0 0.0
  %1114 = vmatpush2.msra.mxu0 0.0
  %1115 = vmatprep.subr.mxu0 0.0
  %1116 = vmatpush2.msra.mxu0 0.0
  %1117 = vmatprep.mubr.f32.mxu0 0.0
  %1118 = vmatmul.mubr.f32.gmra.mxu0 %v1051
  %v1119 = vpop.f32.mrf.mxu0
  %v1120 = vadd.f32 %v1047, %v1119
  %v1121 = vpop.f32.mrf.mxu0
  %1122 = vdwg.mxu0
  %v1123 = vadd.f32 %v962, %v1120
  %v1124 = vsel %vm934, %v1123, 0.0
  %1125 = vadd.xlane.f32.xlu0 %v1124
  %v1126 = vpop.xlane.xlu0 %1125
  %v1127 = vmul.f32 %v1126, %v938
  %v1128 = vsub.f32 %v1123, %v1127
  %v1129 = vmul.f32 %v1128, %v1128
  %v1130 = vsel %vm934, %v1129, 0.0
  %1131 = vadd.xlane.f32.xlu0 %v1130
  %v1132 = vpop.xlane.xlu0 %1131
  %v1133 = vmul.f32 %v1132, %v938
  %v1134 = vadd.f32 %v1133, 1e-05
  %v1135 = vrsqrt.pop %v1134
  %v1136 = vmul.f32 %v1128, %v1135
  %v1138 = vlaneseq
  %v1139 = vshrl.u32 %v1138, 7
  %v1140 = vsub.s32 0, %v1139
  %v1141 = vrot.slane %v78, %v1140
  %v1143 = vmul.f32 %v1136, %v1141
  %v1145 = vlaneseq
  %v1146 = vshrl.u32 %v1145, 7
  %v1147 = vsub.s32 0, %v1146
  %v1148 = vrot.slane %v79, %v1147
  %v1150 = vadd.f32 %v1143, %v1148
  %1151 = vst.msk [vmem:[%s15] sm:$0x1f] %vm934, %v1150
  %v1153 = vlaneseq
  %v1154 = vshrl.u32 %v1153, 7
  %v1155 = vsub.s32 0, %v1154
  %v1156 = vrot.slane %v84, %v1155
  %v1159 = vsel %vm92, %v1150, 0
  %1161 = vmatprep.subr.mxu0 0.0
  %1162 = vmatpush1.msra.mxu0 0.0
  %1163 = vmatprep.subr.mxu0 0.0
  %1164 = vmatpush1.msra.mxu0 0.0
  %1165 = vmatprep.subr.mxu0 0.0
  %1166 = vmatpush1.msra.mxu0 0.0
  %1167 = vmatprep.subr.mxu0 0.0
  %1168 = vmatpush1.msra.mxu0 0.0
  %1169 = vmatprep.subr.mxu0 0.0
  %1170 = vmatpush1.msra.mxu0 0.0
  %1171 = vmatprep.subr.mxu0 0.0
  %1172 = vmatpush1.msra.mxu0 0.0
  %1173 = vmatprep.subr.mxu0 0.0
  %1174 = vmatpush1.msra.mxu0 0.0
  %1175 = vmatprep.subr.mxu0 0.0
  %1176 = vmatpush1.msra.mxu0 0.0
  %1177 = vmatprep.subr.mxu0 0.0
  %1178 = vmatpush1.msra.mxu0 0.0
  %1179 = vmatprep.subr.mxu0 0.0
  %1180 = vmatpush1.msra.mxu0 0.0
  %1181 = vmatprep.subr.mxu0 0.0
  %1182 = vmatpush1.msra.mxu0 0.0
  %1183 = vmatprep.subr.mxu0 0.0
  %1184 = vmatpush1.msra.mxu0 0.0
  %1185 = vmatprep.subr.mxu0 0.0
  %1186 = vmatpush1.msra.mxu0 %v83
  %1187 = vmatprep.subr.mxu0 0.0
  %1188 = vmatpush1.msra.mxu0 %v82
  %1189 = vmatprep.subr.mxu0 0.0
  %1190 = vmatpush1.msra.mxu0 %v81
  %1191 = vmatprep.subr.mxu0 0.0
  %1192 = vmatpush1.msra.mxu0 %v80
  %1193 = vmatprep.subr.mxu0 0.0
  %1194 = vmatpush2.msra.mxu0 0.0
  %1195 = vmatprep.subr.mxu0 0.0
  %1196 = vmatpush2.msra.mxu0 0.0
  %1197 = vmatprep.subr.mxu0 0.0
  %1198 = vmatpush2.msra.mxu0 0.0
  %1199 = vmatprep.subr.mxu0 0.0
  %1200 = vmatpush2.msra.mxu0 0.0
  %1201 = vmatprep.subr.mxu0 0.0
  %1202 = vmatpush2.msra.mxu0 0.0
  %1203 = vmatprep.subr.mxu0 0.0
  %1204 = vmatpush2.msra.mxu0 0.0
  %1205 = vmatprep.subr.mxu0 0.0
  %1206 = vmatpush2.msra.mxu0 0.0
  %1207 = vmatprep.subr.mxu0 0.0
  %1208 = vmatpush2.msra.mxu0 0.0
  %1209 = vmatprep.subr.mxu0 0.0
  %1210 = vmatpush2.msra.mxu0 0.0
  %1211 = vmatprep.subr.mxu0 0.0
  %1212 = vmatpush2.msra.mxu0 0.0
  %1213 = vmatprep.subr.mxu0 0.0
  %1214 = vmatpush2.msra.mxu0 0.0
  %1215 = vmatprep.subr.mxu0 0.0
  %1216 = vmatpush2.msra.mxu0 0.0
  %1217 = vmatprep.subr.mxu0 0.0
  %1218 = vmatpush2.msra.mxu0 0.0
  %1219 = vmatprep.subr.mxu0 0.0
  %1220 = vmatpush2.msra.mxu0 0.0
  %1221 = vmatprep.subr.mxu0 0.0
  %1222 = vmatpush2.msra.mxu0 0.0
  %1223 = vmatprep.subr.mxu0 0.0
  %1224 = vmatpush2.msra.mxu0 0.0
  %1225 = vmatprep.mubr.f32.mxu0 0.0
  %1226 = vmatmul.mubr.f32.gmra.mxu0 %v1159
  %v1227 = vpop.f32.mrf.mxu0
  %v1228 = vadd.f32 %v1156, %v1227
  %v1229 = vpop.f32.mrf.mxu0
  %1230 = vdwg.mxu0
  %1231 = vst.msk [vmem:[%s16] sm:$0x1f] %vm934, %v1228
  %s1232 = scalar_lea.vmem %s0, 8
  %v1233 = vld [vmem:[%s1232] sm:$0x1f]
  %v1235 = vsel %vm92, %v1233, 0
  %1237 = vmatprep.subr.mxu0 0.0
  %1238 = vmatpush1.msra.mxu0 0.0
  %1239 = vmatprep.subr.mxu0 0.0
  %1240 = vmatpush1.msra.mxu0 0.0
  %1241 = vmatprep.subr.mxu0 0.0
  %1242 = vmatpush1.msra.mxu0 0.0
  %1243 = vmatprep.subr.mxu0 0.0
  %1244 = vmatpush1.msra.mxu0 0.0
  %1245 = vmatprep.subr.mxu0 0.0
  %1246 = vmatpush1.msra.mxu0 0.0
  %1247 = vmatprep.subr.mxu0 0.0
  %1248 = vmatpush1.msra.mxu0 0.0
  %1249 = vmatprep.subr.mxu0 0.0
  %1250 = vmatpush1.msra.mxu0 0.0
  %1251 = vmatprep.subr.mxu0 0.0
  %1252 = vmatpush1.msra.mxu0 0.0
  %1253 = vmatprep.subr.mxu0 0.0
  %1254 = vmatpush1.msra.mxu0 0.0
  %1255 = vmatprep.subr.mxu0 0.0
  %1256 = vmatpush1.msra.mxu0 0.0
  %1257 = vmatprep.subr.mxu0 0.0
  %1258 = vmatpush1.msra.mxu0 0.0
  %1259 = vmatprep.subr.mxu0 0.0
  %1260 = vmatpush1.msra.mxu0 0.0
  %1261 = vmatprep.subr.mxu0 0.0
  %1262 = vmatpush1.msra.mxu0 %v55
  %1263 = vmatprep.subr.mxu0 0.0
  %1264 = vmatpush1.msra.mxu0 %v54
  %1265 = vmatprep.subr.mxu0 0.0
  %1266 = vmatpush1.msra.mxu0 %v53
  %1267 = vmatprep.subr.mxu0 0.0
  %1268 = vmatpush1.msra.mxu0 %v52
  %1269 = vmatprep.subr.mxu0 0.0
  %1270 = vmatpush2.msra.mxu0 0.0
  %1271 = vmatprep.subr.mxu0 0.0
  %1272 = vmatpush2.msra.mxu0 0.0
  %1273 = vmatprep.subr.mxu0 0.0
  %1274 = vmatpush2.msra.mxu0 0.0
  %1275 = vmatprep.subr.mxu0 0.0
  %1276 = vmatpush2.msra.mxu0 0.0
  %1277 = vmatprep.subr.mxu0 0.0
  %1278 = vmatpush2.msra.mxu0 0.0
  %1279 = vmatprep.subr.mxu0 0.0
  %1280 = vmatpush2.msra.mxu0 0.0
  %1281 = vmatprep.subr.mxu0 0.0
  %1282 = vmatpush2.msra.mxu0 0.0
  %1283 = vmatprep.subr.mxu0 0.0
  %1284 = vmatpush2.msra.mxu0 0.0
  %1285 = vmatprep.subr.mxu0 0.0
  %1286 = vmatpush2.msra.mxu0 0.0
  %1287 = vmatprep.subr.mxu0 0.0
  %1288 = vmatpush2.msra.mxu0 0.0
  %1289 = vmatprep.subr.mxu0 0.0
  %1290 = vmatpush2.msra.mxu0 0.0
  %1291 = vmatprep.subr.mxu0 0.0
  %1292 = vmatpush2.msra.mxu0 0.0
  %1293 = vmatprep.subr.mxu0 0.0
  %1294 = vmatpush2.msra.mxu0 0.0
  %1295 = vmatprep.subr.mxu0 0.0
  %1296 = vmatpush2.msra.mxu0 0.0
  %1297 = vmatprep.subr.mxu0 0.0
  %1298 = vmatpush2.msra.mxu0 0.0
  %1299 = vmatprep.subr.mxu0 0.0
  %1300 = vmatpush2.msra.mxu0 0.0
  %1301 = vmatprep.mubr.f32.mxu0 0.0
  %1302 = vmatmul.mubr.f32.gmra.mxu0 %v1235
  %v1303 = vpop.f32.mrf.mxu0
  %v1304 = vadd.f32 %v90, %v1303
  %v1305 = vpop.f32.mrf.mxu0
  %1306 = vdwg.mxu0
  %1308 = vrot.lane.b32.xlu0 %v1304, 96
  %v1309 = vpop.permute.xlu0 %1308
  %v1310 = vsel %vm169, %v1304, 0
  %v1312 = vsel %vm169, %v1309, 0
  %1314 = vmatprep.subr.mxu0 0.0
  %1315 = vmatpush1.xpose.msra.mxu0 0.0
  %1316 = vmatprep.subr.mxu0 0.0
  %1317 = vmatpush1.xpose.msra.mxu0 0.0
  %1318 = vmatprep.subr.mxu0 0.0
  %1319 = vmatpush1.xpose.msra.mxu0 0.0
  %1320 = vmatprep.subr.mxu0 0.0
  %1321 = vmatpush1.xpose.msra.mxu0 0.0
  %1322 = vmatprep.subr.mxu0 0.0
  %1323 = vmatpush1.xpose.msra.mxu0 0.0
  %1324 = vmatprep.subr.mxu0 0.0
  %1325 = vmatpush1.xpose.msra.mxu0 0.0
  %1326 = vmatprep.subr.mxu0 0.0
  %1327 = vmatpush1.xpose.msra.mxu0 0.0
  %1328 = vmatprep.subr.mxu0 0.0
  %1329 = vmatpush1.xpose.msra.mxu0 0.0
  %1330 = vmatprep.subr.mxu0 0.0
  %1331 = vmatpush1.xpose.msra.mxu0 0.0
  %1332 = vmatprep.subr.mxu0 0.0
  %1333 = vmatpush1.xpose.msra.mxu0 0.0
  %1334 = vmatprep.subr.mxu0 0.0
  %1335 = vmatpush1.xpose.msra.mxu0 0.0
  %1336 = vmatprep.subr.mxu0 0.0
  %1337 = vmatpush1.xpose.msra.mxu0 0.0
  %1338 = vmatprep.subr.mxu0 0.0
  %1339 = vmatpush1.xpose.msra.mxu0 0.0
  %1340 = vmatprep.subr.mxu0 0.0
  %1341 = vmatpush1.xpose.msra.mxu0 0.0
  %1342 = vmatprep.subr.mxu0 0.0
  %1343 = vmatpush1.xpose.msra.mxu0 0.0
  %1344 = vmatprep.subr.mxu0 0.0
  %1345 = vmatpush1.xpose.msra.mxu0 %v1312
  %1346 = vmatprep.subr.mxu0 0.0
  %1347 = vmatpush2.xpose.msra.mxu0 0.0
  %1348 = vmatprep.subr.mxu0 0.0
  %1349 = vmatpush2.xpose.msra.mxu0 0.0
  %1350 = vmatprep.subr.mxu0 0.0
  %1351 = vmatpush2.xpose.msra.mxu0 0.0
  %1352 = vmatprep.subr.mxu0 0.0
  %1353 = vmatpush2.xpose.msra.mxu0 0.0
  %1354 = vmatprep.subr.mxu0 0.0
  %1355 = vmatpush2.xpose.msra.mxu0 0.0
  %1356 = vmatprep.subr.mxu0 0.0
  %1357 = vmatpush2.xpose.msra.mxu0 0.0
  %1358 = vmatprep.subr.mxu0 0.0
  %1359 = vmatpush2.xpose.msra.mxu0 0.0
  %1360 = vmatprep.subr.mxu0 0.0
  %1361 = vmatpush2.xpose.msra.mxu0 0.0
  %1362 = vmatprep.subr.mxu0 0.0
  %1363 = vmatpush2.xpose.msra.mxu0 0.0
  %1364 = vmatprep.subr.mxu0 0.0
  %1365 = vmatpush2.xpose.msra.mxu0 0.0
  %1366 = vmatprep.subr.mxu0 0.0
  %1367 = vmatpush2.xpose.msra.mxu0 0.0
  %1368 = vmatprep.subr.mxu0 0.0
  %1369 = vmatpush2.xpose.msra.mxu0 0.0
  %1370 = vmatprep.subr.mxu0 0.0
  %1371 = vmatpush2.xpose.msra.mxu0 0.0
  %1372 = vmatprep.subr.mxu0 0.0
  %1373 = vmatpush2.xpose.msra.mxu0 0.0
  %1374 = vmatprep.subr.mxu0 0.0
  %1375 = vmatpush2.xpose.msra.mxu0 0.0
  %1376 = vmatprep.subr.mxu0 0.0
  %1377 = vmatpush2.xpose.msra.mxu0 0.0
  %1378 = vmatprep.mubr.f32.mxu0 0.0
  %1379 = vmatmul.mubr.f32.gmra.mxu0 %v1310
  %v1380 = vpop.f32.mrf.mxu0
  %v1381 = vadd.f32 0.0, %v1380
  %v1382 = vpop.f32.mrf.mxu0
  %1383 = vdwg.mxu0
  %v1384 = vmul.f32 %v1381, 0.35355338
  %v1385 = vsel %vm245, %v1384, -inf
  %1386 = vmax.xlane.f32.xlu0 %v1385
  %v1387 = vpop.xlane.xlu0 %1386
  %v1388 = vsub.f32 %v1384, %v1387
  %v1389 = vmul.f32 %v1388, 1.442695
  %v1390 = vpow.pop %v1389
  %v1391 = vsel %vm245, %v1390, 0.0
  %1392 = vadd.xlane.f32.xlu0 %v1391
  %v1393 = vpop.xlane.xlu0 %1392
  %v1394 = vrcp.pop %v1393
  %v1395 = vmul.f32 %v1390, %v1394
  %1396 = vrot.lane.b32.xlu0 %v1304, 64
  %v1397 = vpop.permute.xlu0 %1396
  %v1399 = vsel %vm259, %v1395, 0
  %v1401 = vsel %vm263, %v1397, 0
  %1403 = vmatprep.subr.mxu0 0.0
  %1404 = vmatpush1.msra.mxu0 0.0
  %1405 = vmatprep.subr.mxu0 0.0
  %1406 = vmatpush1.msra.mxu0 0.0
  %1407 = vmatprep.subr.mxu0 0.0
  %1408 = vmatpush1.msra.mxu0 0.0
  %1409 = vmatprep.subr.mxu0 0.0
  %1410 = vmatpush1.msra.mxu0 0.0
  %1411 = vmatprep.subr.mxu0 0.0
  %1412 = vmatpush1.msra.mxu0 0.0
  %1413 = vmatprep.subr.mxu0 0.0
  %1414 = vmatpush1.msra.mxu0 0.0
  %1415 = vmatprep.subr.mxu0 0.0
  %1416 = vmatpush1.msra.mxu0 0.0
  %1417 = vmatprep.subr.mxu0 0.0
  %1418 = vmatpush1.msra.mxu0 0.0
  %1419 = vmatprep.subr.mxu0 0.0
  %1420 = vmatpush1.msra.mxu0 0.0
  %1421 = vmatprep.subr.mxu0 0.0
  %1422 = vmatpush1.msra.mxu0 0.0
  %1423 = vmatprep.subr.mxu0 0.0
  %1424 = vmatpush1.msra.mxu0 0.0
  %1425 = vmatprep.subr.mxu0 0.0
  %1426 = vmatpush1.msra.mxu0 0.0
  %1427 = vmatprep.subr.mxu0 0.0
  %1428 = vmatpush1.msra.mxu0 0.0
  %1429 = vmatprep.subr.mxu0 0.0
  %1430 = vmatpush1.msra.mxu0 0.0
  %1431 = vmatprep.subr.mxu0 0.0
  %1432 = vmatpush1.msra.mxu0 0.0
  %1433 = vmatprep.subr.mxu0 0.0
  %1434 = vmatpush1.msra.mxu0 %v1401
  %1435 = vmatprep.subr.mxu0 0.0
  %1436 = vmatpush2.msra.mxu0 0.0
  %1437 = vmatprep.subr.mxu0 0.0
  %1438 = vmatpush2.msra.mxu0 0.0
  %1439 = vmatprep.subr.mxu0 0.0
  %1440 = vmatpush2.msra.mxu0 0.0
  %1441 = vmatprep.subr.mxu0 0.0
  %1442 = vmatpush2.msra.mxu0 0.0
  %1443 = vmatprep.subr.mxu0 0.0
  %1444 = vmatpush2.msra.mxu0 0.0
  %1445 = vmatprep.subr.mxu0 0.0
  %1446 = vmatpush2.msra.mxu0 0.0
  %1447 = vmatprep.subr.mxu0 0.0
  %1448 = vmatpush2.msra.mxu0 0.0
  %1449 = vmatprep.subr.mxu0 0.0
  %1450 = vmatpush2.msra.mxu0 0.0
  %1451 = vmatprep.subr.mxu0 0.0
  %1452 = vmatpush2.msra.mxu0 0.0
  %1453 = vmatprep.subr.mxu0 0.0
  %1454 = vmatpush2.msra.mxu0 0.0
  %1455 = vmatprep.subr.mxu0 0.0
  %1456 = vmatpush2.msra.mxu0 0.0
  %1457 = vmatprep.subr.mxu0 0.0
  %1458 = vmatpush2.msra.mxu0 0.0
  %1459 = vmatprep.subr.mxu0 0.0
  %1460 = vmatpush2.msra.mxu0 0.0
  %1461 = vmatprep.subr.mxu0 0.0
  %1462 = vmatpush2.msra.mxu0 0.0
  %1463 = vmatprep.subr.mxu0 0.0
  %1464 = vmatpush2.msra.mxu0 0.0
  %1465 = vmatprep.subr.mxu0 0.0
  %1466 = vmatpush2.msra.mxu0 0.0
  %1467 = vmatprep.mubr.f32.mxu0 0.0
  %1468 = vmatmul.mubr.f32.gmra.mxu0 %v1399
  %v1469 = vpop.f32.mrf.mxu0
  %v1470 = vadd.f32 0.0, %v1469
  %v1471 = vpop.f32.mrf.mxu0
  %1472 = vdwg.mxu0
  %1473 = vrot.lane.b32.xlu0 %v1304, 120
  %v1474 = vpop.permute.xlu0 %1473
  %1475 = vrot.lane.b32.xlu0 %v1304, 88
  %v1476 = vpop.permute.xlu0 %1475
  %v1477 = vsel %vm169, %v1474, 0
  %v1479 = vsel %vm169, %v1476, 0
  %1481 = vmatprep.subr.mxu0 0.0
  %1482 = vmatpush1.xpose.msra.mxu0 0.0
  %1483 = vmatprep.subr.mxu0 0.0
  %1484 = vmatpush1.xpose.msra.mxu0 0.0
  %1485 = vmatprep.subr.mxu0 0.0
  %1486 = vmatpush1.xpose.msra.mxu0 0.0
  %1487 = vmatprep.subr.mxu0 0.0
  %1488 = vmatpush1.xpose.msra.mxu0 0.0
  %1489 = vmatprep.subr.mxu0 0.0
  %1490 = vmatpush1.xpose.msra.mxu0 0.0
  %1491 = vmatprep.subr.mxu0 0.0
  %1492 = vmatpush1.xpose.msra.mxu0 0.0
  %1493 = vmatprep.subr.mxu0 0.0
  %1494 = vmatpush1.xpose.msra.mxu0 0.0
  %1495 = vmatprep.subr.mxu0 0.0
  %1496 = vmatpush1.xpose.msra.mxu0 0.0
  %1497 = vmatprep.subr.mxu0 0.0
  %1498 = vmatpush1.xpose.msra.mxu0 0.0
  %1499 = vmatprep.subr.mxu0 0.0
  %1500 = vmatpush1.xpose.msra.mxu0 0.0
  %1501 = vmatprep.subr.mxu0 0.0
  %1502 = vmatpush1.xpose.msra.mxu0 0.0
  %1503 = vmatprep.subr.mxu0 0.0
  %1504 = vmatpush1.xpose.msra.mxu0 0.0
  %1505 = vmatprep.subr.mxu0 0.0
  %1506 = vmatpush1.xpose.msra.mxu0 0.0
  %1507 = vmatprep.subr.mxu0 0.0
  %1508 = vmatpush1.xpose.msra.mxu0 0.0
  %1509 = vmatprep.subr.mxu0 0.0
  %1510 = vmatpush1.xpose.msra.mxu0 0.0
  %1511 = vmatprep.subr.mxu0 0.0
  %1512 = vmatpush1.xpose.msra.mxu0 %v1479
  %1513 = vmatprep.subr.mxu0 0.0
  %1514 = vmatpush2.xpose.msra.mxu0 0.0
  %1515 = vmatprep.subr.mxu0 0.0
  %1516 = vmatpush2.xpose.msra.mxu0 0.0
  %1517 = vmatprep.subr.mxu0 0.0
  %1518 = vmatpush2.xpose.msra.mxu0 0.0
  %1519 = vmatprep.subr.mxu0 0.0
  %1520 = vmatpush2.xpose.msra.mxu0 0.0
  %1521 = vmatprep.subr.mxu0 0.0
  %1522 = vmatpush2.xpose.msra.mxu0 0.0
  %1523 = vmatprep.subr.mxu0 0.0
  %1524 = vmatpush2.xpose.msra.mxu0 0.0
  %1525 = vmatprep.subr.mxu0 0.0
  %1526 = vmatpush2.xpose.msra.mxu0 0.0
  %1527 = vmatprep.subr.mxu0 0.0
  %1528 = vmatpush2.xpose.msra.mxu0 0.0
  %1529 = vmatprep.subr.mxu0 0.0
  %1530 = vmatpush2.xpose.msra.mxu0 0.0
  %1531 = vmatprep.subr.mxu0 0.0
  %1532 = vmatpush2.xpose.msra.mxu0 0.0
  %1533 = vmatprep.subr.mxu0 0.0
  %1534 = vmatpush2.xpose.msra.mxu0 0.0
  %1535 = vmatprep.subr.mxu0 0.0
  %1536 = vmatpush2.xpose.msra.mxu0 0.0
  %1537 = vmatprep.subr.mxu0 0.0
  %1538 = vmatpush2.xpose.msra.mxu0 0.0
  %1539 = vmatprep.subr.mxu0 0.0
  %1540 = vmatpush2.xpose.msra.mxu0 0.0
  %1541 = vmatprep.subr.mxu0 0.0
  %1542 = vmatpush2.xpose.msra.mxu0 0.0
  %1543 = vmatprep.subr.mxu0 0.0
  %1544 = vmatpush2.xpose.msra.mxu0 0.0
  %1545 = vmatprep.mubr.f32.mxu0 0.0
  %1546 = vmatmul.mubr.f32.gmra.mxu0 %v1477
  %v1547 = vpop.f32.mrf.mxu0
  %v1548 = vadd.f32 0.0, %v1547
  %v1549 = vpop.f32.mrf.mxu0
  %1550 = vdwg.mxu0
  %v1551 = vmul.f32 %v1548, 0.35355338
  %v1552 = vsel %vm245, %v1551, -inf
  %1553 = vmax.xlane.f32.xlu0 %v1552
  %v1554 = vpop.xlane.xlu0 %1553
  %v1555 = vsub.f32 %v1551, %v1554
  %v1556 = vmul.f32 %v1555, 1.442695
  %v1557 = vpow.pop %v1556
  %v1558 = vsel %vm245, %v1557, 0.0
  %1559 = vadd.xlane.f32.xlu0 %v1558
  %v1560 = vpop.xlane.xlu0 %1559
  %v1561 = vrcp.pop %v1560
  %v1562 = vmul.f32 %v1557, %v1561
  %1563 = vrot.lane.b32.xlu0 %v1304, 56
  %v1564 = vpop.permute.xlu0 %1563
  %v1566 = vsel %vm259, %v1562, 0
  %v1568 = vsel %vm263, %v1564, 0
  %1570 = vmatprep.subr.mxu0 0.0
  %1571 = vmatpush1.msra.mxu0 0.0
  %1572 = vmatprep.subr.mxu0 0.0
  %1573 = vmatpush1.msra.mxu0 0.0
  %1574 = vmatprep.subr.mxu0 0.0
  %1575 = vmatpush1.msra.mxu0 0.0
  %1576 = vmatprep.subr.mxu0 0.0
  %1577 = vmatpush1.msra.mxu0 0.0
  %1578 = vmatprep.subr.mxu0 0.0
  %1579 = vmatpush1.msra.mxu0 0.0
  %1580 = vmatprep.subr.mxu0 0.0
  %1581 = vmatpush1.msra.mxu0 0.0
  %1582 = vmatprep.subr.mxu0 0.0
  %1583 = vmatpush1.msra.mxu0 0.0
  %1584 = vmatprep.subr.mxu0 0.0
  %1585 = vmatpush1.msra.mxu0 0.0
  %1586 = vmatprep.subr.mxu0 0.0
  %1587 = vmatpush1.msra.mxu0 0.0
  %1588 = vmatprep.subr.mxu0 0.0
  %1589 = vmatpush1.msra.mxu0 0.0
  %1590 = vmatprep.subr.mxu0 0.0
  %1591 = vmatpush1.msra.mxu0 0.0
  %1592 = vmatprep.subr.mxu0 0.0
  %1593 = vmatpush1.msra.mxu0 0.0
  %1594 = vmatprep.subr.mxu0 0.0
  %1595 = vmatpush1.msra.mxu0 0.0
  %1596 = vmatprep.subr.mxu0 0.0
  %1597 = vmatpush1.msra.mxu0 0.0
  %1598 = vmatprep.subr.mxu0 0.0
  %1599 = vmatpush1.msra.mxu0 0.0
  %1600 = vmatprep.subr.mxu0 0.0
  %1601 = vmatpush1.msra.mxu0 %v1568
  %1602 = vmatprep.subr.mxu0 0.0
  %1603 = vmatpush2.msra.mxu0 0.0
  %1604 = vmatprep.subr.mxu0 0.0
  %1605 = vmatpush2.msra.mxu0 0.0
  %1606 = vmatprep.subr.mxu0 0.0
  %1607 = vmatpush2.msra.mxu0 0.0
  %1608 = vmatprep.subr.mxu0 0.0
  %1609 = vmatpush2.msra.mxu0 0.0
  %1610 = vmatprep.subr.mxu0 0.0
  %1611 = vmatpush2.msra.mxu0 0.0
  %1612 = vmatprep.subr.mxu0 0.0
  %1613 = vmatpush2.msra.mxu0 0.0
  %1614 = vmatprep.subr.mxu0 0.0
  %1615 = vmatpush2.msra.mxu0 0.0
  %1616 = vmatprep.subr.mxu0 0.0
  %1617 = vmatpush2.msra.mxu0 0.0
  %1618 = vmatprep.subr.mxu0 0.0
  %1619 = vmatpush2.msra.mxu0 0.0
  %1620 = vmatprep.subr.mxu0 0.0
  %1621 = vmatpush2.msra.mxu0 0.0
  %1622 = vmatprep.subr.mxu0 0.0
  %1623 = vmatpush2.msra.mxu0 0.0
  %1624 = vmatprep.subr.mxu0 0.0
  %1625 = vmatpush2.msra.mxu0 0.0
  %1626 = vmatprep.subr.mxu0 0.0
  %1627 = vmatpush2.msra.mxu0 0.0
  %1628 = vmatprep.subr.mxu0 0.0
  %1629 = vmatpush2.msra.mxu0 0.0
  %1630 = vmatprep.subr.mxu0 0.0
  %1631 = vmatpush2.msra.mxu0 0.0
  %1632 = vmatprep.subr.mxu0 0.0
  %1633 = vmatpush2.msra.mxu0 0.0
  %1634 = vmatprep.mubr.f32.mxu0 0.0
  %1635 = vmatmul.mubr.f32.gmra.mxu0 %v1566
  %v1636 = vpop.f32.mrf.mxu0
  %v1637 = vadd.f32 0.0, %v1636
  %v1638 = vpop.f32.mrf.mxu0
  %1639 = vdwg.mxu0
  %1640 = vrot.lane.b32.xlu0 %v1304, 112
  %v1641 = vpop.permute.xlu0 %1640
  %1642 = vrot.lane.b32.xlu0 %v1304, 80
  %v1643 = vpop.permute.xlu0 %1642
  %v1644 = vsel %vm169, %v1641, 0
  %v1646 = vsel %vm169, %v1643, 0
  %1648 = vmatprep.subr.mxu0 0.0
  %1649 = vmatpush1.xpose.msra.mxu0 0.0
  %1650 = vmatprep.subr.mxu0 0.0
  %1651 = vmatpush1.xpose.msra.mxu0 0.0
  %1652 = vmatprep.subr.mxu0 0.0
  %1653 = vmatpush1.xpose.msra.mxu0 0.0
  %1654 = vmatprep.subr.mxu0 0.0
  %1655 = vmatpush1.xpose.msra.mxu0 0.0
  %1656 = vmatprep.subr.mxu0 0.0
  %1657 = vmatpush1.xpose.msra.mxu0 0.0
  %1658 = vmatprep.subr.mxu0 0.0
  %1659 = vmatpush1.xpose.msra.mxu0 0.0
  %1660 = vmatprep.subr.mxu0 0.0
  %1661 = vmatpush1.xpose.msra.mxu0 0.0
  %1662 = vmatprep.subr.mxu0 0.0
  %1663 = vmatpush1.xpose.msra.mxu0 0.0
  %1664 = vmatprep.subr.mxu0 0.0
  %1665 = vmatpush1.xpose.msra.mxu0 0.0
  %1666 = vmatprep.subr.mxu0 0.0
  %1667 = vmatpush1.xpose.msra.mxu0 0.0
  %1668 = vmatprep.subr.mxu0 0.0
  %1669 = vmatpush1.xpose.msra.mxu0 0.0
  %1670 = vmatprep.subr.mxu0 0.0
  %1671 = vmatpush1.xpose.msra.mxu0 0.0
  %1672 = vmatprep.subr.mxu0 0.0
  %1673 = vmatpush1.xpose.msra.mxu0 0.0
  %1674 = vmatprep.subr.mxu0 0.0
  %1675 = vmatpush1.xpose.msra.mxu0 0.0
  %1676 = vmatprep.subr.mxu0 0.0
  %1677 = vmatpush1.xpose.msra.mxu0 0.0
  %1678 = vmatprep.subr.mxu0 0.0
  %1679 = vmatpush1.xpose.msra.mxu0 %v1646
  %1680 = vmatprep.subr.mxu0 0.0
  %1681 = vmatpush2.xpose.msra.mxu0 0.0
  %1682 = vmatprep.subr.mxu0 0.0
  %1683 = vmatpush2.xpose.msra.mxu0 0.0
  %1684 = vmatprep.subr.mxu0 0.0
  %1685 = vmatpush2.xpose.msra.mxu0 0.0
  %1686 = vmatprep.subr.mxu0 0.0
  %1687 = vmatpush2.xpose.msra.mxu0 0.0
  %1688 = vmatprep.subr.mxu0 0.0
  %1689 = vmatpush2.xpose.msra.mxu0 0.0
  %1690 = vmatprep.subr.mxu0 0.0
  %1691 = vmatpush2.xpose.msra.mxu0 0.0
  %1692 = vmatprep.subr.mxu0 0.0
  %1693 = vmatpush2.xpose.msra.mxu0 0.0
  %1694 = vmatprep.subr.mxu0 0.0
  %1695 = vmatpush2.xpose.msra.mxu0 0.0
  %1696 = vmatprep.subr.mxu0 0.0
  %1697 = vmatpush2.xpose.msra.mxu0 0.0
  %1698 = vmatprep.subr.mxu0 0.0
  %1699 = vmatpush2.xpose.msra.mxu0 0.0
  %1700 = vmatprep.subr.mxu0 0.0
  %1701 = vmatpush2.xpose.msra.mxu0 0.0
  %1702 = vmatprep.subr.mxu0 0.0
  %1703 = vmatpush2.xpose.msra.mxu0 0.0
  %1704 = vmatprep.subr.mxu0 0.0
  %1705 = vmatpush2.xpose.msra.mxu0 0.0
  %1706 = vmatprep.subr.mxu0 0.0
  %1707 = vmatpush2.xpose.msra.mxu0 0.0
  %1708 = vmatprep.subr.mxu0 0.0
  %1709 = vmatpush2.xpose.msra.mxu0 0.0
  %1710 = vmatprep.subr.mxu0 0.0
  %1711 = vmatpush2.xpose.msra.mxu0 0.0
  %1712 = vmatprep.mubr.f32.mxu0 0.0
  %1713 = vmatmul.mubr.f32.gmra.mxu0 %v1644
  %v1714 = vpop.f32.mrf.mxu0
  %v1715 = vadd.f32 0.0, %v1714
  %v1716 = vpop.f32.mrf.mxu0
  %1717 = vdwg.mxu0
  %v1718 = vmul.f32 %v1715, 0.35355338
  %v1719 = vsel %vm245, %v1718, -inf
  %1720 = vmax.xlane.f32.xlu0 %v1719
  %v1721 = vpop.xlane.xlu0 %1720
  %v1722 = vsub.f32 %v1718, %v1721
  %v1723 = vmul.f32 %v1722, 1.442695
  %v1724 = vpow.pop %v1723
  %v1725 = vsel %vm245, %v1724, 0.0
  %1726 = vadd.xlane.f32.xlu0 %v1725
  %v1727 = vpop.xlane.xlu0 %1726
  %v1728 = vrcp.pop %v1727
  %v1729 = vmul.f32 %v1724, %v1728
  %1730 = vrot.lane.b32.xlu0 %v1304, 48
  %v1731 = vpop.permute.xlu0 %1730
  %v1733 = vsel %vm259, %v1729, 0
  %v1735 = vsel %vm263, %v1731, 0
  %1737 = vmatprep.subr.mxu0 0.0
  %1738 = vmatpush1.msra.mxu0 0.0
  %1739 = vmatprep.subr.mxu0 0.0
  %1740 = vmatpush1.msra.mxu0 0.0
  %1741 = vmatprep.subr.mxu0 0.0
  %1742 = vmatpush1.msra.mxu0 0.0
  %1743 = vmatprep.subr.mxu0 0.0
  %1744 = vmatpush1.msra.mxu0 0.0
  %1745 = vmatprep.subr.mxu0 0.0
  %1746 = vmatpush1.msra.mxu0 0.0
  %1747 = vmatprep.subr.mxu0 0.0
  %1748 = vmatpush1.msra.mxu0 0.0
  %1749 = vmatprep.subr.mxu0 0.0
  %1750 = vmatpush1.msra.mxu0 0.0
  %1751 = vmatprep.subr.mxu0 0.0
  %1752 = vmatpush1.msra.mxu0 0.0
  %1753 = vmatprep.subr.mxu0 0.0
  %1754 = vmatpush1.msra.mxu0 0.0
  %1755 = vmatprep.subr.mxu0 0.0
  %1756 = vmatpush1.msra.mxu0 0.0
  %1757 = vmatprep.subr.mxu0 0.0
  %1758 = vmatpush1.msra.mxu0 0.0
  %1759 = vmatprep.subr.mxu0 0.0
  %1760 = vmatpush1.msra.mxu0 0.0
  %1761 = vmatprep.subr.mxu0 0.0
  %1762 = vmatpush1.msra.mxu0 0.0
  %1763 = vmatprep.subr.mxu0 0.0
  %1764 = vmatpush1.msra.mxu0 0.0
  %1765 = vmatprep.subr.mxu0 0.0
  %1766 = vmatpush1.msra.mxu0 0.0
  %1767 = vmatprep.subr.mxu0 0.0
  %1768 = vmatpush1.msra.mxu0 %v1735
  %1769 = vmatprep.subr.mxu0 0.0
  %1770 = vmatpush2.msra.mxu0 0.0
  %1771 = vmatprep.subr.mxu0 0.0
  %1772 = vmatpush2.msra.mxu0 0.0
  %1773 = vmatprep.subr.mxu0 0.0
  %1774 = vmatpush2.msra.mxu0 0.0
  %1775 = vmatprep.subr.mxu0 0.0
  %1776 = vmatpush2.msra.mxu0 0.0
  %1777 = vmatprep.subr.mxu0 0.0
  %1778 = vmatpush2.msra.mxu0 0.0
  %1779 = vmatprep.subr.mxu0 0.0
  %1780 = vmatpush2.msra.mxu0 0.0
  %1781 = vmatprep.subr.mxu0 0.0
  %1782 = vmatpush2.msra.mxu0 0.0
  %1783 = vmatprep.subr.mxu0 0.0
  %1784 = vmatpush2.msra.mxu0 0.0
  %1785 = vmatprep.subr.mxu0 0.0
  %1786 = vmatpush2.msra.mxu0 0.0
  %1787 = vmatprep.subr.mxu0 0.0
  %1788 = vmatpush2.msra.mxu0 0.0
  %1789 = vmatprep.subr.mxu0 0.0
  %1790 = vmatpush2.msra.mxu0 0.0
  %1791 = vmatprep.subr.mxu0 0.0
  %1792 = vmatpush2.msra.mxu0 0.0
  %1793 = vmatprep.subr.mxu0 0.0
  %1794 = vmatpush2.msra.mxu0 0.0
  %1795 = vmatprep.subr.mxu0 0.0
  %1796 = vmatpush2.msra.mxu0 0.0
  %1797 = vmatprep.subr.mxu0 0.0
  %1798 = vmatpush2.msra.mxu0 0.0
  %1799 = vmatprep.subr.mxu0 0.0
  %1800 = vmatpush2.msra.mxu0 0.0
  %1801 = vmatprep.mubr.f32.mxu0 0.0
  %1802 = vmatmul.mubr.f32.gmra.mxu0 %v1733
  %v1803 = vpop.f32.mrf.mxu0
  %v1804 = vadd.f32 0.0, %v1803
  %v1805 = vpop.f32.mrf.mxu0
  %1806 = vdwg.mxu0
  %1807 = vrot.lane.b32.xlu0 %v1304, 104
  %v1808 = vpop.permute.xlu0 %1807
  %1809 = vrot.lane.b32.xlu0 %v1304, 72
  %v1810 = vpop.permute.xlu0 %1809
  %v1811 = vsel %vm169, %v1808, 0
  %v1813 = vsel %vm169, %v1810, 0
  %1815 = vmatprep.subr.mxu0 0.0
  %1816 = vmatpush1.xpose.msra.mxu0 0.0
  %1817 = vmatprep.subr.mxu0 0.0
  %1818 = vmatpush1.xpose.msra.mxu0 0.0
  %1819 = vmatprep.subr.mxu0 0.0
  %1820 = vmatpush1.xpose.msra.mxu0 0.0
  %1821 = vmatprep.subr.mxu0 0.0
  %1822 = vmatpush1.xpose.msra.mxu0 0.0
  %1823 = vmatprep.subr.mxu0 0.0
  %1824 = vmatpush1.xpose.msra.mxu0 0.0
  %1825 = vmatprep.subr.mxu0 0.0
  %1826 = vmatpush1.xpose.msra.mxu0 0.0
  %1827 = vmatprep.subr.mxu0 0.0
  %1828 = vmatpush1.xpose.msra.mxu0 0.0
  %1829 = vmatprep.subr.mxu0 0.0
  %1830 = vmatpush1.xpose.msra.mxu0 0.0
  %1831 = vmatprep.subr.mxu0 0.0
  %1832 = vmatpush1.xpose.msra.mxu0 0.0
  %1833 = vmatprep.subr.mxu0 0.0
  %1834 = vmatpush1.xpose.msra.mxu0 0.0
  %1835 = vmatprep.subr.mxu0 0.0
  %1836 = vmatpush1.xpose.msra.mxu0 0.0
  %1837 = vmatprep.subr.mxu0 0.0
  %1838 = vmatpush1.xpose.msra.mxu0 0.0
  %1839 = vmatprep.subr.mxu0 0.0
  %1840 = vmatpush1.xpose.msra.mxu0 0.0
  %1841 = vmatprep.subr.mxu0 0.0
  %1842 = vmatpush1.xpose.msra.mxu0 0.0
  %1843 = vmatprep.subr.mxu0 0.0
  %1844 = vmatpush1.xpose.msra.mxu0 0.0
  %1845 = vmatprep.subr.mxu0 0.0
  %1846 = vmatpush1.xpose.msra.mxu0 %v1813
  %1847 = vmatprep.subr.mxu0 0.0
  %1848 = vmatpush2.xpose.msra.mxu0 0.0
  %1849 = vmatprep.subr.mxu0 0.0
  %1850 = vmatpush2.xpose.msra.mxu0 0.0
  %1851 = vmatprep.subr.mxu0 0.0
  %1852 = vmatpush2.xpose.msra.mxu0 0.0
  %1853 = vmatprep.subr.mxu0 0.0
  %1854 = vmatpush2.xpose.msra.mxu0 0.0
  %1855 = vmatprep.subr.mxu0 0.0
  %1856 = vmatpush2.xpose.msra.mxu0 0.0
  %1857 = vmatprep.subr.mxu0 0.0
  %1858 = vmatpush2.xpose.msra.mxu0 0.0
  %1859 = vmatprep.subr.mxu0 0.0
  %1860 = vmatpush2.xpose.msra.mxu0 0.0
  %1861 = vmatprep.subr.mxu0 0.0
  %1862 = vmatpush2.xpose.msra.mxu0 0.0
  %1863 = vmatprep.subr.mxu0 0.0
  %1864 = vmatpush2.xpose.msra.mxu0 0.0
  %1865 = vmatprep.subr.mxu0 0.0
  %1866 = vmatpush2.xpose.msra.mxu0 0.0
  %1867 = vmatprep.subr.mxu0 0.0
  %1868 = vmatpush2.xpose.msra.mxu0 0.0
  %1869 = vmatprep.subr.mxu0 0.0
  %1870 = vmatpush2.xpose.msra.mxu0 0.0
  %1871 = vmatprep.subr.mxu0 0.0
  %1872 = vmatpush2.xpose.msra.mxu0 0.0
  %1873 = vmatprep.subr.mxu0 0.0
  %1874 = vmatpush2.xpose.msra.mxu0 0.0
  %1875 = vmatprep.subr.mxu0 0.0
  %1876 = vmatpush2.xpose.msra.mxu0 0.0
  %1877 = vmatprep.subr.mxu0 0.0
  %1878 = vmatpush2.xpose.msra.mxu0 0.0
  %1879 = vmatprep.mubr.f32.mxu0 0.0
  %1880 = vmatmul.mubr.f32.gmra.mxu0 %v1811
  %v1881 = vpop.f32.mrf.mxu0
  %v1882 = vadd.f32 0.0, %v1881
  %v1883 = vpop.f32.mrf.mxu0
  %1884 = vdwg.mxu0
  %v1885 = vmul.f32 %v1882, 0.35355338
  %v1886 = vsel %vm245, %v1885, -inf
  %1887 = vmax.xlane.f32.xlu0 %v1886
  %v1888 = vpop.xlane.xlu0 %1887
  %v1889 = vsub.f32 %v1885, %v1888
  %v1890 = vmul.f32 %v1889, 1.442695
  %v1891 = vpow.pop %v1890
  %v1892 = vsel %vm245, %v1891, 0.0
  %1893 = vadd.xlane.f32.xlu0 %v1892
  %v1894 = vpop.xlane.xlu0 %1893
  %v1895 = vrcp.pop %v1894
  %v1896 = vmul.f32 %v1891, %v1895
  %1897 = vrot.lane.b32.xlu0 %v1304, 40
  %v1898 = vpop.permute.xlu0 %1897
  %v1900 = vsel %vm259, %v1896, 0
  %v1902 = vsel %vm263, %v1898, 0
  %1904 = vmatprep.subr.mxu0 0.0
  %1905 = vmatpush1.msra.mxu0 0.0
  %1906 = vmatprep.subr.mxu0 0.0
  %1907 = vmatpush1.msra.mxu0 0.0
  %1908 = vmatprep.subr.mxu0 0.0
  %1909 = vmatpush1.msra.mxu0 0.0
  %1910 = vmatprep.subr.mxu0 0.0
  %1911 = vmatpush1.msra.mxu0 0.0
  %1912 = vmatprep.subr.mxu0 0.0
  %1913 = vmatpush1.msra.mxu0 0.0
  %1914 = vmatprep.subr.mxu0 0.0
  %1915 = vmatpush1.msra.mxu0 0.0
  %1916 = vmatprep.subr.mxu0 0.0
  %1917 = vmatpush1.msra.mxu0 0.0
  %1918 = vmatprep.subr.mxu0 0.0
  %1919 = vmatpush1.msra.mxu0 0.0
  %1920 = vmatprep.subr.mxu0 0.0
  %1921 = vmatpush1.msra.mxu0 0.0
  %1922 = vmatprep.subr.mxu0 0.0
  %1923 = vmatpush1.msra.mxu0 0.0
  %1924 = vmatprep.subr.mxu0 0.0
  %1925 = vmatpush1.msra.mxu0 0.0
  %1926 = vmatprep.subr.mxu0 0.0
  %1927 = vmatpush1.msra.mxu0 0.0
  %1928 = vmatprep.subr.mxu0 0.0
  %1929 = vmatpush1.msra.mxu0 0.0
  %1930 = vmatprep.subr.mxu0 0.0
  %1931 = vmatpush1.msra.mxu0 0.0
  %1932 = vmatprep.subr.mxu0 0.0
  %1933 = vmatpush1.msra.mxu0 0.0
  %1934 = vmatprep.subr.mxu0 0.0
  %1935 = vmatpush1.msra.mxu0 %v1902
  %1936 = vmatprep.subr.mxu0 0.0
  %1937 = vmatpush2.msra.mxu0 0.0
  %1938 = vmatprep.subr.mxu0 0.0
  %1939 = vmatpush2.msra.mxu0 0.0
  %1940 = vmatprep.subr.mxu0 0.0
  %1941 = vmatpush2.msra.mxu0 0.0
  %1942 = vmatprep.subr.mxu0 0.0
  %1943 = vmatpush2.msra.mxu0 0.0
  %1944 = vmatprep.subr.mxu0 0.0
  %1945 = vmatpush2.msra.mxu0 0.0
  %1946 = vmatprep.subr.mxu0 0.0
  %1947 = vmatpush2.msra.mxu0 0.0
  %1948 = vmatprep.subr.mxu0 0.0
  %1949 = vmatpush2.msra.mxu0 0.0
  %1950 = vmatprep.subr.mxu0 0.0
  %1951 = vmatpush2.msra.mxu0 0.0
  %1952 = vmatprep.subr.mxu0 0.0
  %1953 = vmatpush2.msra.mxu0 0.0
  %1954 = vmatprep.subr.mxu0 0.0
  %1955 = vmatpush2.msra.mxu0 0.0
  %1956 = vmatprep.subr.mxu0 0.0
  %1957 = vmatpush2.msra.mxu0 0.0
  %1958 = vmatprep.subr.mxu0 0.0
  %1959 = vmatpush2.msra.mxu0 0.0
  %1960 = vmatprep.subr.mxu0 0.0
  %1961 = vmatpush2.msra.mxu0 0.0
  %1962 = vmatprep.subr.mxu0 0.0
  %1963 = vmatpush2.msra.mxu0 0.0
  %1964 = vmatprep.subr.mxu0 0.0
  %1965 = vmatpush2.msra.mxu0 0.0
  %1966 = vmatprep.subr.mxu0 0.0
  %1967 = vmatpush2.msra.mxu0 0.0
  %1968 = vmatprep.mubr.f32.mxu0 0.0
  %1969 = vmatmul.mubr.f32.gmra.mxu0 %v1900
  %v1970 = vpop.f32.mrf.mxu0
  %v1971 = vadd.f32 0.0, %v1970
  %v1972 = vpop.f32.mrf.mxu0
  %1973 = vdwg.mxu0
  %1975 = vrot.lane.b32.xlu0 %v1637, 8
  %v1976 = vpop.permute.xlu0 %1975
  %1979 = vrot.lane.b32.xlu0 %v1804, 16
  %v1980 = vpop.permute.xlu0 %1979
  %1983 = vrot.lane.b32.xlu0 %v1971, 24
  %v1984 = vpop.permute.xlu0 %1983
  %v1986 = vsel %vm169, %v1470, %v1976
  %v1987 = vsel %vm850, %v1986, %v1980
  %v1988 = vsel %vm852, %v1987, %v1984
  %v1990 = vsel %vm92, %v1988, 0
  %1992 = vmatprep.subr.mxu0 0.0
  %1993 = vmatpush1.msra.mxu0 0.0
  %1994 = vmatprep.subr.mxu0 0.0
  %1995 = vmatpush1.msra.mxu0 0.0
  %1996 = vmatprep.subr.mxu0 0.0
  %1997 = vmatpush1.msra.mxu0 0.0
  %1998 = vmatprep.subr.mxu0 0.0
  %1999 = vmatpush1.msra.mxu0 0.0
  %2000 = vmatprep.subr.mxu0 0.0
  %2001 = vmatpush1.msra.mxu0 0.0
  %2002 = vmatprep.subr.mxu0 0.0
  %2003 = vmatpush1.msra.mxu0 0.0
  %2004 = vmatprep.subr.mxu0 0.0
  %2005 = vmatpush1.msra.mxu0 0.0
  %2006 = vmatprep.subr.mxu0 0.0
  %2007 = vmatpush1.msra.mxu0 0.0
  %2008 = vmatprep.subr.mxu0 0.0
  %2009 = vmatpush1.msra.mxu0 0.0
  %2010 = vmatprep.subr.mxu0 0.0
  %2011 = vmatpush1.msra.mxu0 0.0
  %2012 = vmatprep.subr.mxu0 0.0
  %2013 = vmatpush1.msra.mxu0 0.0
  %2014 = vmatprep.subr.mxu0 0.0
  %2015 = vmatpush1.msra.mxu0 0.0
  %2016 = vmatprep.subr.mxu0 0.0
  %2017 = vmatpush1.msra.mxu0 %v60
  %2018 = vmatprep.subr.mxu0 0.0
  %2019 = vmatpush1.msra.mxu0 %v59
  %2020 = vmatprep.subr.mxu0 0.0
  %2021 = vmatpush1.msra.mxu0 %v58
  %2022 = vmatprep.subr.mxu0 0.0
  %2023 = vmatpush1.msra.mxu0 %v57
  %2024 = vmatprep.subr.mxu0 0.0
  %2025 = vmatpush2.msra.mxu0 0.0
  %2026 = vmatprep.subr.mxu0 0.0
  %2027 = vmatpush2.msra.mxu0 0.0
  %2028 = vmatprep.subr.mxu0 0.0
  %2029 = vmatpush2.msra.mxu0 0.0
  %2030 = vmatprep.subr.mxu0 0.0
  %2031 = vmatpush2.msra.mxu0 0.0
  %2032 = vmatprep.subr.mxu0 0.0
  %2033 = vmatpush2.msra.mxu0 0.0
  %2034 = vmatprep.subr.mxu0 0.0
  %2035 = vmatpush2.msra.mxu0 0.0
  %2036 = vmatprep.subr.mxu0 0.0
  %2037 = vmatpush2.msra.mxu0 0.0
  %2038 = vmatprep.subr.mxu0 0.0
  %2039 = vmatpush2.msra.mxu0 0.0
  %2040 = vmatprep.subr.mxu0 0.0
  %2041 = vmatpush2.msra.mxu0 0.0
  %2042 = vmatprep.subr.mxu0 0.0
  %2043 = vmatpush2.msra.mxu0 0.0
  %2044 = vmatprep.subr.mxu0 0.0
  %2045 = vmatpush2.msra.mxu0 0.0
  %2046 = vmatprep.subr.mxu0 0.0
  %2047 = vmatpush2.msra.mxu0 0.0
  %2048 = vmatprep.subr.mxu0 0.0
  %2049 = vmatpush2.msra.mxu0 0.0
  %2050 = vmatprep.subr.mxu0 0.0
  %2051 = vmatpush2.msra.mxu0 0.0
  %2052 = vmatprep.subr.mxu0 0.0
  %2053 = vmatpush2.msra.mxu0 0.0
  %2054 = vmatprep.subr.mxu0 0.0
  %2055 = vmatpush2.msra.mxu0 0.0
  %2056 = vmatprep.mubr.f32.mxu0 0.0
  %2057 = vmatmul.mubr.f32.gmra.mxu0 %v1990
  %v2058 = vpop.f32.mrf.mxu0
  %v2059 = vadd.f32 %v858, %v2058
  %v2060 = vpop.f32.mrf.mxu0
  %2061 = vdwg.mxu0
  %v2062 = vadd.f32 %v1233, %v2059
  %v2063 = vsel %vm934, %v2062, 0.0
  %2064 = vadd.xlane.f32.xlu0 %v2063
  %v2065 = vpop.xlane.xlu0 %2064
  %v2066 = vmul.f32 %v2065, %v938
  %v2067 = vsub.f32 %v2062, %v2066
  %v2068 = vmul.f32 %v2067, %v2067
  %v2069 = vsel %vm934, %v2068, 0.0
  %2070 = vadd.xlane.f32.xlu0 %v2069
  %v2071 = vpop.xlane.xlu0 %2070
  %v2072 = vmul.f32 %v2071, %v938
  %v2073 = vadd.f32 %v2072, 1e-05
  %v2074 = vrsqrt.pop %v2073
  %v2075 = vmul.f32 %v2067, %v2074
  %v2076 = vmul.f32 %v2075, %v953
  %v2077 = vadd.f32 %v2076, %v960
  %v2079 = vsel %vm92, %v2077, 0
  %2081 = vmatprep.subr.mxu0 0.0
  %2082 = vmatpush1.msra.mxu0 0.0
  %2083 = vmatprep.subr.mxu0 0.0
  %2084 = vmatpush1.msra.mxu0 0.0
  %2085 = vmatprep.subr.mxu0 0.0
  %2086 = vmatpush1.msra.mxu0 0.0
  %2087 = vmatprep.subr.mxu0 0.0
  %2088 = vmatpush1.msra.mxu0 0.0
  %2089 = vmatprep.subr.mxu0 0.0
  %2090 = vmatpush1.msra.mxu0 0.0
  %2091 = vmatprep.subr.mxu0 0.0
  %2092 = vmatpush1.msra.mxu0 0.0
  %2093 = vmatprep.subr.mxu0 0.0
  %2094 = vmatpush1.msra.mxu0 0.0
  %2095 = vmatprep.subr.mxu0 0.0
  %2096 = vmatpush1.msra.mxu0 0.0
  %2097 = vmatprep.subr.mxu0 0.0
  %2098 = vmatpush1.msra.mxu0 0.0
  %2099 = vmatprep.subr.mxu0 0.0
  %2100 = vmatpush1.msra.mxu0 0.0
  %2101 = vmatprep.subr.mxu0 0.0
  %2102 = vmatpush1.msra.mxu0 0.0
  %2103 = vmatprep.subr.mxu0 0.0
  %2104 = vmatpush1.msra.mxu0 0.0
  %2105 = vmatprep.subr.mxu0 0.0
  %2106 = vmatpush1.msra.mxu0 %v65
  %2107 = vmatprep.subr.mxu0 0.0
  %2108 = vmatpush1.msra.mxu0 %v64
  %2109 = vmatprep.subr.mxu0 0.0
  %2110 = vmatpush1.msra.mxu0 %v63
  %2111 = vmatprep.subr.mxu0 0.0
  %2112 = vmatpush1.msra.mxu0 %v62
  %2113 = vmatprep.subr.mxu0 0.0
  %2114 = vmatpush2.msra.mxu0 0.0
  %2115 = vmatprep.subr.mxu0 0.0
  %2116 = vmatpush2.msra.mxu0 0.0
  %2117 = vmatprep.subr.mxu0 0.0
  %2118 = vmatpush2.msra.mxu0 0.0
  %2119 = vmatprep.subr.mxu0 0.0
  %2120 = vmatpush2.msra.mxu0 0.0
  %2121 = vmatprep.subr.mxu0 0.0
  %2122 = vmatpush2.msra.mxu0 0.0
  %2123 = vmatprep.subr.mxu0 0.0
  %2124 = vmatpush2.msra.mxu0 0.0
  %2125 = vmatprep.subr.mxu0 0.0
  %2126 = vmatpush2.msra.mxu0 0.0
  %2127 = vmatprep.subr.mxu0 0.0
  %2128 = vmatpush2.msra.mxu0 0.0
  %2129 = vmatprep.subr.mxu0 0.0
  %2130 = vmatpush2.msra.mxu0 0.0
  %2131 = vmatprep.subr.mxu0 0.0
  %2132 = vmatpush2.msra.mxu0 0.0
  %2133 = vmatprep.subr.mxu0 0.0
  %2134 = vmatpush2.msra.mxu0 0.0
  %2135 = vmatprep.subr.mxu0 0.0
  %2136 = vmatpush2.msra.mxu0 0.0
  %2137 = vmatprep.subr.mxu0 0.0
  %2138 = vmatpush2.msra.mxu0 0.0
  %2139 = vmatprep.subr.mxu0 0.0
  %2140 = vmatpush2.msra.mxu0 0.0
  %2141 = vmatprep.subr.mxu0 0.0
  %2142 = vmatpush2.msra.mxu0 0.0
  %2143 = vmatprep.subr.mxu0 0.0
  %2144 = vmatpush2.msra.mxu0 0.0
  %2145 = vmatprep.mubr.f32.mxu0 0.0
  %2146 = vmatmul.mubr.f32.gmra.mxu0 %v2079
  %v2147 = vpop.f32.mrf.mxu0
  %v2148 = vadd.f32 %v967, %v2147
  %v2149 = vpop.f32.mrf.mxu0
  %2150 = vdwg.mxu0
  %v2151 = vmax.f32 %v2148, 0.0
  %v2153 = vsel %vm1049, %v2151, 0
  %2155 = vmatprep.subr.mxu0 0.0
  %2156 = vmatpush1.msra.mxu0 0.0
  %2157 = vmatprep.subr.mxu0 0.0
  %2158 = vmatpush1.msra.mxu0 0.0
  %2159 = vmatprep.subr.mxu0 0.0
  %2160 = vmatpush1.msra.mxu0 0.0
  %2161 = vmatprep.subr.mxu0 0.0
  %2162 = vmatpush1.msra.mxu0 0.0
  %2163 = vmatprep.subr.mxu0 0.0
  %2164 = vmatpush1.msra.mxu0 0.0
  %2165 = vmatprep.subr.mxu0 0.0
  %2166 = vmatpush1.msra.mxu0 0.0
  %2167 = vmatprep.subr.mxu0 0.0
  %2168 = vmatpush1.msra.mxu0 0.0
  %2169 = vmatprep.subr.mxu0 0.0
  %2170 = vmatpush1.msra.mxu0 0.0
  %2171 = vmatprep.subr.mxu0 0.0
  %2172 = vmatpush1.msra.mxu0 %v74
  %2173 = vmatprep.subr.mxu0 0.0
  %2174 = vmatpush1.msra.mxu0 %v73
  %2175 = vmatprep.subr.mxu0 0.0
  %2176 = vmatpush1.msra.mxu0 %v72
  %2177 = vmatprep.subr.mxu0 0.0
  %2178 = vmatpush1.msra.mxu0 %v71
  %2179 = vmatprep.subr.mxu0 0.0
  %2180 = vmatpush1.msra.mxu0 %v70
  %2181 = vmatprep.subr.mxu0 0.0
  %2182 = vmatpush1.msra.mxu0 %v69
  %2183 = vmatprep.subr.mxu0 0.0
  %2184 = vmatpush1.msra.mxu0 %v68
  %2185 = vmatprep.subr.mxu0 0.0
  %2186 = vmatpush1.msra.mxu0 %v67
  %2187 = vmatprep.subr.mxu0 0.0
  %2188 = vmatpush2.msra.mxu0 0.0
  %2189 = vmatprep.subr.mxu0 0.0
  %2190 = vmatpush2.msra.mxu0 0.0
  %2191 = vmatprep.subr.mxu0 0.0
  %2192 = vmatpush2.msra.mxu0 0.0
  %2193 = vmatprep.subr.mxu0 0.0
  %2194 = vmatpush2.msra.mxu0 0.0
  %2195 = vmatprep.subr.mxu0 0.0
  %2196 = vmatpush2.msra.mxu0 0.0
  %2197 = vmatprep.subr.mxu0 0.0
  %2198 = vmatpush2.msra.mxu0 0.0
  %2199 = vmatprep.subr.mxu0 0.0
  %2200 = vmatpush2.msra.mxu0 0.0
  %2201 = vmatprep.subr.mxu0 0.0
  %2202 = vmatpush2.msra.mxu0 0.0
  %2203 = vmatprep.subr.mxu0 0.0
  %2204 = vmatpush2.msra.mxu0 0.0
  %2205 = vmatprep.subr.mxu0 0.0
  %2206 = vmatpush2.msra.mxu0 0.0
  %2207 = vmatprep.subr.mxu0 0.0
  %2208 = vmatpush2.msra.mxu0 0.0
  %2209 = vmatprep.subr.mxu0 0.0
  %2210 = vmatpush2.msra.mxu0 0.0
  %2211 = vmatprep.subr.mxu0 0.0
  %2212 = vmatpush2.msra.mxu0 0.0
  %2213 = vmatprep.subr.mxu0 0.0
  %2214 = vmatpush2.msra.mxu0 0.0
  %2215 = vmatprep.subr.mxu0 0.0
  %2216 = vmatpush2.msra.mxu0 0.0
  %2217 = vmatprep.subr.mxu0 0.0
  %2218 = vmatpush2.msra.mxu0 0.0
  %2219 = vmatprep.mubr.f32.mxu0 0.0
  %2220 = vmatmul.mubr.f32.gmra.mxu0 %v2153
  %v2221 = vpop.f32.mrf.mxu0
  %v2222 = vadd.f32 %v1047, %v2221
  %v2223 = vpop.f32.mrf.mxu0
  %2224 = vdwg.mxu0
  %v2225 = vadd.f32 %v2077, %v2222
  %v2226 = vsel %vm934, %v2225, 0.0
  %2227 = vadd.xlane.f32.xlu0 %v2226
  %v2228 = vpop.xlane.xlu0 %2227
  %v2229 = vmul.f32 %v2228, %v938
  %v2230 = vsub.f32 %v2225, %v2229
  %v2231 = vmul.f32 %v2230, %v2230
  %v2232 = vsel %vm934, %v2231, 0.0
  %2233 = vadd.xlane.f32.xlu0 %v2232
  %v2234 = vpop.xlane.xlu0 %2233
  %v2235 = vmul.f32 %v2234, %v938
  %v2236 = vadd.f32 %v2235, 1e-05
  %v2237 = vrsqrt.pop %v2236
  %v2238 = vmul.f32 %v2230, %v2237
  %v2239 = vmul.f32 %v2238, %v1141
  %v2240 = vadd.f32 %v2239, %v1148
  %s2241 = scalar_lea.vmem %s15, 8
  %2242 = vst.msk [vmem:[%s2241] sm:$0x1f] %vm934, %v2240
  %v2244 = vsel %vm92, %v2240, 0
  %2246 = vmatprep.subr.mxu0 0.0
  %2247 = vmatpush1.msra.mxu0 0.0
  %2248 = vmatprep.subr.mxu0 0.0
  %2249 = vmatpush1.msra.mxu0 0.0
  %2250 = vmatprep.subr.mxu0 0.0
  %2251 = vmatpush1.msra.mxu0 0.0
  %2252 = vmatprep.subr.mxu0 0.0
  %2253 = vmatpush1.msra.mxu0 0.0
  %2254 = vmatprep.subr.mxu0 0.0
  %2255 = vmatpush1.msra.mxu0 0.0
  %2256 = vmatprep.subr.mxu0 0.0
  %2257 = vmatpush1.msra.mxu0 0.0
  %2258 = vmatprep.subr.mxu0 0.0
  %2259 = vmatpush1.msra.mxu0 0.0
  %2260 = vmatprep.subr.mxu0 0.0
  %2261 = vmatpush1.msra.mxu0 0.0
  %2262 = vmatprep.subr.mxu0 0.0
  %2263 = vmatpush1.msra.mxu0 0.0
  %2264 = vmatprep.subr.mxu0 0.0
  %2265 = vmatpush1.msra.mxu0 0.0
  %2266 = vmatprep.subr.mxu0 0.0
  %2267 = vmatpush1.msra.mxu0 0.0
  %2268 = vmatprep.subr.mxu0 0.0
  %2269 = vmatpush1.msra.mxu0 0.0
  %2270 = vmatprep.subr.mxu0 0.0
  %2271 = vmatpush1.msra.mxu0 %v83
  %2272 = vmatprep.subr.mxu0 0.0
  %2273 = vmatpush1.msra.mxu0 %v82
  %2274 = vmatprep.subr.mxu0 0.0
  %2275 = vmatpush1.msra.mxu0 %v81
  %2276 = vmatprep.subr.mxu0 0.0
  %2277 = vmatpush1.msra.mxu0 %v80
  %2278 = vmatprep.subr.mxu0 0.0
  %2279 = vmatpush2.msra.mxu0 0.0
  %2280 = vmatprep.subr.mxu0 0.0
  %2281 = vmatpush2.msra.mxu0 0.0
  %2282 = vmatprep.subr.mxu0 0.0
  %2283 = vmatpush2.msra.mxu0 0.0
  %2284 = vmatprep.subr.mxu0 0.0
  %2285 = vmatpush2.msra.mxu0 0.0
  %2286 = vmatprep.subr.mxu0 0.0
  %2287 = vmatpush2.msra.mxu0 0.0
  %2288 = vmatprep.subr.mxu0 0.0
  %2289 = vmatpush2.msra.mxu0 0.0
  %2290 = vmatprep.subr.mxu0 0.0
  %2291 = vmatpush2.msra.mxu0 0.0
  %2292 = vmatprep.subr.mxu0 0.0
  %2293 = vmatpush2.msra.mxu0 0.0
  %2294 = vmatprep.subr.mxu0 0.0
  %2295 = vmatpush2.msra.mxu0 0.0
  %2296 = vmatprep.subr.mxu0 0.0
  %2297 = vmatpush2.msra.mxu0 0.0
  %2298 = vmatprep.subr.mxu0 0.0
  %2299 = vmatpush2.msra.mxu0 0.0
  %2300 = vmatprep.subr.mxu0 0.0
  %2301 = vmatpush2.msra.mxu0 0.0
  %2302 = vmatprep.subr.mxu0 0.0
  %2303 = vmatpush2.msra.mxu0 0.0
  %2304 = vmatprep.subr.mxu0 0.0
  %2305 = vmatpush2.msra.mxu0 0.0
  %2306 = vmatprep.subr.mxu0 0.0
  %2307 = vmatpush2.msra.mxu0 0.0
  %2308 = vmatprep.subr.mxu0 0.0
  %2309 = vmatpush2.msra.mxu0 0.0
  %2310 = vmatprep.mubr.f32.mxu0 0.0
  %2311 = vmatmul.mubr.f32.gmra.mxu0 %v2244
  %v2312 = vpop.f32.mrf.mxu0
  %v2313 = vadd.f32 %v1156, %v2312
  %v2314 = vpop.f32.mrf.mxu0
  %2315 = vdwg.mxu0
  %s2316 = scalar_lea.vmem %s16, 8
  %2317 = vst.msk [vmem:[%s2316] sm:$0x1f] %vm934, %v2313
  // Predicated region
  $region62: #{attention_forward.3} parent=0 // pred_check
    _
  $region63: #{attention_forward.3} parent=0 // pred_check_branch
    %2319 = sbr.rel (0) target = $region65
  $region64: #{attention_forward.3} parent=0 // pred_region
    _
  $region65: #{attention_forward.3} parent=0 // pred_fallthru
    _
  // Predicated region
  $region66: #{attention_forward.3} parent=0 // pred_check
    _
  $region67: #{attention_forward.3} parent=0 // pred_check_branch
    %2321 = sbr.rel (0) target = $region69
  $region68: #{attention_forward.3} parent=0 // pred_region
    _
  $region69: #{attention_forward.3} parent=0 // pred_fallthru
    _
  // Predicated region
  $region70: #{attention_forward.3} parent=0 // pred_check
    _
  $region71: #{attention_forward.3} parent=0 // pred_check_branch
    %2323 = sbr.rel (0) target = $region73
  $region72: #{attention_forward.3} parent=0 // pred_region
    _
  $region73: #{attention_forward.3} parent=0 // pred_fallthru
    _
  // Predicated region
  $region74: #{attention_forward.3} parent=0 // pred_check
    _
  $region75: #{attention_forward.3} parent=0 // pred_check_branch
    %2325 = sbr.rel (0) target = $region77
  $region76: #{attention_forward.3} parent=0 // pred_region
    _
  $region77: #{attention_forward.3} parent=0 // pred_fallthru
    _

// kernel: attention_forward.5
$region0: #{attention_forward.5}
  #allocation0 [shape = 'u32[]', space=smem, size = 0x4, offset = 0x4, fixed_abs, tag = 'smem constant byte address 0x4 - core index']
  #allocation1 [shape = 'u32[144,128]{1,0:T(1,128)}', space=vmem, size = 0x12000, scoped, tag = 'internal scratch']
  %s0 = inlined_call_operand.vmem [shape: f32[6,2,32], index: 0, kind: input, shape index: {}]
  %s1 = inlined_call_operand.vmem [shape: f32[2,32], index: 1, kind: input, shape index: {}]
  %s2 = inlined_call_operand.vmem [shape: f32[2,32], index: 2, kind: input, shape index: {}]
  %s3 = inlined_call_operand.vmem [shape: f32[32,128], index: 3, kind: input, shape index: {}]
  %s4 = inlined_call_operand.vmem [shape: f32[32,128], index: 4, kind: input, shape index: {}]
  %s5 = inlined_call_operand.vmem [shape: f32[1,128], index: 5, kind: input, shape index: {}]
  %s6 = inlined_call_operand.vmem [shape: f32[64,128], index: 6, kind: input, shape index: {}]
  %s7 = inlined_call_operand.vmem [shape: f32[32,128], index: 7, kind: input, shape index: {}]
  %s8 = inlined_call_operand.vmem [shape: f32[1,128], index: 8, kind: input, shape index: {}]
  %s9 = inlined_call_operand.vmem [shape: f32[10,32], index: 9, kind: input, shape index: {}]
  %s10 = inlined_call_operand.vmem [shape: f32[2,5,32], index: 10, kind: input, shape index: {}]
  %s11 = inlined_call_operand.vmem [shape: f32[10,32], index: 11, kind: input, shape index: {}]
  %s12 = inlined_call_operand.vmem [shape: f32[2,5,32], index: 12, kind: input, shape index: {}]
  %s13 = inlined_call_operand.vmem [shape: f32[5,10], index: 13, kind: input, shape index: {}]
  %s14 = inlined_call_operand.vmem [shape: f32[2,10], index: 14, kind: input, shape index: {}]
  %s15 = inlined_call_operand.vmem [shape: f32[2,10], index: 15, kind: input, shape index: {}]
  %s16 = inlined_call_operand.vmem [shape: f32[64,13], index: 16, kind: input, shape index: {}]
  %s17 = inlined_call_operand.vmem [shape: f32[1,13], index: 17, kind: input, shape index: {}]
  %s18 = inlined_call_operand.vmem [shape: f32[12,13], index: 18, kind: output, shape index: {}]
  %s19 = sld [smem:[#allocation0]]
  $region82: #{attention_forward.5} parent=0
    _
  %s21 = ssub.s32 1, %s19
  %s22 = scalar_select 0, %s21, %s19
  // Predicated region
  $region2: #{attention_forward.5} parent=0 // pred_check
    _
  $region3: #{attention_forward.5} parent=0 // pred_check_branch
    %24 = sbr.rel (0) target = $region5
  $region4: #{attention_forward.5} parent=0 // pred_region
    _
  $region5: #{attention_forward.5} parent=0 // pred_fallthru
    _
  // Predicated region
  $region6: #{attention_forward.5} parent=0 // pred_check
    _
  $region7: #{attention_forward.5} parent=0 // pred_check_branch
    %26 = sbr.rel (0) target = $region9
  $region8: #{attention_forward.5} parent=0 // pred_region
    _
  $region9: #{attention_forward.5} parent=0 // pred_fallthru
    _
  // Predicated region
  $region10: #{attention_forward.5} parent=0 // pred_check
    _
  $region11: #{attention_forward.5} parent=0 // pred_check_branch
    %28 = sbr.rel (0) target = $region13
  $region12: #{attention_forward.5} parent=0 // pred_region
    _
  $region13: #{attention_forward.5} parent=0 // pred_fallthru
    _
  // Predicated region
  $region14: #{attention_forward.5} parent=0 // pred_check
    _
  $region15: #{attention_forward.5} parent=0 // pred_check_branch
    %30 = sbr.rel (0) target = $region17
  $region16: #{attention_forward.5} parent=0 // pred_region
    _
  $region17: #{attention_forward.5} parent=0 // pred_fallthru
    _
  // Predicated region
  $region18: #{attention_forward.5} parent=0 // pred_check
    _
  $region19: #{attention_forward.5} parent=0 // pred_check_branch
    %32 = sbr.rel (0) target = $region21
  $region20: #{attention_forward.5} parent=0 // pred_region
    _
  $region21: #{attention_forward.5} parent=0 // pred_fallthru
    _
  // Predicated region
  $region22: #{attention_forward.5} parent=0 // pred_check
    _
  $region23: #{attention_forward.5} parent=0 // pred_check_branch
    %34 = sbr.rel (0) target = $region25
  $region24: #{attention_forward.5} parent=0 // pred_region
    _
  $region25: #{attention_forward.5} parent=0 // pred_fallthru
    _
  // Predicated region
  $region26: #{attention_forward.5} parent=0 // pred_check
    _
  $region27: #{attention_forward.5} parent=0 // pred_check_branch
    %36 = sbr.rel (0) target = $region29
  $region28: #{attention_forward.5} parent=0 // pred_region
    _
  $region29: #{attention_forward.5} parent=0 // pred_fallthru
    _
  // Predicated region
  $region30: #{attention_forward.5} parent=0 // pred_check
    _
  $region31: #{attention_forward.5} parent=0 // pred_check_branch
    %38 = sbr.rel (0) target = $region33
  $region32: #{attention_forward.5} parent=0 // pred_region
    _
  $region33: #{attention_forward.5} parent=0 // pred_fallthru
    _
  // Predicated region
  $region34: #{attention_forward.5} parent=0 // pred_check
    _
  $region35: #{attention_forward.5} parent=0 // pred_check_branch
    %40 = sbr.rel (0) target = $region37
  $region36: #{attention_forward.5} parent=0 // pred_region
    _
  $region37: #{attention_forward.5} parent=0 // pred_fallthru
    _
  // Predicated region
  $region38: #{attention_forward.5} parent=0 // pred_check
    _
  $region39: #{attention_forward.5} parent=0 // pred_check_branch
    %42 = sbr.rel (0) target = $region41
  $region40: #{attention_forward.5} parent=0 // pred_region
    _
  $region41: #{attention_forward.5} parent=0 // pred_fallthru
    _
  // Predicated region
  $region42: #{attention_forward.5} parent=0 // pred_check
    _
  $region43: #{attention_forward.5} parent=0 // pred_check_branch
    %44 = sbr.rel (0) target = $region45
  $region44: #{attention_forward.5} parent=0 // pred_region
    _
  $region45: #{attention_forward.5} parent=0 // pred_fallthru
    _
  // Predicated region
  $region46: #{attention_forward.5} parent=0 // pred_check
    _
  $region47: #{attention_forward.5} parent=0 // pred_check_branch
    %46 = sbr.rel (0) target = $region49
  $region48: #{attention_forward.5} parent=0 // pred_region
    _
  $region49: #{attention_forward.5} parent=0 // pred_fallthru
    _
  // Predicated region
  $region50: #{attention_forward.5} parent=0 // pred_check
    _
  $region51: #{attention_forward.5} parent=0 // pred_check_branch
    %48 = sbr.rel (0) target = $region53
  $region52: #{attention_forward.5} parent=0 // pred_region
    _
  $region53: #{attention_forward.5} parent=0 // pred_fallthru
    _
  // Predicated region
  $region54: #{attention_forward.5} parent=0 // pred_check
    _
  $region55: #{attention_forward.5} parent=0 // pred_check_branch
    %50 = sbr.rel (0) target = $region57
  $region56: #{attention_forward.5} parent=0 // pred_region
    _
  $region57: #{attention_forward.5} parent=0 // pred_fallthru
    _
  // Predicated region
  $region58: #{attention_forward.5} parent=0 // pred_check
    _
  $region59: #{attention_forward.5} parent=0 // pred_check_branch
    %52 = sbr.rel (0) target = $region61
  $region60: #{attention_forward.5} parent=0 // pred_region
    _
  $region61: #{attention_forward.5} parent=0 // pred_fallthru
    _
  // Predicated region
  $region62: #{attention_forward.5} parent=0 // pred_check
    _
  $region63: #{attention_forward.5} parent=0 // pred_check_branch
    %54 = sbr.rel (0) target = $region65
  $region64: #{attention_forward.5} parent=0 // pred_region
    _
  $region65: #{attention_forward.5} parent=0 // pred_fallthru
    _
  // Predicated region
  $region66: #{attention_forward.5} parent=0 // pred_check
    _
  $region67: #{attention_forward.5} parent=0 // pred_check_branch
    %56 = sbr.rel (0) target = $region69
  $region68: #{attention_forward.5} parent=0 // pred_region
    _
  $region69: #{attention_forward.5} parent=0 // pred_fallthru
    _
  // Predicated region
  $region70: #{attention_forward.5} parent=0 // pred_check
    _
  $region71: #{attention_forward.5} parent=0 // pred_check_branch
    %58 = sbr.rel (0) target = $region73
  $region72: #{attention_forward.5} parent=0 // pred_region
    _
  $region73: #{attention_forward.5} parent=0 // pred_fallthru
    _
  %v59 = vld [vmem:[%s1] sm:$0x3]
  %v60 = vld [vmem:[%s2] sm:$0x3]
  %v61 = vld [vmem:[%s3] sm:$0xff]
  %v62 = vld [vmem:[%s3 + $0x8] sm:$0xff]
  %v63 = vld [vmem:[%s3 + $0x10] sm:$0xff]
  %v64 = vld [vmem:[%s3 + $0x18] sm:$0xff]
  %v65 = vld [vmem:[%s4] sm:$0xff]
  %v66 = vld [vmem:[%s4 + $0x8] sm:$0xff]
  %v67 = vld [vmem:[%s4 + $0x10] sm:$0xff]
  %v68 = vld [vmem:[%s4 + $0x18] sm:$0xff]
  %v69 = vld [vmem:[%s5] sm:$0x1]
  %v70 = vld [vmem:[%s6] sm:$0xff]
  %v71 = vld [vmem:[%s6 + $0x8] sm:$0xff]
  %v72 = vld [vmem:[%s6 + $0x10] sm:$0xff]
  %v73 = vld [vmem:[%s6 + $0x18] sm:$0xff]
  %v74 = vld [vmem:[%s6 + $0x20] sm:$0xff]
  %v75 = vld [vmem:[%s6 + $0x28] sm:$0xff]
  %v76 = vld [vmem:[%s6 + $0x30] sm:$0xff]
  %v77 = vld [vmem:[%s6 + $0x38] sm:$0xff]
  %v78 = vld [vmem:[%s7] sm:$0xff]
  %v79 = vld [vmem:[%s7 + $0x8] sm:$0xff]
  %v80 = vld [vmem:[%s7 + $0x10] sm:$0xff]
  %v81 = vld [vmem:[%s7 + $0x18] sm:$0xff]
  %v82 = vld [vmem:[%s8] sm:$0x1]
  %v83 = vld [vmem:[%s9] sm:$0xff]
  %v84 = vld [vmem:[%s9 + $0x8] sm:$0x3]
  %v85 = vld [vmem:[%s11] sm:$0xff]
  %v86 = vld [vmem:[%s11 + $0x8] sm:$0x3]
  %v87 = vld [vmem:[%s10] sm:$0x1f]
  %s88 = scalar_lea.vmem %s10, 8
  %v89 = vld [vmem:[%s88] sm:$0x1f]
  %v90 = vld [vmem:[%s12] sm:$0x1f]
  %s91 = scalar_lea.vmem %s12, 8
  %v92 = vld [vmem:[%s91] sm:$0x1f]
  %v93 = vld [vmem:[%s13] sm:$0x1f]
  %v94 = vld [vmem:[%s14] sm:$0x3]
  %v95 = vld [vmem:[%s15] sm:$0x3]
  %v96 = vld [vmem:[%s16] sm:$0xff]
  %v97 = vld [vmem:[%s16 + $0x8] sm:$0xff]
  %v98 = vld [vmem:[%s16 + $0x10] sm:$0xff]
  %v99 = vld [vmem:[%s16 + $0x18] sm:$0xff]
  %v100 = vld [vmem:[%s16 + $0x20] sm:$0xff]
  %v101 = vld [vmem:[%s16 + $0x28] sm:$0xff]
  %v102 = vld [vmem:[%s16 + $0x30] sm:$0xff]
  %v103 = vld [vmem:[%s16 + $0x38] sm:$0xff]
  %v104 = vld [vmem:[%s17] sm:$0x1]
  %v105 = vld [vmem:[%s0] sm:$0x3]
  %vm106 = vcmask 261120
  %v108 = vsel %vm106, %v59, 0
  %110 = vmatprep.subr.mxu0 0.0
  %111 = vmatpush1.msra.mxu0 0.0
  %112 = vmatprep.subr.mxu0 0.0
  %113 = vmatpush1.msra.mxu0 0.0
  %114 = vmatprep.subr.mxu0 0.0
  %115 = vmatpush1.msra.mxu0 0.0
  %116 = vmatprep.subr.mxu0 0.0
  %117 = vmatpush1.msra.mxu0 0.0
  %118 = vmatprep.subr.mxu0 0.0
  %119 = vmatpush1.msra.mxu0 0.0
  %120 = vmatprep.subr.mxu0 0.0
  %121 = vmatpush1.msra.mxu0 0.0
  %122 = vmatprep.subr.mxu0 0.0
  %123 = vmatpush1.msra.mxu0 0.0
  %124 = vmatprep.subr.mxu0 0.0
  %125 = vmatpush1.msra.mxu0 0.0
  %126 = vmatprep.subr.mxu0 0.0
  %127 = vmatpush1.msra.mxu0 0.0
  %128 = vmatprep.subr.mxu0 0.0
  %129 = vmatpush1.msra.mxu0 0.0
  %130 = vmatprep.subr.mxu0 0.0
  %131 = vmatpush1.msra.mxu0 0.0
  %132 = vmatprep.subr.mxu0 0.0
  %133 = vmatpush1.msra.mxu0 0.0
  %134 = vmatprep.subr.mxu0 0.0
  %135 = vmatpush1.msra.mxu0 %v68
  %136 = vmatprep.subr.mxu0 0.0
  %137 = vmatpush1.msra.mxu0 %v67
  %138 = vmatprep.subr.mxu0 0.0
  %139 = vmatpush1.msra.mxu0 %v66
  %140 = vmatprep.subr.mxu0 0.0
  %141 = vmatpush1.msra.mxu0 %v65
  %142 = vmatprep.subr.mxu0 0.0
  %143 = vmatpush2.msra.mxu0 0.0
  %144 = vmatprep.subr.mxu0 0.0
  %145 = vmatpush2.msra.mxu0 0.0
  %146 = vmatprep.subr.mxu0 0.0
  %147 = vmatpush2.msra.mxu0 0.0
  %148 = vmatprep.subr.mxu0 0.0
  %149 = vmatpush2.msra.mxu0 0.0
  %150 = vmatprep.subr.mxu0 0.0
  %151 = vmatpush2.msra.mxu0 0.0
  %152 = vmatprep.subr.mxu0 0.0
  %153 = vmatpush2.msra.mxu0 0.0
  %154 = vmatprep.subr.mxu0 0.0
  %155 = vmatpush2.msra.mxu0 0.0
  %156 = vmatprep.subr.mxu0 0.0
  %157 = vmatpush2.msra.mxu0 0.0
  %158 = vmatprep.subr.mxu0 0.0
  %159 = vmatpush2.msra.mxu0 0.0
  %160 = vmatprep.subr.mxu0 0.0
  %161 = vmatpush2.msra.mxu0 0.0
  %162 = vmatprep.subr.mxu0 0.0
  %163 = vmatpush2.msra.mxu0 0.0
  %164 = vmatprep.subr.mxu0 0.0
  %165 = vmatpush2.msra.mxu0 0.0
  %166 = vmatprep.subr.mxu0 0.0
  %167 = vmatpush2.msra.mxu0 0.0
  %168 = vmatprep.subr.mxu0 0.0
  %169 = vmatpush2.msra.mxu0 0.0
  %170 = vmatprep.subr.mxu0 0.0
  %171 = vmatpush2.msra.mxu0 0.0
  %172 = vmatprep.subr.mxu0 0.0
  %173 = vmatpush2.msra.mxu0 0.0
  %174 = vmatprep.mubr.f32.mxu0 0.0
  %175 = vmatmul.mubr.f32.gmra.mxu0 %v108
  %v176 = vpop.f32.mrf.mxu0
  %v177 = vadd.f32 0.0, %v176
  %v178 = vpop.f32.mrf.mxu0
  %179 = vdwg.mxu0
  %v181 = vsel %vm106, %v105, 0
  %183 = vmatprep.subr.mxu0 0.0
  %184 = vmatpush1.msra.mxu0 0.0
  %185 = vmatprep.subr.mxu0 0.0
  %186 = vmatpush1.msra.mxu0 0.0
  %187 = vmatprep.subr.mxu0 0.0
  %188 = vmatpush1.msra.mxu0 0.0
  %189 = vmatprep.subr.mxu0 0.0
  %190 = vmatpush1.msra.mxu0 0.0
  %191 = vmatprep.subr.mxu0 0.0
  %192 = vmatpush1.msra.mxu0 0.0
  %193 = vmatprep.subr.mxu0 0.0
  %194 = vmatpush1.msra.mxu0 0.0
  %195 = vmatprep.subr.mxu0 0.0
  %196 = vmatpush1.msra.mxu0 0.0
  %197 = vmatprep.subr.mxu0 0.0
  %198 = vmatpush1.msra.mxu0 0.0
  %199 = vmatprep.subr.mxu0 0.0
  %200 = vmatpush1.msra.mxu0 0.0
  %201 = vmatprep.subr.mxu0 0.0
  %202 = vmatpush1.msra.mxu0 0.0
  %203 = vmatprep.subr.mxu0 0.0
  %204 = vmatpush1.msra.mxu0 0.0
  %205 = vmatprep.subr.mxu0 0.0
  %206 = vmatpush1.msra.mxu0 0.0
  %207 = vmatprep.subr.mxu0 0.0
  %208 = vmatpush1.msra.mxu0 %v64
  %209 = vmatprep.subr.mxu0 0.0
  %210 = vmatpush1.msra.mxu0 %v63
  %211 = vmatprep.subr.mxu0 0.0
  %212 = vmatpush1.msra.mxu0 %v62
  %213 = vmatprep.subr.mxu0 0.0
  %214 = vmatpush1.msra.mxu0 %v61
  %215 = vmatprep.subr.mxu0 0.0
  %216 = vmatpush2.msra.mxu0 0.0
  %217 = vmatprep.subr.mxu0 0.0
  %218 = vmatpush2.msra.mxu0 0.0
  %219 = vmatprep.subr.mxu0 0.0
  %220 = vmatpush2.msra.mxu0 0.0
  %221 = vmatprep.subr.mxu0 0.0
  %222 = vmatpush2.msra.mxu0 0.0
  %223 = vmatprep.subr.mxu0 0.0
  %224 = vmatpush2.msra.mxu0 0.0
  %225 = vmatprep.subr.mxu0 0.0
  %226 = vmatpush2.msra.mxu0 0.0
  %227 = vmatprep.subr.mxu0 0.0
  %228 = vmatpush2.msra.mxu0 0.0
  %229 = vmatprep.subr.mxu0 0.0
  %230 = vmatpush2.msra.mxu0 0.0
  %231 = vmatprep.subr.mxu0 0.0
  %232 = vmatpush2.msra.mxu0 0.0
  %233 = vmatprep.subr.mxu0 0.0
  %234 = vmatpush2.msra.mxu0 0.0
  %235 = vmatprep.subr.mxu0 0.0
  %236 = vmatpush2.msra.mxu0 0.0
  %237 = vmatprep.subr.mxu0 0.0
  %238 = vmatpush2.msra.mxu0 0.0
  %239 = vmatprep.subr.mxu0 0.0
  %240 = vmatpush2.msra.mxu0 0.0
  %241 = vmatprep.subr.mxu0 0.0
  %242 = vmatpush2.msra.mxu0 0.0
  %243 = vmatprep.subr.mxu0 0.0
  %244 = vmatpush2.msra.mxu0 0.0
  %245 = vmatprep.subr.mxu0 0.0
  %246 = vmatpush2.msra.mxu0 0.0
  %247 = vmatprep.mubr.f32.mxu0 0.0
  %248 = vmatmul.mubr.f32.gmra.mxu0 %v181
  %v249 = vpop.f32.mrf.mxu0
  %v250 = vadd.f32 %v177, %v249
  %v251 = vpop.f32.mrf.mxu0
  %252 = vdwg.mxu0
  %v254 = vlaneseq
  %v255 = vshrl.u32 %v254, 7
  %v256 = vsub.s32 0, %v255
  %v257 = vrot.slane %v69, %v256
  %v259 = vadd.f32 %v250, %v257
  %v260 = vmul.f32 %v259, 0.5
  %v261 = vtanh.pop %v260
  %v262 = vadd.f32 %v261, 1.0
  %v263 = vmul.f32 %v262, 0.5
  %v264 = vtanh.pop %v259
  %266 = vrot.lane.b32.xlu0 %v60, 32
  %v267 = vpop.permute.xlu0 %266
  %v269 = vmul.f32 %v263, %v267
  %271 = vrot.lane.b32.xlu0 %v264, 64
  %v272 = vpop.permute.xlu0 %271
  %v274 = vmul.f32 %v263, %v272
  %276 = vrot.lane.b32.xlu0 %v274, 32
  %v277 = vpop.permute.xlu0 %276
  %v279 = vadd.f32 %v269, %v277
  %v280 = vtanh.pop %v279
  %282 = vrot.lane.b32.xlu0 %v280, 64
  %v283 = vpop.permute.xlu0 %282
  %v285 = vmul.f32 %v263, %v283
  %v286 = vlaneseq
  %v287 = vshrl.u32 %v286, 7
  %v288 = vsub.s32 0, %v287
  %v289 = vrot.slane %v285, %v288
  %291 = vrot.lane.b32.xlu0 %v289, 32
  %v292 = vpop.permute.xlu0 %291
  %v294 = vmul.f32 %v87, %v292
  %vm295 = vcmask 258048
  %v296 = vsel %vm295, %v294, 0.0
  %297 = vadd.xlane.f32.xlu0 %v296
  %v298 = vpop.xlane.xlu0 %297
  %v299 = vlaneseq
  %v300 = vshrl.u32 %v299, 7
  %v301 = vsub.s32 1, %v300
  %v302 = vrot.slane %v285, %v301
  %304 = vrot.lane.b32.xlu0 %v302, 32
  %v305 = vpop.permute.xlu0 %304
  %v307 = vmul.f32 %v89, %v305
  %v308 = vsel %vm295, %v307, 0.0
  %309 = vadd.xlane.f32.xlu0 %v308
  %v310 = vpop.xlane.xlu0 %309
  %vm311 = vcmask 7168
  %v312 = vsel %vm311, %v298, %v310
  %vm313 = vcmask 12288
  %v314 = vsel %vm313, %v312, -inf
  %v315 = vrot.slane %v314, 4
  %v316 = vmax.f32 %v314, %v315
  %v317 = vrot.slane %v316, 2
  %v318 = vmax.f32 %v316, %v317
  %v319 = vrot.slane %v318, 1
  %v320 = vmax.f32 %v318, %v319
  %v321 = vsub.f32 %v312, %v320
  %v322 = vmul.f32 %v321, 1.442695
  %v323 = vpow.pop %v322
  %v324 = vsel %vm313, %v323, 0.0
  %v325 = vrot.slane %v324, 4
  %v326 = vadd.f32 %v324, %v325
  %v327 = vrot.slane %v326, 2
  %v328 = vadd.f32 %v326, %v327
  %v329 = vrot.slane %v328, 1
  %v330 = vadd.f32 %v328, %v329
  %v331 = vrcp.pop %v330
  %v332 = vmul.f32 %v323, %v331
  %vm333 = vcmask 15360
  %v335 = vsel %vm333, %v332, 0
  %vm337 = vcmask 1041408
  %v339 = vsel %vm337, %v94, 0
  %341 = vmatprep.subr.mxu0 0.0
  %342 = vmatpush1.msra.mxu0 0.0
  %343 = vmatprep.subr.mxu0 0.0
  %344 = vmatpush1.msra.mxu0 0.0
  %345 = vmatprep.subr.mxu0 0.0
  %346 = vmatpush1.msra.mxu0 0.0
  %347 = vmatprep.subr.mxu0 0.0
  %348 = vmatpush1.msra.mxu0 0.0
  %349 = vmatprep.subr.mxu0 0.0
  %350 = vmatpush1.msra.mxu0 0.0
  %351 = vmatprep.subr.mxu0 0.0
  %352 = vmatpush1.msra.mxu0 0.0
  %353 = vmatprep.subr.mxu0 0.0
  %354 = vmatpush1.msra.mxu0 0.0
  %355 = vmatprep.subr.mxu0 0.0
  %356 = vmatpush1.msra.mxu0 0.0
  %357 = vmatprep.subr.mxu0 0.0
  %358 = vmatpush1.msra.mxu0 0.0
  %359 = vmatprep.subr.mxu0 0.0
  %360 = vmatpush1.msra.mxu0 0.0
  %361 = vmatprep.subr.mxu0 0.0
  %362 = vmatpush1.msra.mxu0 0.0
  %363 = vmatprep.subr.mxu0 0.0
  %364 = vmatpush1.msra.mxu0 0.0
  %365 = vmatprep.subr.mxu0 0.0
  %366 = vmatpush1.msra.mxu0 0.0
  %367 = vmatprep.subr.mxu0 0.0
  %368 = vmatpush1.msra.mxu0 0.0
  %369 = vmatprep.subr.mxu0 0.0
  %370 = vmatpush1.msra.mxu0 0.0
  %371 = vmatprep.subr.mxu0 0.0
  %372 = vmatpush1.msra.mxu0 %v339
  %373 = vmatprep.subr.mxu0 0.0
  %374 = vmatpush2.msra.mxu0 0.0
  %375 = vmatprep.subr.mxu0 0.0
  %376 = vmatpush2.msra.mxu0 0.0
  %377 = vmatprep.subr.mxu0 0.0
  %378 = vmatpush2.msra.mxu0 0.0
  %379 = vmatprep.subr.mxu0 0.0
  %380 = vmatpush2.msra.mxu0 0.0
  %381 = vmatprep.subr.mxu0 0.0
  %382 = vmatpush2.msra.mxu0 0.0
  %383 = vmatprep.subr.mxu0 0.0
  %384 = vmatpush2.msra.mxu0 0.0
  %385 = vmatprep.subr.mxu0 0.0
  %386 = vmatpush2.msra.mxu0 0.0
  %387 = vmatprep.subr.mxu0 0.0
  %388 = vmatpush2.msra.mxu0 0.0
  %389 = vmatprep.subr.mxu0 0.0
  %390 = vmatpush2.msra.mxu0 0.0
  %391 = vmatprep.subr.mxu0 0.0
  %392 = vmatpush2.msra.mxu0 0.0
  %393 = vmatprep.subr.mxu0 0.0
  %394 = vmatpush2.msra.mxu0 0.0
  %395 = vmatprep.subr.mxu0 0.0
  %396 = vmatpush2.msra.mxu0 0.0
  %397 = vmatprep.subr.mxu0 0.0
  %398 = vmatpush2.msra.mxu0 0.0
  %399 = vmatprep.subr.mxu0 0.0
  %400 = vmatpush2.msra.mxu0 0.0
  %401 = vmatprep.subr.mxu0 0.0
  %402 = vmatpush2.msra.mxu0 0.0
  %403 = vmatprep.subr.mxu0 0.0
  %404 = vmatpush2.msra.mxu0 0.0
  %405 = vmatprep.mubr.f32.mxu0 0.0
  %406 = vmatmul.mubr.f32.gmra.mxu0 %v335
  %v407 = vpop.f32.mrf.mxu0
  %v408 = vadd.f32 0.0, %v407
  %v409 = vpop.f32.mrf.mxu0
  %410 = vdwg.mxu0
  %v411 = vmul.f32 %v93, %v408
  %vm412 = vcmask 77824
  %v413 = vsel %vm412, %v411, 0.0
  %v414 = vrot.slane %v413, 4
  %v415 = vadd.f32 %v413, %v414
  %v416 = vrot.slane %v415, 2
  %v417 = vadd.f32 %v415, %v416
  %v418 = vrot.slane %v417, 1
  %v419 = vadd.f32 %v417, %v418
  %v420 = vmul.f32 %v95, %v419
  %vm421 = vcmask 80896
  %v423 = vsel %vm421, %v420, 0
  %v426 = vsel %vm337, %v84, 0
  %428 = vmatprep.subr.mxu0 0.0
  %429 = vmatpush1.msra.mxu0 0.0
  %430 = vmatprep.subr.mxu0 0.0
  %431 = vmatpush1.msra.mxu0 0.0
  %432 = vmatprep.subr.mxu0 0.0
  %433 = vmatpush1.msra.mxu0 0.0
  %434 = vmatprep.subr.mxu0 0.0
  %435 = vmatpush1.msra.mxu0 0.0
  %436 = vmatprep.subr.mxu0 0.0
  %437 = vmatpush1.msra.mxu0 0.0
  %438 = vmatprep.subr.mxu0 0.0
  %439 = vmatpush1.msra.mxu0 0.0
  %440 = vmatprep.subr.mxu0 0.0
  %441 = vmatpush1.msra.mxu0 0.0
  %442 = vmatprep.subr.mxu0 0.0
  %443 = vmatpush1.msra.mxu0 0.0
  %444 = vmatprep.subr.mxu0 0.0
  %445 = vmatpush1.msra.mxu0 0.0
  %446 = vmatprep.subr.mxu0 0.0
  %447 = vmatpush1.msra.mxu0 0.0
  %448 = vmatprep.subr.mxu0 0.0
  %449 = vmatpush1.msra.mxu0 0.0
  %450 = vmatprep.subr.mxu0 0.0
  %451 = vmatpush1.msra.mxu0 0.0
  %452 = vmatprep.subr.mxu0 0.0
  %453 = vmatpush1.msra.mxu0 0.0
  %454 = vmatprep.subr.mxu0 0.0
  %455 = vmatpush1.msra.mxu0 0.0
  %456 = vmatprep.subr.mxu0 0.0
  %457 = vmatpush1.msra.mxu0 %v426
  %458 = vmatprep.subr.mxu0 0.0
  %459 = vmatpush1.msra.mxu0 %v83
  %460 = vmatprep.subr.mxu0 0.0
  %461 = vmatpush2.msra.mxu0 0.0
  %462 = vmatprep.subr.mxu0 0.0
  %463 = vmatpush2.msra.mxu0 0.0
  %464 = vmatprep.subr.mxu0 0.0
  %465 = vmatpush2.msra.mxu0 0.0
  %466 = vmatprep.subr.mxu0 0.0
  %467 = vmatpush2.msra.mxu0 0.0
  %468 = vmatprep.subr.mxu0 0.0
  %469 = vmatpush2.msra.mxu0 0.0
  %470 = vmatprep.subr.mxu0 0.0
  %471 = vmatpush2.msra.mxu0 0.0
  %472 = vmatprep.subr.mxu0 0.0
  %473 = vmatpush2.msra.mxu0 0.0
  %474 = vmatprep.subr.mxu0 0.0
  %475 = vmatpush2.msra.mxu0 0.0
  %476 = vmatprep.subr.mxu0 0.0
  %477 = vmatpush2.msra.mxu0 0.0
  %478 = vmatprep.subr.mxu0 0.0
  %479 = vmatpush2.msra.mxu0 0.0
  %480 = vmatprep.subr.mxu0 0.0
  %481 = vmatpush2.msra.mxu0 0.0
  %482 = vmatprep.subr.mxu0 0.0
  %483 = vmatpush2.msra.mxu0 0.0
  %484 = vmatprep.subr.mxu0 0.0
  %485 = vmatpush2.msra.mxu0 0.0
  %486 = vmatprep.subr.mxu0 0.0
  %487 = vmatpush2.msra.mxu0 0.0
  %488 = vmatprep.subr.mxu0 0.0
  %489 = vmatpush2.msra.mxu0 0.0
  %490 = vmatprep.subr.mxu0 0.0
  %491 = vmatpush2.msra.mxu0 0.0
  %492 = vmatprep.mubr.f32.mxu0 0.0
  %493 = vmatmul.mubr.f32.gmra.mxu0 %v423
  %v494 = vpop.f32.mrf.mxu0
  %v495 = vadd.f32 0.0, %v494
  %v496 = vpop.f32.mrf.mxu0
  %497 = vdwg.mxu0
  %499 = vrot.lane.b32.xlu0 %v285, 32
  %v500 = vpop.permute.xlu0 %499
  %503 = vrot.lane.b32.xlu0 %v495, 32
  %v504 = vpop.permute.xlu0 %503
  %v506 = vsel %vm106, %v500, %v504
  %s507 = scalar_lea.vmem %s0, 2
  %v508 = vld [vmem:[%s507] sm:$0x3]
  %v509 = vsel %vm106, %v500, 0
  %511 = vmatprep.subr.mxu0 0.0
  %512 = vmatpush1.msra.mxu0 0.0
  %513 = vmatprep.subr.mxu0 0.0
  %514 = vmatpush1.msra.mxu0 0.0
  %515 = vmatprep.subr.mxu0 0.0
  %516 = vmatpush1.msra.mxu0 0.0
  %517 = vmatprep.subr.mxu0 0.0
  %518 = vmatpush1.msra.mxu0 0.0
  %519 = vmatprep.subr.mxu0 0.0
  %520 = vmatpush1.msra.mxu0 0.0
  %521 = vmatprep.subr.mxu0 0.0
  %522 = vmatpush1.msra.mxu0 0.0
  %523 = vmatprep.subr.mxu0 0.0
  %524 = vmatpush1.msra.mxu0 0.0
  %525 = vmatprep.subr.mxu0 0.0
  %526 = vmatpush1.msra.mxu0 0.0
  %527 = vmatprep.subr.mxu0 0.0
  %528 = vmatpush1.msra.mxu0 0.0
  %529 = vmatprep.subr.mxu0 0.0
  %530 = vmatpush1.msra.mxu0 0.0
  %531 = vmatprep.subr.mxu0 0.0
  %532 = vmatpush1.msra.mxu0 0.0
  %533 = vmatprep.subr.mxu0 0.0
  %534 = vmatpush1.msra.mxu0 0.0
  %535 = vmatprep.subr.mxu0 0.0
  %536 = vmatpush1.msra.mxu0 %v68
  %537 = vmatprep.subr.mxu0 0.0
  %538 = vmatpush1.msra.mxu0 %v67
  %539 = vmatprep.subr.mxu0 0.0
  %540 = vmatpush1.msra.mxu0 %v66
  %541 = vmatprep.subr.mxu0 0.0
  %542 = vmatpush1.msra.mxu0 %v65
  %543 = vmatprep.subr.mxu0 0.0
  %544 = vmatpush2.msra.mxu0 0.0
  %545 = vmatprep.subr.mxu0 0.0
  %546 = vmatpush2.msra.mxu0 0.0
  %547 = vmatprep.subr.mxu0 0.0
  %548 = vmatpush2.msra.mxu0 0.0
  %549 = vmatprep.subr.mxu0 0.0
  %550 = vmatpush2.msra.mxu0 0.0
  %551 = vmatprep.subr.mxu0 0.0
  %552 = vmatpush2.msra.mxu0 0.0
  %553 = vmatprep.subr.mxu0 0.0
  %554 = vmatpush2.msra.mxu0 0.0
  %555 = vmatprep.subr.mxu0 0.0
  %556 = vmatpush2.msra.mxu0 0.0
  %557 = vmatprep.subr.mxu0 0.0
  %558 = vmatpush2.msra.mxu0 0.0
  %559 = vmatprep.subr.mxu0 0.0
  %560 = vmatpush2.msra.mxu0 0.0
  %561 = vmatprep.subr.mxu0 0.0
  %562 = vmatpush2.msra.mxu0 0.0
  %563 = vmatprep.subr.mxu0 0.0
  %564 = vmatpush2.msra.mxu0 0.0
  %565 = vmatprep.subr.mxu0 0.0
  %566 = vmatpush2.msra.mxu0 0.0
  %567 = vmatprep.subr.mxu0 0.0
  %568 = vmatpush2.msra.mxu0 0.0
  %569 = vmatprep.subr.mxu0 0.0
  %570 = vmatpush2.msra.mxu0 0.0
  %571 = vmatprep.subr.mxu0 0.0
  %572 = vmatpush2.msra.mxu0 0.0
  %573 = vmatprep.subr.mxu0 0.0
  %574 = vmatpush2.msra.mxu0 0.0
  %575 = vmatprep.mubr.f32.mxu0 0.0
  %576 = vmatmul.mubr.f32.gmra.mxu0 %v509
  %v577 = vpop.f32.mrf.mxu0
  %v578 = vadd.f32 0.0, %v577
  %v579 = vpop.f32.mrf.mxu0
  %580 = vdwg.mxu0
  %v582 = vsel %vm106, %v508, 0
  %584 = vmatprep.subr.mxu0 0.0
  %585 = vmatpush1.msra.mxu0 0.0
  %586 = vmatprep.subr.mxu0 0.0
  %587 = vmatpush1.msra.mxu0 0.0
  %588 = vmatprep.subr.mxu0 0.0
  %589 = vmatpush1.msra.mxu0 0.0
  %590 = vmatprep.subr.mxu0 0.0
  %591 = vmatpush1.msra.mxu0 0.0
  %592 = vmatprep.subr.mxu0 0.0
  %593 = vmatpush1.msra.mxu0 0.0
  %594 = vmatprep.subr.mxu0 0.0
  %595 = vmatpush1.msra.mxu0 0.0
  %596 = vmatprep.subr.mxu0 0.0
  %597 = vmatpush1.msra.mxu0 0.0
  %598 = vmatprep.subr.mxu0 0.0
  %599 = vmatpush1.msra.mxu0 0.0
  %600 = vmatprep.subr.mxu0 0.0
  %601 = vmatpush1.msra.mxu0 0.0
  %602 = vmatprep.subr.mxu0 0.0
  %603 = vmatpush1.msra.mxu0 0.0
  %604 = vmatprep.subr.mxu0 0.0
  %605 = vmatpush1.msra.mxu0 0.0
  %606 = vmatprep.subr.mxu0 0.0
  %607 = vmatpush1.msra.mxu0 0.0
  %608 = vmatprep.subr.mxu0 0.0
  %609 = vmatpush1.msra.mxu0 %v64
  %610 = vmatprep.subr.mxu0 0.0
  %611 = vmatpush1.msra.mxu0 %v63
  %612 = vmatprep.subr.mxu0 0.0
  %613 = vmatpush1.msra.mxu0 %v62
  %614 = vmatprep.subr.mxu0 0.0
  %615 = vmatpush1.msra.mxu0 %v61
  %616 = vmatprep.subr.mxu0 0.0
  %617 = vmatpush2.msra.mxu0 0.0
  %618 = vmatprep.subr.mxu0 0.0
  %619 = vmatpush2.msra.mxu0 0.0
  %620 = vmatprep.subr.mxu0 0.0
  %621 = vmatpush2.msra.mxu0 0.0
  %622 = vmatprep.subr.mxu0 0.0
  %623 = vmatpush2.msra.mxu0 0.0
  %624 = vmatprep.subr.mxu0 0.0
  %625 = vmatpush2.msra.mxu0 0.0
  %626 = vmatprep.subr.mxu0 0.0
  %627 = vmatpush2.msra.mxu0 0.0
  %628 = vmatprep.subr.mxu0 0.0
  %629 = vmatpush2.msra.mxu0 0.0
  %630 = vmatprep.subr.mxu0 0.0
  %631 = vmatpush2.msra.mxu0 0.0
  %632 = vmatprep.subr.mxu0 0.0
  %633 = vmatpush2.msra.mxu0 0.0
  %634 = vmatprep.subr.mxu0 0.0
  %635 = vmatpush2.msra.mxu0 0.0
  %636 = vmatprep.subr.mxu0 0.0
  %637 = vmatpush2.msra.mxu0 0.0
  %638 = vmatprep.subr.mxu0 0.0
  %639 = vmatpush2.msra.mxu0 0.0
  %640 = vmatprep.subr.mxu0 0.0
  %641 = vmatpush2.msra.mxu0 0.0
  %642 = vmatprep.subr.mxu0 0.0
  %643 = vmatpush2.msra.mxu0 0.0
  %644 = vmatprep.subr.mxu0 0.0
  %645 = vmatpush2.msra.mxu0 0.0
  %646 = vmatprep.subr.mxu0 0.0
  %647 = vmatpush2.msra.mxu0 0.0
  %648 = vmatprep.mubr.f32.mxu0 0.0
  %649 = vmatmul.mubr.f32.gmra.mxu0 %v582
  %v650 = vpop.f32.mrf.mxu0
  %v651 = vadd.f32 %v578, %v650
  %v652 = vpop.f32.mrf.mxu0
  %653 = vdwg.mxu0
  %v654 = vadd.f32 %v651, %v257
  %v655 = vmul.f32 %v654, 0.5
  %v656 = vtanh.pop %v655
  %v657 = vadd.f32 %v656, 1.0
  %v658 = vmul.f32 %v657, 0.5
  %v659 = vtanh.pop %v654
  %v660 = vmul.f32 %v658, %v279
  %662 = vrot.lane.b32.xlu0 %v659, 64
  %v663 = vpop.permute.xlu0 %662
  %v665 = vmul.f32 %v658, %v663
  %667 = vrot.lane.b32.xlu0 %v665, 32
  %v668 = vpop.permute.xlu0 %667
  %v670 = vadd.f32 %v660, %v668
  %v671 = vtanh.pop %v670
  %673 = vrot.lane.b32.xlu0 %v671, 64
  %v674 = vpop.permute.xlu0 %673
  %v676 = vmul.f32 %v658, %v674
  %v677 = vlaneseq
  %v678 = vshrl.u32 %v677, 7
  %v679 = vsub.s32 0, %v678
  %v680 = vrot.slane %v676, %v679
  %682 = vrot.lane.b32.xlu0 %v680, 32
  %v683 = vpop.permute.xlu0 %682
  %v685 = vmul.f32 %v87, %v683
  %v686 = vsel %vm295, %v685, 0.0
  %687 = vadd.xlane.f32.xlu0 %v686
  %v688 = vpop.xlane.xlu0 %687
  %v689 = vlaneseq
  %v690 = vshrl.u32 %v689, 7
  %v691 = vsub.s32 1, %v690
  %v692 = vrot.slane %v676, %v691
  %694 = vrot.lane.b32.xlu0 %v692, 32
  %v695 = vpop.permute.xlu0 %694
  %v697 = vmul.f32 %v89, %v695
  %v698 = vsel %vm295, %v697, 0.0
  %699 = vadd.xlane.f32.xlu0 %v698
  %v700 = vpop.xlane.xlu0 %699
  %v701 = vsel %vm311, %v688, %v700
  %v702 = vsel %vm313, %v701, -inf
  %v703 = vrot.slane %v702, 4
  %v704 = vmax.f32 %v702, %v703
  %v705 = vrot.slane %v704, 2
  %v706 = vmax.f32 %v704, %v705
  %v707 = vrot.slane %v706, 1
  %v708 = vmax.f32 %v706, %v707
  %v709 = vsub.f32 %v701, %v708
  %v710 = vmul.f32 %v709, 1.442695
  %v711 = vpow.pop %v710
  %v712 = vsel %vm313, %v711, 0.0
  %v713 = vrot.slane %v712, 4
  %v714 = vadd.f32 %v712, %v713
  %v715 = vrot.slane %v714, 2
  %v716 = vadd.f32 %v714, %v715
  %v717 = vrot.slane %v716, 1
  %v718 = vadd.f32 %v716, %v717
  %v719 = vrcp.pop %v718
  %v720 = vmul.f32 %v711, %v719
  %v722 = vsel %vm333, %v720, 0
  %724 = vmatprep.subr.mxu0 0.0
  %725 = vmatpush1.msra.mxu0 0.0
  %726 = vmatprep.subr.mxu0 0.0
  %727 = vmatpush1.msra.mxu0 0.0
  %728 = vmatprep.subr.mxu0 0.0
  %729 = vmatpush1.msra.mxu0 0.0
  %730 = vmatprep.subr.mxu0 0.0
  %731 = vmatpush1.msra.mxu0 0.0
  %732 = vmatprep.subr.mxu0 0.0
  %733 = vmatpush1.msra.mxu0 0.0
  %734 = vmatprep.subr.mxu0 0.0
  %735 = vmatpush1.msra.mxu0 0.0
  %736 = vmatprep.subr.mxu0 0.0
  %737 = vmatpush1.msra.mxu0 0.0
  %738 = vmatprep.subr.mxu0 0.0
  %739 = vmatpush1.msra.mxu0 0.0
  %740 = vmatprep.subr.mxu0 0.0
  %741 = vmatpush1.msra.mxu0 0.0
  %742 = vmatprep.subr.mxu0 0.0
  %743 = vmatpush1.msra.mxu0 0.0
  %744 = vmatprep.subr.mxu0 0.0
  %745 = vmatpush1.msra.mxu0 0.0
  %746 = vmatprep.subr.mxu0 0.0
  %747 = vmatpush1.msra.mxu0 0.0
  %748 = vmatprep.subr.mxu0 0.0
  %749 = vmatpush1.msra.mxu0 0.0
  %750 = vmatprep.subr.mxu0 0.0
  %751 = vmatpush1.msra.mxu0 0.0
  %752 = vmatprep.subr.mxu0 0.0
  %753 = vmatpush1.msra.mxu0 0.0
  %754 = vmatprep.subr.mxu0 0.0
  %755 = vmatpush1.msra.mxu0 %v339
  %756 = vmatprep.subr.mxu0 0.0
  %757 = vmatpush2.msra.mxu0 0.0
  %758 = vmatprep.subr.mxu0 0.0
  %759 = vmatpush2.msra.mxu0 0.0
  %760 = vmatprep.subr.mxu0 0.0
  %761 = vmatpush2.msra.mxu0 0.0
  %762 = vmatprep.subr.mxu0 0.0
  %763 = vmatpush2.msra.mxu0 0.0
  %764 = vmatprep.subr.mxu0 0.0
  %765 = vmatpush2.msra.mxu0 0.0
  %766 = vmatprep.subr.mxu0 0.0
  %767 = vmatpush2.msra.mxu0 0.0
  %768 = vmatprep.subr.mxu0 0.0
  %769 = vmatpush2.msra.mxu0 0.0
  %770 = vmatprep.subr.mxu0 0.0
  %771 = vmatpush2.msra.mxu0 0.0
  %772 = vmatprep.subr.mxu0 0.0
  %773 = vmatpush2.msra.mxu0 0.0
  %774 = vmatprep.subr.mxu0 0.0
  %775 = vmatpush2.msra.mxu0 0.0
  %776 = vmatprep.subr.mxu0 0.0
  %777 = vmatpush2.msra.mxu0 0.0
  %778 = vmatprep.subr.mxu0 0.0
  %779 = vmatpush2.msra.mxu0 0.0
  %780 = vmatprep.subr.mxu0 0.0
  %781 = vmatpush2.msra.mxu0 0.0
  %782 = vmatprep.subr.mxu0 0.0
  %783 = vmatpush2.msra.mxu0 0.0
  %784 = vmatprep.subr.mxu0 0.0
  %785 = vmatpush2.msra.mxu0 0.0
  %786 = vmatprep.subr.mxu0 0.0
  %787 = vmatpush2.msra.mxu0 0.0
  %788 = vmatprep.mubr.f32.mxu0 0.0
  %789 = vmatmul.mubr.f32.gmra.mxu0 %v722
  %v790 = vpop.f32.mrf.mxu0
  %v791 = vadd.f32 0.0, %v790
  %v792 = vpop.f32.mrf.mxu0
  %793 = vdwg.mxu0
  %v794 = vmul.f32 %v93, %v791
  %v795 = vsel %vm412, %v794, 0.0
  %v796 = vrot.slane %v795, 4
  %v797 = vadd.f32 %v795, %v796
  %v798 = vrot.slane %v797, 2
  %v799 = vadd.f32 %v797, %v798
  %v800 = vrot.slane %v799, 1
  %v801 = vadd.f32 %v799, %v800
  %v802 = vmul.f32 %v95, %v801
  %v804 = vsel %vm421, %v802, 0
  %806 = vmatprep.subr.mxu0 0.0
  %807 = vmatpush1.msra.mxu0 0.0
  %808 = vmatprep.subr.mxu0 0.0
  %809 = vmatpush1.msra.mxu0 0.0
  %810 = vmatprep.subr.mxu0 0.0
  %811 = vmatpush1.msra.mxu0 0.0
  %812 = vmatprep.subr.mxu0 0.0
  %813 = vmatpush1.msra.mxu0 0.0
  %814 = vmatprep.subr.mxu0 0.0
  %815 = vmatpush1.msra.mxu0 0.0
  %816 = vmatprep.subr.mxu0 0.0
  %817 = vmatpush1.msra.mxu0 0.0
  %818 = vmatprep.subr.mxu0 0.0
  %819 = vmatpush1.msra.mxu0 0.0
  %820 = vmatprep.subr.mxu0 0.0
  %821 = vmatpush1.msra.mxu0 0.0
  %822 = vmatprep.subr.mxu0 0.0
  %823 = vmatpush1.msra.mxu0 0.0
  %824 = vmatprep.subr.mxu0 0.0
  %825 = vmatpush1.msra.mxu0 0.0
  %826 = vmatprep.subr.mxu0 0.0
  %827 = vmatpush1.msra.mxu0 0.0
  %828 = vmatprep.subr.mxu0 0.0
  %829 = vmatpush1.msra.mxu0 0.0
  %830 = vmatprep.subr.mxu0 0.0
  %831 = vmatpush1.msra.mxu0 0.0
  %832 = vmatprep.subr.mxu0 0.0
  %833 = vmatpush1.msra.mxu0 0.0
  %834 = vmatprep.subr.mxu0 0.0
  %835 = vmatpush1.msra.mxu0 %v426
  %836 = vmatprep.subr.mxu0 0.0
  %837 = vmatpush1.msra.mxu0 %v83
  %838 = vmatprep.subr.mxu0 0.0
  %839 = vmatpush2.msra.mxu0 0.0
  %840 = vmatprep.subr.mxu0 0.0
  %841 = vmatpush2.msra.mxu0 0.0
  %842 = vmatprep.subr.mxu0 0.0
  %843 = vmatpush2.msra.mxu0 0.0
  %844 = vmatprep.subr.mxu0 0.0
  %845 = vmatpush2.msra.mxu0 0.0
  %846 = vmatprep.subr.mxu0 0.0
  %847 = vmatpush2.msra.mxu0 0.0
  %848 = vmatprep.subr.mxu0 0.0
  %849 = vmatpush2.msra.mxu0 0.0
  %850 = vmatprep.subr.mxu0 0.0
  %851 = vmatpush2.msra.mxu0 0.0
  %852 = vmatprep.subr.mxu0 0.0
  %853 = vmatpush2.msra.mxu0 0.0
  %854 = vmatprep.subr.mxu0 0.0
  %855 = vmatpush2.msra.mxu0 0.0
  %856 = vmatprep.subr.mxu0 0.0
  %857 = vmatpush2.msra.mxu0 0.0
  %858 = vmatprep.subr.mxu0 0.0
  %859 = vmatpush2.msra.mxu0 0.0
  %860 = vmatprep.subr.mxu0 0.0
  %861 = vmatpush2.msra.mxu0 0.0
  %862 = vmatprep.subr.mxu0 0.0
  %863 = vmatpush2.msra.mxu0 0.0
  %864 = vmatprep.subr.mxu0 0.0
  %865 = vmatpush2.msra.mxu0 0.0
  %866 = vmatprep.subr.mxu0 0.0
  %867 = vmatpush2.msra.mxu0 0.0
  %868 = vmatprep.subr.mxu0 0.0
  %869 = vmatpush2.msra.mxu0 0.0
  %870 = vmatprep.mubr.f32.mxu0 0.0
  %871 = vmatmul.mubr.f32.gmra.mxu0 %v804
  %v872 = vpop.f32.mrf.mxu0
  %v873 = vadd.f32 0.0, %v872
  %v874 = vpop.f32.mrf.mxu0
  %875 = vdwg.mxu0
  %877 = vrot.lane.b32.xlu0 %v676, 32
  %v878 = vpop.permute.xlu0 %877
  %881 = vrot.lane.b32.xlu0 %v873, 32
  %v882 = vpop.permute.xlu0 %881
  %v884 = vsel %vm106, %v878, %v882
  %s885 = scalar_lea.vmem %s0, 4
  %v886 = vld [vmem:[%s885] sm:$0x3]
  %v887 = vsel %vm106, %v878, 0
  %889 = vmatprep.subr.mxu0 0.0
  %890 = vmatpush1.msra.mxu0 0.0
  %891 = vmatprep.subr.mxu0 0.0
  %892 = vmatpush1.msra.mxu0 0.0
  %893 = vmatprep.subr.mxu0 0.0
  %894 = vmatpush1.msra.mxu0 0.0
  %895 = vmatprep.subr.mxu0 0.0
  %896 = vmatpush1.msra.mxu0 0.0
  %897 = vmatprep.subr.mxu0 0.0
  %898 = vmatpush1.msra.mxu0 0.0
  %899 = vmatprep.subr.mxu0 0.0
  %900 = vmatpush1.msra.mxu0 0.0
  %901 = vmatprep.subr.mxu0 0.0
  %902 = vmatpush1.msra.mxu0 0.0
  %903 = vmatprep.subr.mxu0 0.0
  %904 = vmatpush1.msra.mxu0 0.0
  %905 = vmatprep.subr.mxu0 0.0
  %906 = vmatpush1.msra.mxu0 0.0
  %907 = vmatprep.subr.mxu0 0.0
  %908 = vmatpush1.msra.mxu0 0.0
  %909 = vmatprep.subr.mxu0 0.0
  %910 = vmatpush1.msra.mxu0 0.0
  %911 = vmatprep.subr.mxu0 0.0
  %912 = vmatpush1.msra.mxu0 0.0
  %913 = vmatprep.subr.mxu0 0.0
  %914 = vmatpush1.msra.mxu0 %v68
  %915 = vmatprep.subr.mxu0 0.0
  %916 = vmatpush1.msra.mxu0 %v67
  %917 = vmatprep.subr.mxu0 0.0
  %918 = vmatpush1.msra.mxu0 %v66
  %919 = vmatprep.subr.mxu0 0.0
  %920 = vmatpush1.msra.mxu0 %v65
  %921 = vmatprep.subr.mxu0 0.0
  %922 = vmatpush2.msra.mxu0 0.0
  %923 = vmatprep.subr.mxu0 0.0
  %924 = vmatpush2.msra.mxu0 0.0
  %925 = vmatprep.subr.mxu0 0.0
  %926 = vmatpush2.msra.mxu0 0.0
  %927 = vmatprep.subr.mxu0 0.0
  %928 = vmatpush2.msra.mxu0 0.0
  %929 = vmatprep.subr.mxu0 0.0
  %930 = vmatpush2.msra.mxu0 0.0
  %931 = vmatprep.subr.mxu0 0.0
  %932 = vmatpush2.msra.mxu0 0.0
  %933 = vmatprep.subr.mxu0 0.0
  %934 = vmatpush2.msra.mxu0 0.0
  %935 = vmatprep.subr.mxu0 0.0
  %936 = vmatpush2.msra.mxu0 0.0
  %937 = vmatprep.subr.mxu0 0.0
  %938 = vmatpush2.msra.mxu0 0.0
  %939 = vmatprep.subr.mxu0 0.0
  %940 = vmatpush2.msra.mxu0 0.0
  %941 = vmatprep.subr.mxu0 0.0
  %942 = vmatpush2.msra.mxu0 0.0
  %943 = vmatprep.subr.mxu0 0.0
  %944 = vmatpush2.msra.mxu0 0.0
  %945 = vmatprep.subr.mxu0 0.0
  %946 = vmatpush2.msra.mxu0 0.0
  %947 = vmatprep.subr.mxu0 0.0
  %948 = vmatpush2.msra.mxu0 0.0
  %949 = vmatprep.subr.mxu0 0.0
  %950 = vmatpush2.msra.mxu0 0.0
  %951 = vmatprep.subr.mxu0 0.0
  %952 = vmatpush2.msra.mxu0 0.0
  %953 = vmatprep.mubr.f32.mxu0 0.0
  %954 = vmatmul.mubr.f32.gmra.mxu0 %v887
  %v955 = vpop.f32.mrf.mxu0
  %v956 = vadd.f32 0.0, %v955
  %v957 = vpop.f32.mrf.mxu0
  %958 = vdwg.mxu0
  %v960 = vsel %vm106, %v886, 0
  %962 = vmatprep.subr.mxu0 0.0
  %963 = vmatpush1.msra.mxu0 0.0
  %964 = vmatprep.subr.mxu0 0.0
  %965 = vmatpush1.msra.mxu0 0.0
  %966 = vmatprep.subr.mxu0 0.0
  %967 = vmatpush1.msra.mxu0 0.0
  %968 = vmatprep.subr.mxu0 0.0
  %969 = vmatpush1.msra.mxu0 0.0
  %970 = vmatprep.subr.mxu0 0.0
  %971 = vmatpush1.msra.mxu0 0.0
  %972 = vmatprep.subr.mxu0 0.0
  %973 = vmatpush1.msra.mxu0 0.0
  %974 = vmatprep.subr.mxu0 0.0
  %975 = vmatpush1.msra.mxu0 0.0
  %976 = vmatprep.subr.mxu0 0.0
  %977 = vmatpush1.msra.mxu0 0.0
  %978 = vmatprep.subr.mxu0 0.0
  %979 = vmatpush1.msra.mxu0 0.0
  %980 = vmatprep.subr.mxu0 0.0
  %981 = vmatpush1.msra.mxu0 0.0
  %982 = vmatprep.subr.mxu0 0.0
  %983 = vmatpush1.msra.mxu0 0.0
  %984 = vmatprep.subr.mxu0 0.0
  %985 = vmatpush1.msra.mxu0 0.0
  %986 = vmatprep.subr.mxu0 0.0
  %987 = vmatpush1.msra.mxu0 %v64
  %988 = vmatprep.subr.mxu0 0.0
  %989 = vmatpush1.msra.mxu0 %v63
  %990 = vmatprep.subr.mxu0 0.0
  %991 = vmatpush1.msra.mxu0 %v62
  %992 = vmatprep.subr.mxu0 0.0
  %993 = vmatpush1.msra.mxu0 %v61
  %994 = vmatprep.subr.mxu0 0.0
  %995 = vmatpush2.msra.mxu0 0.0
  %996 = vmatprep.subr.mxu0 0.0
  %997 = vmatpush2.msra.mxu0 0.0
  %998 = vmatprep.subr.mxu0 0.0
  %999 = vmatpush2.msra.mxu0 0.0
  %1000 = vmatprep.subr.mxu0 0.0
  %1001 = vmatpush2.msra.mxu0 0.0
  %1002 = vmatprep.subr.mxu0 0.0
  %1003 = vmatpush2.msra.mxu0 0.0
  %1004 = vmatprep.subr.mxu0 0.0
  %1005 = vmatpush2.msra.mxu0 0.0
  %1006 = vmatprep.subr.mxu0 0.0
  %1007 = vmatpush2.msra.mxu0 0.0
  %1008 = vmatprep.subr.mxu0 0.0
  %1009 = vmatpush2.msra.mxu0 0.0
  %1010 = vmatprep.subr.mxu0 0.0
  %1011 = vmatpush2.msra.mxu0 0.0
  %1012 = vmatprep.subr.mxu0 0.0
  %1013 = vmatpush2.msra.mxu0 0.0
  %1014 = vmatprep.subr.mxu0 0.0
  %1015 = vmatpush2.msra.mxu0 0.0
  %1016 = vmatprep.subr.mxu0 0.0
  %1017 = vmatpush2.msra.mxu0 0.0
  %1018 = vmatprep.subr.mxu0 0.0
  %1019 = vmatpush2.msra.mxu0 0.0
  %1020 = vmatprep.subr.mxu0 0.0
  %1021 = vmatpush2.msra.mxu0 0.0
  %1022 = vmatprep.subr.mxu0 0.0
  %1023 = vmatpush2.msra.mxu0 0.0
  %1024 = vmatprep.subr.mxu0 0.0
  %1025 = vmatpush2.msra.mxu0 0.0
  %1026 = vmatprep.mubr.f32.mxu0 0.0
  %1027 = vmatmul.mubr.f32.gmra.mxu0 %v960
  %v1028 = vpop.f32.mrf.mxu0
  %v1029 = vadd.f32 %v956, %v1028
  %v1030 = vpop.f32.mrf.mxu0
  %1031 = vdwg.mxu0
  %v1032 = vadd.f32 %v1029, %v257
  %v1033 = vmul.f32 %v1032, 0.5
  %v1034 = vtanh.pop %v1033
  %v1035 = vadd.f32 %v1034, 1.0
  %v1036 = vmul.f32 %v1035, 0.5
  %v1037 = vtanh.pop %v1032
  %v1038 = vmul.f32 %v1036, %v670
  %1040 = vrot.lane.b32.xlu0 %v1037, 64
  %v1041 = vpop.permute.xlu0 %1040
  %v1043 = vmul.f32 %v1036, %v1041
  %1045 = vrot.lane.b32.xlu0 %v1043, 32
  %v1046 = vpop.permute.xlu0 %1045
  %v1048 = vadd.f32 %v1038, %v1046
  %v1049 = vtanh.pop %v1048
  %1051 = vrot.lane.b32.xlu0 %v1049, 64
  %v1052 = vpop.permute.xlu0 %1051
  %v1054 = vmul.f32 %v1036, %v1052
  %v1055 = vlaneseq
  %v1056 = vshrl.u32 %v1055, 7
  %v1057 = vsub.s32 0, %v1056
  %v1058 = vrot.slane %v1054, %v1057
  %1060 = vrot.lane.b32.xlu0 %v1058, 32
  %v1061 = vpop.permute.xlu0 %1060
  %v1063 = vmul.f32 %v87, %v1061
  %v1064 = vsel %vm295, %v1063, 0.0
  %1065 = vadd.xlane.f32.xlu0 %v1064
  %v1066 = vpop.xlane.xlu0 %1065
  %v1067 = vlaneseq
  %v1068 = vshrl.u32 %v1067, 7
  %v1069 = vsub.s32 1, %v1068
  %v1070 = vrot.slane %v1054, %v1069
  %1072 = vrot.lane.b32.xlu0 %v1070, 32
  %v1073 = vpop.permute.xlu0 %1072
  %v1075 = vmul.f32 %v89, %v1073
  %v1076 = vsel %vm295, %v1075, 0.0
  %1077 = vadd.xlane.f32.xlu0 %v1076
  %v1078 = vpop.xlane.xlu0 %1077
  %v1079 = vsel %vm311, %v1066, %v1078
  %v1080 = vsel %vm313, %v1079, -inf
  %v1081 = vrot.slane %v1080, 4
  %v1082 = vmax.f32 %v1080, %v1081
  %v1083 = vrot.slane %v1082, 2
  %v1084 = vmax.f32 %v1082, %v1083
  %v1085 = vrot.slane %v1084, 1
  %v1086 = vmax.f32 %v1084, %v1085
  %v1087 = vsub.f32 %v1079, %v1086
  %v1088 = vmul.f32 %v1087, 1.442695
  %v1089 = vpow.pop %v1088
  %v1090 = vsel %vm313, %v1089, 0.0
  %v1091 = vrot.slane %v1090, 4
  %v1092 = vadd.f32 %v1090, %v1091
  %v1093 = vrot.slane %v1092, 2
  %v1094 = vadd.f32 %v1092, %v1093
  %v1095 = vrot.slane %v1094, 1
  %v1096 = vadd.f32 %v1094, %v1095
  %v1097 = vrcp.pop %v1096
  %v1098 = vmul.f32 %v1089, %v1097
  %v1100 = vsel %vm333, %v1098, 0
  %1102 = vmatprep.subr.mxu0 0.0
  %1103 = vmatpush1.msra.mxu0 0.0
  %1104 = vmatprep.subr.mxu0 0.0
  %1105 = vmatpush1.msra.mxu0 0.0
  %1106 = vmatprep.subr.mxu0 0.0
  %1107 = vmatpush1.msra.mxu0 0.0
  %1108 = vmatprep.subr.mxu0 0.0
  %1109 = vmatpush1.msra.mxu0 0.0
  %1110 = vmatprep.subr.mxu0 0.0
  %1111 = vmatpush1.msra.mxu0 0.0
  %1112 = vmatprep.subr.mxu0 0.0
  %1113 = vmatpush1.msra.mxu0 0.0
  %1114 = vmatprep.subr.mxu0 0.0
  %1115 = vmatpush1.msra.mxu0 0.0
  %1116 = vmatprep.subr.mxu0 0.0
  %1117 = vmatpush1.msra.mxu0 0.0
  %1118 = vmatprep.subr.mxu0 0.0
  %1119 = vmatpush1.msra.mxu0 0.0
  %1120 = vmatprep.subr.mxu0 0.0
  %1121 = vmatpush1.msra.mxu0 0.0
  %1122 = vmatprep.subr.mxu0 0.0
  %1123 = vmatpush1.msra.mxu0 0.0
  %1124 = vmatprep.subr.mxu0 0.0
  %1125 = vmatpush1.msra.mxu0 0.0
  %1126 = vmatprep.subr.mxu0 0.0
  %1127 = vmatpush1.msra.mxu0 0.0
  %1128 = vmatprep.subr.mxu0 0.0
  %1129 = vmatpush1.msra.mxu0 0.0
  %1130 = vmatprep.subr.mxu0 0.0
  %1131 = vmatpush1.msra.mxu0 0.0
  %1132 = vmatprep.subr.mxu0 0.0
  %1133 = vmatpush1.msra.mxu0 %v339
  %1134 = vmatprep.subr.mxu0 0.0
  %1135 = vmatpush2.msra.mxu0 0.0
  %1136 = vmatprep.subr.mxu0 0.0
  %1137 = vmatpush2.msra.mxu0 0.0
  %1138 = vmatprep.subr.mxu0 0.0
  %1139 = vmatpush2.msra.mxu0 0.0
  %1140 = vmatprep.subr.mxu0 0.0
  %1141 = vmatpush2.msra.mxu0 0.0
  %1142 = vmatprep.subr.mxu0 0.0
  %1143 = vmatpush2.msra.mxu0 0.0
  %1144 = vmatprep.subr.mxu0 0.0
  %1145 = vmatpush2.msra.mxu0 0.0
  %1146 = vmatprep.subr.mxu0 0.0
  %1147 = vmatpush2.msra.mxu0 0.0
  %1148 = vmatprep.subr.mxu0 0.0
  %1149 = vmatpush2.msra.mxu0 0.0
  %1150 = vmatprep.subr.mxu0 0.0
  %1151 = vmatpush2.msra.mxu0 0.0
  %1152 = vmatprep.subr.mxu0 0.0
  %1153 = vmatpush2.msra.mxu0 0.0
  %1154 = vmatprep.subr.mxu0 0.0
  %1155 = vmatpush2.msra.mxu0 0.0
  %1156 = vmatprep.subr.mxu0 0.0
  %1157 = vmatpush2.msra.mxu0 0.0
  %1158 = vmatprep.subr.mxu0 0.0
  %1159 = vmatpush2.msra.mxu0 0.0
  %1160 = vmatprep.subr.mxu0 0.0
  %1161 = vmatpush2.msra.mxu0 0.0
  %1162 = vmatprep.subr.mxu0 0.0
  %1163 = vmatpush2.msra.mxu0 0.0
  %1164 = vmatprep.subr.mxu0 0.0
  %1165 = vmatpush2.msra.mxu0 0.0
  %1166 = vmatprep.mubr.f32.mxu0 0.0
  %1167 = vmatmul.mubr.f32.gmra.mxu0 %v1100
  %v1168 = vpop.f32.mrf.mxu0
  %v1169 = vadd.f32 0.0, %v1168
  %v1170 = vpop.f32.mrf.mxu0
  %1171 = vdwg.mxu0
  %v1172 = vmul.f32 %v93, %v1169
  %v1173 = vsel %vm412, %v1172, 0.0
  %v1174 = vrot.slane %v1173, 4
  %v1175 = vadd.f32 %v1173, %v1174
  %v1176 = vrot.slane %v1175, 2
  %v1177 = vadd.f32 %v1175, %v1176
  %v1178 = vrot.slane %v1177, 1
  %v1179 = vadd.f32 %v1177, %v1178
  %v1180 = vmul.f32 %v95, %v1179
  %v1182 = vsel %vm421, %v1180, 0
  %1184 = vmatprep.subr.mxu0 0.0
  %1185 = vmatpush1.msra.mxu0 0.0
  %1186 = vmatprep.subr.mxu0 0.0
  %1187 = vmatpush1.msra.mxu0 0.0
  %1188 = vmatprep.subr.mxu0 0.0
  %1189 = vmatpush1.msra.mxu0 0.0
  %1190 = vmatprep.subr.mxu0 0.0
  %1191 = vmatpush1.msra.mxu0 0.0
  %1192 = vmatprep.subr.mxu0 0.0
  %1193 = vmatpush1.msra.mxu0 0.0
  %1194 = vmatprep.subr.mxu0 0.0
  %1195 = vmatpush1.msra.mxu0 0.0
  %1196 = vmatprep.subr.mxu0 0.0
  %1197 = vmatpush1.msra.mxu0 0.0
  %1198 = vmatprep.subr.mxu0 0.0
  %1199 = vmatpush1.msra.mxu0 0.0
  %1200 = vmatprep.subr.mxu0 0.0
  %1201 = vmatpush1.msra.mxu0 0.0
  %1202 = vmatprep.subr.mxu0 0.0
  %1203 = vmatpush1.msra.mxu0 0.0
  %1204 = vmatprep.subr.mxu0 0.0
  %1205 = vmatpush1.msra.mxu0 0.0
  %1206 = vmatprep.subr.mxu0 0.0
  %1207 = vmatpush1.msra.mxu0 0.0
  %1208 = vmatprep.subr.mxu0 0.0
  %1209 = vmatpush1.msra.mxu0 0.0
  %1210 = vmatprep.subr.mxu0 0.0
  %1211 = vmatpush1.msra.mxu0 0.0
  %1212 = vmatprep.subr.mxu0 0.0
  %1213 = vmatpush1.msra.mxu0 %v426
  %1214 = vmatprep.subr.mxu0 0.0
  %1215 = vmatpush1.msra.mxu0 %v83
  %1216 = vmatprep.subr.mxu0 0.0
  %1217 = vmatpush2.msra.mxu0 0.0
  %1218 = vmatprep.subr.mxu0 0.0
  %1219 = vmatpush2.msra.mxu0 0.0
  %1220 = vmatprep.subr.mxu0 0.0
  %1221 = vmatpush2.msra.mxu0 0.0
  %1222 = vmatprep.subr.mxu0 0.0
  %1223 = vmatpush2.msra.mxu0 0.0
  %1224 = vmatprep.subr.mxu0 0.0
  %1225 = vmatpush2.msra.mxu0 0.0
  %1226 = vmatprep.subr.mxu0 0.0
  %1227 = vmatpush2.msra.mxu0 0.0
  %1228 = vmatprep.subr.mxu0 0.0
  %1229 = vmatpush2.msra.mxu0 0.0
  %1230 = vmatprep.subr.mxu0 0.0
  %1231 = vmatpush2.msra.mxu0 0.0
  %1232 = vmatprep.subr.mxu0 0.0
  %1233 = vmatpush2.msra.mxu0 0.0
  %1234 = vmatprep.subr.mxu0 0.0
  %1235 = vmatpush2.msra.mxu0 0.0
  %1236 = vmatprep.subr.mxu0 0.0
  %1237 = vmatpush2.msra.mxu0 0.0
  %1238 = vmatprep.subr.mxu0 0.0
  %1239 = vmatpush2.msra.mxu0 0.0
  %1240 = vmatprep.subr.mxu0 0.0
  %1241 = vmatpush2.msra.mxu0 0.0
  %1242 = vmatprep.subr.mxu0 0.0
  %1243 = vmatpush2.msra.mxu0 0.0
  %1244 = vmatprep.subr.mxu0 0.0
  %1245 = vmatpush2.msra.mxu0 0.0
  %1246 = vmatprep.subr.mxu0 0.0
  %1247 = vmatpush2.msra.mxu0 0.0
  %1248 = vmatprep.mubr.f32.mxu0 0.0
  %1249 = vmatmul.mubr.f32.gmra.mxu0 %v1182
  %v1250 = vpop.f32.mrf.mxu0
  %v1251 = vadd.f32 0.0, %v1250
  %v1252 = vpop.f32.mrf.mxu0
  %1253 = vdwg.mxu0
  %1255 = vrot.lane.b32.xlu0 %v1054, 32
  %v1256 = vpop.permute.xlu0 %1255
  %1259 = vrot.lane.b32.xlu0 %v1251, 32
  %v1260 = vpop.permute.xlu0 %1259
  %v1262 = vsel %vm106, %v1256, %v1260
  %s1263 = scalar_lea.vmem %s0, 6
  %v1264 = vld [vmem:[%s1263] sm:$0x3]
  %v1265 = vsel %vm106, %v1256, 0
  %1267 = vmatprep.subr.mxu0 0.0
  %1268 = vmatpush1.msra.mxu0 0.0
  %1269 = vmatprep.subr.mxu0 0.0
  %1270 = vmatpush1.msra.mxu0 0.0
  %1271 = vmatprep.subr.mxu0 0.0
  %1272 = vmatpush1.msra.mxu0 0.0
  %1273 = vmatprep.subr.mxu0 0.0
  %1274 = vmatpush1.msra.mxu0 0.0
  %1275 = vmatprep.subr.mxu0 0.0
  %1276 = vmatpush1.msra.mxu0 0.0
  %1277 = vmatprep.subr.mxu0 0.0
  %1278 = vmatpush1.msra.mxu0 0.0
  %1279 = vmatprep.subr.mxu0 0.0
  %1280 = vmatpush1.msra.mxu0 0.0
  %1281 = vmatprep.subr.mxu0 0.0
  %1282 = vmatpush1.msra.mxu0 0.0
  %1283 = vmatprep.subr.mxu0 0.0
  %1284 = vmatpush1.msra.mxu0 0.0
  %1285 = vmatprep.subr.mxu0 0.0
  %1286 = vmatpush1.msra.mxu0 0.0
  %1287 = vmatprep.subr.mxu0 0.0
  %1288 = vmatpush1.msra.mxu0 0.0
  %1289 = vmatprep.subr.mxu0 0.0
  %1290 = vmatpush1.msra.mxu0 0.0
  %1291 = vmatprep.subr.mxu0 0.0
  %1292 = vmatpush1.msra.mxu0 %v68
  %1293 = vmatprep.subr.mxu0 0.0
  %1294 = vmatpush1.msra.mxu0 %v67
  %1295 = vmatprep.subr.mxu0 0.0
  %1296 = vmatpush1.msra.mxu0 %v66
  %1297 = vmatprep.subr.mxu0 0.0
  %1298 = vmatpush1.msra.mxu0 %v65
  %1299 = vmatprep.subr.mxu0 0.0
  %1300 = vmatpush2.msra.mxu0 0.0
  %1301 = vmatprep.subr.mxu0 0.0
  %1302 = vmatpush2.msra.mxu0 0.0
  %1303 = vmatprep.subr.mxu0 0.0
  %1304 = vmatpush2.msra.mxu0 0.0
  %1305 = vmatprep.subr.mxu0 0.0
  %1306 = vmatpush2.msra.mxu0 0.0
  %1307 = vmatprep.subr.mxu0 0.0
  %1308 = vmatpush2.msra.mxu0 0.0
  %1309 = vmatprep.subr.mxu0 0.0
  %1310 = vmatpush2.msra.mxu0 0.0
  %1311 = vmatprep.subr.mxu0 0.0
  %1312 = vmatpush2.msra.mxu0 0.0
  %1313 = vmatprep.subr.mxu0 0.0
  %1314 = vmatpush2.msra.mxu0 0.0
  %1315 = vmatprep.subr.mxu0 0.0
  %1316 = vmatpush2.msra.mxu0 0.0
  %1317 = vmatprep.subr.mxu0 0.0
  %1318 = vmatpush2.msra.mxu0 0.0
  %1319 = vmatprep.subr.mxu0 0.0
  %1320 = vmatpush2.msra.mxu0 0.0
  %1321 = vmatprep.subr.mxu0 0.0
  %1322 = vmatpush2.msra.mxu0 0.0
  %1323 = vmatprep.subr.mxu0 0.0
  %1324 = vmatpush2.msra.mxu0 0.0
  %1325 = vmatprep.subr.mxu0 0.0
  %1326 = vmatpush2.msra.mxu0 0.0
  %1327 = vmatprep.subr.mxu0 0.0
  %1328 = vmatpush2.msra.mxu0 0.0
  %1329 = vmatprep.subr.mxu0 0.0
  %1330 = vmatpush2.msra.mxu0 0.0
  %1331 = vmatprep.mubr.f32.mxu0 0.0
  %1332 = vmatmul.mubr.f32.gmra.mxu0 %v1265
  %v1333 = vpop.f32.mrf.mxu0
  %v1334 = vadd.f32 0.0, %v1333
  %v1335 = vpop.f32.mrf.mxu0
  %1336 = vdwg.mxu0
  %v1338 = vsel %vm106, %v1264, 0
  %1340 = vmatprep.subr.mxu0 0.0
  %1341 = vmatpush1.msra.mxu0 0.0
  %1342 = vmatprep.subr.mxu0 0.0
  %1343 = vmatpush1.msra.mxu0 0.0
  %1344 = vmatprep.subr.mxu0 0.0
  %1345 = vmatpush1.msra.mxu0 0.0
  %1346 = vmatprep.subr.mxu0 0.0
  %1347 = vmatpush1.msra.mxu0 0.0
  %1348 = vmatprep.subr.mxu0 0.0
  %1349 = vmatpush1.msra.mxu0 0.0
  %1350 = vmatprep.subr.mxu0 0.0
  %1351 = vmatpush1.msra.mxu0 0.0
  %1352 = vmatprep.subr.mxu0 0.0
  %1353 = vmatpush1.msra.mxu0 0.0
  %1354 = vmatprep.subr.mxu0 0.0
  %1355 = vmatpush1.msra.mxu0 0.0
  %1356 = vmatprep.subr.mxu0 0.0
  %1357 = vmatpush1.msra.mxu0 0.0
  %1358 = vmatprep.subr.mxu0 0.0
  %1359 = vmatpush1.msra.mxu0 0.0
  %1360 = vmatprep.subr.mxu0 0.0
  %1361 = vmatpush1.msra.mxu0 0.0
  %1362 = vmatprep.subr.mxu0 0.0
  %1363 = vmatpush1.msra.mxu0 0.0
  %1364 = vmatprep.subr.mxu0 0.0
  %1365 = vmatpush1.msra.mxu0 %v64
  %1366 = vmatprep.subr.mxu0 0.0
  %1367 = vmatpush1.msra.mxu0 %v63
  %1368 = vmatprep.subr.mxu0 0.0
  %1369 = vmatpush1.msra.mxu0 %v62
  %1370 = vmatprep.subr.mxu0 0.0
  %1371 = vmatpush1.msra.mxu0 %v61
  %1372 = vmatprep.subr.mxu0 0.0
  %1373 = vmatpush2.msra.mxu0 0.0
  %1374 = vmatprep.subr.mxu0 0.0
  %1375 = vmatpush2.msra.mxu0 0.0
  %1376 = vmatprep.subr.mxu0 0.0
  %1377 = vmatpush2.msra.mxu0 0.0
  %1378 = vmatprep.subr.mxu0 0.0
  %1379 = vmatpush2.msra.mxu0 0.0
  %1380 = vmatprep.subr.mxu0 0.0
  %1381 = vmatpush2.msra.mxu0 0.0
  %1382 = vmatprep.subr.mxu0 0.0
  %1383 = vmatpush2.msra.mxu0 0.0
  %1384 = vmatprep.subr.mxu0 0.0
  %1385 = vmatpush2.msra.mxu0 0.0
  %1386 = vmatprep.subr.mxu0 0.0
  %1387 = vmatpush2.msra.mxu0 0.0
  %1388 = vmatprep.subr.mxu0 0.0
  %1389 = vmatpush2.msra.mxu0 0.0
  %1390 = vmatprep.subr.mxu0 0.0
  %1391 = vmatpush2.msra.mxu0 0.0
  %1392 = vmatprep.subr.mxu0 0.0
  %1393 = vmatpush2.msra.mxu0 0.0
  %1394 = vmatprep.subr.mxu0 0.0
  %1395 = vmatpush2.msra.mxu0 0.0
  %1396 = vmatprep.subr.mxu0 0.0
  %1397 = vmatpush2.msra.mxu0 0.0
  %1398 = vmatprep.subr.mxu0 0.0
  %1399 = vmatpush2.msra.mxu0 0.0
  %1400 = vmatprep.subr.mxu0 0.0
  %1401 = vmatpush2.msra.mxu0 0.0
  %1402 = vmatprep.subr.mxu0 0.0
  %1403 = vmatpush2.msra.mxu0 0.0
  %1404 = vmatprep.mubr.f32.mxu0 0.0
  %1405 = vmatmul.mubr.f32.gmra.mxu0 %v1338
  %v1406 = vpop.f32.mrf.mxu0
  %v1407 = vadd.f32 %v1334, %v1406
  %v1408 = vpop.f32.mrf.mxu0
  %1409 = vdwg.mxu0
  %v1410 = vadd.f32 %v1407, %v257
  %v1411 = vmul.f32 %v1410, 0.5
  %v1412 = vtanh.pop %v1411
  %v1413 = vadd.f32 %v1412, 1.0
  %v1414 = vmul.f32 %v1413, 0.5
  %v1415 = vtanh.pop %v1410
  %v1416 = vmul.f32 %v1414, %v1048
  %1418 = vrot.lane.b32.xlu0 %v1415, 64
  %v1419 = vpop.permute.xlu0 %1418
  %v1421 = vmul.f32 %v1414, %v1419
  %1423 = vrot.lane.b32.xlu0 %v1421, 32
  %v1424 = vpop.permute.xlu0 %1423
  %v1426 = vadd.f32 %v1416, %v1424
  %v1427 = vtanh.pop %v1426
  %1429 = vrot.lane.b32.xlu0 %v1427, 64
  %v1430 = vpop.permute.xlu0 %1429
  %v1432 = vmul.f32 %v1414, %v1430
  %v1433 = vlaneseq
  %v1434 = vshrl.u32 %v1433, 7
  %v1435 = vsub.s32 0, %v1434
  %v1436 = vrot.slane %v1432, %v1435
  %1438 = vrot.lane.b32.xlu0 %v1436, 32
  %v1439 = vpop.permute.xlu0 %1438
  %v1441 = vmul.f32 %v87, %v1439
  %v1442 = vsel %vm295, %v1441, 0.0
  %1443 = vadd.xlane.f32.xlu0 %v1442
  %v1444 = vpop.xlane.xlu0 %1443
  %v1445 = vlaneseq
  %v1446 = vshrl.u32 %v1445, 7
  %v1447 = vsub.s32 1, %v1446
  %v1448 = vrot.slane %v1432, %v1447
  %1450 = vrot.lane.b32.xlu0 %v1448, 32
  %v1451 = vpop.permute.xlu0 %1450
  %v1453 = vmul.f32 %v89, %v1451
  %v1454 = vsel %vm295, %v1453, 0.0
  %1455 = vadd.xlane.f32.xlu0 %v1454
  %v1456 = vpop.xlane.xlu0 %1455
  %v1457 = vsel %vm311, %v1444, %v1456
  %v1458 = vsel %vm313, %v1457, -inf
  %v1459 = vrot.slane %v1458, 4
  %v1460 = vmax.f32 %v1458, %v1459
  %v1461 = vrot.slane %v1460, 2
  %v1462 = vmax.f32 %v1460, %v1461
  %v1463 = vrot.slane %v1462, 1
  %v1464 = vmax.f32 %v1462, %v1463
  %v1465 = vsub.f32 %v1457, %v1464
  %v1466 = vmul.f32 %v1465, 1.442695
  %v1467 = vpow.pop %v1466
  %v1468 = vsel %vm313, %v1467, 0.0
  %v1469 = vrot.slane %v1468, 4
  %v1470 = vadd.f32 %v1468, %v1469
  %v1471 = vrot.slane %v1470, 2
  %v1472 = vadd.f32 %v1470, %v1471
  %v1473 = vrot.slane %v1472, 1
  %v1474 = vadd.f32 %v1472, %v1473
  %v1475 = vrcp.pop %v1474
  %v1476 = vmul.f32 %v1467, %v1475
  %v1478 = vsel %vm333, %v1476, 0
  %1480 = vmatprep.subr.mxu0 0.0
  %1481 = vmatpush1.msra.mxu0 0.0
  %1482 = vmatprep.subr.mxu0 0.0
  %1483 = vmatpush1.msra.mxu0 0.0
  %1484 = vmatprep.subr.mxu0 0.0
  %1485 = vmatpush1.msra.mxu0 0.0
  %1486 = vmatprep.subr.mxu0 0.0
  %1487 = vmatpush1.msra.mxu0 0.0
  %1488 = vmatprep.subr.mxu0 0.0
  %1489 = vmatpush1.msra.mxu0 0.0
  %1490 = vmatprep.subr.mxu0 0.0
  %1491 = vmatpush1.msra.mxu0 0.0
  %1492 = vmatprep.subr.mxu0 0.0
  %1493 = vmatpush1.msra.mxu0 0.0
  %1494 = vmatprep.subr.mxu0 0.0
  %1495 = vmatpush1.msra.mxu0 0.0
  %1496 = vmatprep.subr.mxu0 0.0
  %1497 = vmatpush1.msra.mxu0 0.0
  %1498 = vmatprep.subr.mxu0 0.0
  %1499 = vmatpush1.msra.mxu0 0.0
  %1500 = vmatprep.subr.mxu0 0.0
  %1501 = vmatpush1.msra.mxu0 0.0
  %1502 = vmatprep.subr.mxu0 0.0
  %1503 = vmatpush1.msra.mxu0 0.0
  %1504 = vmatprep.subr.mxu0 0.0
  %1505 = vmatpush1.msra.mxu0 0.0
  %1506 = vmatprep.subr.mxu0 0.0
  %1507 = vmatpush1.msra.mxu0 0.0
  %1508 = vmatprep.subr.mxu0 0.0
  %1509 = vmatpush1.msra.mxu0 0.0
  %1510 = vmatprep.subr.mxu0 0.0
  %1511 = vmatpush1.msra.mxu0 %v339
  %1512 = vmatprep.subr.mxu0 0.0
  %1513 = vmatpush2.msra.mxu0 0.0
  %1514 = vmatprep.subr.mxu0 0.0
  %1515 = vmatpush2.msra.mxu0 0.0
  %1516 = vmatprep.subr.mxu0 0.0
  %1517 = vmatpush2.msra.mxu0 0.0
  %1518 = vmatprep.subr.mxu0 0.0
  %1519 = vmatpush2.msra.mxu0 0.0
  %1520 = vmatprep.subr.mxu0 0.0
  %1521 = vmatpush2.msra.mxu0 0.0
  %1522 = vmatprep.subr.mxu0 0.0
  %1523 = vmatpush2.msra.mxu0 0.0
  %1524 = vmatprep.subr.mxu0 0.0
  %1525 = vmatpush2.msra.mxu0 0.0
  %1526 = vmatprep.subr.mxu0 0.0
  %1527 = vmatpush2.msra.mxu0 0.0
  %1528 = vmatprep.subr.mxu0 0.0
  %1529 = vmatpush2.msra.mxu0 0.0
  %1530 = vmatprep.subr.mxu0 0.0
  %1531 = vmatpush2.msra.mxu0 0.0
  %1532 = vmatprep.subr.mxu0 0.0
  %1533 = vmatpush2.msra.mxu0 0.0
  %1534 = vmatprep.subr.mxu0 0.0
  %1535 = vmatpush2.msra.mxu0 0.0
  %1536 = vmatprep.subr.mxu0 0.0
  %1537 = vmatpush2.msra.mxu0 0.0
  %1538 = vmatprep.subr.mxu0 0.0
  %1539 = vmatpush2.msra.mxu0 0.0
  %1540 = vmatprep.subr.mxu0 0.0
  %1541 = vmatpush2.msra.mxu0 0.0
  %1542 = vmatprep.subr.mxu0 0.0
  %1543 = vmatpush2.msra.mxu0 0.0
  %1544 = vmatprep.mubr.f32.mxu0 0.0
  %1545 = vmatmul.mubr.f32.gmra.mxu0 %v1478
  %v1546 = vpop.f32.mrf.mxu0
  %v1547 = vadd.f32 0.0, %v1546
  %v1548 = vpop.f32.mrf.mxu0
  %1549 = vdwg.mxu0
  %v1550 = vmul.f32 %v93, %v1547
  %v1551 = vsel %vm412, %v1550, 0.0
  %v1552 = vrot.slane %v1551, 4
  %v1553 = vadd.f32 %v1551, %v1552
  %v1554 = vrot.slane %v1553, 2
  %v1555 = vadd.f32 %v1553, %v1554
  %v1556 = vrot.slane %v1555, 1
  %v1557 = vadd.f32 %v1555, %v1556
  %v1558 = vmul.f32 %v95, %v1557
  %v1560 = vsel %vm421, %v1558, 0
  %1562 = vmatprep.subr.mxu0 0.0
  %1563 = vmatpush1.msra.mxu0 0.0
  %1564 = vmatprep.subr.mxu0 0.0
  %1565 = vmatpush1.msra.mxu0 0.0
  %1566 = vmatprep.subr.mxu0 0.0
  %1567 = vmatpush1.msra.mxu0 0.0
  %1568 = vmatprep.subr.mxu0 0.0
  %1569 = vmatpush1.msra.mxu0 0.0
  %1570 = vmatprep.subr.mxu0 0.0
  %1571 = vmatpush1.msra.mxu0 0.0
  %1572 = vmatprep.subr.mxu0 0.0
  %1573 = vmatpush1.msra.mxu0 0.0
  %1574 = vmatprep.subr.mxu0 0.0
  %1575 = vmatpush1.msra.mxu0 0.0
  %1576 = vmatprep.subr.mxu0 0.0
  %1577 = vmatpush1.msra.mxu0 0.0
  %1578 = vmatprep.subr.mxu0 0.0
  %1579 = vmatpush1.msra.mxu0 0.0
  %1580 = vmatprep.subr.mxu0 0.0
  %1581 = vmatpush1.msra.mxu0 0.0
  %1582 = vmatprep.subr.mxu0 0.0
  %1583 = vmatpush1.msra.mxu0 0.0
  %1584 = vmatprep.subr.mxu0 0.0
  %1585 = vmatpush1.msra.mxu0 0.0
  %1586 = vmatprep.subr.mxu0 0.0
  %1587 = vmatpush1.msra.mxu0 0.0
  %1588 = vmatprep.subr.mxu0 0.0
  %1589 = vmatpush1.msra.mxu0 0.0
  %1590 = vmatprep.subr.mxu0 0.0
  %1591 = vmatpush1.msra.mxu0 %v426
  %1592 = vmatprep.subr.mxu0 0.0
  %1593 = vmatpush1.msra.mxu0 %v83
  %1594 = vmatprep.subr.mxu0 0.0
  %1595 = vmatpush2.msra.mxu0 0.0
  %1596 = vmatprep.subr.mxu0 0.0
  %1597 = vmatpush2.msra.mxu0 0.0
  %1598 = vmatprep.subr.mxu0 0.0
  %1599 = vmatpush2.msra.mxu0 0.0
  %1600 = vmatprep.subr.mxu0 0.0
  %1601 = vmatpush2.msra.mxu0 0.0
  %1602 = vmatprep.subr.mxu0 0.0
  %1603 = vmatpush2.msra.mxu0 0.0
  %1604 = vmatprep.subr.mxu0 0.0
  %1605 = vmatpush2.msra.mxu0 0.0
  %1606 = vmatprep.subr.mxu0 0.0
  %1607 = vmatpush2.msra.mxu0 0.0
  %1608 = vmatprep.subr.mxu0 0.0
  %1609 = vmatpush2.msra.mxu0 0.0
  %1610 = vmatprep.subr.mxu0 0.0
  %1611 = vmatpush2.msra.mxu0 0.0
  %1612 = vmatprep.subr.mxu0 0.0
  %1613 = vmatpush2.msra.mxu0 0.0
  %1614 = vmatprep.subr.mxu0 0.0
  %1615 = vmatpush2.msra.mxu0 0.0
  %1616 = vmatprep.subr.mxu0 0.0
  %1617 = vmatpush2.msra.mxu0 0.0
  %1618 = vmatprep.subr.mxu0 0.0
  %1619 = vmatpush2.msra.mxu0 0.0
  %1620 = vmatprep.subr.mxu0 0.0
  %1621 = vmatpush2.msra.mxu0 0.0
  %1622 = vmatprep.subr.mxu0 0.0
  %1623 = vmatpush2.msra.mxu0 0.0
  %1624 = vmatprep.subr.mxu0 0.0
  %1625 = vmatpush2.msra.mxu0 0.0
  %1626 = vmatprep.mubr.f32.mxu0 0.0
  %1627 = vmatmul.mubr.f32.gmra.mxu0 %v1560
  %v1628 = vpop.f32.mrf.mxu0
  %v1629 = vadd.f32 0.0, %v1628
  %v1630 = vpop.f32.mrf.mxu0
  %1631 = vdwg.mxu0
  %1633 = vrot.lane.b32.xlu0 %v1432, 32
  %v1634 = vpop.permute.xlu0 %1633
  %1637 = vrot.lane.b32.xlu0 %v1629, 32
  %v1638 = vpop.permute.xlu0 %1637
  %v1640 = vsel %vm106, %v1634, %v1638
  %s1641 = scalar_lea.vmem %s0, 8
  %v1642 = vld [vmem:[%s1641] sm:$0x3]
  %v1643 = vsel %vm106, %v1634, 0
  %1645 = vmatprep.subr.mxu0 0.0
  %1646 = vmatpush1.msra.mxu0 0.0
  %1647 = vmatprep.subr.mxu0 0.0
  %1648 = vmatpush1.msra.mxu0 0.0
  %1649 = vmatprep.subr.mxu0 0.0
  %1650 = vmatpush1.msra.mxu0 0.0
  %1651 = vmatprep.subr.mxu0 0.0
  %1652 = vmatpush1.msra.mxu0 0.0
  %1653 = vmatprep.subr.mxu0 0.0
  %1654 = vmatpush1.msra.mxu0 0.0
  %1655 = vmatprep.subr.mxu0 0.0
  %1656 = vmatpush1.msra.mxu0 0.0
  %1657 = vmatprep.subr.mxu0 0.0
  %1658 = vmatpush1.msra.mxu0 0.0
  %1659 = vmatprep.subr.mxu0 0.0
  %1660 = vmatpush1.msra.mxu0 0.0
  %1661 = vmatprep.subr.mxu0 0.0
  %1662 = vmatpush1.msra.mxu0 0.0
  %1663 = vmatprep.subr.mxu0 0.0
  %1664 = vmatpush1.msra.mxu0 0.0
  %1665 = vmatprep.subr.mxu0 0.0
  %1666 = vmatpush1.msra.mxu0 0.0
  %1667 = vmatprep.subr.mxu0 0.0
  %1668 = vmatpush1.msra.mxu0 0.0
  %1669 = vmatprep.subr.mxu0 0.0
  %1670 = vmatpush1.msra.mxu0 %v68
  %1671 = vmatprep.subr.mxu0 0.0
  %1672 = vmatpush1.msra.mxu0 %v67
  %1673 = vmatprep.subr.mxu0 0.0
  %1674 = vmatpush1.msra.mxu0 %v66
  %1675 = vmatprep.subr.mxu0 0.0
  %1676 = vmatpush1.msra.mxu0 %v65
  %1677 = vmatprep.subr.mxu0 0.0
  %1678 = vmatpush2.msra.mxu0 0.0
  %1679 = vmatprep.subr.mxu0 0.0
  %1680 = vmatpush2.msra.mxu0 0.0
  %1681 = vmatprep.subr.mxu0 0.0
  %1682 = vmatpush2.msra.mxu0 0.0
  %1683 = vmatprep.subr.mxu0 0.0
  %1684 = vmatpush2.msra.mxu0 0.0
  %1685 = vmatprep.subr.mxu0 0.0
  %1686 = vmatpush2.msra.mxu0 0.0
  %1687 = vmatprep.subr.mxu0 0.0
  %1688 = vmatpush2.msra.mxu0 0.0
  %1689 = vmatprep.subr.mxu0 0.0
  %1690 = vmatpush2.msra.mxu0 0.0
  %1691 = vmatprep.subr.mxu0 0.0
  %1692 = vmatpush2.msra.mxu0 0.0
  %1693 = vmatprep.subr.mxu0 0.0
  %1694 = vmatpush2.msra.mxu0 0.0
  %1695 = vmatprep.subr.mxu0 0.0
  %1696 = vmatpush2.msra.mxu0 0.0
  %1697 = vmatprep.subr.mxu0 0.0
  %1698 = vmatpush2.msra.mxu0 0.0
  %1699 = vmatprep.subr.mxu0 0.0
  %1700 = vmatpush2.msra.mxu0 0.0
  %1701 = vmatprep.subr.mxu0 0.0
  %1702 = vmatpush2.msra.mxu0 0.0
  %1703 = vmatprep.subr.mxu0 0.0
  %1704 = vmatpush2.msra.mxu0 0.0
  %1705 = vmatprep.subr.mxu0 0.0
  %1706 = vmatpush2.msra.mxu0 0.0
  %1707 = vmatprep.subr.mxu0 0.0
  %1708 = vmatpush2.msra.mxu0 0.0
  %1709 = vmatprep.mubr.f32.mxu0 0.0
  %1710 = vmatmul.mubr.f32.gmra.mxu0 %v1643
  %v1711 = vpop.f32.mrf.mxu0
  %v1712 = vadd.f32 0.0, %v1711
  %v1713 = vpop.f32.mrf.mxu0
  %1714 = vdwg.mxu0
  %v1716 = vsel %vm106, %v1642, 0
  %1718 = vmatprep.subr.mxu0 0.0
  %1719 = vmatpush1.msra.mxu0 0.0
  %1720 = vmatprep.subr.mxu0 0.0
  %1721 = vmatpush1.msra.mxu0 0.0
  %1722 = vmatprep.subr.mxu0 0.0
  %1723 = vmatpush1.msra.mxu0 0.0
  %1724 = vmatprep.subr.mxu0 0.0
  %1725 = vmatpush1.msra.mxu0 0.0
  %1726 = vmatprep.subr.mxu0 0.0
  %1727 = vmatpush1.msra.mxu0 0.0
  %1728 = vmatprep.subr.mxu0 0.0
  %1729 = vmatpush1.msra.mxu0 0.0
  %1730 = vmatprep.subr.mxu0 0.0
  %1731 = vmatpush1.msra.mxu0 0.0
  %1732 = vmatprep.subr.mxu0 0.0
  %1733 = vmatpush1.msra.mxu0 0.0
  %1734 = vmatprep.subr.mxu0 0.0
  %1735 = vmatpush1.msra.mxu0 0.0
  %1736 = vmatprep.subr.mxu0 0.0
  %1737 = vmatpush1.msra.mxu0 0.0
  %1738 = vmatprep.subr.mxu0 0.0
  %1739 = vmatpush1.msra.mxu0 0.0
  %1740 = vmatprep.subr.mxu0 0.0
  %1741 = vmatpush1.msra.mxu0 0.0
  %1742 = vmatprep.subr.mxu0 0.0
  %1743 = vmatpush1.msra.mxu0 %v64
  %1744 = vmatprep.subr.mxu0 0.0
  %1745 = vmatpush1.msra.mxu0 %v63
  %1746 = vmatprep.subr.mxu0 0.0
  %1747 = vmatpush1.msra.mxu0 %v62
  %1748 = vmatprep.subr.mxu0 0.0
  %1749 = vmatpush1.msra.mxu0 %v61
  %1750 = vmatprep.subr.mxu0 0.0
  %1751 = vmatpush2.msra.mxu0 0.0
  %1752 = vmatprep.subr.mxu0 0.0
  %1753 = vmatpush2.msra.mxu0 0.0
  %1754 = vmatprep.subr.mxu0 0.0
  %1755 = vmatpush2.msra.mxu0 0.0
  %1756 = vmatprep.subr.mxu0 0.0
  %1757 = vmatpush2.msra.mxu0 0.0
  %1758 = vmatprep.subr.mxu0 0.0
  %1759 = vmatpush2.msra.mxu0 0.0
  %1760 = vmatprep.subr.mxu0 0.0
  %1761 = vmatpush2.msra.mxu0 0.0
  %1762 = vmatprep.subr.mxu0 0.0
  %1763 = vmatpush2.msra.mxu0 0.0
  %1764 = vmatprep.subr.mxu0 0.0
  %1765 = vmatpush2.msra.mxu0 0.0
  %1766 = vmatprep.subr.mxu0 0.0
  %1767 = vmatpush2.msra.mxu0 0.0
  %1768 = vmatprep.subr.mxu0 0.0
  %1769 = vmatpush2.msra.mxu0 0.0
  %1770 = vmatprep.subr.mxu0 0.0
  %1771 = vmatpush2.msra.mxu0 0.0
  %1772 = vmatprep.subr.mxu0 0.0
  %1773 = vmatpush2.msra.mxu0 0.0
  %1774 = vmatprep.subr.mxu0 0.0
  %1775 = vmatpush2.msra.mxu0 0.0
  %1776 = vmatprep.subr.mxu0 0.0
  %1777 = vmatpush2.msra.mxu0 0.0
  %1778 = vmatprep.subr.mxu0 0.0
  %1779 = vmatpush2.msra.mxu0 0.0
  %1780 = vmatprep.subr.mxu0 0.0
  %1781 = vmatpush2.msra.mxu0 0.0
  %1782 = vmatprep.mubr.f32.mxu0 0.0
  %1783 = vmatmul.mubr.f32.gmra.mxu0 %v1716
  %v1784 = vpop.f32.mrf.mxu0
  %v1785 = vadd.f32 %v1712, %v1784
  %v1786 = vpop.f32.mrf.mxu0
  %1787 = vdwg.mxu0
  %v1788 = vadd.f32 %v1785, %v257
  %v1789 = vmul.f32 %v1788, 0.5
  %v1790 = vtanh.pop %v1789
  %v1791 = vadd.f32 %v1790, 1.0
  %v1792 = vmul.f32 %v1791, 0.5
  %v1793 = vtanh.pop %v1788
  %v1794 = vmul.f32 %v1792, %v1426
  %1796 = vrot.lane.b32.xlu0 %v1793, 64
  %v1797 = vpop.permute.xlu0 %1796
  %v1799 = vmul.f32 %v1792, %v1797
  %1801 = vrot.lane.b32.xlu0 %v1799, 32
  %v1802 = vpop.permute.xlu0 %1801
  %v1804 = vadd.f32 %v1794, %v1802
  %v1805 = vtanh.pop %v1804
  %1807 = vrot.lane.b32.xlu0 %v1805, 64
  %v1808 = vpop.permute.xlu0 %1807
  %v1810 = vmul.f32 %v1792, %v1808
  %v1811 = vlaneseq
  %v1812 = vshrl.u32 %v1811, 7
  %v1813 = vsub.s32 0, %v1812
  %v1814 = vrot.slane %v1810, %v1813
  %1816 = vrot.lane.b32.xlu0 %v1814, 32
  %v1817 = vpop.permute.xlu0 %1816
  %v1819 = vmul.f32 %v87, %v1817
  %v1820 = vsel %vm295, %v1819, 0.0
  %1821 = vadd.xlane.f32.xlu0 %v1820
  %v1822 = vpop.xlane.xlu0 %1821
  %v1823 = vlaneseq
  %v1824 = vshrl.u32 %v1823, 7
  %v1825 = vsub.s32 1, %v1824
  %v1826 = vrot.slane %v1810, %v1825
  %1828 = vrot.lane.b32.xlu0 %v1826, 32
  %v1829 = vpop.permute.xlu0 %1828
  %v1831 = vmul.f32 %v89, %v1829
  %v1832 = vsel %vm295, %v1831, 0.0
  %1833 = vadd.xlane.f32.xlu0 %v1832
  %v1834 = vpop.xlane.xlu0 %1833
  %v1835 = vsel %vm311, %v1822, %v1834
  %v1836 = vsel %vm313, %v1835, -inf
  %v1837 = vrot.slane %v1836, 4
  %v1838 = vmax.f32 %v1836, %v1837
  %v1839 = vrot.slane %v1838, 2
  %v1840 = vmax.f32 %v1838, %v1839
  %v1841 = vrot.slane %v1840, 1
  %v1842 = vmax.f32 %v1840, %v1841
  %v1843 = vsub.f32 %v1835, %v1842
  %v1844 = vmul.f32 %v1843, 1.442695
  %v1845 = vpow.pop %v1844
  %v1846 = vsel %vm313, %v1845, 0.0
  %v1847 = vrot.slane %v1846, 4
  %v1848 = vadd.f32 %v1846, %v1847
  %v1849 = vrot.slane %v1848, 2
  %v1850 = vadd.f32 %v1848, %v1849
  %v1851 = vrot.slane %v1850, 1
  %v1852 = vadd.f32 %v1850, %v1851
  %v1853 = vrcp.pop %v1852
  %v1854 = vmul.f32 %v1845, %v1853
  %v1856 = vsel %vm333, %v1854, 0
  %1858 = vmatprep.subr.mxu0 0.0
  %1859 = vmatpush1.msra.mxu0 0.0
  %1860 = vmatprep.subr.mxu0 0.0
  %1861 = vmatpush1.msra.mxu0 0.0
  %1862 = vmatprep.subr.mxu0 0.0
  %1863 = vmatpush1.msra.mxu0 0.0
  %1864 = vmatprep.subr.mxu0 0.0
  %1865 = vmatpush1.msra.mxu0 0.0
  %1866 = vmatprep.subr.mxu0 0.0
  %1867 = vmatpush1.msra.mxu0 0.0
  %1868 = vmatprep.subr.mxu0 0.0
  %1869 = vmatpush1.msra.mxu0 0.0
  %1870 = vmatprep.subr.mxu0 0.0
  %1871 = vmatpush1.msra.mxu0 0.0
  %1872 = vmatprep.subr.mxu0 0.0
  %1873 = vmatpush1.msra.mxu0 0.0
  %1874 = vmatprep.subr.mxu0 0.0
  %1875 = vmatpush1.msra.mxu0 0.0
  %1876 = vmatprep.subr.mxu0 0.0
  %1877 = vmatpush1.msra.mxu0 0.0
  %1878 = vmatprep.subr.mxu0 0.0
  %1879 = vmatpush1.msra.mxu0 0.0
  %1880 = vmatprep.subr.mxu0 0.0
  %1881 = vmatpush1.msra.mxu0 0.0
  %1882 = vmatprep.subr.mxu0 0.0
  %1883 = vmatpush1.msra.mxu0 0.0
  %1884 = vmatprep.subr.mxu0 0.0
  %1885 = vmatpush1.msra.mxu0 0.0
  %1886 = vmatprep.subr.mxu0 0.0
  %1887 = vmatpush1.msra.mxu0 0.0
  %1888 = vmatprep.subr.mxu0 0.0
  %1889 = vmatpush1.msra.mxu0 %v339
  %1890 = vmatprep.subr.mxu0 0.0
  %1891 = vmatpush2.msra.mxu0 0.0
  %1892 = vmatprep.subr.mxu0 0.0
  %1893 = vmatpush2.msra.mxu0 0.0
  %1894 = vmatprep.subr.mxu0 0.0
  %1895 = vmatpush2.msra.mxu0 0.0
  %1896 = vmatprep.subr.mxu0 0.0
  %1897 = vmatpush2.msra.mxu0 0.0
  %1898 = vmatprep.subr.mxu0 0.0
  %1899 = vmatpush2.msra.mxu0 0.0
  %1900 = vmatprep.subr.mxu0 0.0
  %1901 = vmatpush2.msra.mxu0 0.0
  %1902 = vmatprep.subr.mxu0 0.0
  %1903 = vmatpush2.msra.mxu0 0.0
  %1904 = vmatprep.subr.mxu0 0.0
  %1905 = vmatpush2.msra.mxu0 0.0
  %1906 = vmatprep.subr.mxu0 0.0
  %1907 = vmatpush2.msra.mxu0 0.0
  %1908 = vmatprep.subr.mxu0 0.0
  %1909 = vmatpush2.msra.mxu0 0.0
  %1910 = vmatprep.subr.mxu0 0.0
  %1911 = vmatpush2.msra.mxu0 0.0
  %1912 = vmatprep.subr.mxu0 0.0
  %1913 = vmatpush2.msra.mxu0 0.0
  %1914 = vmatprep.subr.mxu0 0.0
  %1915 = vmatpush2.msra.mxu0 0.0
  %1916 = vmatprep.subr.mxu0 0.0
  %1917 = vmatpush2.msra.mxu0 0.0
  %1918 = vmatprep.subr.mxu0 0.0
  %1919 = vmatpush2.msra.mxu0 0.0
  %1920 = vmatprep.subr.mxu0 0.0
  %1921 = vmatpush2.msra.mxu0 0.0
  %1922 = vmatprep.mubr.f32.mxu0 0.0
  %1923 = vmatmul.mubr.f32.gmra.mxu0 %v1856
  %v1924 = vpop.f32.mrf.mxu0
  %v1925 = vadd.f32 0.0, %v1924
  %v1926 = vpop.f32.mrf.mxu0
  %1927 = vdwg.mxu0
  %v1928 = vmul.f32 %v93, %v1925
  %v1929 = vsel %vm412, %v1928, 0.0
  %v1930 = vrot.slane %v1929, 4
  %v1931 = vadd.f32 %v1929, %v1930
  %v1932 = vrot.slane %v1931, 2
  %v1933 = vadd.f32 %v1931, %v1932
  %v1934 = vrot.slane %v1933, 1
  %v1935 = vadd.f32 %v1933, %v1934
  %v1936 = vmul.f32 %v95, %v1935
  %v1938 = vsel %vm421, %v1936, 0
  %1940 = vmatprep.subr.mxu0 0.0
  %1941 = vmatpush1.msra.mxu0 0.0
  %1942 = vmatprep.subr.mxu0 0.0
  %1943 = vmatpush1.msra.mxu0 0.0
  %1944 = vmatprep.subr.mxu0 0.0
  %1945 = vmatpush1.msra.mxu0 0.0
  %1946 = vmatprep.subr.mxu0 0.0
  %1947 = vmatpush1.msra.mxu0 0.0
  %1948 = vmatprep.subr.mxu0 0.0
  %1949 = vmatpush1.msra.mxu0 0.0
  %1950 = vmatprep.subr.mxu0 0.0
  %1951 = vmatpush1.msra.mxu0 0.0
  %1952 = vmatprep.subr.mxu0 0.0
  %1953 = vmatpush1.msra.mxu0 0.0
  %1954 = vmatprep.subr.mxu0 0.0
  %1955 = vmatpush1.msra.mxu0 0.0
  %1956 = vmatprep.subr.mxu0 0.0
  %1957 = vmatpush1.msra.mxu0 0.0
  %1958 = vmatprep.subr.mxu0 0.0
  %1959 = vmatpush1.msra.mxu0 0.0
  %1960 = vmatprep.subr.mxu0 0.0
  %1961 = vmatpush1.msra.mxu0 0.0
  %1962 = vmatprep.subr.mxu0 0.0
  %1963 = vmatpush1.msra.mxu0 0.0
  %1964 = vmatprep.subr.mxu0 0.0
  %1965 = vmatpush1.msra.mxu0 0.0
  %1966 = vmatprep.subr.mxu0 0.0
  %1967 = vmatpush1.msra.mxu0 0.0
  %1968 = vmatprep.subr.mxu0 0.0
  %1969 = vmatpush1.msra.mxu0 %v426
  %1970 = vmatprep.subr.mxu0 0.0
  %1971 = vmatpush1.msra.mxu0 %v83
  %1972 = vmatprep.subr.mxu0 0.0
  %1973 = vmatpush2.msra.mxu0 0.0
  %1974 = vmatprep.subr.mxu0 0.0
  %1975 = vmatpush2.msra.mxu0 0.0
  %1976 = vmatprep.subr.mxu0 0.0
  %1977 = vmatpush2.msra.mxu0 0.0
  %1978 = vmatprep.subr.mxu0 0.0
  %1979 = vmatpush2.msra.mxu0 0.0
  %1980 = vmatprep.subr.mxu0 0.0
  %1981 = vmatpush2.msra.mxu0 0.0
  %1982 = vmatprep.subr.mxu0 0.0
  %1983 = vmatpush2.msra.mxu0 0.0
  %1984 = vmatprep.subr.mxu0 0.0
  %1985 = vmatpush2.msra.mxu0 0.0
  %1986 = vmatprep.subr.mxu0 0.0
  %1987 = vmatpush2.msra.mxu0 0.0
  %1988 = vmatprep.subr.mxu0 0.0
  %1989 = vmatpush2.msra.mxu0 0.0
  %1990 = vmatprep.subr.mxu0 0.0
  %1991 = vmatpush2.msra.mxu0 0.0
  %1992 = vmatprep.subr.mxu0 0.0
  %1993 = vmatpush2.msra.mxu0 0.0
  %1994 = vmatprep.subr.mxu0 0.0
  %1995 = vmatpush2.msra.mxu0 0.0
  %1996 = vmatprep.subr.mxu0 0.0
  %1997 = vmatpush2.msra.mxu0 0.0
  %1998 = vmatprep.subr.mxu0 0.0
  %1999 = vmatpush2.msra.mxu0 0.0
  %2000 = vmatprep.subr.mxu0 0.0
  %2001 = vmatpush2.msra.mxu0 0.0
  %2002 = vmatprep.subr.mxu0 0.0
  %2003 = vmatpush2.msra.mxu0 0.0
  %2004 = vmatprep.mubr.f32.mxu0 0.0
  %2005 = vmatmul.mubr.f32.gmra.mxu0 %v1938
  %v2006 = vpop.f32.mrf.mxu0
  %v2007 = vadd.f32 0.0, %v2006
  %v2008 = vpop.f32.mrf.mxu0
  %2009 = vdwg.mxu0
  %2011 = vrot.lane.b32.xlu0 %v1810, 32
  %v2012 = vpop.permute.xlu0 %2011
  %2015 = vrot.lane.b32.xlu0 %v2007, 32
  %v2016 = vpop.permute.xlu0 %2015
  %v2018 = vsel %vm106, %v2012, %v2016
  %s2019 = scalar_lea.vmem %s0, 10
  %v2020 = vld [vmem:[%s2019] sm:$0x3]
  %v2021 = vsel %vm106, %v2012, 0
  %2023 = vmatprep.subr.mxu0 0.0
  %2024 = vmatpush1.msra.mxu0 0.0
  %2025 = vmatprep.subr.mxu0 0.0
  %2026 = vmatpush1.msra.mxu0 0.0
  %2027 = vmatprep.subr.mxu0 0.0
  %2028 = vmatpush1.msra.mxu0 0.0
  %2029 = vmatprep.subr.mxu0 0.0
  %2030 = vmatpush1.msra.mxu0 0.0
  %2031 = vmatprep.subr.mxu0 0.0
  %2032 = vmatpush1.msra.mxu0 0.0
  %2033 = vmatprep.subr.mxu0 0.0
  %2034 = vmatpush1.msra.mxu0 0.0
  %2035 = vmatprep.subr.mxu0 0.0
  %2036 = vmatpush1.msra.mxu0 0.0
  %2037 = vmatprep.subr.mxu0 0.0
  %2038 = vmatpush1.msra.mxu0 0.0
  %2039 = vmatprep.subr.mxu0 0.0
  %2040 = vmatpush1.msra.mxu0 0.0
  %2041 = vmatprep.subr.mxu0 0.0
  %2042 = vmatpush1.msra.mxu0 0.0
  %2043 = vmatprep.subr.mxu0 0.0
  %2044 = vmatpush1.msra.mxu0 0.0
  %2045 = vmatprep.subr.mxu0 0.0
  %2046 = vmatpush1.msra.mxu0 0.0
  %2047 = vmatprep.subr.mxu0 0.0
  %2048 = vmatpush1.msra.mxu0 %v68
  %2049 = vmatprep.subr.mxu0 0.0
  %2050 = vmatpush1.msra.mxu0 %v67
  %2051 = vmatprep.subr.mxu0 0.0
  %2052 = vmatpush1.msra.mxu0 %v66
  %2053 = vmatprep.subr.mxu0 0.0
  %2054 = vmatpush1.msra.mxu0 %v65
  %2055 = vmatprep.subr.mxu0 0.0
  %2056 = vmatpush2.msra.mxu0 0.0
  %2057 = vmatprep.subr.mxu0 0.0
  %2058 = vmatpush2.msra.mxu0 0.0
  %2059 = vmatprep.subr.mxu0 0.0
  %2060 = vmatpush2.msra.mxu0 0.0
  %2061 = vmatprep.subr.mxu0 0.0
  %2062 = vmatpush2.msra.mxu0 0.0
  %2063 = vmatprep.subr.mxu0 0.0
  %2064 = vmatpush2.msra.mxu0 0.0
  %2065 = vmatprep.subr.mxu0 0.0
  %2066 = vmatpush2.msra.mxu0 0.0
  %2067 = vmatprep.subr.mxu0 0.0
  %2068 = vmatpush2.msra.mxu0 0.0
  %2069 = vmatprep.subr.mxu0 0.0
  %2070 = vmatpush2.msra.mxu0 0.0
  %2071 = vmatprep.subr.mxu0 0.0
  %2072 = vmatpush2.msra.mxu0 0.0
  %2073 = vmatprep.subr.mxu0 0.0
  %2074 = vmatpush2.msra.mxu0 0.0
  %2075 = vmatprep.subr.mxu0 0.0
  %2076 = vmatpush2.msra.mxu0 0.0
  %2077 = vmatprep.subr.mxu0 0.0
  %2078 = vmatpush2.msra.mxu0 0.0
  %2079 = vmatprep.subr.mxu0 0.0
  %2080 = vmatpush2.msra.mxu0 0.0
  %2081 = vmatprep.subr.mxu0 0.0
  %2082 = vmatpush2.msra.mxu0 0.0
  %2083 = vmatprep.subr.mxu0 0.0
  %2084 = vmatpush2.msra.mxu0 0.0
  %2085 = vmatprep.subr.mxu0 0.0
  %2086 = vmatpush2.msra.mxu0 0.0
  %2087 = vmatprep.mubr.f32.mxu0 0.0
  %2088 = vmatmul.mubr.f32.gmra.mxu0 %v2021
  %v2089 = vpop.f32.mrf.mxu0
  %v2090 = vadd.f32 0.0, %v2089
  %v2091 = vpop.f32.mrf.mxu0
  %2092 = vdwg.mxu0
  %v2094 = vsel %vm106, %v2020, 0
  %2096 = vmatprep.subr.mxu0 0.0
  %2097 = vmatpush1.msra.mxu0 0.0
  %2098 = vmatprep.subr.mxu0 0.0
  %2099 = vmatpush1.msra.mxu0 0.0
  %2100 = vmatprep.subr.mxu0 0.0
  %2101 = vmatpush1.msra.mxu0 0.0
  %2102 = vmatprep.subr.mxu0 0.0
  %2103 = vmatpush1.msra.mxu0 0.0
  %2104 = vmatprep.subr.mxu0 0.0
  %2105 = vmatpush1.msra.mxu0 0.0
  %2106 = vmatprep.subr.mxu0 0.0
  %2107 = vmatpush1.msra.mxu0 0.0
  %2108 = vmatprep.subr.mxu0 0.0
  %2109 = vmatpush1.msra.mxu0 0.0
  %2110 = vmatprep.subr.mxu0 0.0
  %2111 = vmatpush1.msra.mxu0 0.0
  %2112 = vmatprep.subr.mxu0 0.0
  %2113 = vmatpush1.msra.mxu0 0.0
  %2114 = vmatprep.subr.mxu0 0.0
  %2115 = vmatpush1.msra.mxu0 0.0
  %2116 = vmatprep.subr.mxu0 0.0
  %2117 = vmatpush1.msra.mxu0 0.0
  %2118 = vmatprep.subr.mxu0 0.0
  %2119 = vmatpush1.msra.mxu0 0.0
  %2120 = vmatprep.subr.mxu0 0.0
  %2121 = vmatpush1.msra.mxu0 %v64
  %2122 = vmatprep.subr.mxu0 0.0
  %2123 = vmatpush1.msra.mxu0 %v63
  %2124 = vmatprep.subr.mxu0 0.0
  %2125 = vmatpush1.msra.mxu0 %v62
  %2126 = vmatprep.subr.mxu0 0.0
  %2127 = vmatpush1.msra.mxu0 %v61
  %2128 = vmatprep.subr.mxu0 0.0
  %2129 = vmatpush2.msra.mxu0 0.0
  %2130 = vmatprep.subr.mxu0 0.0
  %2131 = vmatpush2.msra.mxu0 0.0
  %2132 = vmatprep.subr.mxu0 0.0
  %2133 = vmatpush2.msra.mxu0 0.0
  %2134 = vmatprep.subr.mxu0 0.0
  %2135 = vmatpush2.msra.mxu0 0.0
  %2136 = vmatprep.subr.mxu0 0.0
  %2137 = vmatpush2.msra.mxu0 0.0
  %2138 = vmatprep.subr.mxu0 0.0
  %2139 = vmatpush2.msra.mxu0 0.0
  %2140 = vmatprep.subr.mxu0 0.0
  %2141 = vmatpush2.msra.mxu0 0.0
  %2142 = vmatprep.subr.mxu0 0.0
  %2143 = vmatpush2.msra.mxu0 0.0
  %2144 = vmatprep.subr.mxu0 0.0
  %2145 = vmatpush2.msra.mxu0 0.0
  %2146 = vmatprep.subr.mxu0 0.0
  %2147 = vmatpush2.msra.mxu0 0.0
  %2148 = vmatprep.subr.mxu0 0.0
  %2149 = vmatpush2.msra.mxu0 0.0
  %2150 = vmatprep.subr.mxu0 0.0
  %2151 = vmatpush2.msra.mxu0 0.0
  %2152 = vmatprep.subr.mxu0 0.0
  %2153 = vmatpush2.msra.mxu0 0.0
  %2154 = vmatprep.subr.mxu0 0.0
  %2155 = vmatpush2.msra.mxu0 0.0
  %2156 = vmatprep.subr.mxu0 0.0
  %2157 = vmatpush2.msra.mxu0 0.0
  %2158 = vmatprep.subr.mxu0 0.0
  %2159 = vmatpush2.msra.mxu0 0.0
  %2160 = vmatprep.mubr.f32.mxu0 0.0
  %2161 = vmatmul.mubr.f32.gmra.mxu0 %v2094
  %v2162 = vpop.f32.mrf.mxu0
  %v2163 = vadd.f32 %v2090, %v2162
  %v2164 = vpop.f32.mrf.mxu0
  %2165 = vdwg.mxu0
  %v2166 = vadd.f32 %v2163, %v257
  %v2167 = vmul.f32 %v2166, 0.5
  %v2168 = vtanh.pop %v2167
  %v2169 = vadd.f32 %v2168, 1.0
  %v2170 = vmul.f32 %v2169, 0.5
  %v2171 = vtanh.pop %v2166
  %v2172 = vmul.f32 %v2170, %v1804
  %2174 = vrot.lane.b32.xlu0 %v2171, 64
  %v2175 = vpop.permute.xlu0 %2174
  %v2177 = vmul.f32 %v2170, %v2175
  %2179 = vrot.lane.b32.xlu0 %v2177, 32
  %v2180 = vpop.permute.xlu0 %2179
  %v2182 = vadd.f32 %v2172, %v2180
  %v2183 = vtanh.pop %v2182
  %2185 = vrot.lane.b32.xlu0 %v2183, 64
  %v2186 = vpop.permute.xlu0 %2185
  %v2188 = vmul.f32 %v2170, %v2186
  %v2189 = vlaneseq
  %v2190 = vshrl.u32 %v2189, 7
  %v2191 = vsub.s32 0, %v2190
  %v2192 = vrot.slane %v2188, %v2191
  %2194 = vrot.lane.b32.xlu0 %v2192, 32
  %v2195 = vpop.permute.xlu0 %2194
  %v2197 = vmul.f32 %v87, %v2195
  %v2198 = vsel %vm295, %v2197, 0.0
  %2199 = vadd.xlane.f32.xlu0 %v2198
  %v2200 = vpop.xlane.xlu0 %2199
  %v2201 = vlaneseq
  %v2202 = vshrl.u32 %v2201, 7
  %v2203 = vsub.s32 1, %v2202
  %v2204 = vrot.slane %v2188, %v2203
  %2206 = vrot.lane.b32.xlu0 %v2204, 32
  %v2207 = vpop.permute.xlu0 %2206
  %v2209 = vmul.f32 %v89, %v2207
  %v2210 = vsel %vm295, %v2209, 0.0
  %2211 = vadd.xlane.f32.xlu0 %v2210
  %v2212 = vpop.xlane.xlu0 %2211
  %v2213 = vsel %vm311, %v2200, %v2212
  %v2214 = vsel %vm313, %v2213, -inf
  %v2215 = vrot.slane %v2214, 4
  %v2216 = vmax.f32 %v2214, %v2215
  %v2217 = vrot.slane %v2216, 2
  %v2218 = vmax.f32 %v2216, %v2217
  %v2219 = vrot.slane %v2218, 1
  %v2220 = vmax.f32 %v2218, %v2219
  %v2221 = vsub.f32 %v2213, %v2220
  %v2222 = vmul.f32 %v2221, 1.442695
  %v2223 = vpow.pop %v2222
  %v2224 = vsel %vm313, %v2223, 0.0
  %v2225 = vrot.slane %v2224, 4
  %v2226 = vadd.f32 %v2224, %v2225
  %v2227 = vrot.slane %v2226, 2
  %v2228 = vadd.f32 %v2226, %v2227
  %v2229 = vrot.slane %v2228, 1
  %v2230 = vadd.f32 %v2228, %v2229
  %v2231 = vrcp.pop %v2230
  %v2232 = vmul.f32 %v2223, %v2231
  %v2234 = vsel %vm333, %v2232, 0
  %2236 = vmatprep.subr.mxu0 0.0
  %2237 = vmatpush1.msra.mxu0 0.0
  %2238 = vmatprep.subr.mxu0 0.0
  %2239 = vmatpush1.msra.mxu0 0.0
  %2240 = vmatprep.subr.mxu0 0.0
  %2241 = vmatpush1.msra.mxu0 0.0
  %2242 = vmatprep.subr.mxu0 0.0
  %2243 = vmatpush1.msra.mxu0 0.0
  %2244 = vmatprep.subr.mxu0 0.0
  %2245 = vmatpush1.msra.mxu0 0.0
  %2246 = vmatprep.subr.mxu0 0.0
  %2247 = vmatpush1.msra.mxu0 0.0
  %2248 = vmatprep.subr.mxu0 0.0
  %2249 = vmatpush1.msra.mxu0 0.0
  %2250 = vmatprep.subr.mxu0 0.0
  %2251 = vmatpush1.msra.mxu0 0.0
  %2252 = vmatprep.subr.mxu0 0.0
  %2253 = vmatpush1.msra.mxu0 0.0
  %2254 = vmatprep.subr.mxu0 0.0
  %2255 = vmatpush1.msra.mxu0 0.0
  %2256 = vmatprep.subr.mxu0 0.0
  %2257 = vmatpush1.msra.mxu0 0.0
  %2258 = vmatprep.subr.mxu0 0.0
  %2259 = vmatpush1.msra.mxu0 0.0
  %2260 = vmatprep.subr.mxu0 0.0
  %2261 = vmatpush1.msra.mxu0 0.0
  %2262 = vmatprep.subr.mxu0 0.0
  %2263 = vmatpush1.msra.mxu0 0.0
  %2264 = vmatprep.subr.mxu0 0.0
  %2265 = vmatpush1.msra.mxu0 0.0
  %2266 = vmatprep.subr.mxu0 0.0
  %2267 = vmatpush1.msra.mxu0 %v339
  %2268 = vmatprep.subr.mxu0 0.0
  %2269 = vmatpush2.msra.mxu0 0.0
  %2270 = vmatprep.subr.mxu0 0.0
  %2271 = vmatpush2.msra.mxu0 0.0
  %2272 = vmatprep.subr.mxu0 0.0
  %2273 = vmatpush2.msra.mxu0 0.0
  %2274 = vmatprep.subr.mxu0 0.0
  %2275 = vmatpush2.msra.mxu0 0.0
  %2276 = vmatprep.subr.mxu0 0.0
  %2277 = vmatpush2.msra.mxu0 0.0
  %2278 = vmatprep.subr.mxu0 0.0
  %2279 = vmatpush2.msra.mxu0 0.0
  %2280 = vmatprep.subr.mxu0 0.0
  %2281 = vmatpush2.msra.mxu0 0.0
  %2282 = vmatprep.subr.mxu0 0.0
  %2283 = vmatpush2.msra.mxu0 0.0
  %2284 = vmatprep.subr.mxu0 0.0
  %2285 = vmatpush2.msra.mxu0 0.0
  %2286 = vmatprep.subr.mxu0 0.0
  %2287 = vmatpush2.msra.mxu0 0.0
  %2288 = vmatprep.subr.mxu0 0.0
  %2289 = vmatpush2.msra.mxu0 0.0
  %2290 = vmatprep.subr.mxu0 0.0
  %2291 = vmatpush2.msra.mxu0 0.0
  %2292 = vmatprep.subr.mxu0 0.0
  %2293 = vmatpush2.msra.mxu0 0.0
  %2294 = vmatprep.subr.mxu0 0.0
  %2295 = vmatpush2.msra.mxu0 0.0
  %2296 = vmatprep.subr.mxu0 0.0
  %2297 = vmatpush2.msra.mxu0 0.0
  %2298 = vmatprep.subr.mxu0 0.0
  %2299 = vmatpush2.msra.mxu0 0.0
  %2300 = vmatprep.mubr.f32.mxu0 0.0
  %2301 = vmatmul.mubr.f32.gmra.mxu0 %v2234
  %v2302 = vpop.f32.mrf.mxu0
  %v2303 = vadd.f32 0.0, %v2302
  %v2304 = vpop.f32.mrf.mxu0
  %2305 = vdwg.mxu0
  %v2306 = vmul.f32 %v93, %v2303
  %v2307 = vsel %vm412, %v2306, 0.0
  %v2308 = vrot.slane %v2307, 4
  %v2309 = vadd.f32 %v2307, %v2308
  %v2310 = vrot.slane %v2309, 2
  %v2311 = vadd.f32 %v2309, %v2310
  %v2312 = vrot.slane %v2311, 1
  %v2313 = vadd.f32 %v2311, %v2312
  %v2314 = vmul.f32 %v95, %v2313
  %v2316 = vsel %vm421, %v2314, 0
  %2318 = vmatprep.subr.mxu0 0.0
  %2319 = vmatpush1.msra.mxu0 0.0
  %2320 = vmatprep.subr.mxu0 0.0
  %2321 = vmatpush1.msra.mxu0 0.0
  %2322 = vmatprep.subr.mxu0 0.0
  %2323 = vmatpush1.msra.mxu0 0.0
  %2324 = vmatprep.subr.mxu0 0.0
  %2325 = vmatpush1.msra.mxu0 0.0
  %2326 = vmatprep.subr.mxu0 0.0
  %2327 = vmatpush1.msra.mxu0 0.0
  %2328 = vmatprep.subr.mxu0 0.0
  %2329 = vmatpush1.msra.mxu0 0.0
  %2330 = vmatprep.subr.mxu0 0.0
  %2331 = vmatpush1.msra.mxu0 0.0
  %2332 = vmatprep.subr.mxu0 0.0
  %2333 = vmatpush1.msra.mxu0 0.0
  %2334 = vmatprep.subr.mxu0 0.0
  %2335 = vmatpush1.msra.mxu0 0.0
  %2336 = vmatprep.subr.mxu0 0.0
  %2337 = vmatpush1.msra.mxu0 0.0
  %2338 = vmatprep.subr.mxu0 0.0
  %2339 = vmatpush1.msra.mxu0 0.0
  %2340 = vmatprep.subr.mxu0 0.0
  %2341 = vmatpush1.msra.mxu0 0.0
  %2342 = vmatprep.subr.mxu0 0.0
  %2343 = vmatpush1.msra.mxu0 0.0
  %2344 = vmatprep.subr.mxu0 0.0
  %2345 = vmatpush1.msra.mxu0 0.0
  %2346 = vmatprep.subr.mxu0 0.0
  %2347 = vmatpush1.msra.mxu0 %v426
  %2348 = vmatprep.subr.mxu0 0.0
  %2349 = vmatpush1.msra.mxu0 %v83
  %2350 = vmatprep.subr.mxu0 0.0
  %2351 = vmatpush2.msra.mxu0 0.0
  %2352 = vmatprep.subr.mxu0 0.0
  %2353 = vmatpush2.msra.mxu0 0.0
  %2354 = vmatprep.subr.mxu0 0.0
  %2355 = vmatpush2.msra.mxu0 0.0
  %2356 = vmatprep.subr.mxu0 0.0
  %2357 = vmatpush2.msra.mxu0 0.0
  %2358 = vmatprep.subr.mxu0 0.0
  %2359 = vmatpush2.msra.mxu0 0.0
  %2360 = vmatprep.subr.mxu0 0.0
  %2361 = vmatpush2.msra.mxu0 0.0
  %2362 = vmatprep.subr.mxu0 0.0
  %2363 = vmatpush2.msra.mxu0 0.0
  %2364 = vmatprep.subr.mxu0 0.0
  %2365 = vmatpush2.msra.mxu0 0.0
  %2366 = vmatprep.subr.mxu0 0.0
  %2367 = vmatpush2.msra.mxu0 0.0
  %2368 = vmatprep.subr.mxu0 0.0
  %2369 = vmatpush2.msra.mxu0 0.0
  %2370 = vmatprep.subr.mxu0 0.0
  %2371 = vmatpush2.msra.mxu0 0.0
  %2372 = vmatprep.subr.mxu0 0.0
  %2373 = vmatpush2.msra.mxu0 0.0
  %2374 = vmatprep.subr.mxu0 0.0
  %2375 = vmatpush2.msra.mxu0 0.0
  %2376 = vmatprep.subr.mxu0 0.0
  %2377 = vmatpush2.msra.mxu0 0.0
  %2378 = vmatprep.subr.mxu0 0.0
  %2379 = vmatpush2.msra.mxu0 0.0
  %2380 = vmatprep.subr.mxu0 0.0
  %2381 = vmatpush2.msra.mxu0 0.0
  %2382 = vmatprep.mubr.f32.mxu0 0.0
  %2383 = vmatmul.mubr.f32.gmra.mxu0 %v2316
  %v2384 = vpop.f32.mrf.mxu0
  %v2385 = vadd.f32 0.0, %v2384
  %v2386 = vpop.f32.mrf.mxu0
  %2387 = vdwg.mxu0
  %2389 = vrot.lane.b32.xlu0 %v2188, 32
  %v2390 = vpop.permute.xlu0 %2389
  %2393 = vrot.lane.b32.xlu0 %v2385, 32
  %v2394 = vpop.permute.xlu0 %2393
  %v2396 = vsel %vm106, %v2390, %v2394
  %2397 = vmatprep.subr.mxu0 0.0
  %2398 = vmatpush1.msra.mxu0 0.0
  %2399 = vmatprep.subr.mxu0 0.0
  %2400 = vmatpush1.msra.mxu0 0.0
  %2401 = vmatprep.subr.mxu0 0.0
  %2402 = vmatpush1.msra.mxu0 0.0
  %2403 = vmatprep.subr.mxu0 0.0
  %2404 = vmatpush1.msra.mxu0 0.0
  %2405 = vmatprep.subr.mxu0 0.0
  %2406 = vmatpush1.msra.mxu0 0.0
  %2407 = vmatprep.subr.mxu0 0.0
  %2408 = vmatpush1.msra.mxu0 0.0
  %2409 = vmatprep.subr.mxu0 0.0
  %2410 = vmatpush1.msra.mxu0 0.0
  %2411 = vmatprep.subr.mxu0 0.0
  %2412 = vmatpush1.msra.mxu0 0.0
  %2413 = vmatprep.subr.mxu0 0.0
  %2414 = vmatpush1.msra.mxu0 0.0
  %2415 = vmatprep.subr.mxu0 0.0
  %2416 = vmatpush1.msra.mxu0 0.0
  %2417 = vmatprep.subr.mxu0 0.0
  %2418 = vmatpush1.msra.mxu0 0.0
  %2419 = vmatprep.subr.mxu0 0.0
  %2420 = vmatpush1.msra.mxu0 0.0
  %2421 = vmatprep.subr.mxu0 0.0
  %2422 = vmatpush1.msra.mxu0 %v81
  %2423 = vmatprep.subr.mxu0 0.0
  %2424 = vmatpush1.msra.mxu0 %v80
  %2425 = vmatprep.subr.mxu0 0.0
  %2426 = vmatpush1.msra.mxu0 %v79
  %2427 = vmatprep.subr.mxu0 0.0
  %2428 = vmatpush1.msra.mxu0 %v78
  %2429 = vmatprep.subr.mxu0 0.0
  %2430 = vmatpush2.msra.mxu0 0.0
  %2431 = vmatprep.subr.mxu0 0.0
  %2432 = vmatpush2.msra.mxu0 0.0
  %2433 = vmatprep.subr.mxu0 0.0
  %2434 = vmatpush2.msra.mxu0 0.0
  %2435 = vmatprep.subr.mxu0 0.0
  %2436 = vmatpush2.msra.mxu0 0.0
  %2437 = vmatprep.subr.mxu0 0.0
  %2438 = vmatpush2.msra.mxu0 0.0
  %2439 = vmatprep.subr.mxu0 0.0
  %2440 = vmatpush2.msra.mxu0 0.0
  %2441 = vmatprep.subr.mxu0 0.0
  %2442 = vmatpush2.msra.mxu0 0.0
  %2443 = vmatprep.subr.mxu0 0.0
  %2444 = vmatpush2.msra.mxu0 0.0
  %2445 = vmatprep.subr.mxu0 0.0
  %2446 = vmatpush2.msra.mxu0 0.0
  %2447 = vmatprep.subr.mxu0 0.0
  %2448 = vmatpush2.msra.mxu0 0.0
  %2449 = vmatprep.subr.mxu0 0.0
  %2450 = vmatpush2.msra.mxu0 0.0
  %2451 = vmatprep.subr.mxu0 0.0
  %2452 = vmatpush2.msra.mxu0 0.0
  %2453 = vmatprep.subr.mxu0 0.0
  %2454 = vmatpush2.msra.mxu0 0.0
  %2455 = vmatprep.subr.mxu0 0.0
  %2456 = vmatpush2.msra.mxu0 0.0
  %2457 = vmatprep.subr.mxu0 0.0
  %2458 = vmatpush2.msra.mxu0 0.0
  %2459 = vmatprep.subr.mxu0 0.0
  %2460 = vmatpush2.msra.mxu0 0.0
  %2461 = vmatprep.mubr.f32.mxu0 0.0
  %2462 = vmatmul.mubr.f32.gmra.mxu0 %v108
  %v2463 = vpop.f32.mrf.mxu0
  %v2464 = vadd.f32 0.0, %v2463
  %v2465 = vpop.f32.mrf.mxu0
  %2466 = vdwg.mxu0
  %vm2467 = vcmask 523264
  %v2469 = vsel %vm2467, %v506, 0
  %2471 = vmatprep.subr.mxu0 0.0
  %2472 = vmatpush1.msra.mxu0 0.0
  %2473 = vmatprep.subr.mxu0 0.0
  %2474 = vmatpush1.msra.mxu0 0.0
  %2475 = vmatprep.subr.mxu0 0.0
  %2476 = vmatpush1.msra.mxu0 0.0
  %2477 = vmatprep.subr.mxu0 0.0
  %2478 = vmatpush1.msra.mxu0 0.0
  %2479 = vmatprep.subr.mxu0 0.0
  %2480 = vmatpush1.msra.mxu0 0.0
  %2481 = vmatprep.subr.mxu0 0.0
  %2482 = vmatpush1.msra.mxu0 0.0
  %2483 = vmatprep.subr.mxu0 0.0
  %2484 = vmatpush1.msra.mxu0 0.0
  %2485 = vmatprep.subr.mxu0 0.0
  %2486 = vmatpush1.msra.mxu0 0.0
  %2487 = vmatprep.subr.mxu0 0.0
  %2488 = vmatpush1.msra.mxu0 %v77
  %2489 = vmatprep.subr.mxu0 0.0
  %2490 = vmatpush1.msra.mxu0 %v76
  %2491 = vmatprep.subr.mxu0 0.0
  %2492 = vmatpush1.msra.mxu0 %v75
  %2493 = vmatprep.subr.mxu0 0.0
  %2494 = vmatpush1.msra.mxu0 %v74
  %2495 = vmatprep.subr.mxu0 0.0
  %2496 = vmatpush1.msra.mxu0 %v73
  %2497 = vmatprep.subr.mxu0 0.0
  %2498 = vmatpush1.msra.mxu0 %v72
  %2499 = vmatprep.subr.mxu0 0.0
  %2500 = vmatpush1.msra.mxu0 %v71
  %2501 = vmatprep.subr.mxu0 0.0
  %2502 = vmatpush1.msra.mxu0 %v70
  %2503 = vmatprep.subr.mxu0 0.0
  %2504 = vmatpush2.msra.mxu0 0.0
  %2505 = vmatprep.subr.mxu0 0.0
  %2506 = vmatpush2.msra.mxu0 0.0
  %2507 = vmatprep.subr.mxu0 0.0
  %2508 = vmatpush2.msra.mxu0 0.0
  %2509 = vmatprep.subr.mxu0 0.0
  %2510 = vmatpush2.msra.mxu0 0.0
  %2511 = vmatprep.subr.mxu0 0.0
  %2512 = vmatpush2.msra.mxu0 0.0
  %2513 = vmatprep.subr.mxu0 0.0
  %2514 = vmatpush2.msra.mxu0 0.0
  %2515 = vmatprep.subr.mxu0 0.0
  %2516 = vmatpush2.msra.mxu0 0.0
  %2517 = vmatprep.subr.mxu0 0.0
  %2518 = vmatpush2.msra.mxu0 0.0
  %2519 = vmatprep.subr.mxu0 0.0
  %2520 = vmatpush2.msra.mxu0 0.0
  %2521 = vmatprep.subr.mxu0 0.0
  %2522 = vmatpush2.msra.mxu0 0.0
  %2523 = vmatprep.subr.mxu0 0.0
  %2524 = vmatpush2.msra.mxu0 0.0
  %2525 = vmatprep.subr.mxu0 0.0
  %2526 = vmatpush2.msra.mxu0 0.0
  %2527 = vmatprep.subr.mxu0 0.0
  %2528 = vmatpush2.msra.mxu0 0.0
  %2529 = vmatprep.subr.mxu0 0.0
  %2530 = vmatpush2.msra.mxu0 0.0
  %2531 = vmatprep.subr.mxu0 0.0
  %2532 = vmatpush2.msra.mxu0 0.0
  %2533 = vmatprep.subr.mxu0 0.0
  %2534 = vmatpush2.msra.mxu0 0.0
  %2535 = vmatprep.mubr.f32.mxu0 0.0
  %2536 = vmatmul.mubr.f32.gmra.mxu0 %v2469
  %v2537 = vpop.f32.mrf.mxu0
  %v2538 = vadd.f32 %v2464, %v2537
  %v2539 = vpop.f32.mrf.mxu0
  %2540 = vdwg.mxu0
  %v2542 = vlaneseq
  %v2543 = vshrl.u32 %v2542, 7
  %v2544 = vsub.s32 0, %v2543
  %v2545 = vrot.slane %v82, %v2544
  %v2547 = vadd.f32 %v2538, %v2545
  %v2548 = vmul.f32 %v2547, 0.5
  %v2549 = vtanh.pop %v2548
  %v2550 = vadd.f32 %v2549, 1.0
  %v2551 = vmul.f32 %v2550, 0.5
  %v2552 = vtanh.pop %v2547
  %v2553 = vmul.f32 %v2551, %v267
  %2555 = vrot.lane.b32.xlu0 %v2552, 64
  %v2556 = vpop.permute.xlu0 %2555
  %v2558 = vmul.f32 %v2551, %v2556
  %2560 = vrot.lane.b32.xlu0 %v2558, 32
  %v2561 = vpop.permute.xlu0 %2560
  %v2563 = vadd.f32 %v2553, %v2561
  %v2564 = vtanh.pop %v2563
  %2566 = vrot.lane.b32.xlu0 %v2564, 64
  %v2567 = vpop.permute.xlu0 %2566
  %v2569 = vmul.f32 %v2551, %v2567
  %v2570 = vlaneseq
  %v2571 = vshrl.u32 %v2570, 7
  %v2572 = vsub.s32 0, %v2571
  %v2573 = vrot.slane %v2569, %v2572
  %2575 = vrot.lane.b32.xlu0 %v2573, 32
  %v2576 = vpop.permute.xlu0 %2575
  %v2578 = vmul.f32 %v90, %v2576
  %v2579 = vsel %vm295, %v2578, 0.0
  %2580 = vadd.xlane.f32.xlu0 %v2579
  %v2581 = vpop.xlane.xlu0 %2580
  %v2582 = vlaneseq
  %v2583 = vshrl.u32 %v2582, 7
  %v2584 = vsub.s32 1, %v2583
  %v2585 = vrot.slane %v2569, %v2584
  %2587 = vrot.lane.b32.xlu0 %v2585, 32
  %v2588 = vpop.permute.xlu0 %2587
  %v2590 = vmul.f32 %v92, %v2588
  %v2591 = vsel %vm295, %v2590, 0.0
  %2592 = vadd.xlane.f32.xlu0 %v2591
  %v2593 = vpop.xlane.xlu0 %2592
  %v2594 = vsel %vm311, %v2581, %v2593
  %v2595 = vsel %vm313, %v2594, -inf
  %v2596 = vrot.slane %v2595, 4
  %v2597 = vmax.f32 %v2595, %v2596
  %v2598 = vrot.slane %v2597, 2
  %v2599 = vmax.f32 %v2597, %v2598
  %v2600 = vrot.slane %v2599, 1
  %v2601 = vmax.f32 %v2599, %v2600
  %v2602 = vsub.f32 %v2594, %v2601
  %v2603 = vmul.f32 %v2602, 1.442695
  %v2604 = vpow.pop %v2603
  %v2605 = vsel %vm313, %v2604, 0.0
  %v2606 = vrot.slane %v2605, 4
  %v2607 = vadd.f32 %v2605, %v2606
  %v2608 = vrot.slane %v2607, 2
  %v2609 = vadd.f32 %v2607, %v2608
  %v2610 = vrot.slane %v2609, 1
  %v2611 = vadd.f32 %v2609, %v2610
  %v2612 = vrcp.pop %v2611
  %v2613 = vmul.f32 %v2604, %v2612
  %v2615 = vsel %vm333, %v2613, 0
  %2617 = vmatprep.subr.mxu0 0.0
  %2618 = vmatpush1.msra.mxu0 0.0
  %2619 = vmatprep.subr.mxu0 0.0
  %2620 = vmatpush1.msra.mxu0 0.0
  %2621 = vmatprep.subr.mxu0 0.0
  %2622 = vmatpush1.msra.mxu0 0.0
  %2623 = vmatprep.subr.mxu0 0.0
  %2624 = vmatpush1.msra.mxu0 0.0
  %2625 = vmatprep.subr.mxu0 0.0
  %2626 = vmatpush1.msra.mxu0 0.0
  %2627 = vmatprep.subr.mxu0 0.0
  %2628 = vmatpush1.msra.mxu0 0.0
  %2629 = vmatprep.subr.mxu0 0.0
  %2630 = vmatpush1.msra.mxu0 0.0
  %2631 = vmatprep.subr.mxu0 0.0
  %2632 = vmatpush1.msra.mxu0 0.0
  %2633 = vmatprep.subr.mxu0 0.0
  %2634 = vmatpush1.msra.mxu0 0.0
  %2635 = vmatprep.subr.mxu0 0.0
  %2636 = vmatpush1.msra.mxu0 0.0
  %2637 = vmatprep.subr.mxu0 0.0
  %2638 = vmatpush1.msra.mxu0 0.0
  %2639 = vmatprep.subr.mxu0 0.0
  %2640 = vmatpush1.msra.mxu0 0.0
  %2641 = vmatprep.subr.mxu0 0.0
  %2642 = vmatpush1.msra.mxu0 0.0
  %2643 = vmatprep.subr.mxu0 0.0
  %2644 = vmatpush1.msra.mxu0 0.0
  %2645 = vmatprep.subr.mxu0 0.0
  %2646 = vmatpush1.msra.mxu0 0.0
  %2647 = vmatprep.subr.mxu0 0.0
  %2648 = vmatpush1.msra.mxu0 %v339
  %2649 = vmatprep.subr.mxu0 0.0
  %2650 = vmatpush2.msra.mxu0 0.0
  %2651 = vmatprep.subr.mxu0 0.0
  %2652 = vmatpush2.msra.mxu0 0.0
  %2653 = vmatprep.subr.mxu0 0.0
  %2654 = vmatpush2.msra.mxu0 0.0
  %2655 = vmatprep.subr.mxu0 0.0
  %2656 = vmatpush2.msra.mxu0 0.0
  %2657 = vmatprep.subr.mxu0 0.0
  %2658 = vmatpush2.msra.mxu0 0.0
  %2659 = vmatprep.subr.mxu0 0.0
  %2660 = vmatpush2.msra.mxu0 0.0
  %2661 = vmatprep.subr.mxu0 0.0
  %2662 = vmatpush2.msra.mxu0 0.0
  %2663 = vmatprep.subr.mxu0 0.0
  %2664 = vmatpush2.msra.mxu0 0.0
  %2665 = vmatprep.subr.mxu0 0.0
  %2666 = vmatpush2.msra.mxu0 0.0
  %2667 = vmatprep.subr.mxu0 0.0
  %2668 = vmatpush2.msra.mxu0 0.0
  %2669 = vmatprep.subr.mxu0 0.0
  %2670 = vmatpush2.msra.mxu0 0.0
  %2671 = vmatprep.subr.mxu0 0.0
  %2672 = vmatpush2.msra.mxu0 0.0
  %2673 = vmatprep.subr.mxu0 0.0
  %2674 = vmatpush2.msra.mxu0 0.0
  %2675 = vmatprep.subr.mxu0 0.0
  %2676 = vmatpush2.msra.mxu0 0.0
  %2677 = vmatprep.subr.mxu0 0.0
  %2678 = vmatpush2.msra.mxu0 0.0
  %2679 = vmatprep.subr.mxu0 0.0
  %2680 = vmatpush2.msra.mxu0 0.0
  %2681 = vmatprep.mubr.f32.mxu0 0.0
  %2682 = vmatmul.mubr.f32.gmra.mxu0 %v2615
  %v2683 = vpop.f32.mrf.mxu0
  %v2684 = vadd.f32 0.0, %v2683
  %v2685 = vpop.f32.mrf.mxu0
  %2686 = vdwg.mxu0
  %v2687 = vmul.f32 %v93, %v2684
  %v2688 = vsel %vm412, %v2687, 0.0
  %v2689 = vrot.slane %v2688, 4
  %v2690 = vadd.f32 %v2688, %v2689
  %v2691 = vrot.slane %v2690, 2
  %v2692 = vadd.f32 %v2690, %v2691
  %v2693 = vrot.slane %v2692, 1
  %v2694 = vadd.f32 %v2692, %v2693
  %v2695 = vmul.f32 %v95, %v2694
  %v2697 = vsel %vm421, %v2695, 0
  %v2700 = vsel %vm337, %v86, 0
  %2702 = vmatprep.subr.mxu0 0.0
  %2703 = vmatpush1.msra.mxu0 0.0
  %2704 = vmatprep.subr.mxu0 0.0
  %2705 = vmatpush1.msra.mxu0 0.0
  %2706 = vmatprep.subr.mxu0 0.0
  %2707 = vmatpush1.msra.mxu0 0.0
  %2708 = vmatprep.subr.mxu0 0.0
  %2709 = vmatpush1.msra.mxu0 0.0
  %2710 = vmatprep.subr.mxu0 0.0
  %2711 = vmatpush1.msra.mxu0 0.0
  %2712 = vmatprep.subr.mxu0 0.0
  %2713 = vmatpush1.msra.mxu0 0.0
  %2714 = vmatprep.subr.mxu0 0.0
  %2715 = vmatpush1.msra.mxu0 0.0
  %2716 = vmatprep.subr.mxu0 0.0
  %2717 = vmatpush1.msra.mxu0 0.0
  %2718 = vmatprep.subr.mxu0 0.0
  %2719 = vmatpush1.msra.mxu0 0.0
  %2720 = vmatprep.subr.mxu0 0.0
  %2721 = vmatpush1.msra.mxu0 0.0
  %2722 = vmatprep.subr.mxu0 0.0
  %2723 = vmatpush1.msra.mxu0 0.0
  %2724 = vmatprep.subr.mxu0 0.0
  %2725 = vmatpush1.msra.mxu0 0.0
  %2726 = vmatprep.subr.mxu0 0.0
  %2727 = vmatpush1.msra.mxu0 0.0
  %2728 = vmatprep.subr.mxu0 0.0
  %2729 = vmatpush1.msra.mxu0 0.0
  %2730 = vmatprep.subr.mxu0 0.0
  %2731 = vmatpush1.msra.mxu0 %v2700
  %2732 = vmatprep.subr.mxu0 0.0
  %2733 = vmatpush1.msra.mxu0 %v85
  %2734 = vmatprep.subr.mxu0 0.0
  %2735 = vmatpush2.msra.mxu0 0.0
  %2736 = vmatprep.subr.mxu0 0.0
  %2737 = vmatpush2.msra.mxu0 0.0
  %2738 = vmatprep.subr.mxu0 0.0
  %2739 = vmatpush2.msra.mxu0 0.0
  %2740 = vmatprep.subr.mxu0 0.0
  %2741 = vmatpush2.msra.mxu0 0.0
  %2742 = vmatprep.subr.mxu0 0.0
  %2743 = vmatpush2.msra.mxu0 0.0
  %2744 = vmatprep.subr.mxu0 0.0
  %2745 = vmatpush2.msra.mxu0 0.0
  %2746 = vmatprep.subr.mxu0 0.0
  %2747 = vmatpush2.msra.mxu0 0.0
  %2748 = vmatprep.subr.mxu0 0.0
  %2749 = vmatpush2.msra.mxu0 0.0
  %2750 = vmatprep.subr.mxu0 0.0
  %2751 = vmatpush2.msra.mxu0 0.0
  %2752 = vmatprep.subr.mxu0 0.0
  %2753 = vmatpush2.msra.mxu0 0.0
  %2754 = vmatprep.subr.mxu0 0.0
  %2755 = vmatpush2.msra.mxu0 0.0
  %2756 = vmatprep.subr.mxu0 0.0
  %2757 = vmatpush2.msra.mxu0 0.0
  %2758 = vmatprep.subr.mxu0 0.0
  %2759 = vmatpush2.msra.mxu0 0.0
  %2760 = vmatprep.subr.mxu0 0.0
  %2761 = vmatpush2.msra.mxu0 0.0
  %2762 = vmatprep.subr.mxu0 0.0
  %2763 = vmatpush2.msra.mxu0 0.0
  %2764 = vmatprep.subr.mxu0 0.0
  %2765 = vmatpush2.msra.mxu0 0.0
  %2766 = vmatprep.mubr.f32.mxu0 0.0
  %2767 = vmatmul.mubr.f32.gmra.mxu0 %v2697
  %v2768 = vpop.f32.mrf.mxu0
  %v2769 = vadd.f32 0.0, %v2768
  %v2770 = vpop.f32.mrf.mxu0
  %2771 = vdwg.mxu0
  %2773 = vrot.lane.b32.xlu0 %v2569, 32
  %v2774 = vpop.permute.xlu0 %2773
  %2777 = vrot.lane.b32.xlu0 %v2769, 32
  %v2778 = vpop.permute.xlu0 %2777
  %v2780 = vsel %vm106, %v2774, %v2778
  %v2781 = vsel %vm106, %v2774, 0
  %2783 = vmatprep.subr.mxu0 0.0
  %2784 = vmatpush1.msra.mxu0 0.0
  %2785 = vmatprep.subr.mxu0 0.0
  %2786 = vmatpush1.msra.mxu0 0.0
  %2787 = vmatprep.subr.mxu0 0.0
  %2788 = vmatpush1.msra.mxu0 0.0
  %2789 = vmatprep.subr.mxu0 0.0
  %2790 = vmatpush1.msra.mxu0 0.0
  %2791 = vmatprep.subr.mxu0 0.0
  %2792 = vmatpush1.msra.mxu0 0.0
  %2793 = vmatprep.subr.mxu0 0.0
  %2794 = vmatpush1.msra.mxu0 0.0
  %2795 = vmatprep.subr.mxu0 0.0
  %2796 = vmatpush1.msra.mxu0 0.0
  %2797 = vmatprep.subr.mxu0 0.0
  %2798 = vmatpush1.msra.mxu0 0.0
  %2799 = vmatprep.subr.mxu0 0.0
  %2800 = vmatpush1.msra.mxu0 0.0
  %2801 = vmatprep.subr.mxu0 0.0
  %2802 = vmatpush1.msra.mxu0 0.0
  %2803 = vmatprep.subr.mxu0 0.0
  %2804 = vmatpush1.msra.mxu0 0.0
  %2805 = vmatprep.subr.mxu0 0.0
  %2806 = vmatpush1.msra.mxu0 0.0
  %2807 = vmatprep.subr.mxu0 0.0
  %2808 = vmatpush1.msra.mxu0 %v81
  %2809 = vmatprep.subr.mxu0 0.0
  %2810 = vmatpush1.msra.mxu0 %v80
  %2811 = vmatprep.subr.mxu0 0.0
  %2812 = vmatpush1.msra.mxu0 %v79
  %2813 = vmatprep.subr.mxu0 0.0
  %2814 = vmatpush1.msra.mxu0 %v78
  %2815 = vmatprep.subr.mxu0 0.0
  %2816 = vmatpush2.msra.mxu0 0.0
  %2817 = vmatprep.subr.mxu0 0.0
  %2818 = vmatpush2.msra.mxu0 0.0
  %2819 = vmatprep.subr.mxu0 0.0
  %2820 = vmatpush2.msra.mxu0 0.0
  %2821 = vmatprep.subr.mxu0 0.0
  %2822 = vmatpush2.msra.mxu0 0.0
  %2823 = vmatprep.subr.mxu0 0.0
  %2824 = vmatpush2.msra.mxu0 0.0
  %2825 = vmatprep.subr.mxu0 0.0
  %2826 = vmatpush2.msra.mxu0 0.0
  %2827 = vmatprep.subr.mxu0 0.0
  %2828 = vmatpush2.msra.mxu0 0.0
  %2829 = vmatprep.subr.mxu0 0.0
  %2830 = vmatpush2.msra.mxu0 0.0
  %2831 = vmatprep.subr.mxu0 0.0
  %2832 = vmatpush2.msra.mxu0 0.0
  %2833 = vmatprep.subr.mxu0 0.0
  %2834 = vmatpush2.msra.mxu0 0.0
  %2835 = vmatprep.subr.mxu0 0.0
  %2836 = vmatpush2.msra.mxu0 0.0
  %2837 = vmatprep.subr.mxu0 0.0
  %2838 = vmatpush2.msra.mxu0 0.0
  %2839 = vmatprep.subr.mxu0 0.0
  %2840 = vmatpush2.msra.mxu0 0.0
  %2841 = vmatprep.subr.mxu0 0.0
  %2842 = vmatpush2.msra.mxu0 0.0
  %2843 = vmatprep.subr.mxu0 0.0
  %2844 = vmatpush2.msra.mxu0 0.0
  %2845 = vmatprep.subr.mxu0 0.0
  %2846 = vmatpush2.msra.mxu0 0.0
  %2847 = vmatprep.mubr.f32.mxu0 0.0
  %2848 = vmatmul.mubr.f32.gmra.mxu0 %v2781
  %v2849 = vpop.f32.mrf.mxu0
  %v2850 = vadd.f32 0.0, %v2849
  %v2851 = vpop.f32.mrf.mxu0
  %2852 = vdwg.mxu0
  %v2854 = vsel %vm2467, %v884, 0
  %2856 = vmatprep.subr.mxu0 0.0
  %2857 = vmatpush1.msra.mxu0 0.0
  %2858 = vmatprep.subr.mxu0 0.0
  %2859 = vmatpush1.msra.mxu0 0.0
  %2860 = vmatprep.subr.mxu0 0.0
  %2861 = vmatpush1.msra.mxu0 0.0
  %2862 = vmatprep.subr.mxu0 0.0
  %2863 = vmatpush1.msra.mxu0 0.0
  %2864 = vmatprep.subr.mxu0 0.0
  %2865 = vmatpush1.msra.mxu0 0.0
  %2866 = vmatprep.subr.mxu0 0.0
  %2867 = vmatpush1.msra.mxu0 0.0
  %2868 = vmatprep.subr.mxu0 0.0
  %2869 = vmatpush1.msra.mxu0 0.0
  %2870 = vmatprep.subr.mxu0 0.0
  %2871 = vmatpush1.msra.mxu0 0.0
  %2872 = vmatprep.subr.mxu0 0.0
  %2873 = vmatpush1.msra.mxu0 %v77
  %2874 = vmatprep.subr.mxu0 0.0
  %2875 = vmatpush1.msra.mxu0 %v76
  %2876 = vmatprep.subr.mxu0 0.0
  %2877 = vmatpush1.msra.mxu0 %v75
  %2878 = vmatprep.subr.mxu0 0.0
  %2879 = vmatpush1.msra.mxu0 %v74
  %2880 = vmatprep.subr.mxu0 0.0
  %2881 = vmatpush1.msra.mxu0 %v73
  %2882 = vmatprep.subr.mxu0 0.0
  %2883 = vmatpush1.msra.mxu0 %v72
  %2884 = vmatprep.subr.mxu0 0.0
  %2885 = vmatpush1.msra.mxu0 %v71
  %2886 = vmatprep.subr.mxu0 0.0
  %2887 = vmatpush1.msra.mxu0 %v70
  %2888 = vmatprep.subr.mxu0 0.0
  %2889 = vmatpush2.msra.mxu0 0.0
  %2890 = vmatprep.subr.mxu0 0.0
  %2891 = vmatpush2.msra.mxu0 0.0
  %2892 = vmatprep.subr.mxu0 0.0
  %2893 = vmatpush2.msra.mxu0 0.0
  %2894 = vmatprep.subr.mxu0 0.0
  %2895 = vmatpush2.msra.mxu0 0.0
  %2896 = vmatprep.subr.mxu0 0.0
  %2897 = vmatpush2.msra.mxu0 0.0
  %2898 = vmatprep.subr.mxu0 0.0
  %2899 = vmatpush2.msra.mxu0 0.0
  %2900 = vmatprep.subr.mxu0 0.0
  %2901 = vmatpush2.msra.mxu0 0.0
  %2902 = vmatprep.subr.mxu0 0.0
  %2903 = vmatpush2.msra.mxu0 0.0
  %2904 = vmatprep.subr.mxu0 0.0
  %2905 = vmatpush2.msra.mxu0 0.0
  %2906 = vmatprep.subr.mxu0 0.0
  %2907 = vmatpush2.msra.mxu0 0.0
  %2908 = vmatprep.subr.mxu0 0.0
  %2909 = vmatpush2.msra.mxu0 0.0
  %2910 = vmatprep.subr.mxu0 0.0
  %2911 = vmatpush2.msra.mxu0 0.0
  %2912 = vmatprep.subr.mxu0 0.0
  %2913 = vmatpush2.msra.mxu0 0.0
  %2914 = vmatprep.subr.mxu0 0.0
  %2915 = vmatpush2.msra.mxu0 0.0
  %2916 = vmatprep.subr.mxu0 0.0
  %2917 = vmatpush2.msra.mxu0 0.0
  %2918 = vmatprep.subr.mxu0 0.0
  %2919 = vmatpush2.msra.mxu0 0.0
  %2920 = vmatprep.mubr.f32.mxu0 0.0
  %2921 = vmatmul.mubr.f32.gmra.mxu0 %v2854
  %v2922 = vpop.f32.mrf.mxu0
  %v2923 = vadd.f32 %v2850, %v2922
  %v2924 = vpop.f32.mrf.mxu0
  %2925 = vdwg.mxu0
  %v2926 = vadd.f32 %v2923, %v2545
  %v2927 = vmul.f32 %v2926, 0.5
  %v2928 = vtanh.pop %v2927
  %v2929 = vadd.f32 %v2928, 1.0
  %v2930 = vmul.f32 %v2929, 0.5
  %v2931 = vtanh.pop %v2926
  %v2932 = vmul.f32 %v2930, %v2563
  %2934 = vrot.lane.b32.xlu0 %v2931, 64
  %v2935 = vpop.permute.xlu0 %2934
  %v2937 = vmul.f32 %v2930, %v2935
  %2939 = vrot.lane.b32.xlu0 %v2937, 32
  %v2940 = vpop.permute.xlu0 %2939
  %v2942 = vadd.f32 %v2932, %v2940
  %v2943 = vtanh.pop %v2942
  %2945 = vrot.lane.b32.xlu0 %v2943, 64
  %v2946 = vpop.permute.xlu0 %2945
  %v2948 = vmul.f32 %v2930, %v2946
  %v2949 = vlaneseq
  %v2950 = vshrl.u32 %v2949, 7
  %v2951 = vsub.s32 0, %v2950
  %v2952 = vrot.slane %v2948, %v2951
  %2954 = vrot.lane.b32.xlu0 %v2952, 32
  %v2955 = vpop.permute.xlu0 %2954
  %v2957 = vmul.f32 %v90, %v2955
  %v2958 = vsel %vm295, %v2957, 0.0
  %2959 = vadd.xlane.f32.xlu0 %v2958
  %v2960 = vpop.xlane.xlu0 %2959
  %v2961 = vlaneseq
  %v2962 = vshrl.u32 %v2961, 7
  %v2963 = vsub.s32 1, %v2962
  %v2964 = vrot.slane %v2948, %v2963
  %2966 = vrot.lane.b32.xlu0 %v2964, 32
  %v2967 = vpop.permute.xlu0 %2966
  %v2969 = vmul.f32 %v92, %v2967
  %v2970 = vsel %vm295, %v2969, 0.0
  %2971 = vadd.xlane.f32.xlu0 %v2970
  %v2972 = vpop.xlane.xlu0 %2971
  %v2973 = vsel %vm311, %v2960, %v2972
  %v2974 = vsel %vm313, %v2973, -inf
  %v2975 = vrot.slane %v2974, 4
  %v2976 = vmax.f32 %v2974, %v2975
  %v2977 = vrot.slane %v2976, 2
  %v2978 = vmax.f32 %v2976, %v2977
  %v2979 = vrot.slane %v2978, 1
  %v2980 = vmax.f32 %v2978, %v2979
  %v2981 = vsub.f32 %v2973, %v2980
  %v2982 = vmul.f32 %v2981, 1.442695
  %v2983 = vpow.pop %v2982
  %v2984 = vsel %vm313, %v2983, 0.0
  %v2985 = vrot.slane %v2984, 4
  %v2986 = vadd.f32 %v2984, %v2985
  %v2987 = vrot.slane %v2986, 2
  %v2988 = vadd.f32 %v2986, %v2987
  %v2989 = vrot.slane %v2988, 1
  %v2990 = vadd.f32 %v2988, %v2989
  %v2991 = vrcp.pop %v2990
  %v2992 = vmul.f32 %v2983, %v2991
  %v2994 = vsel %vm333, %v2992, 0
  %2996 = vmatprep.subr.mxu0 0.0
  %2997 = vmatpush1.msra.mxu0 0.0
  %2998 = vmatprep.subr.mxu0 0.0
  %2999 = vmatpush1.msra.mxu0 0.0
  %3000 = vmatprep.subr.mxu0 0.0
  %3001 = vmatpush1.msra.mxu0 0.0
  %3002 = vmatprep.subr.mxu0 0.0
  %3003 = vmatpush1.msra.mxu0 0.0
  %3004 = vmatprep.subr.mxu0 0.0
  %3005 = vmatpush1.msra.mxu0 0.0
  %3006 = vmatprep.subr.mxu0 0.0
  %3007 = vmatpush1.msra.mxu0 0.0
  %3008 = vmatprep.subr.mxu0 0.0
  %3009 = vmatpush1.msra.mxu0 0.0
  %3010 = vmatprep.subr.mxu0 0.0
  %3011 = vmatpush1.msra.mxu0 0.0
  %3012 = vmatprep.subr.mxu0 0.0
  %3013 = vmatpush1.msra.mxu0 0.0
  %3014 = vmatprep.subr.mxu0 0.0
  %3015 = vmatpush1.msra.mxu0 0.0
  %3016 = vmatprep.subr.mxu0 0.0
  %3017 = vmatpush1.msra.mxu0 0.0
  %3018 = vmatprep.subr.mxu0 0.0
  %3019 = vmatpush1.msra.mxu0 0.0
  %3020 = vmatprep.subr.mxu0 0.0
  %3021 = vmatpush1.msra.mxu0 0.0
  %3022 = vmatprep.subr.mxu0 0.0
  %3023 = vmatpush1.msra.mxu0 0.0
  %3024 = vmatprep.subr.mxu0 0.0
  %3025 = vmatpush1.msra.mxu0 0.0
  %3026 = vmatprep.subr.mxu0 0.0
  %3027 = vmatpush1.msra.mxu0 %v339
  %3028 = vmatprep.subr.mxu0 0.0
  %3029 = vmatpush2.msra.mxu0 0.0
  %3030 = vmatprep.subr.mxu0 0.0
  %3031 = vmatpush2.msra.mxu0 0.0
  %3032 = vmatprep.subr.mxu0 0.0
  %3033 = vmatpush2.msra.mxu0 0.0
  %3034 = vmatprep.subr.mxu0 0.0
  %3035 = vmatpush2.msra.mxu0 0.0
  %3036 = vmatprep.subr.mxu0 0.0
  %3037 = vmatpush2.msra.mxu0 0.0
  %3038 = vmatprep.subr.mxu0 0.0
  %3039 = vmatpush2.msra.mxu0 0.0
  %3040 = vmatprep.subr.mxu0 0.0
  %3041 = vmatpush2.msra.mxu0 0.0
  %3042 = vmatprep.subr.mxu0 0.0
  %3043 = vmatpush2.msra.mxu0 0.0
  %3044 = vmatprep.subr.mxu0 0.0
  %3045 = vmatpush2.msra.mxu0 0.0
  %3046 = vmatprep.subr.mxu0 0.0
  %3047 = vmatpush2.msra.mxu0 0.0
  %3048 = vmatprep.subr.mxu0 0.0
  %3049 = vmatpush2.msra.mxu0 0.0
  %3050 = vmatprep.subr.mxu0 0.0
  %3051 = vmatpush2.msra.mxu0 0.0
  %3052 = vmatprep.subr.mxu0 0.0
  %3053 = vmatpush2.msra.mxu0 0.0
  %3054 = vmatprep.subr.mxu0 0.0
  %3055 = vmatpush2.msra.mxu0 0.0
  %3056 = vmatprep.subr.mxu0 0.0
  %3057 = vmatpush2.msra.mxu0 0.0
  %3058 = vmatprep.subr.mxu0 0.0
  %3059 = vmatpush2.msra.mxu0 0.0
  %3060 = vmatprep.mubr.f32.mxu0 0.0
  %3061 = vmatmul.mubr.f32.gmra.mxu0 %v2994
  %v3062 = vpop.f32.mrf.mxu0
  %v3063 = vadd.f32 0.0, %v3062
  %v3064 = vpop.f32.mrf.mxu0
  %3065 = vdwg.mxu0
  %v3066 = vmul.f32 %v93, %v3063
  %v3067 = vsel %vm412, %v3066, 0.0
  %v3068 = vrot.slane %v3067, 4
  %v3069 = vadd.f32 %v3067, %v3068
  %v3070 = vrot.slane %v3069, 2
  %v3071 = vadd.f32 %v3069, %v3070
  %v3072 = vrot.slane %v3071, 1
  %v3073 = vadd.f32 %v3071, %v3072
  %v3074 = vmul.f32 %v95, %v3073
  %v3076 = vsel %vm421, %v3074, 0
  %3078 = vmatprep.subr.mxu0 0.0
  %3079 = vmatpush1.msra.mxu0 0.0
  %3080 = vmatprep.subr.mxu0 0.0
  %3081 = vmatpush1.msra.mxu0 0.0
  %3082 = vmatprep.subr.mxu0 0.0
  %3083 = vmatpush1.msra.mxu0 0.0
  %3084 = vmatprep.subr.mxu0 0.0
  %3085 = vmatpush1.msra.mxu0 0.0
  %3086 = vmatprep.subr.mxu0 0.0
  %3087 = vmatpush1.msra.mxu0 0.0
  %3088 = vmatprep.subr.mxu0 0.0
  %3089 = vmatpush1.msra.mxu0 0.0
  %3090 = vmatprep.subr.mxu0 0.0
  %3091 = vmatpush1.msra.mxu0 0.0
  %3092 = vmatprep.subr.mxu0 0.0
  %3093 = vmatpush1.msra.mxu0 0.0
  %3094 = vmatprep.subr.mxu0 0.0
  %3095 = vmatpush1.msra.mxu0 0.0
  %3096 = vmatprep.subr.mxu0 0.0
  %3097 = vmatpush1.msra.mxu0 0.0
  %3098 = vmatprep.subr.mxu0 0.0
  %3099 = vmatpush1.msra.mxu0 0.0
  %3100 = vmatprep.subr.mxu0 0.0
  %3101 = vmatpush1.msra.mxu0 0.0
  %3102 = vmatprep.subr.mxu0 0.0
  %3103 = vmatpush1.msra.mxu0 0.0
  %3104 = vmatprep.subr.mxu0 0.0
  %3105 = vmatpush1.msra.mxu0 0.0
  %3106 = vmatprep.subr.mxu0 0.0
  %3107 = vmatpush1.msra.mxu0 %v2700
  %3108 = vmatprep.subr.mxu0 0.0
  %3109 = vmatpush1.msra.mxu0 %v85
  %3110 = vmatprep.subr.mxu0 0.0
  %3111 = vmatpush2.msra.mxu0 0.0
  %3112 = vmatprep.subr.mxu0 0.0
  %3113 = vmatpush2.msra.mxu0 0.0
  %3114 = vmatprep.subr.mxu0 0.0
  %3115 = vmatpush2.msra.mxu0 0.0
  %3116 = vmatprep.subr.mxu0 0.0
  %3117 = vmatpush2.msra.mxu0 0.0
  %3118 = vmatprep.subr.mxu0 0.0
  %3119 = vmatpush2.msra.mxu0 0.0
  %3120 = vmatprep.subr.mxu0 0.0
  %3121 = vmatpush2.msra.mxu0 0.0
  %3122 = vmatprep.subr.mxu0 0.0
  %3123 = vmatpush2.msra.mxu0 0.0
  %3124 = vmatprep.subr.mxu0 0.0
  %3125 = vmatpush2.msra.mxu0 0.0
  %3126 = vmatprep.subr.mxu0 0.0
  %3127 = vmatpush2.msra.mxu0 0.0
  %3128 = vmatprep.subr.mxu0 0.0
  %3129 = vmatpush2.msra.mxu0 0.0
  %3130 = vmatprep.subr.mxu0 0.0
  %3131 = vmatpush2.msra.mxu0 0.0
  %3132 = vmatprep.subr.mxu0 0.0
  %3133 = vmatpush2.msra.mxu0 0.0
  %3134 = vmatprep.subr.mxu0 0.0
  %3135 = vmatpush2.msra.mxu0 0.0
  %3136 = vmatprep.subr.mxu0 0.0
  %3137 = vmatpush2.msra.mxu0 0.0
  %3138 = vmatprep.subr.mxu0 0.0
  %3139 = vmatpush2.msra.mxu0 0.0
  %3140 = vmatprep.subr.mxu0 0.0
  %3141 = vmatpush2.msra.mxu0 0.0
  %3142 = vmatprep.mubr.f32.mxu0 0.0
  %3143 = vmatmul.mubr.f32.gmra.mxu0 %v3076
  %v3144 = vpop.f32.mrf.mxu0
  %v3145 = vadd.f32 0.0, %v3144
  %v3146 = vpop.f32.mrf.mxu0
  %3147 = vdwg.mxu0
  %3149 = vrot.lane.b32.xlu0 %v2948, 32
  %v3150 = vpop.permute.xlu0 %3149
  %3153 = vrot.lane.b32.xlu0 %v3145, 32
  %v3154 = vpop.permute.xlu0 %3153
  %v3156 = vsel %vm106, %v3150, %v3154
  %v3157 = vsel %vm106, %v3150, 0
  %3159 = vmatprep.subr.mxu0 0.0
  %3160 = vmatpush1.msra.mxu0 0.0
  %3161 = vmatprep.subr.mxu0 0.0
  %3162 = vmatpush1.msra.mxu0 0.0
  %3163 = vmatprep.subr.mxu0 0.0
  %3164 = vmatpush1.msra.mxu0 0.0
  %3165 = vmatprep.subr.mxu0 0.0
  %3166 = vmatpush1.msra.mxu0 0.0
  %3167 = vmatprep.subr.mxu0 0.0
  %3168 = vmatpush1.msra.mxu0 0.0
  %3169 = vmatprep.subr.mxu0 0.0
  %3170 = vmatpush1.msra.mxu0 0.0
  %3171 = vmatprep.subr.mxu0 0.0
  %3172 = vmatpush1.msra.mxu0 0.0
  %3173 = vmatprep.subr.mxu0 0.0
  %3174 = vmatpush1.msra.mxu0 0.0
  %3175 = vmatprep.subr.mxu0 0.0
  %3176 = vmatpush1.msra.mxu0 0.0
  %3177 = vmatprep.subr.mxu0 0.0
  %3178 = vmatpush1.msra.mxu0 0.0
  %3179 = vmatprep.subr.mxu0 0.0
  %3180 = vmatpush1.msra.mxu0 0.0
  %3181 = vmatprep.subr.mxu0 0.0
  %3182 = vmatpush1.msra.mxu0 0.0
  %3183 = vmatprep.subr.mxu0 0.0
  %3184 = vmatpush1.msra.mxu0 %v81
  %3185 = vmatprep.subr.mxu0 0.0
  %3186 = vmatpush1.msra.mxu0 %v80
  %3187 = vmatprep.subr.mxu0 0.0
  %3188 = vmatpush1.msra.mxu0 %v79
  %3189 = vmatprep.subr.mxu0 0.0
  %3190 = vmatpush1.msra.mxu0 %v78
  %3191 = vmatprep.subr.mxu0 0.0
  %3192 = vmatpush2.msra.mxu0 0.0
  %3193 = vmatprep.subr.mxu0 0.0
  %3194 = vmatpush2.msra.mxu0 0.0
  %3195 = vmatprep.subr.mxu0 0.0
  %3196 = vmatpush2.msra.mxu0 0.0
  %3197 = vmatprep.subr.mxu0 0.0
  %3198 = vmatpush2.msra.mxu0 0.0
  %3199 = vmatprep.subr.mxu0 0.0
  %3200 = vmatpush2.msra.mxu0 0.0
  %3201 = vmatprep.subr.mxu0 0.0
  %3202 = vmatpush2.msra.mxu0 0.0
  %3203 = vmatprep.subr.mxu0 0.0
  %3204 = vmatpush2.msra.mxu0 0.0
  %3205 = vmatprep.subr.mxu0 0.0
  %3206 = vmatpush2.msra.mxu0 0.0
  %3207 = vmatprep.subr.mxu0 0.0
  %3208 = vmatpush2.msra.mxu0 0.0
  %3209 = vmatprep.subr.mxu0 0.0
  %3210 = vmatpush2.msra.mxu0 0.0
  %3211 = vmatprep.subr.mxu0 0.0
  %3212 = vmatpush2.msra.mxu0 0.0
  %3213 = vmatprep.subr.mxu0 0.0
  %3214 = vmatpush2.msra.mxu0 0.0
  %3215 = vmatprep.subr.mxu0 0.0
  %3216 = vmatpush2.msra.mxu0 0.0
  %3217 = vmatprep.subr.mxu0 0.0
  %3218 = vmatpush2.msra.mxu0 0.0
  %3219 = vmatprep.subr.mxu0 0.0
  %3220 = vmatpush2.msra.mxu0 0.0
  %3221 = vmatprep.subr.mxu0 0.0
  %3222 = vmatpush2.msra.mxu0 0.0
  %3223 = vmatprep.mubr.f32.mxu0 0.0
  %3224 = vmatmul.mubr.f32.gmra.mxu0 %v3157
  %v3225 = vpop.f32.mrf.mxu0
  %v3226 = vadd.f32 0.0, %v3225
  %v3227 = vpop.f32.mrf.mxu0
  %3228 = vdwg.mxu0
  %v3230 = vsel %vm2467, %v1262, 0
  %3232 = vmatprep.subr.mxu0 0.0
  %3233 = vmatpush1.msra.mxu0 0.0
  %3234 = vmatprep.subr.mxu0 0.0
  %3235 = vmatpush1.msra.mxu0 0.0
  %3236 = vmatprep.subr.mxu0 0.0
  %3237 = vmatpush1.msra.mxu0 0.0
  %3238 = vmatprep.subr.mxu0 0.0
  %3239 = vmatpush1.msra.mxu0 0.0
  %3240 = vmatprep.subr.mxu0 0.0
  %3241 = vmatpush1.msra.mxu0 0.0
  %3242 = vmatprep.subr.mxu0 0.0
  %3243 = vmatpush1.msra.mxu0 0.0
  %3244 = vmatprep.subr.mxu0 0.0
  %3245 = vmatpush1.msra.mxu0 0.0
  %3246 = vmatprep.subr.mxu0 0.0
  %3247 = vmatpush1.msra.mxu0 0.0
  %3248 = vmatprep.subr.mxu0 0.0
  %3249 = vmatpush1.msra.mxu0 %v77
  %3250 = vmatprep.subr.mxu0 0.0
  %3251 = vmatpush1.msra.mxu0 %v76
  %3252 = vmatprep.subr.mxu0 0.0
  %3253 = vmatpush1.msra.mxu0 %v75
  %3254 = vmatprep.subr.mxu0 0.0
  %3255 = vmatpush1.msra.mxu0 %v74
  %3256 = vmatprep.subr.mxu0 0.0
  %3257 = vmatpush1.msra.mxu0 %v73
  %3258 = vmatprep.subr.mxu0 0.0
  %3259 = vmatpush1.msra.mxu0 %v72
  %3260 = vmatprep.subr.mxu0 0.0
  %3261 = vmatpush1.msra.mxu0 %v71
  %3262 = vmatprep.subr.mxu0 0.0
  %3263 = vmatpush1.msra.mxu0 %v70
  %3264 = vmatprep.subr.mxu0 0.0
  %3265 = vmatpush2.msra.mxu0 0.0
  %3266 = vmatprep.subr.mxu0 0.0
  %3267 = vmatpush2.msra.mxu0 0.0
  %3268 = vmatprep.subr.mxu0 0.0
  %3269 = vmatpush2.msra.mxu0 0.0
  %3270 = vmatprep.subr.mxu0 0.0
  %3271 = vmatpush2.msra.mxu0 0.0
  %3272 = vmatprep.subr.mxu0 0.0
  %3273 = vmatpush2.msra.mxu0 0.0
  %3274 = vmatprep.subr.mxu0 0.0
  %3275 = vmatpush2.msra.mxu0 0.0
  %3276 = vmatprep.subr.mxu0 0.0
  %3277 = vmatpush2.msra.mxu0 0.0
  %3278 = vmatprep.subr.mxu0 0.0
  %3279 = vmatpush2.msra.mxu0 0.0
  %3280 = vmatprep.subr.mxu0 0.0
  %3281 = vmatpush2.msra.mxu0 0.0
  %3282 = vmatprep.subr.mxu0 0.0
  %3283 = vmatpush2.msra.mxu0 0.0
  %3284 = vmatprep.subr.mxu0 0.0
  %3285 = vmatpush2.msra.mxu0 0.0
  %3286 = vmatprep.subr.mxu0 0.0
  %3287 = vmatpush2.msra.mxu0 0.0
  %3288 = vmatprep.subr.mxu0 0.0
  %3289 = vmatpush2.msra.mxu0 0.0
  %3290 = vmatprep.subr.mxu0 0.0
  %3291 = vmatpush2.msra.mxu0 0.0
  %3292 = vmatprep.subr.mxu0 0.0
  %3293 = vmatpush2.msra.mxu0 0.0
  %3294 = vmatprep.subr.mxu0 0.0
  %3295 = vmatpush2.msra.mxu0 0.0
  %3296 = vmatprep.mubr.f32.mxu0 0.0
  %3297 = vmatmul.mubr.f32.gmra.mxu0 %v3230
  %v3298 = vpop.f32.mrf.mxu0
  %v3299 = vadd.f32 %v3226, %v3298
  %v3300 = vpop.f32.mrf.mxu0
  %3301 = vdwg.mxu0
  %v3302 = vadd.f32 %v3299, %v2545
  %v3303 = vmul.f32 %v3302, 0.5
  %v3304 = vtanh.pop %v3303
  %v3305 = vadd.f32 %v3304, 1.0
  %v3306 = vmul.f32 %v3305, 0.5
  %v3307 = vtanh.pop %v3302
  %v3308 = vmul.f32 %v3306, %v2942
  %3310 = vrot.lane.b32.xlu0 %v3307, 64
  %v3311 = vpop.permute.xlu0 %3310
  %v3313 = vmul.f32 %v3306, %v3311
  %3315 = vrot.lane.b32.xlu0 %v3313, 32
  %v3316 = vpop.permute.xlu0 %3315
  %v3318 = vadd.f32 %v3308, %v3316
  %v3319 = vtanh.pop %v3318
  %3321 = vrot.lane.b32.xlu0 %v3319, 64
  %v3322 = vpop.permute.xlu0 %3321
  %v3324 = vmul.f32 %v3306, %v3322
  %v3325 = vlaneseq
  %v3326 = vshrl.u32 %v3325, 7
  %v3327 = vsub.s32 0, %v3326
  %v3328 = vrot.slane %v3324, %v3327
  %3330 = vrot.lane.b32.xlu0 %v3328, 32
  %v3331 = vpop.permute.xlu0 %3330
  %v3333 = vmul.f32 %v90, %v3331
  %v3334 = vsel %vm295, %v3333, 0.0
  %3335 = vadd.xlane.f32.xlu0 %v3334
  %v3336 = vpop.xlane.xlu0 %3335
  %v3337 = vlaneseq
  %v3338 = vshrl.u32 %v3337, 7
  %v3339 = vsub.s32 1, %v3338
  %v3340 = vrot.slane %v3324, %v3339
  %3342 = vrot.lane.b32.xlu0 %v3340, 32
  %v3343 = vpop.permute.xlu0 %3342
  %v3345 = vmul.f32 %v92, %v3343
  %v3346 = vsel %vm295, %v3345, 0.0
  %3347 = vadd.xlane.f32.xlu0 %v3346
  %v3348 = vpop.xlane.xlu0 %3347
  %v3349 = vsel %vm311, %v3336, %v3348
  %v3350 = vsel %vm313, %v3349, -inf
  %v3351 = vrot.slane %v3350, 4
  %v3352 = vmax.f32 %v3350, %v3351
  %v3353 = vrot.slane %v3352, 2
  %v3354 = vmax.f32 %v3352, %v3353
  %v3355 = vrot.slane %v3354, 1
  %v3356 = vmax.f32 %v3354, %v3355
  %v3357 = vsub.f32 %v3349, %v3356
  %v3358 = vmul.f32 %v3357, 1.442695
  %v3359 = vpow.pop %v3358
  %v3360 = vsel %vm313, %v3359, 0.0
  %v3361 = vrot.slane %v3360, 4
  %v3362 = vadd.f32 %v3360, %v3361
  %v3363 = vrot.slane %v3362, 2
  %v3364 = vadd.f32 %v3362, %v3363
  %v3365 = vrot.slane %v3364, 1
  %v3366 = vadd.f32 %v3364, %v3365
  %v3367 = vrcp.pop %v3366
  %v3368 = vmul.f32 %v3359, %v3367
  %v3370 = vsel %vm333, %v3368, 0
  %3372 = vmatprep.subr.mxu0 0.0
  %3373 = vmatpush1.msra.mxu0 0.0
  %3374 = vmatprep.subr.mxu0 0.0
  %3375 = vmatpush1.msra.mxu0 0.0
  %3376 = vmatprep.subr.mxu0 0.0
  %3377 = vmatpush1.msra.mxu0 0.0
  %3378 = vmatprep.subr.mxu0 0.0
  %3379 = vmatpush1.msra.mxu0 0.0
  %3380 = vmatprep.subr.mxu0 0.0
  %3381 = vmatpush1.msra.mxu0 0.0
  %3382 = vmatprep.subr.mxu0 0.0
  %3383 = vmatpush1.msra.mxu0 0.0
  %3384 = vmatprep.subr.mxu0 0.0
  %3385 = vmatpush1.msra.mxu0 0.0
  %3386 = vmatprep.subr.mxu0 0.0
  %3387 = vmatpush1.msra.mxu0 0.0
  %3388 = vmatprep.subr.mxu0 0.0
  %3389 = vmatpush1.msra.mxu0 0.0
  %3390 = vmatprep.subr.mxu0 0.0
  %3391 = vmatpush1.msra.mxu0 0.0
  %3392 = vmatprep.subr.mxu0 0.0
  %3393 = vmatpush1.msra.mxu0 0.0
  %3394 = vmatprep.subr.mxu0 0.0
  %3395 = vmatpush1.msra.mxu0 0.0
  %3396 = vmatprep.subr.mxu0 0.0
  %3397 = vmatpush1.msra.mxu0 0.0
  %3398 = vmatprep.subr.mxu0 0.0
  %3399 = vmatpush1.msra.mxu0 0.0
  %3400 = vmatprep.subr.mxu0 0.0
  %3401 = vmatpush1.msra.mxu0 0.0
  %3402 = vmatprep.subr.mxu0 0.0
  %3403 = vmatpush1.msra.mxu0 %v339
  %3404 = vmatprep.subr.mxu0 0.0
  %3405 = vmatpush2.msra.mxu0 0.0
  %3406 = vmatprep.subr.mxu0 0.0
  %3407 = vmatpush2.msra.mxu0 0.0
  %3408 = vmatprep.subr.mxu0 0.0
  %3409 = vmatpush2.msra.mxu0 0.0
  %3410 = vmatprep.subr.mxu0 0.0
  %3411 = vmatpush2.msra.mxu0 0.0
  %3412 = vmatprep.subr.mxu0 0.0
  %3413 = vmatpush2.msra.mxu0 0.0
  %3414 = vmatprep.subr.mxu0 0.0
  %3415 = vmatpush2.msra.mxu0 0.0
  %3416 = vmatprep.subr.mxu0 0.0
  %3417 = vmatpush2.msra.mxu0 0.0
  %3418 = vmatprep.subr.mxu0 0.0
  %3419 = vmatpush2.msra.mxu0 0.0
  %3420 = vmatprep.subr.mxu0 0.0
  %3421 = vmatpush2.msra.mxu0 0.0
  %3422 = vmatprep.subr.mxu0 0.0
  %3423 = vmatpush2.msra.mxu0 0.0
  %3424 = vmatprep.subr.mxu0 0.0
  %3425 = vmatpush2.msra.mxu0 0.0
  %3426 = vmatprep.subr.mxu0 0.0
  %3427 = vmatpush2.msra.mxu0 0.0
  %3428 = vmatprep.subr.mxu0 0.0
  %3429 = vmatpush2.msra.mxu0 0.0
  %3430 = vmatprep.subr.mxu0 0.0
  %3431 = vmatpush2.msra.mxu0 0.0
  %3432 = vmatprep.subr.mxu0 0.0
  %3433 = vmatpush2.msra.mxu0 0.0
  %3434 = vmatprep.subr.mxu0 0.0
  %3435 = vmatpush2.msra.mxu0 0.0
  %3436 = vmatprep.mubr.f32.mxu0 0.0
  %3437 = vmatmul.mubr.f32.gmra.mxu0 %v3370
  %v3438 = vpop.f32.mrf.mxu0
  %v3439 = vadd.f32 0.0, %v3438
  %v3440 = vpop.f32.mrf.mxu0
  %3441 = vdwg.mxu0
  %v3442 = vmul.f32 %v93, %v3439
  %v3443 = vsel %vm412, %v3442, 0.0
  %v3444 = vrot.slane %v3443, 4
  %v3445 = vadd.f32 %v3443, %v3444
  %v3446 = vrot.slane %v3445, 2
  %v3447 = vadd.f32 %v3445, %v3446
  %v3448 = vrot.slane %v3447, 1
  %v3449 = vadd.f32 %v3447, %v3448
  %v3450 = vmul.f32 %v95, %v3449
  %v3452 = vsel %vm421, %v3450, 0
  %3454 = vmatprep.subr.mxu0 0.0
  %3455 = vmatpush1.msra.mxu0 0.0
  %3456 = vmatprep.subr.mxu0 0.0
  %3457 = vmatpush1.msra.mxu0 0.0
  %3458 = vmatprep.subr.mxu0 0.0
  %3459 = vmatpush1.msra.mxu0 0.0
  %3460 = vmatprep.subr.mxu0 0.0
  %3461 = vmatpush1.msra.mxu0 0.0
  %3462 = vmatprep.subr.mxu0 0.0
  %3463 = vmatpush1.msra.mxu0 0.0
  %3464 = vmatprep.subr.mxu0 0.0
  %3465 = vmatpush1.msra.mxu0 0.0
  %3466 = vmatprep.subr.mxu0 0.0
  %3467 = vmatpush1.msra.mxu0 0.0
  %3468 = vmatprep.subr.mxu0 0.0
  %3469 = vmatpush1.msra.mxu0 0.0
  %3470 = vmatprep.subr.mxu0 0.0
  %3471 = vmatpush1.msra.mxu0 0.0
  %3472 = vmatprep.subr.mxu0 0.0
  %3473 = vmatpush1.msra.mxu0 0.0
  %3474 = vmatprep.subr.mxu0 0.0
  %3475 = vmatpush1.msra.mxu0 0.0
  %3476 = vmatprep.subr.mxu0 0.0
  %3477 = vmatpush1.msra.mxu0 0.0
  %3478 = vmatprep.subr.mxu0 0.0
  %3479 = vmatpush1.msra.mxu0 0.0
  %3480 = vmatprep.subr.mxu0 0.0
  %3481 = vmatpush1.msra.mxu0 0.0
  %3482 = vmatprep.subr.mxu0 0.0
  %3483 = vmatpush1.msra.mxu0 %v2700
  %3484 = vmatprep.subr.mxu0 0.0
  %3485 = vmatpush1.msra.mxu0 %v85
  %3486 = vmatprep.subr.mxu0 0.0
  %3487 = vmatpush2.msra.mxu0 0.0
  %3488 = vmatprep.subr.mxu0 0.0
  %3489 = vmatpush2.msra.mxu0 0.0
  %3490 = vmatprep.subr.mxu0 0.0
  %3491 = vmatpush2.msra.mxu0 0.0
  %3492 = vmatprep.subr.mxu0 0.0
  %3493 = vmatpush2.msra.mxu0 0.0
  %3494 = vmatprep.subr.mxu0 0.0
  %3495 = vmatpush2.msra.mxu0 0.0
  %3496 = vmatprep.subr.mxu0 0.0
  %3497 = vmatpush2.msra.mxu0 0.0
  %3498 = vmatprep.subr.mxu0 0.0
  %3499 = vmatpush2.msra.mxu0 0.0
  %3500 = vmatprep.subr.mxu0 0.0
  %3501 = vmatpush2.msra.mxu0 0.0
  %3502 = vmatprep.subr.mxu0 0.0
  %3503 = vmatpush2.msra.mxu0 0.0
  %3504 = vmatprep.subr.mxu0 0.0
  %3505 = vmatpush2.msra.mxu0 0.0
  %3506 = vmatprep.subr.mxu0 0.0
  %3507 = vmatpush2.msra.mxu0 0.0
  %3508 = vmatprep.subr.mxu0 0.0
  %3509 = vmatpush2.msra.mxu0 0.0
  %3510 = vmatprep.subr.mxu0 0.0
  %3511 = vmatpush2.msra.mxu0 0.0
  %3512 = vmatprep.subr.mxu0 0.0
  %3513 = vmatpush2.msra.mxu0 0.0
  %3514 = vmatprep.subr.mxu0 0.0
  %3515 = vmatpush2.msra.mxu0 0.0
  %3516 = vmatprep.subr.mxu0 0.0
  %3517 = vmatpush2.msra.mxu0 0.0
  %3518 = vmatprep.mubr.f32.mxu0 0.0
  %3519 = vmatmul.mubr.f32.gmra.mxu0 %v3452
  %v3520 = vpop.f32.mrf.mxu0
  %v3521 = vadd.f32 0.0, %v3520
  %v3522 = vpop.f32.mrf.mxu0
  %3523 = vdwg.mxu0
  %3525 = vrot.lane.b32.xlu0 %v3324, 32
  %v3526 = vpop.permute.xlu0 %3525
  %3529 = vrot.lane.b32.xlu0 %v3521, 32
  %v3530 = vpop.permute.xlu0 %3529
  %v3532 = vsel %vm106, %v3526, %v3530
  %v3533 = vsel %vm106, %v3526, 0
  %3535 = vmatprep.subr.mxu0 0.0
  %3536 = vmatpush1.msra.mxu0 0.0
  %3537 = vmatprep.subr.mxu0 0.0
  %3538 = vmatpush1.msra.mxu0 0.0
  %3539 = vmatprep.subr.mxu0 0.0
  %3540 = vmatpush1.msra.mxu0 0.0
  %3541 = vmatprep.subr.mxu0 0.0
  %3542 = vmatpush1.msra.mxu0 0.0
  %3543 = vmatprep.subr.mxu0 0.0
  %3544 = vmatpush1.msra.mxu0 0.0
  %3545 = vmatprep.subr.mxu0 0.0
  %3546 = vmatpush1.msra.mxu0 0.0
  %3547 = vmatprep.subr.mxu0 0.0
  %3548 = vmatpush1.msra.mxu0 0.0
  %3549 = vmatprep.subr.mxu0 0.0
  %3550 = vmatpush1.msra.mxu0 0.0
  %3551 = vmatprep.subr.mxu0 0.0
  %3552 = vmatpush1.msra.mxu0 0.0
  %3553 = vmatprep.subr.mxu0 0.0
  %3554 = vmatpush1.msra.mxu0 0.0
  %3555 = vmatprep.subr.mxu0 0.0
  %3556 = vmatpush1.msra.mxu0 0.0
  %3557 = vmatprep.subr.mxu0 0.0
  %3558 = vmatpush1.msra.mxu0 0.0
  %3559 = vmatprep.subr.mxu0 0.0
  %3560 = vmatpush1.msra.mxu0 %v81
  %3561 = vmatprep.subr.mxu0 0.0
  %3562 = vmatpush1.msra.mxu0 %v80
  %3563 = vmatprep.subr.mxu0 0.0
  %3564 = vmatpush1.msra.mxu0 %v79
  %3565 = vmatprep.subr.mxu0 0.0
  %3566 = vmatpush1.msra.mxu0 %v78
  %3567 = vmatprep.subr.mxu0 0.0
  %3568 = vmatpush2.msra.mxu0 0.0
  %3569 = vmatprep.subr.mxu0 0.0
  %3570 = vmatpush2.msra.mxu0 0.0
  %3571 = vmatprep.subr.mxu0 0.0
  %3572 = vmatpush2.msra.mxu0 0.0
  %3573 = vmatprep.subr.mxu0 0.0
  %3574 = vmatpush2.msra.mxu0 0.0
  %3575 = vmatprep.subr.mxu0 0.0
  %3576 = vmatpush2.msra.mxu0 0.0
  %3577 = vmatprep.subr.mxu0 0.0
  %3578 = vmatpush2.msra.mxu0 0.0
  %3579 = vmatprep.subr.mxu0 0.0
  %3580 = vmatpush2.msra.mxu0 0.0
  %3581 = vmatprep.subr.mxu0 0.0
  %3582 = vmatpush2.msra.mxu0 0.0
  %3583 = vmatprep.subr.mxu0 0.0
  %3584 = vmatpush2.msra.mxu0 0.0
  %3585 = vmatprep.subr.mxu0 0.0
  %3586 = vmatpush2.msra.mxu0 0.0
  %3587 = vmatprep.subr.mxu0 0.0
  %3588 = vmatpush2.msra.mxu0 0.0
  %3589 = vmatprep.subr.mxu0 0.0
  %3590 = vmatpush2.msra.mxu0 0.0
  %3591 = vmatprep.subr.mxu0 0.0
  %3592 = vmatpush2.msra.mxu0 0.0
  %3593 = vmatprep.subr.mxu0 0.0
  %3594 = vmatpush2.msra.mxu0 0.0
  %3595 = vmatprep.subr.mxu0 0.0
  %3596 = vmatpush2.msra.mxu0 0.0
  %3597 = vmatprep.subr.mxu0 0.0
  %3598 = vmatpush2.msra.mxu0 0.0
  %3599 = vmatprep.mubr.f32.mxu0 0.0
  %3600 = vmatmul.mubr.f32.gmra.mxu0 %v3533
  %v3601 = vpop.f32.mrf.mxu0
  %v3602 = vadd.f32 0.0, %v3601
  %v3603 = vpop.f32.mrf.mxu0
  %3604 = vdwg.mxu0
  %v3606 = vsel %vm2467, %v1640, 0
  %3608 = vmatprep.subr.mxu0 0.0
  %3609 = vmatpush1.msra.mxu0 0.0
  %3610 = vmatprep.subr.mxu0 0.0
  %3611 = vmatpush1.msra.mxu0 0.0
  %3612 = vmatprep.subr.mxu0 0.0
  %3613 = vmatpush1.msra.mxu0 0.0
  %3614 = vmatprep.subr.mxu0 0.0
  %3615 = vmatpush1.msra.mxu0 0.0
  %3616 = vmatprep.subr.mxu0 0.0
  %3617 = vmatpush1.msra.mxu0 0.0
  %3618 = vmatprep.subr.mxu0 0.0
  %3619 = vmatpush1.msra.mxu0 0.0
  %3620 = vmatprep.subr.mxu0 0.0
  %3621 = vmatpush1.msra.mxu0 0.0
  %3622 = vmatprep.subr.mxu0 0.0
  %3623 = vmatpush1.msra.mxu0 0.0
  %3624 = vmatprep.subr.mxu0 0.0
  %3625 = vmatpush1.msra.mxu0 %v77
  %3626 = vmatprep.subr.mxu0 0.0
  %3627 = vmatpush1.msra.mxu0 %v76
  %3628 = vmatprep.subr.mxu0 0.0
  %3629 = vmatpush1.msra.mxu0 %v75
  %3630 = vmatprep.subr.mxu0 0.0
  %3631 = vmatpush1.msra.mxu0 %v74
  %3632 = vmatprep.subr.mxu0 0.0
  %3633 = vmatpush1.msra.mxu0 %v73
  %3634 = vmatprep.subr.mxu0 0.0
  %3635 = vmatpush1.msra.mxu0 %v72
  %3636 = vmatprep.subr.mxu0 0.0
  %3637 = vmatpush1.msra.mxu0 %v71
  %3638 = vmatprep.subr.mxu0 0.0
  %3639 = vmatpush1.msra.mxu0 %v70
  %3640 = vmatprep.subr.mxu0 0.0
  %3641 = vmatpush2.msra.mxu0 0.0
  %3642 = vmatprep.subr.mxu0 0.0
  %3643 = vmatpush2.msra.mxu0 0.0
  %3644 = vmatprep.subr.mxu0 0.0
  %3645 = vmatpush2.msra.mxu0 0.0
  %3646 = vmatprep.subr.mxu0 0.0
  %3647 = vmatpush2.msra.mxu0 0.0
  %3648 = vmatprep.subr.mxu0 0.0
  %3649 = vmatpush2.msra.mxu0 0.0
  %3650 = vmatprep.subr.mxu0 0.0
  %3651 = vmatpush2.msra.mxu0 0.0
  %3652 = vmatprep.subr.mxu0 0.0
  %3653 = vmatpush2.msra.mxu0 0.0
  %3654 = vmatprep.subr.mxu0 0.0
  %3655 = vmatpush2.msra.mxu0 0.0
  %3656 = vmatprep.subr.mxu0 0.0
  %3657 = vmatpush2.msra.mxu0 0.0
  %3658 = vmatprep.subr.mxu0 0.0
  %3659 = vmatpush2.msra.mxu0 0.0
  %3660 = vmatprep.subr.mxu0 0.0
  %3661 = vmatpush2.msra.mxu0 0.0
  %3662 = vmatprep.subr.mxu0 0.0
  %3663 = vmatpush2.msra.mxu0 0.0
  %3664 = vmatprep.subr.mxu0 0.0
  %3665 = vmatpush2.msra.mxu0 0.0
  %3666 = vmatprep.subr.mxu0 0.0
  %3667 = vmatpush2.msra.mxu0 0.0
  %3668 = vmatprep.subr.mxu0 0.0
  %3669 = vmatpush2.msra.mxu0 0.0
  %3670 = vmatprep.subr.mxu0 0.0
  %3671 = vmatpush2.msra.mxu0 0.0
  %3672 = vmatprep.mubr.f32.mxu0 0.0
  %3673 = vmatmul.mubr.f32.gmra.mxu0 %v3606
  %v3674 = vpop.f32.mrf.mxu0
  %v3675 = vadd.f32 %v3602, %v3674
  %v3676 = vpop.f32.mrf.mxu0
  %3677 = vdwg.mxu0
  %v3678 = vadd.f32 %v3675, %v2545
  %v3679 = vmul.f32 %v3678, 0.5
  %v3680 = vtanh.pop %v3679
  %v3681 = vadd.f32 %v3680, 1.0
  %v3682 = vmul.f32 %v3681, 0.5
  %v3683 = vtanh.pop %v3678
  %v3684 = vmul.f32 %v3682, %v3318
  %3686 = vrot.lane.b32.xlu0 %v3683, 64
  %v3687 = vpop.permute.xlu0 %3686
  %v3689 = vmul.f32 %v3682, %v3687
  %3691 = vrot.lane.b32.xlu0 %v3689, 32
  %v3692 = vpop.permute.xlu0 %3691
  %v3694 = vadd.f32 %v3684, %v3692
  %v3695 = vtanh.pop %v3694
  %3697 = vrot.lane.b32.xlu0 %v3695, 64
  %v3698 = vpop.permute.xlu0 %3697
  %v3700 = vmul.f32 %v3682, %v3698
  %v3701 = vlaneseq
  %v3702 = vshrl.u32 %v3701, 7
  %v3703 = vsub.s32 0, %v3702
  %v3704 = vrot.slane %v3700, %v3703
  %3706 = vrot.lane.b32.xlu0 %v3704, 32
  %v3707 = vpop.permute.xlu0 %3706
  %v3709 = vmul.f32 %v90, %v3707
  %v3710 = vsel %vm295, %v3709, 0.0
  %3711 = vadd.xlane.f32.xlu0 %v3710
  %v3712 = vpop.xlane.xlu0 %3711
  %v3713 = vlaneseq
  %v3714 = vshrl.u32 %v3713, 7
  %v3715 = vsub.s32 1, %v3714
  %v3716 = vrot.slane %v3700, %v3715
  %3718 = vrot.lane.b32.xlu0 %v3716, 32
  %v3719 = vpop.permute.xlu0 %3718
  %v3721 = vmul.f32 %v92, %v3719
  %v3722 = vsel %vm295, %v3721, 0.0
  %3723 = vadd.xlane.f32.xlu0 %v3722
  %v3724 = vpop.xlane.xlu0 %3723
  %v3725 = vsel %vm311, %v3712, %v3724
  %v3726 = vsel %vm313, %v3725, -inf
  %v3727 = vrot.slane %v3726, 4
  %v3728 = vmax.f32 %v3726, %v3727
  %v3729 = vrot.slane %v3728, 2
  %v3730 = vmax.f32 %v3728, %v3729
  %v3731 = vrot.slane %v3730, 1
  %v3732 = vmax.f32 %v3730, %v3731
  %v3733 = vsub.f32 %v3725, %v3732
  %v3734 = vmul.f32 %v3733, 1.442695
  %v3735 = vpow.pop %v3734
  %v3736 = vsel %vm313, %v3735, 0.0
  %v3737 = vrot.slane %v3736, 4
  %v3738 = vadd.f32 %v3736, %v3737
  %v3739 = vrot.slane %v3738, 2
  %v3740 = vadd.f32 %v3738, %v3739
  %v3741 = vrot.slane %v3740, 1
  %v3742 = vadd.f32 %v3740, %v3741
  %v3743 = vrcp.pop %v3742
  %v3744 = vmul.f32 %v3735, %v3743
  %v3746 = vsel %vm333, %v3744, 0
  %3748 = vmatprep.subr.mxu0 0.0
  %3749 = vmatpush1.msra.mxu0 0.0
  %3750 = vmatprep.subr.mxu0 0.0
  %3751 = vmatpush1.msra.mxu0 0.0
  %3752 = vmatprep.subr.mxu0 0.0
  %3753 = vmatpush1.msra.mxu0 0.0
  %3754 = vmatprep.subr.mxu0 0.0
  %3755 = vmatpush1.msra.mxu0 0.0
  %3756 = vmatprep.subr.mxu0 0.0
  %3757 = vmatpush1.msra.mxu0 0.0
  %3758 = vmatprep.subr.mxu0 0.0
  %3759 = vmatpush1.msra.mxu0 0.0
  %3760 = vmatprep.subr.mxu0 0.0
  %3761 = vmatpush1.msra.mxu0 0.0
  %3762 = vmatprep.subr.mxu0 0.0
  %3763 = vmatpush1.msra.mxu0 0.0
  %3764 = vmatprep.subr.mxu0 0.0
  %3765 = vmatpush1.msra.mxu0 0.0
  %3766 = vmatprep.subr.mxu0 0.0
  %3767 = vmatpush1.msra.mxu0 0.0
  %3768 = vmatprep.subr.mxu0 0.0
  %3769 = vmatpush1.msra.mxu0 0.0
  %3770 = vmatprep.subr.mxu0 0.0
  %3771 = vmatpush1.msra.mxu0 0.0
  %3772 = vmatprep.subr.mxu0 0.0
  %3773 = vmatpush1.msra.mxu0 0.0
  %3774 = vmatprep.subr.mxu0 0.0
  %3775 = vmatpush1.msra.mxu0 0.0
  %3776 = vmatprep.subr.mxu0 0.0
  %3777 = vmatpush1.msra.mxu0 0.0
  %3778 = vmatprep.subr.mxu0 0.0
  %3779 = vmatpush1.msra.mxu0 %v339
  %3780 = vmatprep.subr.mxu0 0.0
  %3781 = vmatpush2.msra.mxu0 0.0
  %3782 = vmatprep.subr.mxu0 0.0
  %3783 = vmatpush2.msra.mxu0 0.0
  %3784 = vmatprep.subr.mxu0 0.0
  %3785 = vmatpush2.msra.mxu0 0.0
  %3786 = vmatprep.subr.mxu0 0.0
  %3787 = vmatpush2.msra.mxu0 0.0
  %3788 = vmatprep.subr.mxu0 0.0
  %3789 = vmatpush2.msra.mxu0 0.0
  %3790 = vmatprep.subr.mxu0 0.0
  %3791 = vmatpush2.msra.mxu0 0.0
  %3792 = vmatprep.subr.mxu0 0.0
  %3793 = vmatpush2.msra.mxu0 0.0
  %3794 = vmatprep.subr.mxu0 0.0
  %3795 = vmatpush2.msra.mxu0 0.0
  %3796 = vmatprep.subr.mxu0 0.0
  %3797 = vmatpush2.msra.mxu0 0.0
  %3798 = vmatprep.subr.mxu0 0.0
  %3799 = vmatpush2.msra.mxu0 0.0
  %3800 = vmatprep.subr.mxu0 0.0
  %3801 = vmatpush2.msra.mxu0 0.0
  %3802 = vmatprep.subr.mxu0 0.0
  %3803 = vmatpush2.msra.mxu0 0.0
  %3804 = vmatprep.subr.mxu0 0.0
  %3805 = vmatpush2.msra.mxu0 0.0
  %3806 = vmatprep.subr.mxu0 0.0
  %3807 = vmatpush2.msra.mxu0 0.0
  %3808 = vmatprep.subr.mxu0 0.0
  %3809 = vmatpush2.msra.mxu0 0.0
  %3810 = vmatprep.subr.mxu0 0.0
  %3811 = vmatpush2.msra.mxu0 0.0
  %3812 = vmatprep.mubr.f32.mxu0 0.0
  %3813 = vmatmul.mubr.f32.gmra.mxu0 %v3746
  %v3814 = vpop.f32.mrf.mxu0
  %v3815 = vadd.f32 0.0, %v3814
  %v3816 = vpop.f32.mrf.mxu0
  %3817 = vdwg.mxu0
  %v3818 = vmul.f32 %v93, %v3815
  %v3819 = vsel %vm412, %v3818, 0.0
  %v3820 = vrot.slane %v3819, 4
  %v3821 = vadd.f32 %v3819, %v3820
  %v3822 = vrot.slane %v3821, 2
  %v3823 = vadd.f32 %v3821, %v3822
  %v3824 = vrot.slane %v3823, 1
  %v3825 = vadd.f32 %v3823, %v3824
  %v3826 = vmul.f32 %v95, %v3825
  %v3828 = vsel %vm421, %v3826, 0
  %3830 = vmatprep.subr.mxu0 0.0
  %3831 = vmatpush1.msra.mxu0 0.0
  %3832 = vmatprep.subr.mxu0 0.0
  %3833 = vmatpush1.msra.mxu0 0.0
  %3834 = vmatprep.subr.mxu0 0.0
  %3835 = vmatpush1.msra.mxu0 0.0
  %3836 = vmatprep.subr.mxu0 0.0
  %3837 = vmatpush1.msra.mxu0 0.0
  %3838 = vmatprep.subr.mxu0 0.0
  %3839 = vmatpush1.msra.mxu0 0.0
  %3840 = vmatprep.subr.mxu0 0.0
  %3841 = vmatpush1.msra.mxu0 0.0
  %3842 = vmatprep.subr.mxu0 0.0
  %3843 = vmatpush1.msra.mxu0 0.0
  %3844 = vmatprep.subr.mxu0 0.0
  %3845 = vmatpush1.msra.mxu0 0.0
  %3846 = vmatprep.subr.mxu0 0.0
  %3847 = vmatpush1.msra.mxu0 0.0
  %3848 = vmatprep.subr.mxu0 0.0
  %3849 = vmatpush1.msra.mxu0 0.0
  %3850 = vmatprep.subr.mxu0 0.0
  %3851 = vmatpush1.msra.mxu0 0.0
  %3852 = vmatprep.subr.mxu0 0.0
  %3853 = vmatpush1.msra.mxu0 0.0
  %3854 = vmatprep.subr.mxu0 0.0
  %3855 = vmatpush1.msra.mxu0 0.0
  %3856 = vmatprep.subr.mxu0 0.0
  %3857 = vmatpush1.msra.mxu0 0.0
  %3858 = vmatprep.subr.mxu0 0.0
  %3859 = vmatpush1.msra.mxu0 %v2700
  %3860 = vmatprep.subr.mxu0 0.0
  %3861 = vmatpush1.msra.mxu0 %v85
  %3862 = vmatprep.subr.mxu0 0.0
  %3863 = vmatpush2.msra.mxu0 0.0
  %3864 = vmatprep.subr.mxu0 0.0
  %3865 = vmatpush2.msra.mxu0 0.0
  %3866 = vmatprep.subr.mxu0 0.0
  %3867 = vmatpush2.msra.mxu0 0.0
  %3868 = vmatprep.subr.mxu0 0.0
  %3869 = vmatpush2.msra.mxu0 0.0
  %3870 = vmatprep.subr.mxu0 0.0
  %3871 = vmatpush2.msra.mxu0 0.0
  %3872 = vmatprep.subr.mxu0 0.0
  %3873 = vmatpush2.msra.mxu0 0.0
  %3874 = vmatprep.subr.mxu0 0.0
  %3875 = vmatpush2.msra.mxu0 0.0
  %3876 = vmatprep.subr.mxu0 0.0
  %3877 = vmatpush2.msra.mxu0 0.0
  %3878 = vmatprep.subr.mxu0 0.0
  %3879 = vmatpush2.msra.mxu0 0.0
  %3880 = vmatprep.subr.mxu0 0.0
  %3881 = vmatpush2.msra.mxu0 0.0
  %3882 = vmatprep.subr.mxu0 0.0
  %3883 = vmatpush2.msra.mxu0 0.0
  %3884 = vmatprep.subr.mxu0 0.0
  %3885 = vmatpush2.msra.mxu0 0.0
  %3886 = vmatprep.subr.mxu0 0.0
  %3887 = vmatpush2.msra.mxu0 0.0
  %3888 = vmatprep.subr.mxu0 0.0
  %3889 = vmatpush2.msra.mxu0 0.0
  %3890 = vmatprep.subr.mxu0 0.0
  %3891 = vmatpush2.msra.mxu0 0.0
  %3892 = vmatprep.subr.mxu0 0.0
  %3893 = vmatpush2.msra.mxu0 0.0
  %3894 = vmatprep.mubr.f32.mxu0 0.0
  %3895 = vmatmul.mubr.f32.gmra.mxu0 %v3828
  %v3896 = vpop.f32.mrf.mxu0
  %v3897 = vadd.f32 0.0, %v3896
  %v3898 = vpop.f32.mrf.mxu0
  %3899 = vdwg.mxu0
  %3901 = vrot.lane.b32.xlu0 %v3700, 32
  %v3902 = vpop.permute.xlu0 %3901
  %3905 = vrot.lane.b32.xlu0 %v3897, 32
  %v3906 = vpop.permute.xlu0 %3905
  %v3908 = vsel %vm106, %v3902, %v3906
  %v3909 = vsel %vm106, %v3902, 0
  %3911 = vmatprep.subr.mxu0 0.0
  %3912 = vmatpush1.msra.mxu0 0.0
  %3913 = vmatprep.subr.mxu0 0.0
  %3914 = vmatpush1.msra.mxu0 0.0
  %3915 = vmatprep.subr.mxu0 0.0
  %3916 = vmatpush1.msra.mxu0 0.0
  %3917 = vmatprep.subr.mxu0 0.0
  %3918 = vmatpush1.msra.mxu0 0.0
  %3919 = vmatprep.subr.mxu0 0.0
  %3920 = vmatpush1.msra.mxu0 0.0
  %3921 = vmatprep.subr.mxu0 0.0
  %3922 = vmatpush1.msra.mxu0 0.0
  %3923 = vmatprep.subr.mxu0 0.0
  %3924 = vmatpush1.msra.mxu0 0.0
  %3925 = vmatprep.subr.mxu0 0.0
  %3926 = vmatpush1.msra.mxu0 0.0
  %3927 = vmatprep.subr.mxu0 0.0
  %3928 = vmatpush1.msra.mxu0 0.0
  %3929 = vmatprep.subr.mxu0 0.0
  %3930 = vmatpush1.msra.mxu0 0.0
  %3931 = vmatprep.subr.mxu0 0.0
  %3932 = vmatpush1.msra.mxu0 0.0
  %3933 = vmatprep.subr.mxu0 0.0
  %3934 = vmatpush1.msra.mxu0 0.0
  %3935 = vmatprep.subr.mxu0 0.0
  %3936 = vmatpush1.msra.mxu0 %v81
  %3937 = vmatprep.subr.mxu0 0.0
  %3938 = vmatpush1.msra.mxu0 %v80
  %3939 = vmatprep.subr.mxu0 0.0
  %3940 = vmatpush1.msra.mxu0 %v79
  %3941 = vmatprep.subr.mxu0 0.0
  %3942 = vmatpush1.msra.mxu0 %v78
  %3943 = vmatprep.subr.mxu0 0.0
  %3944 = vmatpush2.msra.mxu0 0.0
  %3945 = vmatprep.subr.mxu0 0.0
  %3946 = vmatpush2.msra.mxu0 0.0
  %3947 = vmatprep.subr.mxu0 0.0
  %3948 = vmatpush2.msra.mxu0 0.0
  %3949 = vmatprep.subr.mxu0 0.0
  %3950 = vmatpush2.msra.mxu0 0.0
  %3951 = vmatprep.subr.mxu0 0.0
  %3952 = vmatpush2.msra.mxu0 0.0
  %3953 = vmatprep.subr.mxu0 0.0
  %3954 = vmatpush2.msra.mxu0 0.0
  %3955 = vmatprep.subr.mxu0 0.0
  %3956 = vmatpush2.msra.mxu0 0.0
  %3957 = vmatprep.subr.mxu0 0.0
  %3958 = vmatpush2.msra.mxu0 0.0
  %3959 = vmatprep.subr.mxu0 0.0
  %3960 = vmatpush2.msra.mxu0 0.0
  %3961 = vmatprep.subr.mxu0 0.0
  %3962 = vmatpush2.msra.mxu0 0.0
  %3963 = vmatprep.subr.mxu0 0.0
  %3964 = vmatpush2.msra.mxu0 0.0
  %3965 = vmatprep.subr.mxu0 0.0
  %3966 = vmatpush2.msra.mxu0 0.0
  %3967 = vmatprep.subr.mxu0 0.0
  %3968 = vmatpush2.msra.mxu0 0.0
  %3969 = vmatprep.subr.mxu0 0.0
  %3970 = vmatpush2.msra.mxu0 0.0
  %3971 = vmatprep.subr.mxu0 0.0
  %3972 = vmatpush2.msra.mxu0 0.0
  %3973 = vmatprep.subr.mxu0 0.0
  %3974 = vmatpush2.msra.mxu0 0.0
  %3975 = vmatprep.mubr.f32.mxu0 0.0
  %3976 = vmatmul.mubr.f32.gmra.mxu0 %v3909
  %v3977 = vpop.f32.mrf.mxu0
  %v3978 = vadd.f32 0.0, %v3977
  %v3979 = vpop.f32.mrf.mxu0
  %3980 = vdwg.mxu0
  %v3982 = vsel %vm2467, %v2018, 0
  %3984 = vmatprep.subr.mxu0 0.0
  %3985 = vmatpush1.msra.mxu0 0.0
  %3986 = vmatprep.subr.mxu0 0.0
  %3987 = vmatpush1.msra.mxu0 0.0
  %3988 = vmatprep.subr.mxu0 0.0
  %3989 = vmatpush1.msra.mxu0 0.0
  %3990 = vmatprep.subr.mxu0 0.0
  %3991 = vmatpush1.msra.mxu0 0.0
  %3992 = vmatprep.subr.mxu0 0.0
  %3993 = vmatpush1.msra.mxu0 0.0
  %3994 = vmatprep.subr.mxu0 0.0
  %3995 = vmatpush1.msra.mxu0 0.0
  %3996 = vmatprep.subr.mxu0 0.0
  %3997 = vmatpush1.msra.mxu0 0.0
  %3998 = vmatprep.subr.mxu0 0.0
  %3999 = vmatpush1.msra.mxu0 0.0
  %4000 = vmatprep.subr.mxu0 0.0
  %4001 = vmatpush1.msra.mxu0 %v77
  %4002 = vmatprep.subr.mxu0 0.0
  %4003 = vmatpush1.msra.mxu0 %v76
  %4004 = vmatprep.subr.mxu0 0.0
  %4005 = vmatpush1.msra.mxu0 %v75
  %4006 = vmatprep.subr.mxu0 0.0
  %4007 = vmatpush1.msra.mxu0 %v74
  %4008 = vmatprep.subr.mxu0 0.0
  %4009 = vmatpush1.msra.mxu0 %v73
  %4010 = vmatprep.subr.mxu0 0.0
  %4011 = vmatpush1.msra.mxu0 %v72
  %4012 = vmatprep.subr.mxu0 0.0
  %4013 = vmatpush1.msra.mxu0 %v71
  %4014 = vmatprep.subr.mxu0 0.0
  %4015 = vmatpush1.msra.mxu0 %v70
  %4016 = vmatprep.subr.mxu0 0.0
  %4017 = vmatpush2.msra.mxu0 0.0
  %4018 = vmatprep.subr.mxu0 0.0
  %4019 = vmatpush2.msra.mxu0 0.0
  %4020 = vmatprep.subr.mxu0 0.0
  %4021 = vmatpush2.msra.mxu0 0.0
  %4022 = vmatprep.subr.mxu0 0.0
  %4023 = vmatpush2.msra.mxu0 0.0
  %4024 = vmatprep.subr.mxu0 0.0
  %4025 = vmatpush2.msra.mxu0 0.0
  %4026 = vmatprep.subr.mxu0 0.0
  %4027 = vmatpush2.msra.mxu0 0.0
  %4028 = vmatprep.subr.mxu0 0.0
  %4029 = vmatpush2.msra.mxu0 0.0
  %4030 = vmatprep.subr.mxu0 0.0
  %4031 = vmatpush2.msra.mxu0 0.0
  %4032 = vmatprep.subr.mxu0 0.0
  %4033 = vmatpush2.msra.mxu0 0.0
  %4034 = vmatprep.subr.mxu0 0.0
  %4035 = vmatpush2.msra.mxu0 0.0
  %4036 = vmatprep.subr.mxu0 0.0
  %4037 = vmatpush2.msra.mxu0 0.0
  %4038 = vmatprep.subr.mxu0 0.0
  %4039 = vmatpush2.msra.mxu0 0.0
  %4040 = vmatprep.subr.mxu0 0.0
  %4041 = vmatpush2.msra.mxu0 0.0
  %4042 = vmatprep.subr.mxu0 0.0
  %4043 = vmatpush2.msra.mxu0 0.0
  %4044 = vmatprep.subr.mxu0 0.0
  %4045 = vmatpush2.msra.mxu0 0.0
  %4046 = vmatprep.subr.mxu0 0.0
  %4047 = vmatpush2.msra.mxu0 0.0
  %4048 = vmatprep.mubr.f32.mxu0 0.0
  %4049 = vmatmul.mubr.f32.gmra.mxu0 %v3982
  %v4050 = vpop.f32.mrf.mxu0
  %v4051 = vadd.f32 %v3978, %v4050
  %v4052 = vpop.f32.mrf.mxu0
  %4053 = vdwg.mxu0
  %v4054 = vadd.f32 %v4051, %v2545
  %v4055 = vmul.f32 %v4054, 0.5
  %v4056 = vtanh.pop %v4055
  %v4057 = vadd.f32 %v4056, 1.0
  %v4058 = vmul.f32 %v4057, 0.5
  %v4059 = vtanh.pop %v4054
  %v4060 = vmul.f32 %v4058, %v3694
  %4062 = vrot.lane.b32.xlu0 %v4059, 64
  %v4063 = vpop.permute.xlu0 %4062
  %v4065 = vmul.f32 %v4058, %v4063
  %4067 = vrot.lane.b32.xlu0 %v4065, 32
  %v4068 = vpop.permute.xlu0 %4067
  %v4070 = vadd.f32 %v4060, %v4068
  %v4071 = vtanh.pop %v4070
  %4073 = vrot.lane.b32.xlu0 %v4071, 64
  %v4074 = vpop.permute.xlu0 %4073
  %v4076 = vmul.f32 %v4058, %v4074
  %v4077 = vlaneseq
  %v4078 = vshrl.u32 %v4077, 7
  %v4079 = vsub.s32 0, %v4078
  %v4080 = vrot.slane %v4076, %v4079
  %4082 = vrot.lane.b32.xlu0 %v4080, 32
  %v4083 = vpop.permute.xlu0 %4082
  %v4085 = vmul.f32 %v90, %v4083
  %v4086 = vsel %vm295, %v4085, 0.0
  %4087 = vadd.xlane.f32.xlu0 %v4086
  %v4088 = vpop.xlane.xlu0 %4087
  %v4089 = vlaneseq
  %v4090 = vshrl.u32 %v4089, 7
  %v4091 = vsub.s32 1, %v4090
  %v4092 = vrot.slane %v4076, %v4091
  %4094 = vrot.lane.b32.xlu0 %v4092, 32
  %v4095 = vpop.permute.xlu0 %4094
  %v4097 = vmul.f32 %v92, %v4095
  %v4098 = vsel %vm295, %v4097, 0.0
  %4099 = vadd.xlane.f32.xlu0 %v4098
  %v4100 = vpop.xlane.xlu0 %4099
  %v4101 = vsel %vm311, %v4088, %v4100
  %v4102 = vsel %vm313, %v4101, -inf
  %v4103 = vrot.slane %v4102, 4
  %v4104 = vmax.f32 %v4102, %v4103
  %v4105 = vrot.slane %v4104, 2
  %v4106 = vmax.f32 %v4104, %v4105
  %v4107 = vrot.slane %v4106, 1
  %v4108 = vmax.f32 %v4106, %v4107
  %v4109 = vsub.f32 %v4101, %v4108
  %v4110 = vmul.f32 %v4109, 1.442695
  %v4111 = vpow.pop %v4110
  %v4112 = vsel %vm313, %v4111, 0.0
  %v4113 = vrot.slane %v4112, 4
  %v4114 = vadd.f32 %v4112, %v4113
  %v4115 = vrot.slane %v4114, 2
  %v4116 = vadd.f32 %v4114, %v4115
  %v4117 = vrot.slane %v4116, 1
  %v4118 = vadd.f32 %v4116, %v4117
  %v4119 = vrcp.pop %v4118
  %v4120 = vmul.f32 %v4111, %v4119
  %v4122 = vsel %vm333, %v4120, 0
  %4124 = vmatprep.subr.mxu0 0.0
  %4125 = vmatpush1.msra.mxu0 0.0
  %4126 = vmatprep.subr.mxu0 0.0
  %4127 = vmatpush1.msra.mxu0 0.0
  %4128 = vmatprep.subr.mxu0 0.0
  %4129 = vmatpush1.msra.mxu0 0.0
  %4130 = vmatprep.subr.mxu0 0.0
  %4131 = vmatpush1.msra.mxu0 0.0
  %4132 = vmatprep.subr.mxu0 0.0
  %4133 = vmatpush1.msra.mxu0 0.0
  %4134 = vmatprep.subr.mxu0 0.0
  %4135 = vmatpush1.msra.mxu0 0.0
  %4136 = vmatprep.subr.mxu0 0.0
  %4137 = vmatpush1.msra.mxu0 0.0
  %4138 = vmatprep.subr.mxu0 0.0
  %4139 = vmatpush1.msra.mxu0 0.0
  %4140 = vmatprep.subr.mxu0 0.0
  %4141 = vmatpush1.msra.mxu0 0.0
  %4142 = vmatprep.subr.mxu0 0.0
  %4143 = vmatpush1.msra.mxu0 0.0
  %4144 = vmatprep.subr.mxu0 0.0
  %4145 = vmatpush1.msra.mxu0 0.0
  %4146 = vmatprep.subr.mxu0 0.0
  %4147 = vmatpush1.msra.mxu0 0.0
  %4148 = vmatprep.subr.mxu0 0.0
  %4149 = vmatpush1.msra.mxu0 0.0
  %4150 = vmatprep.subr.mxu0 0.0
  %4151 = vmatpush1.msra.mxu0 0.0
  %4152 = vmatprep.subr.mxu0 0.0
  %4153 = vmatpush1.msra.mxu0 0.0
  %4154 = vmatprep.subr.mxu0 0.0
  %4155 = vmatpush1.msra.mxu0 %v339
  %4156 = vmatprep.subr.mxu0 0.0
  %4157 = vmatpush2.msra.mxu0 0.0
  %4158 = vmatprep.subr.mxu0 0.0
  %4159 = vmatpush2.msra.mxu0 0.0
  %4160 = vmatprep.subr.mxu0 0.0
  %4161 = vmatpush2.msra.mxu0 0.0
  %4162 = vmatprep.subr.mxu0 0.0
  %4163 = vmatpush2.msra.mxu0 0.0
  %4164 = vmatprep.subr.mxu0 0.0
  %4165 = vmatpush2.msra.mxu0 0.0
  %4166 = vmatprep.subr.mxu0 0.0
  %4167 = vmatpush2.msra.mxu0 0.0
  %4168 = vmatprep.subr.mxu0 0.0
  %4169 = vmatpush2.msra.mxu0 0.0
  %4170 = vmatprep.subr.mxu0 0.0
  %4171 = vmatpush2.msra.mxu0 0.0
  %4172 = vmatprep.subr.mxu0 0.0
  %4173 = vmatpush2.msra.mxu0 0.0
  %4174 = vmatprep.subr.mxu0 0.0
  %4175 = vmatpush2.msra.mxu0 0.0
  %4176 = vmatprep.subr.mxu0 0.0
  %4177 = vmatpush2.msra.mxu0 0.0
  %4178 = vmatprep.subr.mxu0 0.0
  %4179 = vmatpush2.msra.mxu0 0.0
  %4180 = vmatprep.subr.mxu0 0.0
  %4181 = vmatpush2.msra.mxu0 0.0
  %4182 = vmatprep.subr.mxu0 0.0
  %4183 = vmatpush2.msra.mxu0 0.0
  %4184 = vmatprep.subr.mxu0 0.0
  %4185 = vmatpush2.msra.mxu0 0.0
  %4186 = vmatprep.subr.mxu0 0.0
  %4187 = vmatpush2.msra.mxu0 0.0
  %4188 = vmatprep.mubr.f32.mxu0 0.0
  %4189 = vmatmul.mubr.f32.gmra.mxu0 %v4122
  %v4190 = vpop.f32.mrf.mxu0
  %v4191 = vadd.f32 0.0, %v4190
  %v4192 = vpop.f32.mrf.mxu0
  %4193 = vdwg.mxu0
  %v4194 = vmul.f32 %v93, %v4191
  %v4195 = vsel %vm412, %v4194, 0.0
  %v4196 = vrot.slane %v4195, 4
  %v4197 = vadd.f32 %v4195, %v4196
  %v4198 = vrot.slane %v4197, 2
  %v4199 = vadd.f32 %v4197, %v4198
  %v4200 = vrot.slane %v4199, 1
  %v4201 = vadd.f32 %v4199, %v4200
  %v4202 = vmul.f32 %v95, %v4201
  %v4204 = vsel %vm421, %v4202, 0
  %4206 = vmatprep.subr.mxu0 0.0
  %4207 = vmatpush1.msra.mxu0 0.0
  %4208 = vmatprep.subr.mxu0 0.0
  %4209 = vmatpush1.msra.mxu0 0.0
  %4210 = vmatprep.subr.mxu0 0.0
  %4211 = vmatpush1.msra.mxu0 0.0
  %4212 = vmatprep.subr.mxu0 0.0
  %4213 = vmatpush1.msra.mxu0 0.0
  %4214 = vmatprep.subr.mxu0 0.0
  %4215 = vmatpush1.msra.mxu0 0.0
  %4216 = vmatprep.subr.mxu0 0.0
  %4217 = vmatpush1.msra.mxu0 0.0
  %4218 = vmatprep.subr.mxu0 0.0
  %4219 = vmatpush1.msra.mxu0 0.0
  %4220 = vmatprep.subr.mxu0 0.0
  %4221 = vmatpush1.msra.mxu0 0.0
  %4222 = vmatprep.subr.mxu0 0.0
  %4223 = vmatpush1.msra.mxu0 0.0
  %4224 = vmatprep.subr.mxu0 0.0
  %4225 = vmatpush1.msra.mxu0 0.0
  %4226 = vmatprep.subr.mxu0 0.0
  %4227 = vmatpush1.msra.mxu0 0.0
  %4228 = vmatprep.subr.mxu0 0.0
  %4229 = vmatpush1.msra.mxu0 0.0
  %4230 = vmatprep.subr.mxu0 0.0
  %4231 = vmatpush1.msra.mxu0 0.0
  %4232 = vmatprep.subr.mxu0 0.0
  %4233 = vmatpush1.msra.mxu0 0.0
  %4234 = vmatprep.subr.mxu0 0.0
  %4235 = vmatpush1.msra.mxu0 %v2700
  %4236 = vmatprep.subr.mxu0 0.0
  %4237 = vmatpush1.msra.mxu0 %v85
  %4238 = vmatprep.subr.mxu0 0.0
  %4239 = vmatpush2.msra.mxu0 0.0
  %4240 = vmatprep.subr.mxu0 0.0
  %4241 = vmatpush2.msra.mxu0 0.0
  %4242 = vmatprep.subr.mxu0 0.0
  %4243 = vmatpush2.msra.mxu0 0.0
  %4244 = vmatprep.subr.mxu0 0.0
  %4245 = vmatpush2.msra.mxu0 0.0
  %4246 = vmatprep.subr.mxu0 0.0
  %4247 = vmatpush2.msra.mxu0 0.0
  %4248 = vmatprep.subr.mxu0 0.0
  %4249 = vmatpush2.msra.mxu0 0.0
  %4250 = vmatprep.subr.mxu0 0.0
  %4251 = vmatpush2.msra.mxu0 0.0
  %4252 = vmatprep.subr.mxu0 0.0
  %4253 = vmatpush2.msra.mxu0 0.0
  %4254 = vmatprep.subr.mxu0 0.0
  %4255 = vmatpush2.msra.mxu0 0.0
  %4256 = vmatprep.subr.mxu0 0.0
  %4257 = vmatpush2.msra.mxu0 0.0
  %4258 = vmatprep.subr.mxu0 0.0
  %4259 = vmatpush2.msra.mxu0 0.0
  %4260 = vmatprep.subr.mxu0 0.0
  %4261 = vmatpush2.msra.mxu0 0.0
  %4262 = vmatprep.subr.mxu0 0.0
  %4263 = vmatpush2.msra.mxu0 0.0
  %4264 = vmatprep.subr.mxu0 0.0
  %4265 = vmatpush2.msra.mxu0 0.0
  %4266 = vmatprep.subr.mxu0 0.0
  %4267 = vmatpush2.msra.mxu0 0.0
  %4268 = vmatprep.subr.mxu0 0.0
  %4269 = vmatpush2.msra.mxu0 0.0
  %4270 = vmatprep.mubr.f32.mxu0 0.0
  %4271 = vmatmul.mubr.f32.gmra.mxu0 %v4204
  %v4272 = vpop.f32.mrf.mxu0
  %v4273 = vadd.f32 0.0, %v4272
  %v4274 = vpop.f32.mrf.mxu0
  %4275 = vdwg.mxu0
  %4277 = vrot.lane.b32.xlu0 %v4076, 32
  %v4278 = vpop.permute.xlu0 %4277
  %4281 = vrot.lane.b32.xlu0 %v4273, 32
  %v4282 = vpop.permute.xlu0 %4281
  %v4284 = vsel %vm106, %v4278, %v4282
  %v4285 = vsel %vm106, %v4278, 0
  %4287 = vmatprep.subr.mxu0 0.0
  %4288 = vmatpush1.msra.mxu0 0.0
  %4289 = vmatprep.subr.mxu0 0.0
  %4290 = vmatpush1.msra.mxu0 0.0
  %4291 = vmatprep.subr.mxu0 0.0
  %4292 = vmatpush1.msra.mxu0 0.0
  %4293 = vmatprep.subr.mxu0 0.0
  %4294 = vmatpush1.msra.mxu0 0.0
  %4295 = vmatprep.subr.mxu0 0.0
  %4296 = vmatpush1.msra.mxu0 0.0
  %4297 = vmatprep.subr.mxu0 0.0
  %4298 = vmatpush1.msra.mxu0 0.0
  %4299 = vmatprep.subr.mxu0 0.0
  %4300 = vmatpush1.msra.mxu0 0.0
  %4301 = vmatprep.subr.mxu0 0.0
  %4302 = vmatpush1.msra.mxu0 0.0
  %4303 = vmatprep.subr.mxu0 0.0
  %4304 = vmatpush1.msra.mxu0 0.0
  %4305 = vmatprep.subr.mxu0 0.0
  %4306 = vmatpush1.msra.mxu0 0.0
  %4307 = vmatprep.subr.mxu0 0.0
  %4308 = vmatpush1.msra.mxu0 0.0
  %4309 = vmatprep.subr.mxu0 0.0
  %4310 = vmatpush1.msra.mxu0 0.0
  %4311 = vmatprep.subr.mxu0 0.0
  %4312 = vmatpush1.msra.mxu0 %v81
  %4313 = vmatprep.subr.mxu0 0.0
  %4314 = vmatpush1.msra.mxu0 %v80
  %4315 = vmatprep.subr.mxu0 0.0
  %4316 = vmatpush1.msra.mxu0 %v79
  %4317 = vmatprep.subr.mxu0 0.0
  %4318 = vmatpush1.msra.mxu0 %v78
  %4319 = vmatprep.subr.mxu0 0.0
  %4320 = vmatpush2.msra.mxu0 0.0
  %4321 = vmatprep.subr.mxu0 0.0
  %4322 = vmatpush2.msra.mxu0 0.0
  %4323 = vmatprep.subr.mxu0 0.0
  %4324 = vmatpush2.msra.mxu0 0.0
  %4325 = vmatprep.subr.mxu0 0.0
  %4326 = vmatpush2.msra.mxu0 0.0
  %4327 = vmatprep.subr.mxu0 0.0
  %4328 = vmatpush2.msra.mxu0 0.0
  %4329 = vmatprep.subr.mxu0 0.0
  %4330 = vmatpush2.msra.mxu0 0.0
  %4331 = vmatprep.subr.mxu0 0.0
  %4332 = vmatpush2.msra.mxu0 0.0
  %4333 = vmatprep.subr.mxu0 0.0
  %4334 = vmatpush2.msra.mxu0 0.0
  %4335 = vmatprep.subr.mxu0 0.0
  %4336 = vmatpush2.msra.mxu0 0.0
  %4337 = vmatprep.subr.mxu0 0.0
  %4338 = vmatpush2.msra.mxu0 0.0
  %4339 = vmatprep.subr.mxu0 0.0
  %4340 = vmatpush2.msra.mxu0 0.0
  %4341 = vmatprep.subr.mxu0 0.0
  %4342 = vmatpush2.msra.mxu0 0.0
  %4343 = vmatprep.subr.mxu0 0.0
  %4344 = vmatpush2.msra.mxu0 0.0
  %4345 = vmatprep.subr.mxu0 0.0
  %4346 = vmatpush2.msra.mxu0 0.0
  %4347 = vmatprep.subr.mxu0 0.0
  %4348 = vmatpush2.msra.mxu0 0.0
  %4349 = vmatprep.subr.mxu0 0.0
  %4350 = vmatpush2.msra.mxu0 0.0
  %4351 = vmatprep.mubr.f32.mxu0 0.0
  %4352 = vmatmul.mubr.f32.gmra.mxu0 %v4285
  %v4353 = vpop.f32.mrf.mxu0
  %v4354 = vadd.f32 0.0, %v4353
  %v4355 = vpop.f32.mrf.mxu0
  %4356 = vdwg.mxu0
  %v4358 = vsel %vm2467, %v2396, 0
  %4360 = vmatprep.subr.mxu0 0.0
  %4361 = vmatpush1.msra.mxu0 0.0
  %4362 = vmatprep.subr.mxu0 0.0
  %4363 = vmatpush1.msra.mxu0 0.0
  %4364 = vmatprep.subr.mxu0 0.0
  %4365 = vmatpush1.msra.mxu0 0.0
  %4366 = vmatprep.subr.mxu0 0.0
  %4367 = vmatpush1.msra.mxu0 0.0
  %4368 = vmatprep.subr.mxu0 0.0
  %4369 = vmatpush1.msra.mxu0 0.0
  %4370 = vmatprep.subr.mxu0 0.0
  %4371 = vmatpush1.msra.mxu0 0.0
  %4372 = vmatprep.subr.mxu0 0.0
  %4373 = vmatpush1.msra.mxu0 0.0
  %4374 = vmatprep.subr.mxu0 0.0
  %4375 = vmatpush1.msra.mxu0 0.0
  %4376 = vmatprep.subr.mxu0 0.0
  %4377 = vmatpush1.msra.mxu0 %v77
  %4378 = vmatprep.subr.mxu0 0.0
  %4379 = vmatpush1.msra.mxu0 %v76
  %4380 = vmatprep.subr.mxu0 0.0
  %4381 = vmatpush1.msra.mxu0 %v75
  %4382 = vmatprep.subr.mxu0 0.0
  %4383 = vmatpush1.msra.mxu0 %v74
  %4384 = vmatprep.subr.mxu0 0.0
  %4385 = vmatpush1.msra.mxu0 %v73
  %4386 = vmatprep.subr.mxu0 0.0
  %4387 = vmatpush1.msra.mxu0 %v72
  %4388 = vmatprep.subr.mxu0 0.0
  %4389 = vmatpush1.msra.mxu0 %v71
  %4390 = vmatprep.subr.mxu0 0.0
  %4391 = vmatpush1.msra.mxu0 %v70
  %4392 = vmatprep.subr.mxu0 0.0
  %4393 = vmatpush2.msra.mxu0 0.0
  %4394 = vmatprep.subr.mxu0 0.0
  %4395 = vmatpush2.msra.mxu0 0.0
  %4396 = vmatprep.subr.mxu0 0.0
  %4397 = vmatpush2.msra.mxu0 0.0
  %4398 = vmatprep.subr.mxu0 0.0
  %4399 = vmatpush2.msra.mxu0 0.0
  %4400 = vmatprep.subr.mxu0 0.0
  %4401 = vmatpush2.msra.mxu0 0.0
  %4402 = vmatprep.subr.mxu0 0.0
  %4403 = vmatpush2.msra.mxu0 0.0
  %4404 = vmatprep.subr.mxu0 0.0
  %4405 = vmatpush2.msra.mxu0 0.0
  %4406 = vmatprep.subr.mxu0 0.0
  %4407 = vmatpush2.msra.mxu0 0.0
  %4408 = vmatprep.subr.mxu0 0.0
  %4409 = vmatpush2.msra.mxu0 0.0
  %4410 = vmatprep.subr.mxu0 0.0
  %4411 = vmatpush2.msra.mxu0 0.0
  %4412 = vmatprep.subr.mxu0 0.0
  %4413 = vmatpush2.msra.mxu0 0.0
  %4414 = vmatprep.subr.mxu0 0.0
  %4415 = vmatpush2.msra.mxu0 0.0
  %4416 = vmatprep.subr.mxu0 0.0
  %4417 = vmatpush2.msra.mxu0 0.0
  %4418 = vmatprep.subr.mxu0 0.0
  %4419 = vmatpush2.msra.mxu0 0.0
  %4420 = vmatprep.subr.mxu0 0.0
  %4421 = vmatpush2.msra.mxu0 0.0
  %4422 = vmatprep.subr.mxu0 0.0
  %4423 = vmatpush2.msra.mxu0 0.0
  %4424 = vmatprep.mubr.f32.mxu0 0.0
  %4425 = vmatmul.mubr.f32.gmra.mxu0 %v4358
  %v4426 = vpop.f32.mrf.mxu0
  %v4427 = vadd.f32 %v4354, %v4426
  %v4428 = vpop.f32.mrf.mxu0
  %4429 = vdwg.mxu0
  %v4430 = vadd.f32 %v4427, %v2545
  %v4431 = vmul.f32 %v4430, 0.5
  %v4432 = vtanh.pop %v4431
  %v4433 = vadd.f32 %v4432, 1.0
  %v4434 = vmul.f32 %v4433, 0.5
  %v4435 = vtanh.pop %v4430
  %v4436 = vmul.f32 %v4434, %v4070
  %4438 = vrot.lane.b32.xlu0 %v4435, 64
  %v4439 = vpop.permute.xlu0 %4438
  %v4441 = vmul.f32 %v4434, %v4439
  %4443 = vrot.lane.b32.xlu0 %v4441, 32
  %v4444 = vpop.permute.xlu0 %4443
  %v4446 = vadd.f32 %v4436, %v4444
  %v4447 = vtanh.pop %v4446
  %4449 = vrot.lane.b32.xlu0 %v4447, 64
  %v4450 = vpop.permute.xlu0 %4449
  %v4452 = vmul.f32 %v4434, %v4450
  %v4453 = vlaneseq
  %v4454 = vshrl.u32 %v4453, 7
  %v4455 = vsub.s32 0, %v4454
  %v4456 = vrot.slane %v4452, %v4455
  %4458 = vrot.lane.b32.xlu0 %v4456, 32
  %v4459 = vpop.permute.xlu0 %4458
  %v4461 = vmul.f32 %v90, %v4459
  %v4462 = vsel %vm295, %v4461, 0.0
  %4463 = vadd.xlane.f32.xlu0 %v4462
  %v4464 = vpop.xlane.xlu0 %4463
  %v4465 = vlaneseq
  %v4466 = vshrl.u32 %v4465, 7
  %v4467 = vsub.s32 1, %v4466
  %v4468 = vrot.slane %v4452, %v4467
  %4470 = vrot.lane.b32.xlu0 %v4468, 32
  %v4471 = vpop.permute.xlu0 %4470
  %v4473 = vmul.f32 %v92, %v4471
  %v4474 = vsel %vm295, %v4473, 0.0
  %4475 = vadd.xlane.f32.xlu0 %v4474
  %v4476 = vpop.xlane.xlu0 %4475
  %v4477 = vsel %vm311, %v4464, %v4476
  %v4478 = vsel %vm313, %v4477, -inf
  %v4479 = vrot.slane %v4478, 4
  %v4480 = vmax.f32 %v4478, %v4479
  %v4481 = vrot.slane %v4480, 2
  %v4482 = vmax.f32 %v4480, %v4481
  %v4483 = vrot.slane %v4482, 1
  %v4484 = vmax.f32 %v4482, %v4483
  %v4485 = vsub.f32 %v4477, %v4484
  %v4486 = vmul.f32 %v4485, 1.442695
  %v4487 = vpow.pop %v4486
  %v4488 = vsel %vm313, %v4487, 0.0
  %v4489 = vrot.slane %v4488, 4
  %v4490 = vadd.f32 %v4488, %v4489
  %v4491 = vrot.slane %v4490, 2
  %v4492 = vadd.f32 %v4490, %v4491
  %v4493 = vrot.slane %v4492, 1
  %v4494 = vadd.f32 %v4492, %v4493
  %v4495 = vrcp.pop %v4494
  %v4496 = vmul.f32 %v4487, %v4495
  %v4498 = vsel %vm333, %v4496, 0
  %4500 = vmatprep.subr.mxu0 0.0
  %4501 = vmatpush1.msra.mxu0 0.0
  %4502 = vmatprep.subr.mxu0 0.0
  %4503 = vmatpush1.msra.mxu0 0.0
  %4504 = vmatprep.subr.mxu0 0.0
  %4505 = vmatpush1.msra.mxu0 0.0
  %4506 = vmatprep.subr.mxu0 0.0
  %4507 = vmatpush1.msra.mxu0 0.0
  %4508 = vmatprep.subr.mxu0 0.0
  %4509 = vmatpush1.msra.mxu0 0.0
  %4510 = vmatprep.subr.mxu0 0.0
  %4511 = vmatpush1.msra.mxu0 0.0
  %4512 = vmatprep.subr.mxu0 0.0
  %4513 = vmatpush1.msra.mxu0 0.0
  %4514 = vmatprep.subr.mxu0 0.0
  %4515 = vmatpush1.msra.mxu0 0.0
  %4516 = vmatprep.subr.mxu0 0.0
  %4517 = vmatpush1.msra.mxu0 0.0
  %4518 = vmatprep.subr.mxu0 0.0
  %4519 = vmatpush1.msra.mxu0 0.0
  %4520 = vmatprep.subr.mxu0 0.0
  %4521 = vmatpush1.msra.mxu0 0.0
  %4522 = vmatprep.subr.mxu0 0.0
  %4523 = vmatpush1.msra.mxu0 0.0
  %4524 = vmatprep.subr.mxu0 0.0
  %4525 = vmatpush1.msra.mxu0 0.0
  %4526 = vmatprep.subr.mxu0 0.0
  %4527 = vmatpush1.msra.mxu0 0.0
  %4528 = vmatprep.subr.mxu0 0.0
  %4529 = vmatpush1.msra.mxu0 0.0
  %4530 = vmatprep.subr.mxu0 0.0
  %4531 = vmatpush1.msra.mxu0 %v339
  %4532 = vmatprep.subr.mxu0 0.0
  %4533 = vmatpush2.msra.mxu0 0.0
  %4534 = vmatprep.subr.mxu0 0.0
  %4535 = vmatpush2.msra.mxu0 0.0
  %4536 = vmatprep.subr.mxu0 0.0
  %4537 = vmatpush2.msra.mxu0 0.0
  %4538 = vmatprep.subr.mxu0 0.0
  %4539 = vmatpush2.msra.mxu0 0.0
  %4540 = vmatprep.subr.mxu0 0.0
  %4541 = vmatpush2.msra.mxu0 0.0
  %4542 = vmatprep.subr.mxu0 0.0
  %4543 = vmatpush2.msra.mxu0 0.0
  %4544 = vmatprep.subr.mxu0 0.0
  %4545 = vmatpush2.msra.mxu0 0.0
  %4546 = vmatprep.subr.mxu0 0.0
  %4547 = vmatpush2.msra.mxu0 0.0
  %4548 = vmatprep.subr.mxu0 0.0
  %4549 = vmatpush2.msra.mxu0 0.0
  %4550 = vmatprep.subr.mxu0 0.0
  %4551 = vmatpush2.msra.mxu0 0.0
  %4552 = vmatprep.subr.mxu0 0.0
  %4553 = vmatpush2.msra.mxu0 0.0
  %4554 = vmatprep.subr.mxu0 0.0
  %4555 = vmatpush2.msra.mxu0 0.0
  %4556 = vmatprep.subr.mxu0 0.0
  %4557 = vmatpush2.msra.mxu0 0.0
  %4558 = vmatprep.subr.mxu0 0.0
  %4559 = vmatpush2.msra.mxu0 0.0
  %4560 = vmatprep.subr.mxu0 0.0
  %4561 = vmatpush2.msra.mxu0 0.0
  %4562 = vmatprep.subr.mxu0 0.0
  %4563 = vmatpush2.msra.mxu0 0.0
  %4564 = vmatprep.mubr.f32.mxu0 0.0
  %4565 = vmatmul.mubr.f32.gmra.mxu0 %v4498
  %v4566 = vpop.f32.mrf.mxu0
  %v4567 = vadd.f32 0.0, %v4566
  %v4568 = vpop.f32.mrf.mxu0
  %4569 = vdwg.mxu0
  %v4570 = vmul.f32 %v93, %v4567
  %v4571 = vsel %vm412, %v4570, 0.0
  %v4572 = vrot.slane %v4571, 4
  %v4573 = vadd.f32 %v4571, %v4572
  %v4574 = vrot.slane %v4573, 2
  %v4575 = vadd.f32 %v4573, %v4574
  %v4576 = vrot.slane %v4575, 1
  %v4577 = vadd.f32 %v4575, %v4576
  %v4578 = vmul.f32 %v95, %v4577
  %v4580 = vsel %vm421, %v4578, 0
  %4582 = vmatprep.subr.mxu0 0.0
  %4583 = vmatpush1.msra.mxu0 0.0
  %4584 = vmatprep.subr.mxu0 0.0
  %4585 = vmatpush1.msra.mxu0 0.0
  %4586 = vmatprep.subr.mxu0 0.0
  %4587 = vmatpush1.msra.mxu0 0.0
  %4588 = vmatprep.subr.mxu0 0.0
  %4589 = vmatpush1.msra.mxu0 0.0
  %4590 = vmatprep.subr.mxu0 0.0
  %4591 = vmatpush1.msra.mxu0 0.0
  %4592 = vmatprep.subr.mxu0 0.0
  %4593 = vmatpush1.msra.mxu0 0.0
  %4594 = vmatprep.subr.mxu0 0.0
  %4595 = vmatpush1.msra.mxu0 0.0
  %4596 = vmatprep.subr.mxu0 0.0
  %4597 = vmatpush1.msra.mxu0 0.0
  %4598 = vmatprep.subr.mxu0 0.0
  %4599 = vmatpush1.msra.mxu0 0.0
  %4600 = vmatprep.subr.mxu0 0.0
  %4601 = vmatpush1.msra.mxu0 0.0
  %4602 = vmatprep.subr.mxu0 0.0
  %4603 = vmatpush1.msra.mxu0 0.0
  %4604 = vmatprep.subr.mxu0 0.0
  %4605 = vmatpush1.msra.mxu0 0.0
  %4606 = vmatprep.subr.mxu0 0.0
  %4607 = vmatpush1.msra.mxu0 0.0
  %4608 = vmatprep.subr.mxu0 0.0
  %4609 = vmatpush1.msra.mxu0 0.0
  %4610 = vmatprep.subr.mxu0 0.0
  %4611 = vmatpush1.msra.mxu0 %v2700
  %4612 = vmatprep.subr.mxu0 0.0
  %4613 = vmatpush1.msra.mxu0 %v85
  %4614 = vmatprep.subr.mxu0 0.0
  %4615 = vmatpush2.msra.mxu0 0.0
  %4616 = vmatprep.subr.mxu0 0.0
  %4617 = vmatpush2.msra.mxu0 0.0
  %4618 = vmatprep.subr.mxu0 0.0
  %4619 = vmatpush2.msra.mxu0 0.0
  %4620 = vmatprep.subr.mxu0 0.0
  %4621 = vmatpush2.msra.mxu0 0.0
  %4622 = vmatprep.subr.mxu0 0.0
  %4623 = vmatpush2.msra.mxu0 0.0
  %4624 = vmatprep.subr.mxu0 0.0
  %4625 = vmatpush2.msra.mxu0 0.0
  %4626 = vmatprep.subr.mxu0 0.0
  %4627 = vmatpush2.msra.mxu0 0.0
  %4628 = vmatprep.subr.mxu0 0.0
  %4629 = vmatpush2.msra.mxu0 0.0
  %4630 = vmatprep.subr.mxu0 0.0
  %4631 = vmatpush2.msra.mxu0 0.0
  %4632 = vmatprep.subr.mxu0 0.0
  %4633 = vmatpush2.msra.mxu0 0.0
  %4634 = vmatprep.subr.mxu0 0.0
  %4635 = vmatpush2.msra.mxu0 0.0
  %4636 = vmatprep.subr.mxu0 0.0
  %4637 = vmatpush2.msra.mxu0 0.0
  %4638 = vmatprep.subr.mxu0 0.0
  %4639 = vmatpush2.msra.mxu0 0.0
  %4640 = vmatprep.subr.mxu0 0.0
  %4641 = vmatpush2.msra.mxu0 0.0
  %4642 = vmatprep.subr.mxu0 0.0
  %4643 = vmatpush2.msra.mxu0 0.0
  %4644 = vmatprep.subr.mxu0 0.0
  %4645 = vmatpush2.msra.mxu0 0.0
  %4646 = vmatprep.mubr.f32.mxu0 0.0
  %4647 = vmatmul.mubr.f32.gmra.mxu0 %v4580
  %v4648 = vpop.f32.mrf.mxu0
  %v4649 = vadd.f32 0.0, %v4648
  %v4650 = vpop.f32.mrf.mxu0
  %4651 = vdwg.mxu0
  %4653 = vrot.lane.b32.xlu0 %v4452, 32
  %v4654 = vpop.permute.xlu0 %4653
  %4657 = vrot.lane.b32.xlu0 %v4649, 32
  %v4658 = vpop.permute.xlu0 %4657
  %v4660 = vsel %vm106, %v4654, %v4658
  %v4662 = vrot.slane %v3156, 6
  %v4665 = vrot.slane %v3532, 4
  %v4668 = vrot.slane %v3908, 2
  %v4671 = vrot.slane %v4660, 6
  %v4673 = vsel %vm337, %v2780, %v4662
  %vm4674 = vcmask 1043456
  %v4675 = vsel %vm4674, %v4673, %v4665
  %vm4676 = vcmask 1045504
  %v4677 = vsel %vm4676, %v4675, %v4668
  %v4678 = vsel %vm337, %v4284, %v4671
  %v4680 = vlaneseq
  %v4681 = vshrl.u32 %v4680, 7
  %v4682 = vsub.s32 0, %v4681
  %v4683 = vrot.slane %v104, %v4682
  %v4686 = vsel %vm2467, %v4677, 0
  %v4689 = vsel %vm2467, %v4678, 0
  %4691 = vmatprep.subr.mxu0 0.0
  %4692 = vmatpush1.msra.mxu0 0.0
  %4693 = vmatprep.subr.mxu0 0.0
  %4694 = vmatpush1.msra.mxu0 0.0
  %4695 = vmatprep.subr.mxu0 0.0
  %4696 = vmatpush1.msra.mxu0 0.0
  %4697 = vmatprep.subr.mxu0 0.0
  %4698 = vmatpush1.msra.mxu0 0.0
  %4699 = vmatprep.subr.mxu0 0.0
  %4700 = vmatpush1.msra.mxu0 0.0
  %4701 = vmatprep.subr.mxu0 0.0
  %4702 = vmatpush1.msra.mxu0 0.0
  %4703 = vmatprep.subr.mxu0 0.0
  %4704 = vmatpush1.msra.mxu0 0.0
  %4705 = vmatprep.subr.mxu0 0.0
  %4706 = vmatpush1.msra.mxu0 0.0
  %4707 = vmatprep.subr.mxu0 0.0
  %4708 = vmatpush1.msra.mxu0 %v103
  %4709 = vmatprep.subr.mxu0 0.0
  %4710 = vmatpush1.msra.mxu0 %v102
  %4711 = vmatprep.subr.mxu0 0.0
  %4712 = vmatpush1.msra.mxu0 %v101
  %4713 = vmatprep.subr.mxu0 0.0
  %4714 = vmatpush1.msra.mxu0 %v100
  %4715 = vmatprep.subr.mxu0 0.0
  %4716 = vmatpush1.msra.mxu0 %v99
  %4717 = vmatprep.subr.mxu0 0.0
  %4718 = vmatpush1.msra.mxu0 %v98
  %4719 = vmatprep.subr.mxu0 0.0
  %4720 = vmatpush1.msra.mxu0 %v97
  %4721 = vmatprep.subr.mxu0 0.0
  %4722 = vmatpush1.msra.mxu0 %v96
  %4723 = vmatprep.subr.mxu0 0.0
  %4724 = vmatpush2.msra.mxu0 0.0
  %4725 = vmatprep.subr.mxu0 0.0
  %4726 = vmatpush2.msra.mxu0 0.0
  %4727 = vmatprep.subr.mxu0 0.0
  %4728 = vmatpush2.msra.mxu0 0.0
  %4729 = vmatprep.subr.mxu0 0.0
  %4730 = vmatpush2.msra.mxu0 0.0
  %4731 = vmatprep.subr.mxu0 0.0
  %4732 = vmatpush2.msra.mxu0 0.0
  %4733 = vmatprep.subr.mxu0 0.0
  %4734 = vmatpush2.msra.mxu0 0.0
  %4735 = vmatprep.subr.mxu0 0.0
  %4736 = vmatpush2.msra.mxu0 0.0
  %4737 = vmatprep.subr.mxu0 0.0
  %4738 = vmatpush2.msra.mxu0 0.0
  %4739 = vmatprep.subr.mxu0 0.0
  %4740 = vmatpush2.msra.mxu0 0.0
  %4741 = vmatprep.subr.mxu0 0.0
  %4742 = vmatpush2.msra.mxu0 0.0
  %4743 = vmatprep.subr.mxu0 0.0
  %4744 = vmatpush2.msra.mxu0 0.0
  %4745 = vmatprep.subr.mxu0 0.0
  %4746 = vmatpush2.msra.mxu0 0.0
  %4747 = vmatprep.subr.mxu0 0.0
  %4748 = vmatpush2.msra.mxu0 0.0
  %4749 = vmatprep.subr.mxu0 0.0
  %4750 = vmatpush2.msra.mxu0 0.0
  %4751 = vmatprep.subr.mxu0 0.0
  %4752 = vmatpush2.msra.mxu0 0.0
  %4753 = vmatprep.subr.mxu0 0.0
  %4754 = vmatpush2.msra.mxu0 0.0
  %4755 = vmatprep.mubr.f32.mxu0 0.0
  %4756 = vmatmul.mubr.f32.gmra.mxu0 %v4686
  %v4757 = vpop.f32.mrf.mxu0
  %v4758 = vadd.f32 %v4683, %v4757
  %v4759 = vpop.f32.mrf.mxu0
  %4760 = vmatprep.mubr.f32.mxu0 0.0
  %4761 = vmatmul.mubr.f32.gmra.mxu0 %v4689
  %v4762 = vpop.f32.mrf.mxu0
  %v4763 = vadd.f32 %v4683, %v4762
  %v4764 = vpop.f32.mrf.mxu0
  %4765 = vdwg.mxu0
  %vm4766 = vcmask 105472
  %v4767 = vsel %vm4766, %v4758, -inf
  %4768 = vmax.xlane.f32.xlu0 %v4767
  %v4769 = vpop.xlane.xlu0 %4768
  %vm4770 = vcmask 101376
  %v4771 = vsel %vm4770, %v4763, -inf
  %4772 = vmax.xlane.f32.xlu0 %v4771
  %v4773 = vpop.xlane.xlu0 %4772
  %v4774 = vsub.f32 %v4758, %v4769
  %v4775 = vsub.f32 %v4763, %v4773
  %v4776 = vmul.f32 %v4774, 1.442695
  %v4777 = vpow.pop %v4776
  %v4778 = vmul.f32 %v4775, 1.442695
  %v4779 = vpow.pop %v4778
  %v4780 = vsel %vm4766, %v4777, 0.0
  %4781 = vadd.xlane.f32.xlu0 %v4780
  %v4782 = vpop.xlane.xlu0 %4781
  %v4783 = vsel %vm4770, %v4779, 0.0
  %4784 = vadd.xlane.f32.xlu0 %v4783
  %v4785 = vpop.xlane.xlu0 %4784
  %v4786 = vlog2.pop %v4782
  %v4787 = vmul.f32 %v4786, 0.6931472
  %v4788 = vlog2.pop %v4785
  %v4789 = vmul.f32 %v4788, 0.6931472
  %v4790 = vsub.f32 %v4774, %v4787
  %v4791 = vsub.f32 %v4775, %v4789
  %4792 = vst.msk [vmem:[%s18] sm:$0xff] %vm4766, %v4790
  %4793 = vst.msk [vmem:[%s18 + $0x8] sm:$0xf] %vm4770, %v4791
  // Predicated region
  $region74: #{attention_forward.5} parent=0 // pred_check
    _
  $region75: #{attention_forward.5} parent=0 // pred_check_branch
    %4795 = sbr.rel (0) target = $region77
  $region76: #{attention_forward.5} parent=0 // pred_region
    _
  $region77: #{attention_forward.5} parent=0 // pred_fallthru
    _
  // Predicated region
  $region78: #{attention_forward.5} parent=0 // pred_check
    _
  $region79: #{attention_forward.5} parent=0 // pred_check_branch
    %4797 = sbr.rel (0) target = $region81
  $region80: #{attention_forward.5} parent=0 // pred_region
    _
  $region81: #{attention_forward.5} parent=0 // pred_fallthru
    _

</llo_original>
